<compile_context>
chip_gen: v6e
topology: v6e:2x2x1
jax: 0.10.0
libtpu: 0.0.40
codegen_flags: <defaults>
</compile_context>

<pallas_src>
import math

import numpy as np
import jax
import jax.numpy as jnp
from jax.experimental import pallas as pl
from jax.experimental.pallas import tpu as pltpu


_VMEM = pl.BlockSpec(memory_space=pltpu.MemorySpace.VMEM)


# ------------------------------ fused kernel ------------------------------- #

def _categorical_dqn_kernel(p1_ref, w1_ref, b1_ref,
                            s2_ref, w2_ref, b2_ref,
                            s3_ref, w3_ref, b3_ref,
                            wfc1_ref, bfc1_ref,
                            wfc2_ref, bfc2_ref,
                            o_ref):
    f32 = jnp.float32
    bf16 = jnp.bfloat16

    # ---- conv1: matmul on the prebuilt patch matrix, + bias + ReLU ----
    # p1: (B*oh1*ow1, Cin*8*8) bf16, w1: (Cin*8*8, 32) bf16
    y1 = jnp.dot(p1_ref[...], w1_ref[...], preferred_element_type=f32)
    y1 = jnp.maximum(y1 + b1_ref[...], 0.0)            # (B*64, 32) f32
    y1b = y1.astype(bf16)

    # ---- conv2: 16 kernel positions, each = row-selection matmul + weight matmul
    nk2 = s2_ref.shape[0]                               # 16
    rows2 = s2_ref.shape[1]                             # B*9
    c2_out = w2_ref.shape[2]                            # 64
    acc2 = jnp.zeros((rows2, c2_out), f32)
    for k in range(nk2):
        # one-hot row gather of the shifted conv window (exact in bf16)
        t = jnp.dot(s2_ref[k], y1b, preferred_element_type=f32).astype(bf16)
        acc2 = acc2 + jnp.dot(t, w2_ref[k], preferred_element_type=f32)
    y2 = jnp.maximum(acc2 + b2_ref[...], 0.0)           # (B*9, 64) f32
    y2b = y2.astype(bf16)

    # ---- conv3: 9 kernel positions (output spatial is 1x1) ----
    nk3 = s3_ref.shape[0]                               # 9
    rows3 = s3_ref.shape[1]                             # B
    c3_out = w3_ref.shape[2]                            # 64
    acc3 = jnp.zeros((rows3, c3_out), f32)
    for k in range(nk3):
        t = jnp.dot(s3_ref[k], y2b, preferred_element_type=f32).astype(bf16)
        acc3 = acc3 + jnp.dot(t, w3_ref[k], preferred_element_type=f32)
    y3 = jnp.maximum(acc3 + b3_ref[...], 0.0)           # (B, 64) f32  == flatten

    # ---- fc1 + ReLU ----
    h = jnp.dot(y3.astype(bf16), wfc1_ref[...], preferred_element_type=f32)
    h = jnp.maximum(h + bfc1_ref[...], 0.0)             # (B, 512) f32
    hb = h.astype(bf16)

    # ---- fc2 per action + stable softmax over atoms ----
    n_act = wfc2_ref.shape[0]
    for a in range(n_act):
        logits = jnp.dot(hb, wfc2_ref[a], preferred_element_type=f32)
        logits = logits + bfc2_ref[a]                   # (B, atoms) f32
        m = jnp.max(logits, axis=-1, keepdims=True)
        e = jnp.exp(logits - m)
        s = jnp.sum(e, axis=-1, keepdims=True)
        p = e * pl.reciprocal(s, approx=True)
        o_ref[a] = p.astype(o_ref.dtype)                # output layout (A, B, atoms)


# ------------------------------ XLA-side prep ------------------------------- #

def _im2col_conv1(x_nchw, k=8, stride=4):
    """im2col for the input layer only (tiny, one-shot XLA prep).

    Patch feature order = c*k*k + i*k + j (matches torch weight.view(Cout,-1));
    row order = b*(oh*ow) + oy*ow + ox (matches the in-kernel selection matrices).
    """
    B, C, H, W = x_nchw.shape
    oh = (H - k) // stride + 1
    ow = (W - k) // stride + 1
    cols = []
    for i in range(k):
        for j in range(k):
            cols.append(x_nchw[:, :, i:i + stride * oh:stride,
                               j:j + stride * ow:stride])      # (B, C, oh, ow)
    p = jnp.stack(cols, axis=2)                                # (B, C, k*k, oh, ow)
    p = p.reshape(B, C * k * k, oh, ow)
    p = p.transpose(0, 2, 3, 1).reshape(B * oh * ow, C * k * k)
    return p.astype(jnp.bfloat16)


def build_selectors(batch, oh1, ow1, oh2, ow2):
    """One-hot row-selection matrices for conv2 (4x4, stride 2) and conv3 (3x3,
    stride 1, 1x1 output).  Built once on the host with numpy."""
    n1 = oh1 * ow1
    n2 = oh2 * ow2
    s2 = np.zeros((16, batch * n2, batch * n1), np.float32)
    for ky in range(4):
        for kx in range(4):
            k = ky * 4 + kx
            for b in range(batch):
                for oy in range(oh2):
                    for ox in range(ow2):
                        r_out = b * n2 + oy * ow2 + ox
                        r_in = b * n1 + (2 * oy + ky) * ow1 + (2 * ox + kx)
                        s2[k, r_out, r_in] = 1.0
    s3 = np.zeros((9, batch, batch * n2), np.float32)
    for ky in range(3):
        for kx in range(3):
            k = ky * 3 + kx
            for b in range(batch):
                s3[k, b, b * n2 + ky * ow2 + kx] = 1.0
    return {"s2": jnp.asarray(s2, dtype=jnp.bfloat16),
            "s3": jnp.asarray(s3, dtype=jnp.bfloat16)}


# --------------------------- parameter construction ------------------------- #

def _uniform(key, shape, bound):
    return jax.random.uniform(key, shape, jnp.float32, -bound, bound)


def init_params(key, input_shape, num_actions, atoms):
    """PyTorch-default init, stored directly in kernel-friendly layouts."""
    C, H, W = input_shape

    def osz(s, k, st):
        return (s - k) // st + 1

    oh1, ow1 = osz(H, 8, 4), osz(W, 8, 4)
    oh2, ow2 = osz(oh1, 4, 2), osz(ow1, 4, 2)
    oh3, ow3 = osz(oh2, 3, 1), osz(ow2, 3, 1)
    assert oh3 == 1 and ow3 == 1, "this fused demo assumes a 1x1 conv3 output"
    feat = 64 * oh3 * ow3

    ks = jax.random.split(key, 10)
    bf16 = jnp.bfloat16

    b = 1.0 / math.sqrt(C * 8 * 8)
    w1 = _uniform(ks[0], (32, C, 8, 8), b)
    b1 = _uniform(ks[1], (32,), b)
    b = 1.0 / math.sqrt(32 * 4 * 4)
    w2 = _uniform(ks[2], (64, 32, 4, 4), b)
    b2 = _uniform(ks[3], (64,), b)
    b = 1.0 / math.sqrt(64 * 3 * 3)
    w3 = _uniform(ks[4], (64, 64, 3, 3), b)
    b3 = _uniform(ks[5], (64,), b)
    b = 1.0 / math.sqrt(feat)
    wfc1 = _uniform(ks[6], (feat, 512), b)
    bfc1 = _uniform(ks[7], (512,), b)
    b = 1.0 / math.sqrt(512)
    wfc2 = _uniform(ks[8], (num_actions * atoms, 512), b)   # torch layout (out, in)
    bfc2 = _uniform(ks[9], (num_actions * atoms,), b)

    params = dict(
        # conv1: (Cin*8*8, 32); patch feature index = c*64 + ky*8 + kx
        w1m=w1.reshape(32, C * 8 * 8).T.astype(bf16),
        b1=b1.reshape(1, 32),
        # conv2: stacked per kernel position k = ky*4 + kx -> (16, 32, 64)
        w2s=w2.transpose(2, 3, 1, 0).reshape(16, 32, 64).astype(bf16),
        b2=b2.reshape(1, 64),
        # conv3: stacked per kernel position k = ky*3 + kx -> (9, 64, 64)
        w3s=w3.transpose(2, 3, 1, 0).reshape(9, 64, 64).astype(bf16),
        b3=b3.reshape(1, 64),
        # fc1: (feat, 512)
        wfc1=wfc1.astype(bf16),
        bfc1=bfc1.reshape(1, 512),
        # fc2: per-action (A, 512, atoms); torch column j = a*atoms + z
        wfc2s=wfc2.reshape(num_actions, atoms, 512).transpose(0, 2, 1).astype(bf16),
        bfc2s=bfc2.reshape(num_actions, 1, atoms),
    )
    geom = dict(oh1=oh1, ow1=ow1, oh2=oh2, ow2=ow2)
    return params, geom


# ------------------------------- forward pass ------------------------------- #

def categorical_dqn_forward(params, sel, x):
    """x: (B, C, H, W) float32 NCHW.  Returns (B, num_actions, atoms) probs."""
    B = x.shape[0]
    num_actions, d_fc2, atoms = params["wfc2s"].shape

    p1 = _im2col_conv1(x)                                  # (B*oh1*ow1, Cin*64) bf16

    operands = (p1, params["w1m"], params["b1"],
                sel["s2"], params["w2s"], params["b2"],
                sel["s3"], params["w3s"], params["b3"],
                params["wfc1"], params["bfc1"],
                params["wfc2s"], params["bfc2s"])

    # Advisory cost estimate for XLA's scheduler.
    n1, k1 = p1.shape
    c1_out = params["w1m"].shape[1]
    nk2, r2, _ = sel["s2"].shape
    c2_out = params["w2s"].shape[2]
    nk3, r3, _ = sel["s3"].shape
    c3_out = params["w3s"].shape[2]
    d_fc1 = params["wfc1"].shape[1]
    flops = 2 * (n1 * k1 * c1_out
                 + nk2 * (r2 * n1 * c1_out + r2 * c1_out * c2_out)
                 + nk3 * (r3 * r2 * c2_out + r3 * c2_out * c3_out)
                 + r3 * c3_out * d_fc1
                 + num_actions * r3 * d_fc2 * atoms)
    out_bytes = num_actions * B * atoms * 4
    bytes_accessed = sum(int(a.size) * a.dtype.itemsize for a in operands) + out_bytes
    cost = pl.CostEstimate(flops=int(flops),
                           transcendentals=int(B * num_actions * atoms),
                           bytes_accessed=int(bytes_accessed))

    probs_abz = pl.pallas_call(
        _categorical_dqn_kernel,
        out_shape=jax.ShapeDtypeStruct((num_actions, B, atoms), jnp.float32),
        in_specs=[_VMEM] * len(operands),
        out_specs=_VMEM,
        cost_estimate=cost,
    )(*operands)

    # (A, B, atoms) -> (B, A, atoms); trivially small.
    return jnp.transpose(probs_abz, (1, 0, 2))


# ----------------------------------- main ------------------------------------ #

if __name__ == "__main__":
    key = jax.random.PRNGKey(0)
    k_param, k_x = jax.random.split(key)

    # Conv stack spatial path: 36 -> 8 -> 3 -> 1.
    input_shape = (4, 36, 36)
    num_actions = 6
    atoms = 51
    batch = 2

    params, geom = init_params(k_param, input_shape, num_actions, atoms)
    sel = build_selectors(batch, **geom)
    x = jax.random.normal(k_x, (batch,) + input_shape, dtype=jnp.float32)

    fwd = jax.jit(categorical_dqn_forward)
    out = jax.block_until_ready(fwd(params, sel, x))

    assert out.shape == (batch, num_actions, atoms)
    # each (batch, action) distribution must sum to ~1
    sums = jnp.sum(out, axis=-1)
    assert bool(jnp.allclose(sums, 1.0, atol=1e-2)), sums
    assert bool(jnp.all(out >= 0.0))

    print("KERNEL_OK")
</pallas_src>

<mosaic_0001>
module attributes {stable_mosaic.version = 11 : i64} {
  func.func @_categorical_dqn_kernel(%arg0: memref<128x256xbf16, #tpu.memory_space<vmem>>, %arg1: memref<256x32xbf16, #tpu.memory_space<vmem>>, %arg2: memref<1x32xf32, #tpu.memory_space<vmem>>, %arg3: memref<16x18x128xbf16, #tpu.memory_space<vmem>>, %arg4: memref<16x32x64xbf16, #tpu.memory_space<vmem>>, %arg5: memref<1x64xf32, #tpu.memory_space<vmem>>, %arg6: memref<9x2x18xbf16, #tpu.memory_space<vmem>>, %arg7: memref<9x64x64xbf16, #tpu.memory_space<vmem>>, %arg8: memref<1x64xf32, #tpu.memory_space<vmem>>, %arg9: memref<64x512xbf16, #tpu.memory_space<vmem>>, %arg10: memref<1x512xf32, #tpu.memory_space<vmem>>, %arg11: memref<6x512x51xbf16, #tpu.memory_space<vmem>>, %arg12: memref<6x1x51xf32, #tpu.memory_space<vmem>>, %arg13: memref<6x2x51xf32, #tpu.memory_space<vmem>>) attributes {dimension_semantics = [], scalar_prefetch = 0 : i64, scratch_operands = 0 : i64, tpu.core_type = #tpu.core_type<tc>} {
    %c0 = arith.constant 0 : index
    %c0_0 = arith.constant 0 : index
    %0 = vector.load %arg0[%c0, %c0_0] : memref<128x256xbf16, #tpu.memory_space<vmem>>, vector<128x256xbf16>
    %c0_1 = arith.constant 0 : index
    %c0_2 = arith.constant 0 : index
    %1 = vector.load %arg1[%c0_1, %c0_2] : memref<256x32xbf16, #tpu.memory_space<vmem>>, vector<256x32xbf16>
    %cst = arith.constant dense<0.000000e+00> : vector<128x32xf32>
    %2 = tpu.matmul %0, %1, %cst {dimension_numbers = #tpu.dot_dimension_numbers<[1], [0], [0], [1], [0, 0, 1, 1], [], []>} : vector<128x256xbf16>, vector<256x32xbf16>, vector<128x32xf32> -> vector<128x32xf32>
    %c0_3 = arith.constant 0 : index
    %c0_4 = arith.constant 0 : index
    %3 = vector.load %arg2[%c0_3, %c0_4] : memref<1x32xf32, #tpu.memory_space<vmem>>, vector<1x32xf32>
    %4 = vector.broadcast %3 : vector<1x32xf32> to vector<128x32xf32>
    %5 = arith.addf %2, %4 : vector<128x32xf32>
    %cst_5 = arith.constant 0.000000e+00 : f32
    %6 = vector.broadcast %cst_5 : f32 to vector<128x32xf32>
    %7 = arith.maximumf %5, %6 : vector<128x32xf32>
    %8 = arith.truncf %7 : vector<128x32xf32> to vector<128x32xbf16>
    %cst_6 = arith.constant 0.000000e+00 : f32
    %9 = vector.broadcast %cst_6 : f32 to vector<18x64xf32>
    %c0_7 = arith.constant 0 : index
    %c0_8 = arith.constant 0 : index
    %c0_9 = arith.constant 0 : index
    %10 = vector.load %arg3[%c0_7, %c0_8, %c0_9] : memref<16x18x128xbf16, #tpu.memory_space<vmem>>, vector<1x18x128xbf16>
    %11 = vector.shape_cast %10 : vector<1x18x128xbf16> to vector<18x128xbf16>
    %cst_10 = arith.constant dense<0.000000e+00> : vector<18x32xf32>
    %12 = tpu.matmul %11, %8, %cst_10 {dimension_numbers = #tpu.dot_dimension_numbers<[1], [0], [0], [1], [0, 0, 1, 1], [], []>} : vector<18x128xbf16>, vector<128x32xbf16>, vector<18x32xf32> -> vector<18x32xf32>
    %13 = arith.truncf %12 : vector<18x32xf32> to vector<18x32xbf16>
    %c0_11 = arith.constant 0 : index
    %c0_12 = arith.constant 0 : index
    %c0_13 = arith.constant 0 : index
    %14 = vector.load %arg4[%c0_11, %c0_12, %c0_13] : memref<16x32x64xbf16, #tpu.memory_space<vmem>>, vector<1x32x64xbf16>
    %15 = vector.shape_cast %14 : vector<1x32x64xbf16> to vector<32x64xbf16>
    %cst_14 = arith.constant dense<0.000000e+00> : vector<18x64xf32>
    %16 = tpu.matmul %13, %15, %cst_14 {dimension_numbers = #tpu.dot_dimension_numbers<[1], [0], [0], [1], [0, 0, 1, 1], [], []>} : vector<18x32xbf16>, vector<32x64xbf16>, vector<18x64xf32> -> vector<18x64xf32>
    %17 = arith.addf %9, %16 : vector<18x64xf32>
    %c1 = arith.constant 1 : index
    %c0_15 = arith.constant 0 : index
    %c0_16 = arith.constant 0 : index
    %18 = vector.load %arg3[%c1, %c0_15, %c0_16] : memref<16x18x128xbf16, #tpu.memory_space<vmem>>, vector<1x18x128xbf16>
    %19 = vector.shape_cast %18 : vector<1x18x128xbf16> to vector<18x128xbf16>
    %cst_17 = arith.constant dense<0.000000e+00> : vector<18x32xf32>
    %20 = tpu.matmul %19, %8, %cst_17 {dimension_numbers = #tpu.dot_dimension_numbers<[1], [0], [0], [1], [0, 0, 1, 1], [], []>} : vector<18x128xbf16>, vector<128x32xbf16>, vector<18x32xf32> -> vector<18x32xf32>
    %21 = arith.truncf %20 : vector<18x32xf32> to vector<18x32xbf16>
    %c1_18 = arith.constant 1 : index
    %c0_19 = arith.constant 0 : index
    %c0_20 = arith.constant 0 : index
    %22 = vector.load %arg4[%c1_18, %c0_19, %c0_20] : memref<16x32x64xbf16, #tpu.memory_space<vmem>>, vector<1x32x64xbf16>
    %23 = vector.shape_cast %22 : vector<1x32x64xbf16> to vector<32x64xbf16>
    %cst_21 = arith.constant dense<0.000000e+00> : vector<18x64xf32>
    %24 = tpu.matmul %21, %23, %cst_21 {dimension_numbers = #tpu.dot_dimension_numbers<[1], [0], [0], [1], [0, 0, 1, 1], [], []>} : vector<18x32xbf16>, vector<32x64xbf16>, vector<18x64xf32> -> vector<18x64xf32>
    %25 = arith.addf %17, %24 : vector<18x64xf32>
    %c2 = arith.constant 2 : index
    %c0_22 = arith.constant 0 : index
    %c0_23 = arith.constant 0 : index
    %26 = vector.load %arg3[%c2, %c0_22, %c0_23] : memref<16x18x128xbf16, #tpu.memory_space<vmem>>, vector<1x18x128xbf16>
    %27 = vector.shape_cast %26 : vector<1x18x128xbf16> to vector<18x128xbf16>
    %cst_24 = arith.constant dense<0.000000e+00> : vector<18x32xf32>
    %28 = tpu.matmul %27, %8, %cst_24 {dimension_numbers = #tpu.dot_dimension_numbers<[1], [0], [0], [1], [0, 0, 1, 1], [], []>} : vector<18x128xbf16>, vector<128x32xbf16>, vector<18x32xf32> -> vector<18x32xf32>
    %29 = arith.truncf %28 : vector<18x32xf32> to vector<18x32xbf16>
    %c2_25 = arith.constant 2 : index
    %c0_26 = arith.constant 0 : index
    %c0_27 = arith.constant 0 : index
    %30 = vector.load %arg4[%c2_25, %c0_26, %c0_27] : memref<16x32x64xbf16, #tpu.memory_space<vmem>>, vector<1x32x64xbf16>
    %31 = vector.shape_cast %30 : vector<1x32x64xbf16> to vector<32x64xbf16>
    %cst_28 = arith.constant dense<0.000000e+00> : vector<18x64xf32>
    %32 = tpu.matmul %29, %31, %cst_28 {dimension_numbers = #tpu.dot_dimension_numbers<[1], [0], [0], [1], [0, 0, 1, 1], [], []>} : vector<18x32xbf16>, vector<32x64xbf16>, vector<18x64xf32> -> vector<18x64xf32>
    %33 = arith.addf %25, %32 : vector<18x64xf32>
    %c3 = arith.constant 3 : index
    %c0_29 = arith.constant 0 : index
    %c0_30 = arith.constant 0 : index
    %34 = vector.load %arg3[%c3, %c0_29, %c0_30] : memref<16x18x128xbf16, #tpu.memory_space<vmem>>, vector<1x18x128xbf16>
    %35 = vector.shape_cast %34 : vector<1x18x128xbf16> to vector<18x128xbf16>
    %cst_31 = arith.constant dense<0.000000e+00> : vector<18x32xf32>
    %36 = tpu.matmul %35, %8, %cst_31 {dimension_numbers = #tpu.dot_dimension_numbers<[1], [0], [0], [1], [0, 0, 1, 1], [], []>} : vector<18x128xbf16>, vector<128x32xbf16>, vector<18x32xf32> -> vector<18x32xf32>
    %37 = arith.truncf %36 : vector<18x32xf32> to vector<18x32xbf16>
    %c3_32 = arith.constant 3 : index
    %c0_33 = arith.constant 0 : index
    %c0_34 = arith.constant 0 : index
    %38 = vector.load %arg4[%c3_32, %c0_33, %c0_34] : memref<16x32x64xbf16, #tpu.memory_space<vmem>>, vector<1x32x64xbf16>
    %39 = vector.shape_cast %38 : vector<1x32x64xbf16> to vector<32x64xbf16>
    %cst_35 = arith.constant dense<0.000000e+00> : vector<18x64xf32>
    %40 = tpu.matmul %37, %39, %cst_35 {dimension_numbers = #tpu.dot_dimension_numbers<[1], [0], [0], [1], [0, 0, 1, 1], [], []>} : vector<18x32xbf16>, vector<32x64xbf16>, vector<18x64xf32> -> vector<18x64xf32>
    %41 = arith.addf %33, %40 : vector<18x64xf32>
    %c4 = arith.constant 4 : index
    %c0_36 = arith.constant 0 : index
    %c0_37 = arith.constant 0 : index
    %42 = vector.load %arg3[%c4, %c0_36, %c0_37] : memref<16x18x128xbf16, #tpu.memory_space<vmem>>, vector<1x18x128xbf16>
    %43 = vector.shape_cast %42 : vector<1x18x128xbf16> to vector<18x128xbf16>
    %cst_38 = arith.constant dense<0.000000e+00> : vector<18x32xf32>
    %44 = tpu.matmul %43, %8, %cst_38 {dimension_numbers = #tpu.dot_dimension_numbers<[1], [0], [0], [1], [0, 0, 1, 1], [], []>} : vector<18x128xbf16>, vector<128x32xbf16>, vector<18x32xf32> -> vector<18x32xf32>
    %45 = arith.truncf %44 : vector<18x32xf32> to vector<18x32xbf16>
    %c4_39 = arith.constant 4 : index
    %c0_40 = arith.constant 0 : index
    %c0_41 = arith.constant 0 : index
    %46 = vector.load %arg4[%c4_39, %c0_40, %c0_41] : memref<16x32x64xbf16, #tpu.memory_space<vmem>>, vector<1x32x64xbf16>
    %47 = vector.shape_cast %46 : vector<1x32x64xbf16> to vector<32x64xbf16>
    %cst_42 = arith.constant dense<0.000000e+00> : vector<18x64xf32>
    %48 = tpu.matmul %45, %47, %cst_42 {dimension_numbers = #tpu.dot_dimension_numbers<[1], [0], [0], [1], [0, 0, 1, 1], [], []>} : vector<18x32xbf16>, vector<32x64xbf16>, vector<18x64xf32> -> vector<18x64xf32>
    %49 = arith.addf %41, %48 : vector<18x64xf32>
    %c5 = arith.constant 5 : index
    %c0_43 = arith.constant 0 : index
    %c0_44 = arith.constant 0 : index
    %50 = vector.load %arg3[%c5, %c0_43, %c0_44] : memref<16x18x128xbf16, #tpu.memory_space<vmem>>, vector<1x18x128xbf16>
    %51 = vector.shape_cast %50 : vector<1x18x128xbf16> to vector<18x128xbf16>
    %cst_45 = arith.constant dense<0.000000e+00> : vector<18x32xf32>
    %52 = tpu.matmul %51, %8, %cst_45 {dimension_numbers = #tpu.dot_dimension_numbers<[1], [0], [0], [1], [0, 0, 1, 1], [], []>} : vector<18x128xbf16>, vector<128x32xbf16>, vector<18x32xf32> -> vector<18x32xf32>
    %53 = arith.truncf %52 : vector<18x32xf32> to vector<18x32xbf16>
    %c5_46 = arith.constant 5 : index
    %c0_47 = arith.constant 0 : index
    %c0_48 = arith.constant 0 : index
    %54 = vector.load %arg4[%c5_46, %c0_47, %c0_48] : memref<16x32x64xbf16, #tpu.memory_space<vmem>>, vector<1x32x64xbf16>
    %55 = vector.shape_cast %54 : vector<1x32x64xbf16> to vector<32x64xbf16>
    %cst_49 = arith.constant dense<0.000000e+00> : vector<18x64xf32>
    %56 = tpu.matmul %53, %55, %cst_49 {dimension_numbers = #tpu.dot_dimension_numbers<[1], [0], [0], [1], [0, 0, 1, 1], [], []>} : vector<18x32xbf16>, vector<32x64xbf16>, vector<18x64xf32> -> vector<18x64xf32>
    %57 = arith.addf %49, %56 : vector<18x64xf32>
    %c6 = arith.constant 6 : index
    %c0_50 = arith.constant 0 : index
    %c0_51 = arith.constant 0 : index
    %58 = vector.load %arg3[%c6, %c0_50, %c0_51] : memref<16x18x128xbf16, #tpu.memory_space<vmem>>, vector<1x18x128xbf16>
    %59 = vector.shape_cast %58 : vector<1x18x128xbf16> to vector<18x128xbf16>
    %cst_52 = arith.constant dense<0.000000e+00> : vector<18x32xf32>
    %60 = tpu.matmul %59, %8, %cst_52 {dimension_numbers = #tpu.dot_dimension_numbers<[1], [0], [0], [1], [0, 0, 1, 1], [], []>} : vector<18x128xbf16>, vector<128x32xbf16>, vector<18x32xf32> -> vector<18x32xf32>
    %61 = arith.truncf %60 : vector<18x32xf32> to vector<18x32xbf16>
    %c6_53 = arith.constant 6 : index
    %c0_54 = arith.constant 0 : index
    %c0_55 = arith.constant 0 : index
    %62 = vector.load %arg4[%c6_53, %c0_54, %c0_55] : memref<16x32x64xbf16, #tpu.memory_space<vmem>>, vector<1x32x64xbf16>
    %63 = vector.shape_cast %62 : vector<1x32x64xbf16> to vector<32x64xbf16>
    %cst_56 = arith.constant dense<0.000000e+00> : vector<18x64xf32>
    %64 = tpu.matmul %61, %63, %cst_56 {dimension_numbers = #tpu.dot_dimension_numbers<[1], [0], [0], [1], [0, 0, 1, 1], [], []>} : vector<18x32xbf16>, vector<32x64xbf16>, vector<18x64xf32> -> vector<18x64xf32>
    %65 = arith.addf %57, %64 : vector<18x64xf32>
    %c7 = arith.constant 7 : index
    %c0_57 = arith.constant 0 : index
    %c0_58 = arith.constant 0 : index
    %66 = vector.load %arg3[%c7, %c0_57, %c0_58] : memref<16x18x128xbf16, #tpu.memory_space<vmem>>, vector<1x18x128xbf16>
    %67 = vector.shape_cast %66 : vector<1x18x128xbf16> to vector<18x128xbf16>
    %cst_59 = arith.constant dense<0.000000e+00> : vector<18x32xf32>
    %68 = tpu.matmul %67, %8, %cst_59 {dimension_numbers = #tpu.dot_dimension_numbers<[1], [0], [0], [1], [0, 0, 1, 1], [], []>} : vector<18x128xbf16>, vector<128x32xbf16>, vector<18x32xf32> -> vector<18x32xf32>
    %69 = arith.truncf %68 : vector<18x32xf32> to vector<18x32xbf16>
    %c7_60 = arith.constant 7 : index
    %c0_61 = arith.constant 0 : index
    %c0_62 = arith.constant 0 : index
    %70 = vector.load %arg4[%c7_60, %c0_61, %c0_62] : memref<16x32x64xbf16, #tpu.memory_space<vmem>>, vector<1x32x64xbf16>
    %71 = vector.shape_cast %70 : vector<1x32x64xbf16> to vector<32x64xbf16>
    %cst_63 = arith.constant dense<0.000000e+00> : vector<18x64xf32>
    %72 = tpu.matmul %69, %71, %cst_63 {dimension_numbers = #tpu.dot_dimension_numbers<[1], [0], [0], [1], [0, 0, 1, 1], [], []>} : vector<18x32xbf16>, vector<32x64xbf16>, vector<18x64xf32> -> vector<18x64xf32>
    %73 = arith.addf %65, %72 : vector<18x64xf32>
    %c8 = arith.constant 8 : index
    %c0_64 = arith.constant 0 : index
    %c0_65 = arith.constant 0 : index
    %74 = vector.load %arg3[%c8, %c0_64, %c0_65] : memref<16x18x128xbf16, #tpu.memory_space<vmem>>, vector<1x18x128xbf16>
    %75 = vector.shape_cast %74 : vector<1x18x128xbf16> to vector<18x128xbf16>
    %cst_66 = arith.constant dense<0.000000e+00> : vector<18x32xf32>
    %76 = tpu.matmul %75, %8, %cst_66 {dimension_numbers = #tpu.dot_dimension_numbers<[1], [0], [0], [1], [0, 0, 1, 1], [], []>} : vector<18x128xbf16>, vector<128x32xbf16>, vector<18x32xf32> -> vector<18x32xf32>
    %77 = arith.truncf %76 : vector<18x32xf32> to vector<18x32xbf16>
    %c8_67 = arith.constant 8 : index
    %c0_68 = arith.constant 0 : index
    %c0_69 = arith.constant 0 : index
    %78 = vector.load %arg4[%c8_67, %c0_68, %c0_69] : memref<16x32x64xbf16, #tpu.memory_space<vmem>>, vector<1x32x64xbf16>
    %79 = vector.shape_cast %78 : vector<1x32x64xbf16> to vector<32x64xbf16>
    %cst_70 = arith.constant dense<0.000000e+00> : vector<18x64xf32>
    %80 = tpu.matmul %77, %79, %cst_70 {dimension_numbers = #tpu.dot_dimension_numbers<[1], [0], [0], [1], [0, 0, 1, 1], [], []>} : vector<18x32xbf16>, vector<32x64xbf16>, vector<18x64xf32> -> vector<18x64xf32>
    %81 = arith.addf %73, %80 : vector<18x64xf32>
    %c9 = arith.constant 9 : index
    %c0_71 = arith.constant 0 : index
    %c0_72 = arith.constant 0 : index
    %82 = vector.load %arg3[%c9, %c0_71, %c0_72] : memref<16x18x128xbf16, #tpu.memory_space<vmem>>, vector<1x18x128xbf16>
    %83 = vector.shape_cast %82 : vector<1x18x128xbf16> to vector<18x128xbf16>
    %cst_73 = arith.constant dense<0.000000e+00> : vector<18x32xf32>
    %84 = tpu.matmul %83, %8, %cst_73 {dimension_numbers = #tpu.dot_dimension_numbers<[1], [0], [0], [1], [0, 0, 1, 1], [], []>} : vector<18x128xbf16>, vector<128x32xbf16>, vector<18x32xf32> -> vector<18x32xf32>
    %85 = arith.truncf %84 : vector<18x32xf32> to vector<18x32xbf16>
    %c9_74 = arith.constant 9 : index
    %c0_75 = arith.constant 0 : index
    %c0_76 = arith.constant 0 : index
    %86 = vector.load %arg4[%c9_74, %c0_75, %c0_76] : memref<16x32x64xbf16, #tpu.memory_space<vmem>>, vector<1x32x64xbf16>
    %87 = vector.shape_cast %86 : vector<1x32x64xbf16> to vector<32x64xbf16>
    %cst_77 = arith.constant dense<0.000000e+00> : vector<18x64xf32>
    %88 = tpu.matmul %85, %87, %cst_77 {dimension_numbers = #tpu.dot_dimension_numbers<[1], [0], [0], [1], [0, 0, 1, 1], [], []>} : vector<18x32xbf16>, vector<32x64xbf16>, vector<18x64xf32> -> vector<18x64xf32>
    %89 = arith.addf %81, %88 : vector<18x64xf32>
    %c10 = arith.constant 10 : index
    %c0_78 = arith.constant 0 : index
    %c0_79 = arith.constant 0 : index
    %90 = vector.load %arg3[%c10, %c0_78, %c0_79] : memref<16x18x128xbf16, #tpu.memory_space<vmem>>, vector<1x18x128xbf16>
    %91 = vector.shape_cast %90 : vector<1x18x128xbf16> to vector<18x128xbf16>
    %cst_80 = arith.constant dense<0.000000e+00> : vector<18x32xf32>
    %92 = tpu.matmul %91, %8, %cst_80 {dimension_numbers = #tpu.dot_dimension_numbers<[1], [0], [0], [1], [0, 0, 1, 1], [], []>} : vector<18x128xbf16>, vector<128x32xbf16>, vector<18x32xf32> -> vector<18x32xf32>
    %93 = arith.truncf %92 : vector<18x32xf32> to vector<18x32xbf16>
    %c10_81 = arith.constant 10 : index
    %c0_82 = arith.constant 0 : index
    %c0_83 = arith.constant 0 : index
    %94 = vector.load %arg4[%c10_81, %c0_82, %c0_83] : memref<16x32x64xbf16, #tpu.memory_space<vmem>>, vector<1x32x64xbf16>
    %95 = vector.shape_cast %94 : vector<1x32x64xbf16> to vector<32x64xbf16>
    %cst_84 = arith.constant dense<0.000000e+00> : vector<18x64xf32>
    %96 = tpu.matmul %93, %95, %cst_84 {dimension_numbers = #tpu.dot_dimension_numbers<[1], [0], [0], [1], [0, 0, 1, 1], [], []>} : vector<18x32xbf16>, vector<32x64xbf16>, vector<18x64xf32> -> vector<18x64xf32>
    %97 = arith.addf %89, %96 : vector<18x64xf32>
    %c11 = arith.constant 11 : index
    %c0_85 = arith.constant 0 : index
    %c0_86 = arith.constant 0 : index
    %98 = vector.load %arg3[%c11, %c0_85, %c0_86] : memref<16x18x128xbf16, #tpu.memory_space<vmem>>, vector<1x18x128xbf16>
    %99 = vector.shape_cast %98 : vector<1x18x128xbf16> to vector<18x128xbf16>
    %cst_87 = arith.constant dense<0.000000e+00> : vector<18x32xf32>
    %100 = tpu.matmul %99, %8, %cst_87 {dimension_numbers = #tpu.dot_dimension_numbers<[1], [0], [0], [1], [0, 0, 1, 1], [], []>} : vector<18x128xbf16>, vector<128x32xbf16>, vector<18x32xf32> -> vector<18x32xf32>
    %101 = arith.truncf %100 : vector<18x32xf32> to vector<18x32xbf16>
    %c11_88 = arith.constant 11 : index
    %c0_89 = arith.constant 0 : index
    %c0_90 = arith.constant 0 : index
    %102 = vector.load %arg4[%c11_88, %c0_89, %c0_90] : memref<16x32x64xbf16, #tpu.memory_space<vmem>>, vector<1x32x64xbf16>
    %103 = vector.shape_cast %102 : vector<1x32x64xbf16> to vector<32x64xbf16>
    %cst_91 = arith.constant dense<0.000000e+00> : vector<18x64xf32>
    %104 = tpu.matmul %101, %103, %cst_91 {dimension_numbers = #tpu.dot_dimension_numbers<[1], [0], [0], [1], [0, 0, 1, 1], [], []>} : vector<18x32xbf16>, vector<32x64xbf16>, vector<18x64xf32> -> vector<18x64xf32>
    %105 = arith.addf %97, %104 : vector<18x64xf32>
    %c12 = arith.constant 12 : index
    %c0_92 = arith.constant 0 : index
    %c0_93 = arith.constant 0 : index
    %106 = vector.load %arg3[%c12, %c0_92, %c0_93] : memref<16x18x128xbf16, #tpu.memory_space<vmem>>, vector<1x18x128xbf16>
    %107 = vector.shape_cast %106 : vector<1x18x128xbf16> to vector<18x128xbf16>
    %cst_94 = arith.constant dense<0.000000e+00> : vector<18x32xf32>
    %108 = tpu.matmul %107, %8, %cst_94 {dimension_numbers = #tpu.dot_dimension_numbers<[1], [0], [0], [1], [0, 0, 1, 1], [], []>} : vector<18x128xbf16>, vector<128x32xbf16>, vector<18x32xf32> -> vector<18x32xf32>
    %109 = arith.truncf %108 : vector<18x32xf32> to vector<18x32xbf16>
    %c12_95 = arith.constant 12 : index
    %c0_96 = arith.constant 0 : index
    %c0_97 = arith.constant 0 : index
    %110 = vector.load %arg4[%c12_95, %c0_96, %c0_97] : memref<16x32x64xbf16, #tpu.memory_space<vmem>>, vector<1x32x64xbf16>
    %111 = vector.shape_cast %110 : vector<1x32x64xbf16> to vector<32x64xbf16>
    %cst_98 = arith.constant dense<0.000000e+00> : vector<18x64xf32>
    %112 = tpu.matmul %109, %111, %cst_98 {dimension_numbers = #tpu.dot_dimension_numbers<[1], [0], [0], [1], [0, 0, 1, 1], [], []>} : vector<18x32xbf16>, vector<32x64xbf16>, vector<18x64xf32> -> vector<18x64xf32>
    %113 = arith.addf %105, %112 : vector<18x64xf32>
    %c13 = arith.constant 13 : index
    %c0_99 = arith.constant 0 : index
    %c0_100 = arith.constant 0 : index
    %114 = vector.load %arg3[%c13, %c0_99, %c0_100] : memref<16x18x128xbf16, #tpu.memory_space<vmem>>, vector<1x18x128xbf16>
    %115 = vector.shape_cast %114 : vector<1x18x128xbf16> to vector<18x128xbf16>
    %cst_101 = arith.constant dense<0.000000e+00> : vector<18x32xf32>
    %116 = tpu.matmul %115, %8, %cst_101 {dimension_numbers = #tpu.dot_dimension_numbers<[1], [0], [0], [1], [0, 0, 1, 1], [], []>} : vector<18x128xbf16>, vector<128x32xbf16>, vector<18x32xf32> -> vector<18x32xf32>
    %117 = arith.truncf %116 : vector<18x32xf32> to vector<18x32xbf16>
    %c13_102 = arith.constant 13 : index
    %c0_103 = arith.constant 0 : index
    %c0_104 = arith.constant 0 : index
    %118 = vector.load %arg4[%c13_102, %c0_103, %c0_104] : memref<16x32x64xbf16, #tpu.memory_space<vmem>>, vector<1x32x64xbf16>
    %119 = vector.shape_cast %118 : vector<1x32x64xbf16> to vector<32x64xbf16>
    %cst_105 = arith.constant dense<0.000000e+00> : vector<18x64xf32>
    %120 = tpu.matmul %117, %119, %cst_105 {dimension_numbers = #tpu.dot_dimension_numbers<[1], [0], [0], [1], [0, 0, 1, 1], [], []>} : vector<18x32xbf16>, vector<32x64xbf16>, vector<18x64xf32> -> vector<18x64xf32>
    %121 = arith.addf %113, %120 : vector<18x64xf32>
    %c14 = arith.constant 14 : index
    %c0_106 = arith.constant 0 : index
    %c0_107 = arith.constant 0 : index
    %122 = vector.load %arg3[%c14, %c0_106, %c0_107] : memref<16x18x128xbf16, #tpu.memory_space<vmem>>, vector<1x18x128xbf16>
    %123 = vector.shape_cast %122 : vector<1x18x128xbf16> to vector<18x128xbf16>
    %cst_108 = arith.constant dense<0.000000e+00> : vector<18x32xf32>
    %124 = tpu.matmul %123, %8, %cst_108 {dimension_numbers = #tpu.dot_dimension_numbers<[1], [0], [0], [1], [0, 0, 1, 1], [], []>} : vector<18x128xbf16>, vector<128x32xbf16>, vector<18x32xf32> -> vector<18x32xf32>
    %125 = arith.truncf %124 : vector<18x32xf32> to vector<18x32xbf16>
    %c14_109 = arith.constant 14 : index
    %c0_110 = arith.constant 0 : index
    %c0_111 = arith.constant 0 : index
    %126 = vector.load %arg4[%c14_109, %c0_110, %c0_111] : memref<16x32x64xbf16, #tpu.memory_space<vmem>>, vector<1x32x64xbf16>
    %127 = vector.shape_cast %126 : vector<1x32x64xbf16> to vector<32x64xbf16>
    %cst_112 = arith.constant dense<0.000000e+00> : vector<18x64xf32>
    %128 = tpu.matmul %125, %127, %cst_112 {dimension_numbers = #tpu.dot_dimension_numbers<[1], [0], [0], [1], [0, 0, 1, 1], [], []>} : vector<18x32xbf16>, vector<32x64xbf16>, vector<18x64xf32> -> vector<18x64xf32>
    %129 = arith.addf %121, %128 : vector<18x64xf32>
    %c15 = arith.constant 15 : index
    %c0_113 = arith.constant 0 : index
    %c0_114 = arith.constant 0 : index
    %130 = vector.load %arg3[%c15, %c0_113, %c0_114] : memref<16x18x128xbf16, #tpu.memory_space<vmem>>, vector<1x18x128xbf16>
    %131 = vector.shape_cast %130 : vector<1x18x128xbf16> to vector<18x128xbf16>
    %cst_115 = arith.constant dense<0.000000e+00> : vector<18x32xf32>
    %132 = tpu.matmul %131, %8, %cst_115 {dimension_numbers = #tpu.dot_dimension_numbers<[1], [0], [0], [1], [0, 0, 1, 1], [], []>} : vector<18x128xbf16>, vector<128x32xbf16>, vector<18x32xf32> -> vector<18x32xf32>
    %133 = arith.truncf %132 : vector<18x32xf32> to vector<18x32xbf16>
    %c15_116 = arith.constant 15 : index
    %c0_117 = arith.constant 0 : index
    %c0_118 = arith.constant 0 : index
    %134 = vector.load %arg4[%c15_116, %c0_117, %c0_118] : memref<16x32x64xbf16, #tpu.memory_space<vmem>>, vector<1x32x64xbf16>
    %135 = vector.shape_cast %134 : vector<1x32x64xbf16> to vector<32x64xbf16>
    %cst_119 = arith.constant dense<0.000000e+00> : vector<18x64xf32>
    %136 = tpu.matmul %133, %135, %cst_119 {dimension_numbers = #tpu.dot_dimension_numbers<[1], [0], [0], [1], [0, 0, 1, 1], [], []>} : vector<18x32xbf16>, vector<32x64xbf16>, vector<18x64xf32> -> vector<18x64xf32>
    %137 = arith.addf %129, %136 : vector<18x64xf32>
    %c0_120 = arith.constant 0 : index
    %c0_121 = arith.constant 0 : index
    %138 = vector.load %arg5[%c0_120, %c0_121] : memref<1x64xf32, #tpu.memory_space<vmem>>, vector<1x64xf32>
    %139 = vector.broadcast %138 : vector<1x64xf32> to vector<18x64xf32>
    %140 = arith.addf %137, %139 : vector<18x64xf32>
    %cst_122 = arith.constant 0.000000e+00 : f32
    %141 = vector.broadcast %cst_122 : f32 to vector<18x64xf32>
    %142 = arith.maximumf %140, %141 : vector<18x64xf32>
    %143 = arith.truncf %142 : vector<18x64xf32> to vector<18x64xbf16>
    %cst_123 = arith.constant 0.000000e+00 : f32
    %144 = vector.broadcast %cst_123 : f32 to vector<2x64xf32>
    %c0_124 = arith.constant 0 : index
    %c0_125 = arith.constant 0 : index
    %c0_126 = arith.constant 0 : index
    %145 = vector.load %arg6[%c0_124, %c0_125, %c0_126] : memref<9x2x18xbf16, #tpu.memory_space<vmem>>, vector<1x2x18xbf16>
    %146 = vector.shape_cast %145 : vector<1x2x18xbf16> to vector<2x18xbf16>
    %cst_127 = arith.constant dense<0.000000e+00> : vector<2x64xf32>
    %147 = tpu.matmul %146, %143, %cst_127 {dimension_numbers = #tpu.dot_dimension_numbers<[1], [0], [0], [1], [0, 0, 1, 1], [], []>} : vector<2x18xbf16>, vector<18x64xbf16>, vector<2x64xf32> -> vector<2x64xf32>
    %148 = arith.truncf %147 : vector<2x64xf32> to vector<2x64xbf16>
    %c0_128 = arith.constant 0 : index
    %c0_129 = arith.constant 0 : index
    %c0_130 = arith.constant 0 : index
    %149 = vector.load %arg7[%c0_128, %c0_129, %c0_130] : memref<9x64x64xbf16, #tpu.memory_space<vmem>>, vector<1x64x64xbf16>
    %150 = vector.shape_cast %149 : vector<1x64x64xbf16> to vector<64x64xbf16>
    %cst_131 = arith.constant dense<0.000000e+00> : vector<2x64xf32>
    %151 = tpu.matmul %148, %150, %cst_131 {dimension_numbers = #tpu.dot_dimension_numbers<[1], [0], [0], [1], [0, 0, 1, 1], [], []>} : vector<2x64xbf16>, vector<64x64xbf16>, vector<2x64xf32> -> vector<2x64xf32>
    %152 = arith.addf %144, %151 : vector<2x64xf32>
    %c1_132 = arith.constant 1 : index
    %c0_133 = arith.constant 0 : index
    %c0_134 = arith.constant 0 : index
    %153 = vector.load %arg6[%c1_132, %c0_133, %c0_134] : memref<9x2x18xbf16, #tpu.memory_space<vmem>>, vector<1x2x18xbf16>
    %154 = vector.shape_cast %153 : vector<1x2x18xbf16> to vector<2x18xbf16>
    %cst_135 = arith.constant dense<0.000000e+00> : vector<2x64xf32>
    %155 = tpu.matmul %154, %143, %cst_135 {dimension_numbers = #tpu.dot_dimension_numbers<[1], [0], [0], [1], [0, 0, 1, 1], [], []>} : vector<2x18xbf16>, vector<18x64xbf16>, vector<2x64xf32> -> vector<2x64xf32>
    %156 = arith.truncf %155 : vector<2x64xf32> to vector<2x64xbf16>
    %c1_136 = arith.constant 1 : index
    %c0_137 = arith.constant 0 : index
    %c0_138 = arith.constant 0 : index
    %157 = vector.load %arg7[%c1_136, %c0_137, %c0_138] : memref<9x64x64xbf16, #tpu.memory_space<vmem>>, vector<1x64x64xbf16>
    %158 = vector.shape_cast %157 : vector<1x64x64xbf16> to vector<64x64xbf16>
    %cst_139 = arith.constant dense<0.000000e+00> : vector<2x64xf32>
    %159 = tpu.matmul %156, %158, %cst_139 {dimension_numbers = #tpu.dot_dimension_numbers<[1], [0], [0], [1], [0, 0, 1, 1], [], []>} : vector<2x64xbf16>, vector<64x64xbf16>, vector<2x64xf32> -> vector<2x64xf32>
    %160 = arith.addf %152, %159 : vector<2x64xf32>
    %c2_140 = arith.constant 2 : index
    %c0_141 = arith.constant 0 : index
    %c0_142 = arith.constant 0 : index
    %161 = vector.load %arg6[%c2_140, %c0_141, %c0_142] : memref<9x2x18xbf16, #tpu.memory_space<vmem>>, vector<1x2x18xbf16>
    %162 = vector.shape_cast %161 : vector<1x2x18xbf16> to vector<2x18xbf16>
    %cst_143 = arith.constant dense<0.000000e+00> : vector<2x64xf32>
    %163 = tpu.matmul %162, %143, %cst_143 {dimension_numbers = #tpu.dot_dimension_numbers<[1], [0], [0], [1], [0, 0, 1, 1], [], []>} : vector<2x18xbf16>, vector<18x64xbf16>, vector<2x64xf32> -> vector<2x64xf32>
    %164 = arith.truncf %163 : vector<2x64xf32> to vector<2x64xbf16>
    %c2_144 = arith.constant 2 : index
    %c0_145 = arith.constant 0 : index
    %c0_146 = arith.constant 0 : index
    %165 = vector.load %arg7[%c2_144, %c0_145, %c0_146] : memref<9x64x64xbf16, #tpu.memory_space<vmem>>, vector<1x64x64xbf16>
    %166 = vector.shape_cast %165 : vector<1x64x64xbf16> to vector<64x64xbf16>
    %cst_147 = arith.constant dense<0.000000e+00> : vector<2x64xf32>
    %167 = tpu.matmul %164, %166, %cst_147 {dimension_numbers = #tpu.dot_dimension_numbers<[1], [0], [0], [1], [0, 0, 1, 1], [], []>} : vector<2x64xbf16>, vector<64x64xbf16>, vector<2x64xf32> -> vector<2x64xf32>
    %168 = arith.addf %160, %167 : vector<2x64xf32>
    %c3_148 = arith.constant 3 : index
    %c0_149 = arith.constant 0 : index
    %c0_150 = arith.constant 0 : index
    %169 = vector.load %arg6[%c3_148, %c0_149, %c0_150] : memref<9x2x18xbf16, #tpu.memory_space<vmem>>, vector<1x2x18xbf16>
    %170 = vector.shape_cast %169 : vector<1x2x18xbf16> to vector<2x18xbf16>
    %cst_151 = arith.constant dense<0.000000e+00> : vector<2x64xf32>
    %171 = tpu.matmul %170, %143, %cst_151 {dimension_numbers = #tpu.dot_dimension_numbers<[1], [0], [0], [1], [0, 0, 1, 1], [], []>} : vector<2x18xbf16>, vector<18x64xbf16>, vector<2x64xf32> -> vector<2x64xf32>
    %172 = arith.truncf %171 : vector<2x64xf32> to vector<2x64xbf16>
    %c3_152 = arith.constant 3 : index
    %c0_153 = arith.constant 0 : index
    %c0_154 = arith.constant 0 : index
    %173 = vector.load %arg7[%c3_152, %c0_153, %c0_154] : memref<9x64x64xbf16, #tpu.memory_space<vmem>>, vector<1x64x64xbf16>
    %174 = vector.shape_cast %173 : vector<1x64x64xbf16> to vector<64x64xbf16>
    %cst_155 = arith.constant dense<0.000000e+00> : vector<2x64xf32>
    %175 = tpu.matmul %172, %174, %cst_155 {dimension_numbers = #tpu.dot_dimension_numbers<[1], [0], [0], [1], [0, 0, 1, 1], [], []>} : vector<2x64xbf16>, vector<64x64xbf16>, vector<2x64xf32> -> vector<2x64xf32>
    %176 = arith.addf %168, %175 : vector<2x64xf32>
    %c4_156 = arith.constant 4 : index
    %c0_157 = arith.constant 0 : index
    %c0_158 = arith.constant 0 : index
    %177 = vector.load %arg6[%c4_156, %c0_157, %c0_158] : memref<9x2x18xbf16, #tpu.memory_space<vmem>>, vector<1x2x18xbf16>
    %178 = vector.shape_cast %177 : vector<1x2x18xbf16> to vector<2x18xbf16>
    %cst_159 = arith.constant dense<0.000000e+00> : vector<2x64xf32>
    %179 = tpu.matmul %178, %143, %cst_159 {dimension_numbers = #tpu.dot_dimension_numbers<[1], [0], [0], [1], [0, 0, 1, 1], [], []>} : vector<2x18xbf16>, vector<18x64xbf16>, vector<2x64xf32> -> vector<2x64xf32>
    %180 = arith.truncf %179 : vector<2x64xf32> to vector<2x64xbf16>
    %c4_160 = arith.constant 4 : index
    %c0_161 = arith.constant 0 : index
    %c0_162 = arith.constant 0 : index
    %181 = vector.load %arg7[%c4_160, %c0_161, %c0_162] : memref<9x64x64xbf16, #tpu.memory_space<vmem>>, vector<1x64x64xbf16>
    %182 = vector.shape_cast %181 : vector<1x64x64xbf16> to vector<64x64xbf16>
    %cst_163 = arith.constant dense<0.000000e+00> : vector<2x64xf32>
    %183 = tpu.matmul %180, %182, %cst_163 {dimension_numbers = #tpu.dot_dimension_numbers<[1], [0], [0], [1], [0, 0, 1, 1], [], []>} : vector<2x64xbf16>, vector<64x64xbf16>, vector<2x64xf32> -> vector<2x64xf32>
    %184 = arith.addf %176, %183 : vector<2x64xf32>
    %c5_164 = arith.constant 5 : index
    %c0_165 = arith.constant 0 : index
    %c0_166 = arith.constant 0 : index
    %185 = vector.load %arg6[%c5_164, %c0_165, %c0_166] : memref<9x2x18xbf16, #tpu.memory_space<vmem>>, vector<1x2x18xbf16>
    %186 = vector.shape_cast %185 : vector<1x2x18xbf16> to vector<2x18xbf16>
    %cst_167 = arith.constant dense<0.000000e+00> : vector<2x64xf32>
    %187 = tpu.matmul %186, %143, %cst_167 {dimension_numbers = #tpu.dot_dimension_numbers<[1], [0], [0], [1], [0, 0, 1, 1], [], []>} : vector<2x18xbf16>, vector<18x64xbf16>, vector<2x64xf32> -> vector<2x64xf32>
    %188 = arith.truncf %187 : vector<2x64xf32> to vector<2x64xbf16>
    %c5_168 = arith.constant 5 : index
    %c0_169 = arith.constant 0 : index
    %c0_170 = arith.constant 0 : index
    %189 = vector.load %arg7[%c5_168, %c0_169, %c0_170] : memref<9x64x64xbf16, #tpu.memory_space<vmem>>, vector<1x64x64xbf16>
    %190 = vector.shape_cast %189 : vector<1x64x64xbf16> to vector<64x64xbf16>
    %cst_171 = arith.constant dense<0.000000e+00> : vector<2x64xf32>
    %191 = tpu.matmul %188, %190, %cst_171 {dimension_numbers = #tpu.dot_dimension_numbers<[1], [0], [0], [1], [0, 0, 1, 1], [], []>} : vector<2x64xbf16>, vector<64x64xbf16>, vector<2x64xf32> -> vector<2x64xf32>
    %192 = arith.addf %184, %191 : vector<2x64xf32>
    %c6_172 = arith.constant 6 : index
    %c0_173 = arith.constant 0 : index
    %c0_174 = arith.constant 0 : index
    %193 = vector.load %arg6[%c6_172, %c0_173, %c0_174] : memref<9x2x18xbf16, #tpu.memory_space<vmem>>, vector<1x2x18xbf16>
    %194 = vector.shape_cast %193 : vector<1x2x18xbf16> to vector<2x18xbf16>
    %cst_175 = arith.constant dense<0.000000e+00> : vector<2x64xf32>
    %195 = tpu.matmul %194, %143, %cst_175 {dimension_numbers = #tpu.dot_dimension_numbers<[1], [0], [0], [1], [0, 0, 1, 1], [], []>} : vector<2x18xbf16>, vector<18x64xbf16>, vector<2x64xf32> -> vector<2x64xf32>
    %196 = arith.truncf %195 : vector<2x64xf32> to vector<2x64xbf16>
    %c6_176 = arith.constant 6 : index
    %c0_177 = arith.constant 0 : index
    %c0_178 = arith.constant 0 : index
    %197 = vector.load %arg7[%c6_176, %c0_177, %c0_178] : memref<9x64x64xbf16, #tpu.memory_space<vmem>>, vector<1x64x64xbf16>
    %198 = vector.shape_cast %197 : vector<1x64x64xbf16> to vector<64x64xbf16>
    %cst_179 = arith.constant dense<0.000000e+00> : vector<2x64xf32>
    %199 = tpu.matmul %196, %198, %cst_179 {dimension_numbers = #tpu.dot_dimension_numbers<[1], [0], [0], [1], [0, 0, 1, 1], [], []>} : vector<2x64xbf16>, vector<64x64xbf16>, vector<2x64xf32> -> vector<2x64xf32>
    %200 = arith.addf %192, %199 : vector<2x64xf32>
    %c7_180 = arith.constant 7 : index
    %c0_181 = arith.constant 0 : index
    %c0_182 = arith.constant 0 : index
    %201 = vector.load %arg6[%c7_180, %c0_181, %c0_182] : memref<9x2x18xbf16, #tpu.memory_space<vmem>>, vector<1x2x18xbf16>
    %202 = vector.shape_cast %201 : vector<1x2x18xbf16> to vector<2x18xbf16>
    %cst_183 = arith.constant dense<0.000000e+00> : vector<2x64xf32>
    %203 = tpu.matmul %202, %143, %cst_183 {dimension_numbers = #tpu.dot_dimension_numbers<[1], [0], [0], [1], [0, 0, 1, 1], [], []>} : vector<2x18xbf16>, vector<18x64xbf16>, vector<2x64xf32> -> vector<2x64xf32>
    %204 = arith.truncf %203 : vector<2x64xf32> to vector<2x64xbf16>
    %c7_184 = arith.constant 7 : index
    %c0_185 = arith.constant 0 : index
    %c0_186 = arith.constant 0 : index
    %205 = vector.load %arg7[%c7_184, %c0_185, %c0_186] : memref<9x64x64xbf16, #tpu.memory_space<vmem>>, vector<1x64x64xbf16>
    %206 = vector.shape_cast %205 : vector<1x64x64xbf16> to vector<64x64xbf16>
    %cst_187 = arith.constant dense<0.000000e+00> : vector<2x64xf32>
    %207 = tpu.matmul %204, %206, %cst_187 {dimension_numbers = #tpu.dot_dimension_numbers<[1], [0], [0], [1], [0, 0, 1, 1], [], []>} : vector<2x64xbf16>, vector<64x64xbf16>, vector<2x64xf32> -> vector<2x64xf32>
    %208 = arith.addf %200, %207 : vector<2x64xf32>
    %c8_188 = arith.constant 8 : index
    %c0_189 = arith.constant 0 : index
    %c0_190 = arith.constant 0 : index
    %209 = vector.load %arg6[%c8_188, %c0_189, %c0_190] : memref<9x2x18xbf16, #tpu.memory_space<vmem>>, vector<1x2x18xbf16>
    %210 = vector.shape_cast %209 : vector<1x2x18xbf16> to vector<2x18xbf16>
    %cst_191 = arith.constant dense<0.000000e+00> : vector<2x64xf32>
    %211 = tpu.matmul %210, %143, %cst_191 {dimension_numbers = #tpu.dot_dimension_numbers<[1], [0], [0], [1], [0, 0, 1, 1], [], []>} : vector<2x18xbf16>, vector<18x64xbf16>, vector<2x64xf32> -> vector<2x64xf32>
    %212 = arith.truncf %211 : vector<2x64xf32> to vector<2x64xbf16>
    %c8_192 = arith.constant 8 : index
    %c0_193 = arith.constant 0 : index
    %c0_194 = arith.constant 0 : index
    %213 = vector.load %arg7[%c8_192, %c0_193, %c0_194] : memref<9x64x64xbf16, #tpu.memory_space<vmem>>, vector<1x64x64xbf16>
    %214 = vector.shape_cast %213 : vector<1x64x64xbf16> to vector<64x64xbf16>
    %cst_195 = arith.constant dense<0.000000e+00> : vector<2x64xf32>
    %215 = tpu.matmul %212, %214, %cst_195 {dimension_numbers = #tpu.dot_dimension_numbers<[1], [0], [0], [1], [0, 0, 1, 1], [], []>} : vector<2x64xbf16>, vector<64x64xbf16>, vector<2x64xf32> -> vector<2x64xf32>
    %216 = arith.addf %208, %215 : vector<2x64xf32>
    %c0_196 = arith.constant 0 : index
    %c0_197 = arith.constant 0 : index
    %217 = vector.load %arg8[%c0_196, %c0_197] : memref<1x64xf32, #tpu.memory_space<vmem>>, vector<1x64xf32>
    %218 = vector.broadcast %217 : vector<1x64xf32> to vector<2x64xf32>
    %219 = arith.addf %216, %218 : vector<2x64xf32>
    %cst_198 = arith.constant 0.000000e+00 : f32
    %220 = vector.broadcast %cst_198 : f32 to vector<2x64xf32>
    %221 = arith.maximumf %219, %220 : vector<2x64xf32>
    %222 = arith.truncf %221 : vector<2x64xf32> to vector<2x64xbf16>
    %c0_199 = arith.constant 0 : index
    %c0_200 = arith.constant 0 : index
    %223 = vector.load %arg9[%c0_199, %c0_200] : memref<64x512xbf16, #tpu.memory_space<vmem>>, vector<64x512xbf16>
    %cst_201 = arith.constant dense<0.000000e+00> : vector<2x512xf32>
    %224 = tpu.matmul %222, %223, %cst_201 {dimension_numbers = #tpu.dot_dimension_numbers<[1], [0], [0], [1], [0, 0, 1, 1], [], []>} : vector<2x64xbf16>, vector<64x512xbf16>, vector<2x512xf32> -> vector<2x512xf32>
    %c0_202 = arith.constant 0 : index
    %c0_203 = arith.constant 0 : index
    %225 = vector.load %arg10[%c0_202, %c0_203] : memref<1x512xf32, #tpu.memory_space<vmem>>, vector<1x512xf32>
    %226 = vector.broadcast %225 : vector<1x512xf32> to vector<2x512xf32>
    %227 = arith.addf %224, %226 : vector<2x512xf32>
    %cst_204 = arith.constant 0.000000e+00 : f32
    %228 = vector.broadcast %cst_204 : f32 to vector<2x512xf32>
    %229 = arith.maximumf %227, %228 : vector<2x512xf32>
    %230 = arith.truncf %229 : vector<2x512xf32> to vector<2x512xbf16>
    %c0_205 = arith.constant 0 : index
    %c0_206 = arith.constant 0 : index
    %c0_207 = arith.constant 0 : index
    %231 = vector.load %arg11[%c0_205, %c0_206, %c0_207] : memref<6x512x51xbf16, #tpu.memory_space<vmem>>, vector<1x512x51xbf16>
    %232 = vector.shape_cast %231 : vector<1x512x51xbf16> to vector<512x51xbf16>
    %cst_208 = arith.constant dense<0.000000e+00> : vector<2x51xf32>
    %233 = tpu.matmul %230, %232, %cst_208 {dimension_numbers = #tpu.dot_dimension_numbers<[1], [0], [0], [1], [0, 0, 1, 1], [], []>} : vector<2x512xbf16>, vector<512x51xbf16>, vector<2x51xf32> -> vector<2x51xf32>
    %c0_209 = arith.constant 0 : index
    %c0_210 = arith.constant 0 : index
    %c0_211 = arith.constant 0 : index
    %234 = vector.load %arg12[%c0_209, %c0_210, %c0_211] : memref<6x1x51xf32, #tpu.memory_space<vmem>>, vector<1x1x51xf32>
    %235 = vector.shape_cast %234 : vector<1x1x51xf32> to vector<1x51xf32>
    %236 = vector.broadcast %235 : vector<1x51xf32> to vector<2x51xf32>
    %237 = arith.addf %233, %236 : vector<2x51xf32>
    %cst_212 = arith.constant dense<0xFF800000> : vector<2xf32>
    %238 = vector.multi_reduction <maximumf>, %237, %cst_212 [1] : vector<2x51xf32> to vector<2xf32>
    %239 = vector.shape_cast %238 : vector<2xf32> to vector<2x1xf32>
    %240 = vector.broadcast %239 : vector<2x1xf32> to vector<2x51xf32>
    %241 = arith.subf %237, %240 : vector<2x51xf32>
    %242 = math.exp %241 : vector<2x51xf32>
    %cst_213 = arith.constant dense<0.000000e+00> : vector<2xf32>
    %243 = vector.multi_reduction <add>, %242, %cst_213 [1] : vector<2x51xf32> to vector<2xf32>
    %244 = vector.shape_cast %243 : vector<2xf32> to vector<2x1xf32>
    %245 = tpu.reciprocal %244 {approx = true} : vector<2x1xf32> -> vector<2x1xf32>
    %246 = vector.broadcast %245 : vector<2x1xf32> to vector<2x51xf32>
    %247 = arith.mulf %242, %246 : vector<2x51xf32>
    %c0_214 = arith.constant 0 : index
    %c0_215 = arith.constant 0 : index
    %c0_216 = arith.constant 0 : index
    %248 = vector.load %arg13[%c0_214, %c0_215, %c0_216] : memref<6x2x51xf32, #tpu.memory_space<vmem>>, vector<1x2x51xf32>
    %249 = vector.shape_cast %248 : vector<1x2x51xf32> to vector<2x51xf32>
    %250 = vector.shape_cast %247 : vector<2x51xf32> to vector<1x2x51xf32>
    tpu.vector_store %arg13[%c0_214, %c0_215, %c0_216], %250 {strides = array<i32>} : memref<6x2x51xf32, #tpu.memory_space<vmem>>, vector<1x2x51xf32>,
    %c1_217 = arith.constant 1 : index
    %c0_218 = arith.constant 0 : index
    %c0_219 = arith.constant 0 : index
    %251 = vector.load %arg11[%c1_217, %c0_218, %c0_219] : memref<6x512x51xbf16, #tpu.memory_space<vmem>>, vector<1x512x51xbf16>
    %252 = vector.shape_cast %251 : vector<1x512x51xbf16> to vector<512x51xbf16>
    %cst_220 = arith.constant dense<0.000000e+00> : vector<2x51xf32>
    %253 = tpu.matmul %230, %252, %cst_220 {dimension_numbers = #tpu.dot_dimension_numbers<[1], [0], [0], [1], [0, 0, 1, 1], [], []>} : vector<2x512xbf16>, vector<512x51xbf16>, vector<2x51xf32> -> vector<2x51xf32>
    %c1_221 = arith.constant 1 : index
    %c0_222 = arith.constant 0 : index
    %c0_223 = arith.constant 0 : index
    %254 = vector.load %arg12[%c1_221, %c0_222, %c0_223] : memref<6x1x51xf32, #tpu.memory_space<vmem>>, vector<1x1x51xf32>
    %255 = vector.shape_cast %254 : vector<1x1x51xf32> to vector<1x51xf32>
    %256 = vector.broadcast %255 : vector<1x51xf32> to vector<2x51xf32>
    %257 = arith.addf %253, %256 : vector<2x51xf32>
    %cst_224 = arith.constant dense<0xFF800000> : vector<2xf32>
    %258 = vector.multi_reduction <maximumf>, %257, %cst_224 [1] : vector<2x51xf32> to vector<2xf32>
    %259 = vector.shape_cast %258 : vector<2xf32> to vector<2x1xf32>
    %260 = vector.broadcast %259 : vector<2x1xf32> to vector<2x51xf32>
    %261 = arith.subf %257, %260 : vector<2x51xf32>
    %262 = math.exp %261 : vector<2x51xf32>
    %cst_225 = arith.constant dense<0.000000e+00> : vector<2xf32>
    %263 = vector.multi_reduction <add>, %262, %cst_225 [1] : vector<2x51xf32> to vector<2xf32>
    %264 = vector.shape_cast %263 : vector<2xf32> to vector<2x1xf32>
    %265 = tpu.reciprocal %264 {approx = true} : vector<2x1xf32> -> vector<2x1xf32>
    %266 = vector.broadcast %265 : vector<2x1xf32> to vector<2x51xf32>
    %267 = arith.mulf %262, %266 : vector<2x51xf32>
    %c1_226 = arith.constant 1 : index
    %c0_227 = arith.constant 0 : index
    %c0_228 = arith.constant 0 : index
    %268 = vector.load %arg13[%c1_226, %c0_227, %c0_228] : memref<6x2x51xf32, #tpu.memory_space<vmem>>, vector<1x2x51xf32>
    %269 = vector.shape_cast %268 : vector<1x2x51xf32> to vector<2x51xf32>
    %270 = vector.shape_cast %267 : vector<2x51xf32> to vector<1x2x51xf32>
    tpu.vector_store %arg13[%c1_226, %c0_227, %c0_228], %270 {strides = array<i32>} : memref<6x2x51xf32, #tpu.memory_space<vmem>>, vector<1x2x51xf32>,
    %c2_229 = arith.constant 2 : index
    %c0_230 = arith.constant 0 : index
    %c0_231 = arith.constant 0 : index
    %271 = vector.load %arg11[%c2_229, %c0_230, %c0_231] : memref<6x512x51xbf16, #tpu.memory_space<vmem>>, vector<1x512x51xbf16>
    %272 = vector.shape_cast %271 : vector<1x512x51xbf16> to vector<512x51xbf16>
    %cst_232 = arith.constant dense<0.000000e+00> : vector<2x51xf32>
    %273 = tpu.matmul %230, %272, %cst_232 {dimension_numbers = #tpu.dot_dimension_numbers<[1], [0], [0], [1], [0, 0, 1, 1], [], []>} : vector<2x512xbf16>, vector<512x51xbf16>, vector<2x51xf32> -> vector<2x51xf32>
    %c2_233 = arith.constant 2 : index
    %c0_234 = arith.constant 0 : index
    %c0_235 = arith.constant 0 : index
    %274 = vector.load %arg12[%c2_233, %c0_234, %c0_235] : memref<6x1x51xf32, #tpu.memory_space<vmem>>, vector<1x1x51xf32>
    %275 = vector.shape_cast %274 : vector<1x1x51xf32> to vector<1x51xf32>
    %276 = vector.broadcast %275 : vector<1x51xf32> to vector<2x51xf32>
    %277 = arith.addf %273, %276 : vector<2x51xf32>
    %cst_236 = arith.constant dense<0xFF800000> : vector<2xf32>
    %278 = vector.multi_reduction <maximumf>, %277, %cst_236 [1] : vector<2x51xf32> to vector<2xf32>
    %279 = vector.shape_cast %278 : vector<2xf32> to vector<2x1xf32>
    %280 = vector.broadcast %279 : vector<2x1xf32> to vector<2x51xf32>
    %281 = arith.subf %277, %280 : vector<2x51xf32>
    %282 = math.exp %281 : vector<2x51xf32>
    %cst_237 = arith.constant dense<0.000000e+00> : vector<2xf32>
    %283 = vector.multi_reduction <add>, %282, %cst_237 [1] : vector<2x51xf32> to vector<2xf32>
    %284 = vector.shape_cast %283 : vector<2xf32> to vector<2x1xf32>
    %285 = tpu.reciprocal %284 {approx = true} : vector<2x1xf32> -> vector<2x1xf32>
    %286 = vector.broadcast %285 : vector<2x1xf32> to vector<2x51xf32>
    %287 = arith.mulf %282, %286 : vector<2x51xf32>
    %c2_238 = arith.constant 2 : index
    %c0_239 = arith.constant 0 : index
    %c0_240 = arith.constant 0 : index
    %288 = vector.load %arg13[%c2_238, %c0_239, %c0_240] : memref<6x2x51xf32, #tpu.memory_space<vmem>>, vector<1x2x51xf32>
    %289 = vector.shape_cast %288 : vector<1x2x51xf32> to vector<2x51xf32>
    %290 = vector.shape_cast %287 : vector<2x51xf32> to vector<1x2x51xf32>
    tpu.vector_store %arg13[%c2_238, %c0_239, %c0_240], %290 {strides = array<i32>} : memref<6x2x51xf32, #tpu.memory_space<vmem>>, vector<1x2x51xf32>,
    %c3_241 = arith.constant 3 : index
    %c0_242 = arith.constant 0 : index
    %c0_243 = arith.constant 0 : index
    %291 = vector.load %arg11[%c3_241, %c0_242, %c0_243] : memref<6x512x51xbf16, #tpu.memory_space<vmem>>, vector<1x512x51xbf16>
    %292 = vector.shape_cast %291 : vector<1x512x51xbf16> to vector<512x51xbf16>
    %cst_244 = arith.constant dense<0.000000e+00> : vector<2x51xf32>
    %293 = tpu.matmul %230, %292, %cst_244 {dimension_numbers = #tpu.dot_dimension_numbers<[1], [0], [0], [1], [0, 0, 1, 1], [], []>} : vector<2x512xbf16>, vector<512x51xbf16>, vector<2x51xf32> -> vector<2x51xf32>
    %c3_245 = arith.constant 3 : index
    %c0_246 = arith.constant 0 : index
    %c0_247 = arith.constant 0 : index
    %294 = vector.load %arg12[%c3_245, %c0_246, %c0_247] : memref<6x1x51xf32, #tpu.memory_space<vmem>>, vector<1x1x51xf32>
    %295 = vector.shape_cast %294 : vector<1x1x51xf32> to vector<1x51xf32>
    %296 = vector.broadcast %295 : vector<1x51xf32> to vector<2x51xf32>
    %297 = arith.addf %293, %296 : vector<2x51xf32>
    %cst_248 = arith.constant dense<0xFF800000> : vector<2xf32>
    %298 = vector.multi_reduction <maximumf>, %297, %cst_248 [1] : vector<2x51xf32> to vector<2xf32>
    %299 = vector.shape_cast %298 : vector<2xf32> to vector<2x1xf32>
    %300 = vector.broadcast %299 : vector<2x1xf32> to vector<2x51xf32>
    %301 = arith.subf %297, %300 : vector<2x51xf32>
    %302 = math.exp %301 : vector<2x51xf32>
    %cst_249 = arith.constant dense<0.000000e+00> : vector<2xf32>
    %303 = vector.multi_reduction <add>, %302, %cst_249 [1] : vector<2x51xf32> to vector<2xf32>
    %304 = vector.shape_cast %303 : vector<2xf32> to vector<2x1xf32>
    %305 = tpu.reciprocal %304 {approx = true} : vector<2x1xf32> -> vector<2x1xf32>
    %306 = vector.broadcast %305 : vector<2x1xf32> to vector<2x51xf32>
    %307 = arith.mulf %302, %306 : vector<2x51xf32>
    %c3_250 = arith.constant 3 : index
    %c0_251 = arith.constant 0 : index
    %c0_252 = arith.constant 0 : index
    %308 = vector.load %arg13[%c3_250, %c0_251, %c0_252] : memref<6x2x51xf32, #tpu.memory_space<vmem>>, vector<1x2x51xf32>
    %309 = vector.shape_cast %308 : vector<1x2x51xf32> to vector<2x51xf32>
    %310 = vector.shape_cast %307 : vector<2x51xf32> to vector<1x2x51xf32>
    tpu.vector_store %arg13[%c3_250, %c0_251, %c0_252], %310 {strides = array<i32>} : memref<6x2x51xf32, #tpu.memory_space<vmem>>, vector<1x2x51xf32>,
    %c4_253 = arith.constant 4 : index
    %c0_254 = arith.constant 0 : index
    %c0_255 = arith.constant 0 : index
    %311 = vector.load %arg11[%c4_253, %c0_254, %c0_255] : memref<6x512x51xbf16, #tpu.memory_space<vmem>>, vector<1x512x51xbf16>
    %312 = vector.shape_cast %311 : vector<1x512x51xbf16> to vector<512x51xbf16>
    %cst_256 = arith.constant dense<0.000000e+00> : vector<2x51xf32>
    %313 = tpu.matmul %230, %312, %cst_256 {dimension_numbers = #tpu.dot_dimension_numbers<[1], [0], [0], [1], [0, 0, 1, 1], [], []>} : vector<2x512xbf16>, vector<512x51xbf16>, vector<2x51xf32> -> vector<2x51xf32>
    %c4_257 = arith.constant 4 : index
    %c0_258 = arith.constant 0 : index
    %c0_259 = arith.constant 0 : index
    %314 = vector.load %arg12[%c4_257, %c0_258, %c0_259] : memref<6x1x51xf32, #tpu.memory_space<vmem>>, vector<1x1x51xf32>
    %315 = vector.shape_cast %314 : vector<1x1x51xf32> to vector<1x51xf32>
    %316 = vector.broadcast %315 : vector<1x51xf32> to vector<2x51xf32>
    %317 = arith.addf %313, %316 : vector<2x51xf32>
    %cst_260 = arith.constant dense<0xFF800000> : vector<2xf32>
    %318 = vector.multi_reduction <maximumf>, %317, %cst_260 [1] : vector<2x51xf32> to vector<2xf32>
    %319 = vector.shape_cast %318 : vector<2xf32> to vector<2x1xf32>
    %320 = vector.broadcast %319 : vector<2x1xf32> to vector<2x51xf32>
    %321 = arith.subf %317, %320 : vector<2x51xf32>
    %322 = math.exp %321 : vector<2x51xf32>
    %cst_261 = arith.constant dense<0.000000e+00> : vector<2xf32>
    %323 = vector.multi_reduction <add>, %322, %cst_261 [1] : vector<2x51xf32> to vector<2xf32>
    %324 = vector.shape_cast %323 : vector<2xf32> to vector<2x1xf32>
    %325 = tpu.reciprocal %324 {approx = true} : vector<2x1xf32> -> vector<2x1xf32>
    %326 = vector.broadcast %325 : vector<2x1xf32> to vector<2x51xf32>
    %327 = arith.mulf %322, %326 : vector<2x51xf32>
    %c4_262 = arith.constant 4 : index
    %c0_263 = arith.constant 0 : index
    %c0_264 = arith.constant 0 : index
    %328 = vector.load %arg13[%c4_262, %c0_263, %c0_264] : memref<6x2x51xf32, #tpu.memory_space<vmem>>, vector<1x2x51xf32>
    %329 = vector.shape_cast %328 : vector<1x2x51xf32> to vector<2x51xf32>
    %330 = vector.shape_cast %327 : vector<2x51xf32> to vector<1x2x51xf32>
    tpu.vector_store %arg13[%c4_262, %c0_263, %c0_264], %330 {strides = array<i32>} : memref<6x2x51xf32, #tpu.memory_space<vmem>>, vector<1x2x51xf32>,
    %c5_265 = arith.constant 5 : index
    %c0_266 = arith.constant 0 : index
    %c0_267 = arith.constant 0 : index
    %331 = vector.load %arg11[%c5_265, %c0_266, %c0_267] : memref<6x512x51xbf16, #tpu.memory_space<vmem>>, vector<1x512x51xbf16>
    %332 = vector.shape_cast %331 : vector<1x512x51xbf16> to vector<512x51xbf16>
    %cst_268 = arith.constant dense<0.000000e+00> : vector<2x51xf32>
    %333 = tpu.matmul %230, %332, %cst_268 {dimension_numbers = #tpu.dot_dimension_numbers<[1], [0], [0], [1], [0, 0, 1, 1], [], []>} : vector<2x512xbf16>, vector<512x51xbf16>, vector<2x51xf32> -> vector<2x51xf32>
    %c5_269 = arith.constant 5 : index
    %c0_270 = arith.constant 0 : index
    %c0_271 = arith.constant 0 : index
    %334 = vector.load %arg12[%c5_269, %c0_270, %c0_271] : memref<6x1x51xf32, #tpu.memory_space<vmem>>, vector<1x1x51xf32>
    %335 = vector.shape_cast %334 : vector<1x1x51xf32> to vector<1x51xf32>
    %336 = vector.broadcast %335 : vector<1x51xf32> to vector<2x51xf32>
    %337 = arith.addf %333, %336 : vector<2x51xf32>
    %cst_272 = arith.constant dense<0xFF800000> : vector<2xf32>
    %338 = vector.multi_reduction <maximumf>, %337, %cst_272 [1] : vector<2x51xf32> to vector<2xf32>
    %339 = vector.shape_cast %338 : vector<2xf32> to vector<2x1xf32>
    %340 = vector.broadcast %339 : vector<2x1xf32> to vector<2x51xf32>
    %341 = arith.subf %337, %340 : vector<2x51xf32>
    %342 = math.exp %341 : vector<2x51xf32>
    %cst_273 = arith.constant dense<0.000000e+00> : vector<2xf32>
    %343 = vector.multi_reduction <add>, %342, %cst_273 [1] : vector<2x51xf32> to vector<2xf32>
    %344 = vector.shape_cast %343 : vector<2xf32> to vector<2x1xf32>
    %345 = tpu.reciprocal %344 {approx = true} : vector<2x1xf32> -> vector<2x1xf32>
    %346 = vector.broadcast %345 : vector<2x1xf32> to vector<2x51xf32>
    %347 = arith.mulf %342, %346 : vector<2x51xf32>
    %c5_274 = arith.constant 5 : index
    %c0_275 = arith.constant 0 : index
    %c0_276 = arith.constant 0 : index
    %348 = vector.load %arg13[%c5_274, %c0_275, %c0_276] : memref<6x2x51xf32, #tpu.memory_space<vmem>>, vector<1x2x51xf32>
    %349 = vector.shape_cast %348 : vector<1x2x51xf32> to vector<2x51xf32>
    %350 = vector.shape_cast %347 : vector<2x51xf32> to vector<1x2x51xf32>
    tpu.vector_store %arg13[%c5_274, %c0_275, %c0_276], %350 {strides = array<i32>} : memref<6x2x51xf32, #tpu.memory_space<vmem>>, vector<1x2x51xf32>,
    return
  }
}

</mosaic_0001>

<llo_original>
// kernel: categorical_dqn_forward.1
$region0: #{categorical_dqn_forward.1}
  #allocation0 [shape = 'u32[]', space=smem, size = 0x4, offset = 0x4, fixed_abs, tag = 'smem constant byte address 0x4 - core index']
  #allocation1 [shape = 'u32[144,128]{1,0:T(1,128)}', space=vmem, size = 0x12000, scoped, tag = 'internal scratch']
  %s0 = inlined_call_operand.vmem [shape: bf16[128,256], index: 0, kind: input, shape index: {}]
  %s1 = inlined_call_operand.vmem [shape: bf16[256,32], index: 1, kind: input, shape index: {}]
  %s2 = inlined_call_operand.vmem [shape: f32[1,32], index: 2, kind: input, shape index: {}]
  %s3 = inlined_call_operand.vmem [shape: bf16[16,18,128], index: 3, kind: input, shape index: {}]
  %s4 = inlined_call_operand.vmem [shape: bf16[16,32,64], index: 4, kind: input, shape index: {}]
  %s5 = inlined_call_operand.vmem [shape: f32[1,64], index: 5, kind: input, shape index: {}]
  %s6 = inlined_call_operand.vmem [shape: bf16[9,2,18], index: 6, kind: input, shape index: {}]
  %s7 = inlined_call_operand.vmem [shape: bf16[9,64,64], index: 7, kind: input, shape index: {}]
  %s8 = inlined_call_operand.vmem [shape: f32[1,64], index: 8, kind: input, shape index: {}]
  %s9 = inlined_call_operand.vmem [shape: bf16[64,512], index: 9, kind: input, shape index: {}]
  %s10 = inlined_call_operand.vmem [shape: f32[1,512], index: 10, kind: input, shape index: {}]
  %s11 = inlined_call_operand.vmem [shape: bf16[6,512,51], index: 11, kind: input, shape index: {}]
  %s12 = inlined_call_operand.vmem [shape: f32[6,1,51], index: 12, kind: input, shape index: {}]
  %s13 = inlined_call_operand.hbm [shape: f32[6,2,51], index: 13, kind: output, shape index: {}]
  %s14 = sld [smem:[#allocation0]]
  $region62: #{categorical_dqn_forward.1} parent=0
    _
  %s16 = ssub.s32 1, %s14
  %s17 = scalar_select 0, %s16, %s14
  $region1: #{categorical_dqn_forward.1} parent=0
    #allocation2 [shape = 'u8[6144]{0}', space=vmem, size = 0x1800, scoped, tag = 'output window, operand 0, single buffered']
    #allocation3 [shape = 's32[1]{0}', space=sflag, size = 0x4, scoped, tag = 'scoped memory for categorical_dqn_forward.1']
    %18 = vsyncpa [#allocation3], 0
    // Predicated region
    $region2: #{categorical_dqn_forward.1} parent=1 // pred_check
      _
    $region3: #{categorical_dqn_forward.1} parent=1 // pred_check_branch
      %20 = sbr.rel (0) target = $region5
    $region4: #{categorical_dqn_forward.1} parent=1 // pred_region
      _
    $region5: #{categorical_dqn_forward.1} parent=1 // pred_fallthru
      _
    // Predicated region
    $region6: #{categorical_dqn_forward.1} parent=1 // pred_check
      _
    $region7: #{categorical_dqn_forward.1} parent=1 // pred_check_branch
      %22 = sbr.rel (0) target = $region9
    $region8: #{categorical_dqn_forward.1} parent=1 // pred_region
      _
    $region9: #{categorical_dqn_forward.1} parent=1 // pred_fallthru
      _
    // Predicated region
    $region10: #{categorical_dqn_forward.1} parent=1 // pred_check
      _
    $region11: #{categorical_dqn_forward.1} parent=1 // pred_check_branch
      %24 = sbr.rel (0) target = $region13
    $region12: #{categorical_dqn_forward.1} parent=1 // pred_region
      _
    $region13: #{categorical_dqn_forward.1} parent=1 // pred_fallthru
      _
    // Predicated region
    $region14: #{categorical_dqn_forward.1} parent=1 // pred_check
      _
    $region15: #{categorical_dqn_forward.1} parent=1 // pred_check_branch
      %26 = sbr.rel (0) target = $region17
    $region16: #{categorical_dqn_forward.1} parent=1 // pred_region
      _
    $region17: #{categorical_dqn_forward.1} parent=1 // pred_fallthru
      _
    // Predicated region
    $region18: #{categorical_dqn_forward.1} parent=1 // pred_check
      _
    $region19: #{categorical_dqn_forward.1} parent=1 // pred_check_branch
      %28 = sbr.rel (0) target = $region21
    $region20: #{categorical_dqn_forward.1} parent=1 // pred_region
      _
    $region21: #{categorical_dqn_forward.1} parent=1 // pred_fallthru
      _
    // Predicated region
    $region22: #{categorical_dqn_forward.1} parent=1 // pred_check
      _
    $region23: #{categorical_dqn_forward.1} parent=1 // pred_check_branch
      %30 = sbr.rel (0) target = $region25
    $region24: #{categorical_dqn_forward.1} parent=1 // pred_region
      _
    $region25: #{categorical_dqn_forward.1} parent=1 // pred_fallthru
      _
    // Predicated region
    $region26: #{categorical_dqn_forward.1} parent=1 // pred_check
      _
    $region27: #{categorical_dqn_forward.1} parent=1 // pred_check_branch
      %32 = sbr.rel (0) target = $region29
    $region28: #{categorical_dqn_forward.1} parent=1 // pred_region
      _
    $region29: #{categorical_dqn_forward.1} parent=1 // pred_fallthru
      _
    // Predicated region
    $region30: #{categorical_dqn_forward.1} parent=1 // pred_check
      _
    $region31: #{categorical_dqn_forward.1} parent=1 // pred_check_branch
      %34 = sbr.rel (0) target = $region33
    $region32: #{categorical_dqn_forward.1} parent=1 // pred_region
      _
    $region33: #{categorical_dqn_forward.1} parent=1 // pred_fallthru
      _
    // Predicated region
    $region34: #{categorical_dqn_forward.1} parent=1 // pred_check
      _
    $region35: #{categorical_dqn_forward.1} parent=1 // pred_check_branch
      %36 = sbr.rel (0) target = $region37
    $region36: #{categorical_dqn_forward.1} parent=1 // pred_region
      _
    $region37: #{categorical_dqn_forward.1} parent=1 // pred_fallthru
      _
    // Predicated region
    $region38: #{categorical_dqn_forward.1} parent=1 // pred_check
      _
    $region39: #{categorical_dqn_forward.1} parent=1 // pred_check_branch
      %38 = sbr.rel (0) target = $region41
    $region40: #{categorical_dqn_forward.1} parent=1 // pred_region
      _
    $region41: #{categorical_dqn_forward.1} parent=1 // pred_fallthru
      _
    // Predicated region
    $region42: #{categorical_dqn_forward.1} parent=1 // pred_check
      _
    $region43: #{categorical_dqn_forward.1} parent=1 // pred_check_branch
      %40 = sbr.rel (0) target = $region45
    $region44: #{categorical_dqn_forward.1} parent=1 // pred_region
      _
    $region45: #{categorical_dqn_forward.1} parent=1 // pred_fallthru
      _
    // Predicated region
    $region46: #{categorical_dqn_forward.1} parent=1 // pred_check
      _
    $region47: #{categorical_dqn_forward.1} parent=1 // pred_check_branch
      %42 = sbr.rel (0) target = $region49
    $region48: #{categorical_dqn_forward.1} parent=1 // pred_region
      _
    $region49: #{categorical_dqn_forward.1} parent=1 // pred_fallthru
      _
    // Predicated region
    $region50: #{categorical_dqn_forward.1} parent=1 // pred_check
      _
    $region51: #{categorical_dqn_forward.1} parent=1 // pred_check_branch
      %44 = sbr.rel (0) target = $region53
    $region52: #{categorical_dqn_forward.1} parent=1 // pred_region
      _
    $region53: #{categorical_dqn_forward.1} parent=1 // pred_fallthru
      _
    %v46 = vld [vmem:[%s0] sm:$0xff]
    %v47 = vld [vmem:[%s0 + $0x8] sm:$0xff]
    %v48 = vld [vmem:[%s0 + $0x10] sm:$0xff]
    %v49 = vld [vmem:[%s0 + $0x18] sm:$0xff]
    %v50 = vld [vmem:[%s0 + $0x20] sm:$0xff]
    %v51 = vld [vmem:[%s0 + $0x28] sm:$0xff]
    %v52 = vld [vmem:[%s0 + $0x30] sm:$0xff]
    %v53 = vld [vmem:[%s0 + $0x38] sm:$0xff]
    %v54 = vld [vmem:[%s0 + $0x40] sm:$0xff]
    %v55 = vld [vmem:[%s0 + $0x48] sm:$0xff]
    %v56 = vld [vmem:[%s0 + $0x50] sm:$0xff]
    %v57 = vld [vmem:[%s0 + $0x58] sm:$0xff]
    %v58 = vld [vmem:[%s0 + $0x60] sm:$0xff]
    %v59 = vld [vmem:[%s0 + $0x68] sm:$0xff]
    %v60 = vld [vmem:[%s0 + $0x70] sm:$0xff]
    %v61 = vld [vmem:[%s0 + $0x78] sm:$0xff]
    %v62 = vld [vmem:[%s1] sm:$0xf]
    %v63 = vld [vmem:[%s1 + $0x4] sm:$0xf]
    %v64 = vld [vmem:[%s1 + $0x8] sm:$0xf]
    %v65 = vld [vmem:[%s1 + $0xc] sm:$0xf]
    %v66 = vld [vmem:[%s1 + $0x10] sm:$0xf]
    %v67 = vld [vmem:[%s1 + $0x14] sm:$0xf]
    %v68 = vld [vmem:[%s1 + $0x18] sm:$0xf]
    %v69 = vld [vmem:[%s1 + $0x1c] sm:$0xf]
    %v70 = vld [vmem:[%s1 + $0x20] sm:$0xf]
    %v71 = vld [vmem:[%s1 + $0x24] sm:$0xf]
    %v72 = vld [vmem:[%s1 + $0x28] sm:$0xf]
    %v73 = vld [vmem:[%s1 + $0x2c] sm:$0xf]
    %v74 = vld [vmem:[%s1 + $0x30] sm:$0xf]
    %v75 = vld [vmem:[%s1 + $0x34] sm:$0xf]
    %v76 = vld [vmem:[%s1 + $0x38] sm:$0xf]
    %v77 = vld [vmem:[%s1 + $0x3c] sm:$0xf]
    %v78 = vld [vmem:[%s1 + $0x40] sm:$0xf]
    %v79 = vld [vmem:[%s1 + $0x44] sm:$0xf]
    %v80 = vld [vmem:[%s1 + $0x48] sm:$0xf]
    %v81 = vld [vmem:[%s1 + $0x4c] sm:$0xf]
    %v82 = vld [vmem:[%s1 + $0x50] sm:$0xf]
    %v83 = vld [vmem:[%s1 + $0x54] sm:$0xf]
    %v84 = vld [vmem:[%s1 + $0x58] sm:$0xf]
    %v85 = vld [vmem:[%s1 + $0x5c] sm:$0xf]
    %v86 = vld [vmem:[%s1 + $0x60] sm:$0xf]
    %v87 = vld [vmem:[%s1 + $0x64] sm:$0xf]
    %v88 = vld [vmem:[%s1 + $0x68] sm:$0xf]
    %v89 = vld [vmem:[%s1 + $0x6c] sm:$0xf]
    %v90 = vld [vmem:[%s1 + $0x70] sm:$0xf]
    %v91 = vld [vmem:[%s1 + $0x74] sm:$0xf]
    %v92 = vld [vmem:[%s1 + $0x78] sm:$0xf]
    %v93 = vld [vmem:[%s1 + $0x7c] sm:$0xf]
    %v94 = vld [vmem:[%s2] sm:$0x1]
    %v96 = vlaneseq
    %v97 = vshrl.u32 %v96, 7
    %v98 = vsub.s32 0, %v97
    %v99 = vrot.slane %v94, %v98
    %v117 = vunpack.c.l.b16 %v46
    %v118 = vunpack.c.h.b16 %v46
    %v119 = vunpack.c.l.b16 %v47
    %v120 = vunpack.c.h.b16 %v47
    %v121 = vunpack.c.l.b16 %v48
    %v122 = vunpack.c.h.b16 %v48
    %v123 = vunpack.c.l.b16 %v49
    %v124 = vunpack.c.h.b16 %v49
    %v125 = vunpack.c.l.b16 %v50
    %v126 = vunpack.c.h.b16 %v50
    %v127 = vunpack.c.l.b16 %v51
    %v128 = vunpack.c.h.b16 %v51
    %v129 = vunpack.c.l.b16 %v52
    %v130 = vunpack.c.h.b16 %v52
    %v131 = vunpack.c.l.b16 %v53
    %v132 = vunpack.c.h.b16 %v53
    %v133 = vunpack.c.l.b16 %v54
    %v134 = vunpack.c.h.b16 %v54
    %v135 = vunpack.c.l.b16 %v55
    %v136 = vunpack.c.h.b16 %v55
    %v137 = vunpack.c.l.b16 %v56
    %v138 = vunpack.c.h.b16 %v56
    %v139 = vunpack.c.l.b16 %v57
    %v140 = vunpack.c.h.b16 %v57
    %v141 = vunpack.c.l.b16 %v58
    %v142 = vunpack.c.h.b16 %v58
    %v143 = vunpack.c.l.b16 %v59
    %v144 = vunpack.c.h.b16 %v59
    %v145 = vunpack.c.l.b16 %v60
    %v146 = vunpack.c.h.b16 %v60
    %v147 = vunpack.c.l.b16 %v61
    %v148 = vunpack.c.h.b16 %v61
    %v149 = vpack.c.b16 %v119, %v117
    %v150 = vpack.c.b16 %v120, %v118
    %v151 = vpack.c.b16 %v123, %v121
    %v152 = vpack.c.b16 %v124, %v122
    %v153 = vpack.c.b16 %v127, %v125
    %v154 = vpack.c.b16 %v128, %v126
    %v155 = vpack.c.b16 %v131, %v129
    %v156 = vpack.c.b16 %v132, %v130
    %v157 = vpack.c.b16 %v135, %v133
    %v158 = vpack.c.b16 %v136, %v134
    %v159 = vpack.c.b16 %v139, %v137
    %v160 = vpack.c.b16 %v140, %v138
    %v161 = vpack.c.b16 %v143, %v141
    %v162 = vpack.c.b16 %v144, %v142
    %v163 = vpack.c.b16 %v147, %v145
    %v164 = vpack.c.b16 %v148, %v146
    %v213 = vunpack.c.l.b16 %v62
    %v214 = vunpack.c.l.b16 %v63
    %v215 = vunpack.c.l.b16 %v64
    %v216 = vunpack.c.l.b16 %v65
    %v217 = vunpack.c.l.b16 %v66
    %v218 = vunpack.c.l.b16 %v67
    %v219 = vunpack.c.l.b16 %v68
    %v220 = vunpack.c.l.b16 %v69
    %v221 = vunpack.c.l.b16 %v70
    %v222 = vunpack.c.l.b16 %v71
    %v223 = vunpack.c.l.b16 %v72
    %v224 = vunpack.c.l.b16 %v73
    %v225 = vunpack.c.l.b16 %v74
    %v226 = vunpack.c.l.b16 %v75
    %v227 = vunpack.c.l.b16 %v76
    %v228 = vunpack.c.l.b16 %v77
    %v229 = vunpack.c.l.b16 %v78
    %v230 = vunpack.c.l.b16 %v79
    %v231 = vunpack.c.l.b16 %v80
    %v232 = vunpack.c.l.b16 %v81
    %v233 = vunpack.c.l.b16 %v82
    %v234 = vunpack.c.l.b16 %v83
    %v235 = vunpack.c.l.b16 %v84
    %v236 = vunpack.c.l.b16 %v85
    %v237 = vunpack.c.l.b16 %v86
    %v238 = vunpack.c.l.b16 %v87
    %v239 = vunpack.c.l.b16 %v88
    %v240 = vunpack.c.l.b16 %v89
    %v241 = vunpack.c.l.b16 %v90
    %v242 = vunpack.c.l.b16 %v91
    %v243 = vunpack.c.l.b16 %v92
    %v244 = vunpack.c.l.b16 %v93
    %v245 = vpack.c.b16 %v214, %v213
    %v246 = vpack.c.b16 %v216, %v215
    %v247 = vpack.c.b16 %v218, %v217
    %v248 = vpack.c.b16 %v220, %v219
    %v249 = vpack.c.b16 %v222, %v221
    %v250 = vpack.c.b16 %v224, %v223
    %v251 = vpack.c.b16 %v226, %v225
    %v252 = vpack.c.b16 %v228, %v227
    %v253 = vpack.c.b16 %v230, %v229
    %v254 = vpack.c.b16 %v232, %v231
    %v255 = vpack.c.b16 %v234, %v233
    %v256 = vpack.c.b16 %v236, %v235
    %v257 = vpack.c.b16 %v238, %v237
    %v258 = vpack.c.b16 %v240, %v239
    %v259 = vpack.c.b16 %v242, %v241
    %v260 = vpack.c.b16 %v244, %v243
    %277 = vmatprep.subr.bf16.mxu0 0
    %278 = vmatpush1.bf16.msra.mxu0 %v252
    %279 = vmatprep.subr.bf16.mxu0 0
    %280 = vmatpush1.bf16.msra.mxu0 %v251
    %281 = vmatprep.subr.bf16.mxu0 0
    %282 = vmatpush1.bf16.msra.mxu0 %v250
    %283 = vmatprep.subr.bf16.mxu0 0
    %284 = vmatpush1.bf16.msra.mxu0 %v249
    %285 = vmatprep.subr.bf16.mxu0 0
    %286 = vmatpush1.bf16.msra.mxu0 %v248
    %287 = vmatprep.subr.bf16.mxu0 0
    %288 = vmatpush1.bf16.msra.mxu0 %v247
    %289 = vmatprep.subr.bf16.mxu0 0
    %290 = vmatpush1.bf16.msra.mxu0 %v246
    %291 = vmatprep.subr.bf16.mxu0 0
    %292 = vmatpush1.bf16.msra.mxu0 %v245
    %293 = vmatprep.subr.bf16.mxu0 0
    %294 = vmatpush2.bf16.msra.mxu0 %v260
    %295 = vmatprep.subr.bf16.mxu0 0
    %296 = vmatpush2.bf16.msra.mxu0 %v259
    %297 = vmatprep.subr.bf16.mxu0 0
    %298 = vmatpush2.bf16.msra.mxu0 %v258
    %299 = vmatprep.subr.bf16.mxu0 0
    %300 = vmatpush2.bf16.msra.mxu0 %v257
    %301 = vmatprep.subr.bf16.mxu0 0
    %302 = vmatpush2.bf16.msra.mxu0 %v256
    %303 = vmatprep.subr.bf16.mxu0 0
    %304 = vmatpush2.bf16.msra.mxu0 %v255
    %305 = vmatprep.subr.bf16.mxu0 0
    %306 = vmatpush2.bf16.msra.mxu0 %v254
    %307 = vmatprep.subr.bf16.mxu0 0
    %308 = vmatpush2.bf16.msra.mxu0 %v253
    %309 = vmatprep.mubr.bf16.mxu0 %v150
    %310 = vmatmul.mubr.bf16.gmra.mxu0 %v149
    %v311 = vpop.f32.mrf.mxu0
    %v312 = vadd.f32 %v99, %v311
    %v313 = vpop.f32.mrf.mxu0
    %v314 = vpop.f32.mrf.mxu0
    %v315 = vadd.f32 %v99, %v314
    %v316 = vpop.f32.mrf.mxu0
    %317 = vmatprep.mubr.bf16.mxu0 %v152
    %318 = vmatmul.mubr.bf16.gmra.mxu0 %v151
    %v319 = vpop.f32.mrf.mxu0
    %v320 = vadd.f32 %v99, %v319
    %v321 = vpop.f32.mrf.mxu0
    %v322 = vpop.f32.mrf.mxu0
    %v323 = vadd.f32 %v99, %v322
    %v324 = vpop.f32.mrf.mxu0
    %325 = vmatprep.mubr.bf16.mxu0 %v154
    %326 = vmatmul.mubr.bf16.gmra.mxu0 %v153
    %v327 = vpop.f32.mrf.mxu0
    %v328 = vadd.f32 %v99, %v327
    %v329 = vpop.f32.mrf.mxu0
    %v330 = vpop.f32.mrf.mxu0
    %v331 = vadd.f32 %v99, %v330
    %v332 = vpop.f32.mrf.mxu0
    %333 = vmatprep.mubr.bf16.mxu0 %v156
    %334 = vmatmul.mubr.bf16.gmra.mxu0 %v155
    %v335 = vpop.f32.mrf.mxu0
    %v336 = vadd.f32 %v99, %v335
    %v337 = vpop.f32.mrf.mxu0
    %v338 = vpop.f32.mrf.mxu0
    %v339 = vadd.f32 %v99, %v338
    %v340 = vpop.f32.mrf.mxu0
    %341 = vmatprep.mubr.bf16.mxu0 %v158
    %342 = vmatmul.mubr.bf16.gmra.mxu0 %v157
    %v343 = vpop.f32.mrf.mxu0
    %v344 = vadd.f32 %v99, %v343
    %v345 = vpop.f32.mrf.mxu0
    %v346 = vpop.f32.mrf.mxu0
    %v347 = vadd.f32 %v99, %v346
    %v348 = vpop.f32.mrf.mxu0
    %349 = vmatprep.mubr.bf16.mxu0 %v160
    %350 = vmatmul.mubr.bf16.gmra.mxu0 %v159
    %v351 = vpop.f32.mrf.mxu0
    %v352 = vadd.f32 %v99, %v351
    %v353 = vpop.f32.mrf.mxu0
    %v354 = vpop.f32.mrf.mxu0
    %v355 = vadd.f32 %v99, %v354
    %v356 = vpop.f32.mrf.mxu0
    %357 = vmatprep.mubr.bf16.mxu0 %v162
    %358 = vmatmul.mubr.bf16.gmra.mxu0 %v161
    %v359 = vpop.f32.mrf.mxu0
    %v360 = vadd.f32 %v99, %v359
    %v361 = vpop.f32.mrf.mxu0
    %v362 = vpop.f32.mrf.mxu0
    %v363 = vadd.f32 %v99, %v362
    %v364 = vpop.f32.mrf.mxu0
    %365 = vmatprep.mubr.bf16.mxu0 %v164
    %366 = vmatmul.mubr.bf16.gmra.mxu0 %v163
    %v367 = vpop.f32.mrf.mxu0
    %v368 = vadd.f32 %v99, %v367
    %v369 = vpop.f32.mrf.mxu0
    %v370 = vpop.f32.mrf.mxu0
    %v371 = vadd.f32 %v99, %v370
    %v372 = vpop.f32.mrf.mxu0
    %373 = vdwg.mxu0
    %v374 = vmax.f32 %v312, 0.0
    %v375 = vmax.f32 %v315, 0.0
    %v376 = vmax.f32 %v320, 0.0
    %v377 = vmax.f32 %v323, 0.0
    %v378 = vmax.f32 %v328, 0.0
    %v379 = vmax.f32 %v331, 0.0
    %v380 = vmax.f32 %v336, 0.0
    %v381 = vmax.f32 %v339, 0.0
    %v382 = vmax.f32 %v344, 0.0
    %v383 = vmax.f32 %v347, 0.0
    %v384 = vmax.f32 %v352, 0.0
    %v385 = vmax.f32 %v355, 0.0
    %v386 = vmax.f32 %v360, 0.0
    %v387 = vmax.f32 %v363, 0.0
    %v388 = vmax.f32 %v368, 0.0
    %v389 = vmax.f32 %v371, 0.0
    %v390 = vpack.c.bf16 %v375, %v374
    %v391 = vpack.c.bf16 %v377, %v376
    %v392 = vpack.c.bf16 %v379, %v378
    %v393 = vpack.c.bf16 %v381, %v380
    %v394 = vpack.c.bf16 %v383, %v382
    %v395 = vpack.c.bf16 %v385, %v384
    %v396 = vpack.c.bf16 %v387, %v386
    %v397 = vpack.c.bf16 %v389, %v388
    %v398 = vld [vmem:[%s3] sm:$0xf]
    %v399 = vld [vmem:[%s3 + $0x4] sm:$0xf]
    %v400 = vld [vmem:[%s3 + $0x8] sm:$0x1]
    %v404 = vunpack.c.l.b16 %v398
    %v405 = vunpack.c.l.b16 %v399
    %v406 = vunpack.c.l.b16 %v400
    %v407 = vpack.c.b16 %v405, %v404
    %v408 = vpack.c.b16 %v406, %v406
    %411 = vmatprep.subr.bf16.mxu0 0
    %412 = vmatpush1.bf16.msra.mxu0 %v397
    %413 = vmatprep.subr.bf16.mxu0 0
    %414 = vmatpush1.bf16.msra.mxu0 %v396
    %415 = vmatprep.subr.bf16.mxu0 0
    %416 = vmatpush1.bf16.msra.mxu0 %v395
    %417 = vmatprep.subr.bf16.mxu0 0
    %418 = vmatpush1.bf16.msra.mxu0 %v394
    %419 = vmatprep.subr.bf16.mxu0 0
    %420 = vmatpush1.bf16.msra.mxu0 %v393
    %421 = vmatprep.subr.bf16.mxu0 0
    %422 = vmatpush1.bf16.msra.mxu0 %v392
    %423 = vmatprep.subr.bf16.mxu0 0
    %424 = vmatpush1.bf16.msra.mxu0 %v391
    %425 = vmatprep.subr.bf16.mxu0 0
    %426 = vmatpush1.bf16.msra.mxu0 %v390
    %427 = vmatprep.subr.bf16.mxu0 0
    %428 = vmatpush2.bf16.msra.mxu0 0
    %429 = vmatprep.subr.bf16.mxu0 0
    %430 = vmatpush2.bf16.msra.mxu0 0
    %431 = vmatprep.subr.bf16.mxu0 0
    %432 = vmatpush2.bf16.msra.mxu0 0
    %433 = vmatprep.subr.bf16.mxu0 0
    %434 = vmatpush2.bf16.msra.mxu0 0
    %435 = vmatprep.subr.bf16.mxu0 0
    %436 = vmatpush2.bf16.msra.mxu0 0
    %437 = vmatprep.subr.bf16.mxu0 0
    %438 = vmatpush2.bf16.msra.mxu0 0
    %439 = vmatprep.subr.bf16.mxu0 0
    %440 = vmatpush2.bf16.msra.mxu0 0
    %441 = vmatprep.subr.bf16.mxu0 0
    %442 = vmatpush2.bf16.msra.mxu0 0
    %443 = vmatprep.mubr.bf16.mxu0 0
    %444 = vmatmul.mubr.bf16.gmra.mxu0 %v407
    %v445 = vpop.f32.mrf.mxu0
    %v446 = vadd.f32 0.0, %v445
    %v447 = vpop.f32.mrf.mxu0
    %v448 = vpop.f32.mrf.mxu0
    %v449 = vadd.f32 0.0, %v448
    %v450 = vpop.f32.mrf.mxu0
    %451 = vmatprep.mubr.bf16.mxu0 0
    %452 = vmatmul.mubr.bf16.gmra.mxu0 %v408
    %v453 = vpop.f32.mrf.mxu0
    %v454 = vadd.f32 0.0, %v453
    %v455 = vpop.f32.mrf.mxu0
    %v456 = vpop.f32.mrf.mxu0
    %v457 = vpop.f32.mrf.mxu0
    %458 = vdwg.mxu0
    %v459 = vpack.c.bf16 %v449, %v446
    %v460 = vpack.c.bf16 %v454, %v454
    %v461 = vld [vmem:[%s4] sm:$0xf]
    %v462 = vld [vmem:[%s4 + $0x4] sm:$0xf]
    %v463 = vld [vmem:[%s4 + $0x8] sm:$0xf]
    %v464 = vld [vmem:[%s4 + $0xc] sm:$0xf]
    %s465 = scalar_lea.vmem %s3, 12
    %v466 = vld [vmem:[%s465] sm:$0xf]
    %v467 = vld [vmem:[%s465 + $0x4] sm:$0xf]
    %v468 = vld [vmem:[%s465 + $0x8] sm:$0x1]
    %v472 = vunpack.c.l.b16 %v466
    %v473 = vunpack.c.l.b16 %v467
    %v474 = vunpack.c.l.b16 %v468
    %v475 = vpack.c.b16 %v473, %v472
    %v476 = vpack.c.b16 %v474, %v474
    %479 = vmatprep.subr.bf16.mxu0 0
    %480 = vmatpush1.bf16.msra.mxu0 %v397
    %481 = vmatprep.subr.bf16.mxu0 0
    %482 = vmatpush1.bf16.msra.mxu0 %v396
    %483 = vmatprep.subr.bf16.mxu0 0
    %484 = vmatpush1.bf16.msra.mxu0 %v395
    %485 = vmatprep.subr.bf16.mxu0 0
    %486 = vmatpush1.bf16.msra.mxu0 %v394
    %487 = vmatprep.subr.bf16.mxu0 0
    %488 = vmatpush1.bf16.msra.mxu0 %v393
    %489 = vmatprep.subr.bf16.mxu0 0
    %490 = vmatpush1.bf16.msra.mxu0 %v392
    %491 = vmatprep.subr.bf16.mxu0 0
    %492 = vmatpush1.bf16.msra.mxu0 %v391
    %493 = vmatprep.subr.bf16.mxu0 0
    %494 = vmatpush1.bf16.msra.mxu0 %v390
    %495 = vmatprep.subr.bf16.mxu0 0
    %496 = vmatpush2.bf16.msra.mxu0 0
    %497 = vmatprep.subr.bf16.mxu0 0
    %498 = vmatpush2.bf16.msra.mxu0 0
    %499 = vmatprep.subr.bf16.mxu0 0
    %500 = vmatpush2.bf16.msra.mxu0 0
    %501 = vmatprep.subr.bf16.mxu0 0
    %502 = vmatpush2.bf16.msra.mxu0 0
    %503 = vmatprep.subr.bf16.mxu0 0
    %504 = vmatpush2.bf16.msra.mxu0 0
    %505 = vmatprep.subr.bf16.mxu0 0
    %506 = vmatpush2.bf16.msra.mxu0 0
    %507 = vmatprep.subr.bf16.mxu0 0
    %508 = vmatpush2.bf16.msra.mxu0 0
    %509 = vmatprep.subr.bf16.mxu0 0
    %510 = vmatpush2.bf16.msra.mxu0 0
    %511 = vmatprep.mubr.bf16.mxu0 0
    %512 = vmatmul.mubr.bf16.gmra.mxu0 %v475
    %v513 = vpop.f32.mrf.mxu0
    %v514 = vadd.f32 0.0, %v513
    %v515 = vpop.f32.mrf.mxu0
    %v516 = vpop.f32.mrf.mxu0
    %v517 = vadd.f32 0.0, %v516
    %v518 = vpop.f32.mrf.mxu0
    %519 = vmatprep.mubr.bf16.mxu0 0
    %520 = vmatmul.mubr.bf16.gmra.mxu0 %v476
    %v521 = vpop.f32.mrf.mxu0
    %v522 = vadd.f32 0.0, %v521
    %v523 = vpop.f32.mrf.mxu0
    %v524 = vpop.f32.mrf.mxu0
    %v525 = vpop.f32.mrf.mxu0
    %526 = vdwg.mxu0
    %v527 = vpack.c.bf16 %v517, %v514
    %v528 = vpack.c.bf16 %v522, %v522
    %s529 = scalar_lea.vmem %s4, 16
    %v530 = vld [vmem:[%s529] sm:$0xf]
    %v531 = vld [vmem:[%s529 + $0x4] sm:$0xf]
    %v532 = vld [vmem:[%s529 + $0x8] sm:$0xf]
    %v533 = vld [vmem:[%s529 + $0xc] sm:$0xf]
    %v538 = vunpack.c.l.b16 %v530
    %v539 = vunpack.c.l.b16 %v531
    %v540 = vunpack.c.l.b16 %v532
    %v541 = vunpack.c.l.b16 %v533
    %v542 = vpack.c.b16 %v539, %v538
    %v543 = vpack.c.b16 %v541, %v540
    %vm546 = vcmask 261120
    %v548 = vsel %vm546, %v527, 0
    %v551 = vsel %vm546, %v528, 0
    %553 = vmatprep.subr.bf16.mxu0 0
    %554 = vmatpush1.bf16.msra.mxu0 0
    %555 = vmatprep.subr.bf16.mxu0 0
    %556 = vmatpush1.bf16.msra.mxu0 0
    %557 = vmatprep.subr.bf16.mxu0 0
    %558 = vmatpush1.bf16.msra.mxu0 0
    %559 = vmatprep.subr.bf16.mxu0 0
    %560 = vmatpush1.bf16.msra.mxu0 0
    %561 = vmatprep.subr.bf16.mxu0 0
    %562 = vmatpush1.bf16.msra.mxu0 0
    %563 = vmatprep.subr.bf16.mxu0 0
    %564 = vmatpush1.bf16.msra.mxu0 0
    %565 = vmatprep.subr.bf16.mxu0 0
    %566 = vmatpush1.bf16.msra.mxu0 %v543
    %567 = vmatprep.subr.bf16.mxu0 0
    %568 = vmatpush1.bf16.msra.mxu0 %v542
    %569 = vmatprep.subr.bf16.mxu0 0
    %570 = vmatpush2.bf16.msra.mxu0 0
    %571 = vmatprep.subr.bf16.mxu0 0
    %572 = vmatpush2.bf16.msra.mxu0 0
    %573 = vmatprep.subr.bf16.mxu0 0
    %574 = vmatpush2.bf16.msra.mxu0 0
    %575 = vmatprep.subr.bf16.mxu0 0
    %576 = vmatpush2.bf16.msra.mxu0 0
    %577 = vmatprep.subr.bf16.mxu0 0
    %578 = vmatpush2.bf16.msra.mxu0 0
    %579 = vmatprep.subr.bf16.mxu0 0
    %580 = vmatpush2.bf16.msra.mxu0 0
    %581 = vmatprep.subr.bf16.mxu0 0
    %582 = vmatpush2.bf16.msra.mxu0 0
    %583 = vmatprep.subr.bf16.mxu0 0
    %584 = vmatpush2.bf16.msra.mxu0 0
    %585 = vmatprep.mubr.bf16.mxu0 0
    %586 = vmatmul.mubr.bf16.gmra.mxu0 %v548
    %v587 = vpop.f32.mrf.mxu0
    %v588 = vadd.f32 0.0, %v587
    %v589 = vpop.f32.mrf.mxu0
    %v590 = vpop.f32.mrf.mxu0
    %v591 = vadd.f32 0.0, %v590
    %v592 = vpop.f32.mrf.mxu0
    %593 = vmatprep.mubr.bf16.mxu0 0
    %594 = vmatmul.mubr.bf16.gmra.mxu0 %v551
    %v595 = vpop.f32.mrf.mxu0
    %v596 = vadd.f32 0.0, %v595
    %v597 = vpop.f32.mrf.mxu0
    %v598 = vpop.f32.mrf.mxu0
    %v599 = vpop.f32.mrf.mxu0
    %600 = vdwg.mxu0
    %v605 = vunpack.c.l.b16 %v461
    %v606 = vunpack.c.l.b16 %v462
    %v607 = vunpack.c.l.b16 %v463
    %v608 = vunpack.c.l.b16 %v464
    %v609 = vpack.c.b16 %v606, %v605
    %v610 = vpack.c.b16 %v608, %v607
    %v614 = vsel %vm546, %v459, 0
    %v617 = vsel %vm546, %v460, 0
    %619 = vmatprep.subr.bf16.mxu0 0
    %620 = vmatpush1.bf16.msra.mxu0 0
    %621 = vmatprep.subr.bf16.mxu0 0
    %622 = vmatpush1.bf16.msra.mxu0 0
    %623 = vmatprep.subr.bf16.mxu0 0
    %624 = vmatpush1.bf16.msra.mxu0 0
    %625 = vmatprep.subr.bf16.mxu0 0
    %626 = vmatpush1.bf16.msra.mxu0 0
    %627 = vmatprep.subr.bf16.mxu0 0
    %628 = vmatpush1.bf16.msra.mxu0 0
    %629 = vmatprep.subr.bf16.mxu0 0
    %630 = vmatpush1.bf16.msra.mxu0 0
    %631 = vmatprep.subr.bf16.mxu0 0
    %632 = vmatpush1.bf16.msra.mxu0 %v610
    %633 = vmatprep.subr.bf16.mxu0 0
    %634 = vmatpush1.bf16.msra.mxu0 %v609
    %635 = vmatprep.subr.bf16.mxu0 0
    %636 = vmatpush2.bf16.msra.mxu0 0
    %637 = vmatprep.subr.bf16.mxu0 0
    %638 = vmatpush2.bf16.msra.mxu0 0
    %639 = vmatprep.subr.bf16.mxu0 0
    %640 = vmatpush2.bf16.msra.mxu0 0
    %641 = vmatprep.subr.bf16.mxu0 0
    %642 = vmatpush2.bf16.msra.mxu0 0
    %643 = vmatprep.subr.bf16.mxu0 0
    %644 = vmatpush2.bf16.msra.mxu0 0
    %645 = vmatprep.subr.bf16.mxu0 0
    %646 = vmatpush2.bf16.msra.mxu0 0
    %647 = vmatprep.subr.bf16.mxu0 0
    %648 = vmatpush2.bf16.msra.mxu0 0
    %649 = vmatprep.subr.bf16.mxu0 0
    %650 = vmatpush2.bf16.msra.mxu0 0
    %651 = vmatprep.mubr.bf16.mxu0 0
    %652 = vmatmul.mubr.bf16.gmra.mxu0 %v614
    %v653 = vpop.f32.mrf.mxu0
    %v654 = vadd.f32 %v588, %v653
    %v655 = vpop.f32.mrf.mxu0
    %v656 = vpop.f32.mrf.mxu0
    %v657 = vadd.f32 %v591, %v656
    %v658 = vpop.f32.mrf.mxu0
    %659 = vmatprep.mubr.bf16.mxu0 0
    %660 = vmatmul.mubr.bf16.gmra.mxu0 %v617
    %v661 = vpop.f32.mrf.mxu0
    %v662 = vadd.f32 %v596, %v661
    %v663 = vpop.f32.mrf.mxu0
    %v664 = vpop.f32.mrf.mxu0
    %v665 = vpop.f32.mrf.mxu0
    %666 = vdwg.mxu0
    %s667 = scalar_lea.vmem %s3, 24
    %v668 = vld [vmem:[%s667] sm:$0xf]
    %v669 = vld [vmem:[%s667 + $0x4] sm:$0xf]
    %v670 = vld [vmem:[%s667 + $0x8] sm:$0x1]
    %v674 = vunpack.c.l.b16 %v668
    %v675 = vunpack.c.l.b16 %v669
    %v676 = vunpack.c.l.b16 %v670
    %v677 = vpack.c.b16 %v675, %v674
    %v678 = vpack.c.b16 %v676, %v676
    %681 = vmatprep.subr.bf16.mxu0 0
    %682 = vmatpush1.bf16.msra.mxu0 %v397
    %683 = vmatprep.subr.bf16.mxu0 0
    %684 = vmatpush1.bf16.msra.mxu0 %v396
    %685 = vmatprep.subr.bf16.mxu0 0
    %686 = vmatpush1.bf16.msra.mxu0 %v395
    %687 = vmatprep.subr.bf16.mxu0 0
    %688 = vmatpush1.bf16.msra.mxu0 %v394
    %689 = vmatprep.subr.bf16.mxu0 0
    %690 = vmatpush1.bf16.msra.mxu0 %v393
    %691 = vmatprep.subr.bf16.mxu0 0
    %692 = vmatpush1.bf16.msra.mxu0 %v392
    %693 = vmatprep.subr.bf16.mxu0 0
    %694 = vmatpush1.bf16.msra.mxu0 %v391
    %695 = vmatprep.subr.bf16.mxu0 0
    %696 = vmatpush1.bf16.msra.mxu0 %v390
    %697 = vmatprep.subr.bf16.mxu0 0
    %698 = vmatpush2.bf16.msra.mxu0 0
    %699 = vmatprep.subr.bf16.mxu0 0
    %700 = vmatpush2.bf16.msra.mxu0 0
    %701 = vmatprep.subr.bf16.mxu0 0
    %702 = vmatpush2.bf16.msra.mxu0 0
    %703 = vmatprep.subr.bf16.mxu0 0
    %704 = vmatpush2.bf16.msra.mxu0 0
    %705 = vmatprep.subr.bf16.mxu0 0
    %706 = vmatpush2.bf16.msra.mxu0 0
    %707 = vmatprep.subr.bf16.mxu0 0
    %708 = vmatpush2.bf16.msra.mxu0 0
    %709 = vmatprep.subr.bf16.mxu0 0
    %710 = vmatpush2.bf16.msra.mxu0 0
    %711 = vmatprep.subr.bf16.mxu0 0
    %712 = vmatpush2.bf16.msra.mxu0 0
    %713 = vmatprep.mubr.bf16.mxu0 0
    %714 = vmatmul.mubr.bf16.gmra.mxu0 %v677
    %v715 = vpop.f32.mrf.mxu0
    %v716 = vadd.f32 0.0, %v715
    %v717 = vpop.f32.mrf.mxu0
    %v718 = vpop.f32.mrf.mxu0
    %v719 = vadd.f32 0.0, %v718
    %v720 = vpop.f32.mrf.mxu0
    %721 = vmatprep.mubr.bf16.mxu0 0
    %722 = vmatmul.mubr.bf16.gmra.mxu0 %v678
    %v723 = vpop.f32.mrf.mxu0
    %v724 = vadd.f32 0.0, %v723
    %v725 = vpop.f32.mrf.mxu0
    %v726 = vpop.f32.mrf.mxu0
    %v727 = vpop.f32.mrf.mxu0
    %728 = vdwg.mxu0
    %v729 = vpack.c.bf16 %v719, %v716
    %v730 = vpack.c.bf16 %v724, %v724
    %s731 = scalar_lea.vmem %s4, 32
    %v732 = vld [vmem:[%s731] sm:$0xf]
    %v733 = vld [vmem:[%s731 + $0x4] sm:$0xf]
    %v734 = vld [vmem:[%s731 + $0x8] sm:$0xf]
    %v735 = vld [vmem:[%s731 + $0xc] sm:$0xf]
    %v740 = vunpack.c.l.b16 %v732
    %v741 = vunpack.c.l.b16 %v733
    %v742 = vunpack.c.l.b16 %v734
    %v743 = vunpack.c.l.b16 %v735
    %v744 = vpack.c.b16 %v741, %v740
    %v745 = vpack.c.b16 %v743, %v742
    %v749 = vsel %vm546, %v729, 0
    %v752 = vsel %vm546, %v730, 0
    %754 = vmatprep.subr.bf16.mxu0 0
    %755 = vmatpush1.bf16.msra.mxu0 0
    %756 = vmatprep.subr.bf16.mxu0 0
    %757 = vmatpush1.bf16.msra.mxu0 0
    %758 = vmatprep.subr.bf16.mxu0 0
    %759 = vmatpush1.bf16.msra.mxu0 0
    %760 = vmatprep.subr.bf16.mxu0 0
    %761 = vmatpush1.bf16.msra.mxu0 0
    %762 = vmatprep.subr.bf16.mxu0 0
    %763 = vmatpush1.bf16.msra.mxu0 0
    %764 = vmatprep.subr.bf16.mxu0 0
    %765 = vmatpush1.bf16.msra.mxu0 0
    %766 = vmatprep.subr.bf16.mxu0 0
    %767 = vmatpush1.bf16.msra.mxu0 %v745
    %768 = vmatprep.subr.bf16.mxu0 0
    %769 = vmatpush1.bf16.msra.mxu0 %v744
    %770 = vmatprep.subr.bf16.mxu0 0
    %771 = vmatpush2.bf16.msra.mxu0 0
    %772 = vmatprep.subr.bf16.mxu0 0
    %773 = vmatpush2.bf16.msra.mxu0 0
    %774 = vmatprep.subr.bf16.mxu0 0
    %775 = vmatpush2.bf16.msra.mxu0 0
    %776 = vmatprep.subr.bf16.mxu0 0
    %777 = vmatpush2.bf16.msra.mxu0 0
    %778 = vmatprep.subr.bf16.mxu0 0
    %779 = vmatpush2.bf16.msra.mxu0 0
    %780 = vmatprep.subr.bf16.mxu0 0
    %781 = vmatpush2.bf16.msra.mxu0 0
    %782 = vmatprep.subr.bf16.mxu0 0
    %783 = vmatpush2.bf16.msra.mxu0 0
    %784 = vmatprep.subr.bf16.mxu0 0
    %785 = vmatpush2.bf16.msra.mxu0 0
    %786 = vmatprep.mubr.bf16.mxu0 0
    %787 = vmatmul.mubr.bf16.gmra.mxu0 %v749
    %v788 = vpop.f32.mrf.mxu0
    %v789 = vadd.f32 0.0, %v788
    %v790 = vpop.f32.mrf.mxu0
    %v791 = vpop.f32.mrf.mxu0
    %v792 = vadd.f32 0.0, %v791
    %v793 = vpop.f32.mrf.mxu0
    %794 = vmatprep.mubr.bf16.mxu0 0
    %795 = vmatmul.mubr.bf16.gmra.mxu0 %v752
    %v796 = vpop.f32.mrf.mxu0
    %v797 = vadd.f32 0.0, %v796
    %v798 = vpop.f32.mrf.mxu0
    %v799 = vpop.f32.mrf.mxu0
    %v800 = vpop.f32.mrf.mxu0
    %801 = vdwg.mxu0
    %v802 = vadd.f32 %v654, %v789
    %v803 = vadd.f32 %v657, %v792
    %v804 = vadd.f32 %v662, %v797
    %s805 = scalar_lea.vmem %s3, 36
    %v806 = vld [vmem:[%s805] sm:$0xf]
    %v807 = vld [vmem:[%s805 + $0x4] sm:$0xf]
    %v808 = vld [vmem:[%s805 + $0x8] sm:$0x1]
    %v812 = vunpack.c.l.b16 %v806
    %v813 = vunpack.c.l.b16 %v807
    %v814 = vunpack.c.l.b16 %v808
    %v815 = vpack.c.b16 %v813, %v812
    %v816 = vpack.c.b16 %v814, %v814
    %819 = vmatprep.subr.bf16.mxu0 0
    %820 = vmatpush1.bf16.msra.mxu0 %v397
    %821 = vmatprep.subr.bf16.mxu0 0
    %822 = vmatpush1.bf16.msra.mxu0 %v396
    %823 = vmatprep.subr.bf16.mxu0 0
    %824 = vmatpush1.bf16.msra.mxu0 %v395
    %825 = vmatprep.subr.bf16.mxu0 0
    %826 = vmatpush1.bf16.msra.mxu0 %v394
    %827 = vmatprep.subr.bf16.mxu0 0
    %828 = vmatpush1.bf16.msra.mxu0 %v393
    %829 = vmatprep.subr.bf16.mxu0 0
    %830 = vmatpush1.bf16.msra.mxu0 %v392
    %831 = vmatprep.subr.bf16.mxu0 0
    %832 = vmatpush1.bf16.msra.mxu0 %v391
    %833 = vmatprep.subr.bf16.mxu0 0
    %834 = vmatpush1.bf16.msra.mxu0 %v390
    %835 = vmatprep.subr.bf16.mxu0 0
    %836 = vmatpush2.bf16.msra.mxu0 0
    %837 = vmatprep.subr.bf16.mxu0 0
    %838 = vmatpush2.bf16.msra.mxu0 0
    %839 = vmatprep.subr.bf16.mxu0 0
    %840 = vmatpush2.bf16.msra.mxu0 0
    %841 = vmatprep.subr.bf16.mxu0 0
    %842 = vmatpush2.bf16.msra.mxu0 0
    %843 = vmatprep.subr.bf16.mxu0 0
    %844 = vmatpush2.bf16.msra.mxu0 0
    %845 = vmatprep.subr.bf16.mxu0 0
    %846 = vmatpush2.bf16.msra.mxu0 0
    %847 = vmatprep.subr.bf16.mxu0 0
    %848 = vmatpush2.bf16.msra.mxu0 0
    %849 = vmatprep.subr.bf16.mxu0 0
    %850 = vmatpush2.bf16.msra.mxu0 0
    %851 = vmatprep.mubr.bf16.mxu0 0
    %852 = vmatmul.mubr.bf16.gmra.mxu0 %v815
    %v853 = vpop.f32.mrf.mxu0
    %v854 = vadd.f32 0.0, %v853
    %v855 = vpop.f32.mrf.mxu0
    %v856 = vpop.f32.mrf.mxu0
    %v857 = vadd.f32 0.0, %v856
    %v858 = vpop.f32.mrf.mxu0
    %859 = vmatprep.mubr.bf16.mxu0 0
    %860 = vmatmul.mubr.bf16.gmra.mxu0 %v816
    %v861 = vpop.f32.mrf.mxu0
    %v862 = vadd.f32 0.0, %v861
    %v863 = vpop.f32.mrf.mxu0
    %v864 = vpop.f32.mrf.mxu0
    %v865 = vpop.f32.mrf.mxu0
    %866 = vdwg.mxu0
    %v867 = vpack.c.bf16 %v857, %v854
    %v868 = vpack.c.bf16 %v862, %v862
    %s869 = scalar_lea.vmem %s4, 48
    %v870 = vld [vmem:[%s869] sm:$0xf]
    %v871 = vld [vmem:[%s869 + $0x4] sm:$0xf]
    %v872 = vld [vmem:[%s869 + $0x8] sm:$0xf]
    %v873 = vld [vmem:[%s869 + $0xc] sm:$0xf]
    %v878 = vunpack.c.l.b16 %v870
    %v879 = vunpack.c.l.b16 %v871
    %v880 = vunpack.c.l.b16 %v872
    %v881 = vunpack.c.l.b16 %v873
    %v882 = vpack.c.b16 %v879, %v878
    %v883 = vpack.c.b16 %v881, %v880
    %v887 = vsel %vm546, %v867, 0
    %v890 = vsel %vm546, %v868, 0
    %892 = vmatprep.subr.bf16.mxu0 0
    %893 = vmatpush1.bf16.msra.mxu0 0
    %894 = vmatprep.subr.bf16.mxu0 0
    %895 = vmatpush1.bf16.msra.mxu0 0
    %896 = vmatprep.subr.bf16.mxu0 0
    %897 = vmatpush1.bf16.msra.mxu0 0
    %898 = vmatprep.subr.bf16.mxu0 0
    %899 = vmatpush1.bf16.msra.mxu0 0
    %900 = vmatprep.subr.bf16.mxu0 0
    %901 = vmatpush1.bf16.msra.mxu0 0
    %902 = vmatprep.subr.bf16.mxu0 0
    %903 = vmatpush1.bf16.msra.mxu0 0
    %904 = vmatprep.subr.bf16.mxu0 0
    %905 = vmatpush1.bf16.msra.mxu0 %v883
    %906 = vmatprep.subr.bf16.mxu0 0
    %907 = vmatpush1.bf16.msra.mxu0 %v882
    %908 = vmatprep.subr.bf16.mxu0 0
    %909 = vmatpush2.bf16.msra.mxu0 0
    %910 = vmatprep.subr.bf16.mxu0 0
    %911 = vmatpush2.bf16.msra.mxu0 0
    %912 = vmatprep.subr.bf16.mxu0 0
    %913 = vmatpush2.bf16.msra.mxu0 0
    %914 = vmatprep.subr.bf16.mxu0 0
    %915 = vmatpush2.bf16.msra.mxu0 0
    %916 = vmatprep.subr.bf16.mxu0 0
    %917 = vmatpush2.bf16.msra.mxu0 0
    %918 = vmatprep.subr.bf16.mxu0 0
    %919 = vmatpush2.bf16.msra.mxu0 0
    %920 = vmatprep.subr.bf16.mxu0 0
    %921 = vmatpush2.bf16.msra.mxu0 0
    %922 = vmatprep.subr.bf16.mxu0 0
    %923 = vmatpush2.bf16.msra.mxu0 0
    %924 = vmatprep.mubr.bf16.mxu0 0
    %925 = vmatmul.mubr.bf16.gmra.mxu0 %v887
    %v926 = vpop.f32.mrf.mxu0
    %v927 = vadd.f32 0.0, %v926
    %v928 = vpop.f32.mrf.mxu0
    %v929 = vpop.f32.mrf.mxu0
    %v930 = vadd.f32 0.0, %v929
    %v931 = vpop.f32.mrf.mxu0
    %932 = vmatprep.mubr.bf16.mxu0 0
    %933 = vmatmul.mubr.bf16.gmra.mxu0 %v890
    %v934 = vpop.f32.mrf.mxu0
    %v935 = vadd.f32 0.0, %v934
    %v936 = vpop.f32.mrf.mxu0
    %v937 = vpop.f32.mrf.mxu0
    %v938 = vpop.f32.mrf.mxu0
    %939 = vdwg.mxu0
    %v940 = vadd.f32 %v802, %v927
    %v941 = vadd.f32 %v803, %v930
    %v942 = vadd.f32 %v804, %v935
    %s943 = scalar_lea.vmem %s3, 48
    %v944 = vld [vmem:[%s943] sm:$0xf]
    %v945 = vld [vmem:[%s943 + $0x4] sm:$0xf]
    %v946 = vld [vmem:[%s943 + $0x8] sm:$0x1]
    %v950 = vunpack.c.l.b16 %v944
    %v951 = vunpack.c.l.b16 %v945
    %v952 = vunpack.c.l.b16 %v946
    %v953 = vpack.c.b16 %v951, %v950
    %v954 = vpack.c.b16 %v952, %v952
    %957 = vmatprep.subr.bf16.mxu0 0
    %958 = vmatpush1.bf16.msra.mxu0 %v397
    %959 = vmatprep.subr.bf16.mxu0 0
    %960 = vmatpush1.bf16.msra.mxu0 %v396
    %961 = vmatprep.subr.bf16.mxu0 0
    %962 = vmatpush1.bf16.msra.mxu0 %v395
    %963 = vmatprep.subr.bf16.mxu0 0
    %964 = vmatpush1.bf16.msra.mxu0 %v394
    %965 = vmatprep.subr.bf16.mxu0 0
    %966 = vmatpush1.bf16.msra.mxu0 %v393
    %967 = vmatprep.subr.bf16.mxu0 0
    %968 = vmatpush1.bf16.msra.mxu0 %v392
    %969 = vmatprep.subr.bf16.mxu0 0
    %970 = vmatpush1.bf16.msra.mxu0 %v391
    %971 = vmatprep.subr.bf16.mxu0 0
    %972 = vmatpush1.bf16.msra.mxu0 %v390
    %973 = vmatprep.subr.bf16.mxu0 0
    %974 = vmatpush2.bf16.msra.mxu0 0
    %975 = vmatprep.subr.bf16.mxu0 0
    %976 = vmatpush2.bf16.msra.mxu0 0
    %977 = vmatprep.subr.bf16.mxu0 0
    %978 = vmatpush2.bf16.msra.mxu0 0
    %979 = vmatprep.subr.bf16.mxu0 0
    %980 = vmatpush2.bf16.msra.mxu0 0
    %981 = vmatprep.subr.bf16.mxu0 0
    %982 = vmatpush2.bf16.msra.mxu0 0
    %983 = vmatprep.subr.bf16.mxu0 0
    %984 = vmatpush2.bf16.msra.mxu0 0
    %985 = vmatprep.subr.bf16.mxu0 0
    %986 = vmatpush2.bf16.msra.mxu0 0
    %987 = vmatprep.subr.bf16.mxu0 0
    %988 = vmatpush2.bf16.msra.mxu0 0
    %989 = vmatprep.mubr.bf16.mxu0 0
    %990 = vmatmul.mubr.bf16.gmra.mxu0 %v953
    %v991 = vpop.f32.mrf.mxu0
    %v992 = vadd.f32 0.0, %v991
    %v993 = vpop.f32.mrf.mxu0
    %v994 = vpop.f32.mrf.mxu0
    %v995 = vadd.f32 0.0, %v994
    %v996 = vpop.f32.mrf.mxu0
    %997 = vmatprep.mubr.bf16.mxu0 0
    %998 = vmatmul.mubr.bf16.gmra.mxu0 %v954
    %v999 = vpop.f32.mrf.mxu0
    %v1000 = vadd.f32 0.0, %v999
    %v1001 = vpop.f32.mrf.mxu0
    %v1002 = vpop.f32.mrf.mxu0
    %v1003 = vpop.f32.mrf.mxu0
    %1004 = vdwg.mxu0
    %v1005 = vpack.c.bf16 %v995, %v992
    %v1006 = vpack.c.bf16 %v1000, %v1000
    %s1007 = scalar_lea.vmem %s4, 64
    %v1008 = vld [vmem:[%s1007] sm:$0xf]
    %v1009 = vld [vmem:[%s1007 + $0x4] sm:$0xf]
    %v1010 = vld [vmem:[%s1007 + $0x8] sm:$0xf]
    %v1011 = vld [vmem:[%s1007 + $0xc] sm:$0xf]
    %v1016 = vunpack.c.l.b16 %v1008
    %v1017 = vunpack.c.l.b16 %v1009
    %v1018 = vunpack.c.l.b16 %v1010
    %v1019 = vunpack.c.l.b16 %v1011
    %v1020 = vpack.c.b16 %v1017, %v1016
    %v1021 = vpack.c.b16 %v1019, %v1018
    %v1025 = vsel %vm546, %v1005, 0
    %v1028 = vsel %vm546, %v1006, 0
    %1030 = vmatprep.subr.bf16.mxu0 0
    %1031 = vmatpush1.bf16.msra.mxu0 0
    %1032 = vmatprep.subr.bf16.mxu0 0
    %1033 = vmatpush1.bf16.msra.mxu0 0
    %1034 = vmatprep.subr.bf16.mxu0 0
    %1035 = vmatpush1.bf16.msra.mxu0 0
    %1036 = vmatprep.subr.bf16.mxu0 0
    %1037 = vmatpush1.bf16.msra.mxu0 0
    %1038 = vmatprep.subr.bf16.mxu0 0
    %1039 = vmatpush1.bf16.msra.mxu0 0
    %1040 = vmatprep.subr.bf16.mxu0 0
    %1041 = vmatpush1.bf16.msra.mxu0 0
    %1042 = vmatprep.subr.bf16.mxu0 0
    %1043 = vmatpush1.bf16.msra.mxu0 %v1021
    %1044 = vmatprep.subr.bf16.mxu0 0
    %1045 = vmatpush1.bf16.msra.mxu0 %v1020
    %1046 = vmatprep.subr.bf16.mxu0 0
    %1047 = vmatpush2.bf16.msra.mxu0 0
    %1048 = vmatprep.subr.bf16.mxu0 0
    %1049 = vmatpush2.bf16.msra.mxu0 0
    %1050 = vmatprep.subr.bf16.mxu0 0
    %1051 = vmatpush2.bf16.msra.mxu0 0
    %1052 = vmatprep.subr.bf16.mxu0 0
    %1053 = vmatpush2.bf16.msra.mxu0 0
    %1054 = vmatprep.subr.bf16.mxu0 0
    %1055 = vmatpush2.bf16.msra.mxu0 0
    %1056 = vmatprep.subr.bf16.mxu0 0
    %1057 = vmatpush2.bf16.msra.mxu0 0
    %1058 = vmatprep.subr.bf16.mxu0 0
    %1059 = vmatpush2.bf16.msra.mxu0 0
    %1060 = vmatprep.subr.bf16.mxu0 0
    %1061 = vmatpush2.bf16.msra.mxu0 0
    %1062 = vmatprep.mubr.bf16.mxu0 0
    %1063 = vmatmul.mubr.bf16.gmra.mxu0 %v1025
    %v1064 = vpop.f32.mrf.mxu0
    %v1065 = vadd.f32 0.0, %v1064
    %v1066 = vpop.f32.mrf.mxu0
    %v1067 = vpop.f32.mrf.mxu0
    %v1068 = vadd.f32 0.0, %v1067
    %v1069 = vpop.f32.mrf.mxu0
    %1070 = vmatprep.mubr.bf16.mxu0 0
    %1071 = vmatmul.mubr.bf16.gmra.mxu0 %v1028
    %v1072 = vpop.f32.mrf.mxu0
    %v1073 = vadd.f32 0.0, %v1072
    %v1074 = vpop.f32.mrf.mxu0
    %v1075 = vpop.f32.mrf.mxu0
    %v1076 = vpop.f32.mrf.mxu0
    %1077 = vdwg.mxu0
    %v1078 = vadd.f32 %v940, %v1065
    %v1079 = vadd.f32 %v941, %v1068
    %v1080 = vadd.f32 %v942, %v1073
    %s1081 = scalar_lea.vmem %s3, 60
    %v1082 = vld [vmem:[%s1081] sm:$0xf]
    %v1083 = vld [vmem:[%s1081 + $0x4] sm:$0xf]
    %v1084 = vld [vmem:[%s1081 + $0x8] sm:$0x1]
    %v1088 = vunpack.c.l.b16 %v1082
    %v1089 = vunpack.c.l.b16 %v1083
    %v1090 = vunpack.c.l.b16 %v1084
    %v1091 = vpack.c.b16 %v1089, %v1088
    %v1092 = vpack.c.b16 %v1090, %v1090
    %1095 = vmatprep.subr.bf16.mxu0 0
    %1096 = vmatpush1.bf16.msra.mxu0 %v397
    %1097 = vmatprep.subr.bf16.mxu0 0
    %1098 = vmatpush1.bf16.msra.mxu0 %v396
    %1099 = vmatprep.subr.bf16.mxu0 0
    %1100 = vmatpush1.bf16.msra.mxu0 %v395
    %1101 = vmatprep.subr.bf16.mxu0 0
    %1102 = vmatpush1.bf16.msra.mxu0 %v394
    %1103 = vmatprep.subr.bf16.mxu0 0
    %1104 = vmatpush1.bf16.msra.mxu0 %v393
    %1105 = vmatprep.subr.bf16.mxu0 0
    %1106 = vmatpush1.bf16.msra.mxu0 %v392
    %1107 = vmatprep.subr.bf16.mxu0 0
    %1108 = vmatpush1.bf16.msra.mxu0 %v391
    %1109 = vmatprep.subr.bf16.mxu0 0
    %1110 = vmatpush1.bf16.msra.mxu0 %v390
    %1111 = vmatprep.subr.bf16.mxu0 0
    %1112 = vmatpush2.bf16.msra.mxu0 0
    %1113 = vmatprep.subr.bf16.mxu0 0
    %1114 = vmatpush2.bf16.msra.mxu0 0
    %1115 = vmatprep.subr.bf16.mxu0 0
    %1116 = vmatpush2.bf16.msra.mxu0 0
    %1117 = vmatprep.subr.bf16.mxu0 0
    %1118 = vmatpush2.bf16.msra.mxu0 0
    %1119 = vmatprep.subr.bf16.mxu0 0
    %1120 = vmatpush2.bf16.msra.mxu0 0
    %1121 = vmatprep.subr.bf16.mxu0 0
    %1122 = vmatpush2.bf16.msra.mxu0 0
    %1123 = vmatprep.subr.bf16.mxu0 0
    %1124 = vmatpush2.bf16.msra.mxu0 0
    %1125 = vmatprep.subr.bf16.mxu0 0
    %1126 = vmatpush2.bf16.msra.mxu0 0
    %1127 = vmatprep.mubr.bf16.mxu0 0
    %1128 = vmatmul.mubr.bf16.gmra.mxu0 %v1091
    %v1129 = vpop.f32.mrf.mxu0
    %v1130 = vadd.f32 0.0, %v1129
    %v1131 = vpop.f32.mrf.mxu0
    %v1132 = vpop.f32.mrf.mxu0
    %v1133 = vadd.f32 0.0, %v1132
    %v1134 = vpop.f32.mrf.mxu0
    %1135 = vmatprep.mubr.bf16.mxu0 0
    %1136 = vmatmul.mubr.bf16.gmra.mxu0 %v1092
    %v1137 = vpop.f32.mrf.mxu0
    %v1138 = vadd.f32 0.0, %v1137
    %v1139 = vpop.f32.mrf.mxu0
    %v1140 = vpop.f32.mrf.mxu0
    %v1141 = vpop.f32.mrf.mxu0
    %1142 = vdwg.mxu0
    %v1143 = vpack.c.bf16 %v1133, %v1130
    %v1144 = vpack.c.bf16 %v1138, %v1138
    %s1145 = scalar_lea.vmem %s4, 80
    %v1146 = vld [vmem:[%s1145] sm:$0xf]
    %v1147 = vld [vmem:[%s1145 + $0x4] sm:$0xf]
    %v1148 = vld [vmem:[%s1145 + $0x8] sm:$0xf]
    %v1149 = vld [vmem:[%s1145 + $0xc] sm:$0xf]
    %v1154 = vunpack.c.l.b16 %v1146
    %v1155 = vunpack.c.l.b16 %v1147
    %v1156 = vunpack.c.l.b16 %v1148
    %v1157 = vunpack.c.l.b16 %v1149
    %v1158 = vpack.c.b16 %v1155, %v1154
    %v1159 = vpack.c.b16 %v1157, %v1156
    %v1163 = vsel %vm546, %v1143, 0
    %v1166 = vsel %vm546, %v1144, 0
    %1168 = vmatprep.subr.bf16.mxu0 0
    %1169 = vmatpush1.bf16.msra.mxu0 0
    %1170 = vmatprep.subr.bf16.mxu0 0
    %1171 = vmatpush1.bf16.msra.mxu0 0
    %1172 = vmatprep.subr.bf16.mxu0 0
    %1173 = vmatpush1.bf16.msra.mxu0 0
    %1174 = vmatprep.subr.bf16.mxu0 0
    %1175 = vmatpush1.bf16.msra.mxu0 0
    %1176 = vmatprep.subr.bf16.mxu0 0
    %1177 = vmatpush1.bf16.msra.mxu0 0
    %1178 = vmatprep.subr.bf16.mxu0 0
    %1179 = vmatpush1.bf16.msra.mxu0 0
    %1180 = vmatprep.subr.bf16.mxu0 0
    %1181 = vmatpush1.bf16.msra.mxu0 %v1159
    %1182 = vmatprep.subr.bf16.mxu0 0
    %1183 = vmatpush1.bf16.msra.mxu0 %v1158
    %1184 = vmatprep.subr.bf16.mxu0 0
    %1185 = vmatpush2.bf16.msra.mxu0 0
    %1186 = vmatprep.subr.bf16.mxu0 0
    %1187 = vmatpush2.bf16.msra.mxu0 0
    %1188 = vmatprep.subr.bf16.mxu0 0
    %1189 = vmatpush2.bf16.msra.mxu0 0
    %1190 = vmatprep.subr.bf16.mxu0 0
    %1191 = vmatpush2.bf16.msra.mxu0 0
    %1192 = vmatprep.subr.bf16.mxu0 0
    %1193 = vmatpush2.bf16.msra.mxu0 0
    %1194 = vmatprep.subr.bf16.mxu0 0
    %1195 = vmatpush2.bf16.msra.mxu0 0
    %1196 = vmatprep.subr.bf16.mxu0 0
    %1197 = vmatpush2.bf16.msra.mxu0 0
    %1198 = vmatprep.subr.bf16.mxu0 0
    %1199 = vmatpush2.bf16.msra.mxu0 0
    %1200 = vmatprep.mubr.bf16.mxu0 0
    %1201 = vmatmul.mubr.bf16.gmra.mxu0 %v1163
    %v1202 = vpop.f32.mrf.mxu0
    %v1203 = vadd.f32 0.0, %v1202
    %v1204 = vpop.f32.mrf.mxu0
    %v1205 = vpop.f32.mrf.mxu0
    %v1206 = vadd.f32 0.0, %v1205
    %v1207 = vpop.f32.mrf.mxu0
    %1208 = vmatprep.mubr.bf16.mxu0 0
    %1209 = vmatmul.mubr.bf16.gmra.mxu0 %v1166
    %v1210 = vpop.f32.mrf.mxu0
    %v1211 = vadd.f32 0.0, %v1210
    %v1212 = vpop.f32.mrf.mxu0
    %v1213 = vpop.f32.mrf.mxu0
    %v1214 = vpop.f32.mrf.mxu0
    %1215 = vdwg.mxu0
    %v1216 = vadd.f32 %v1078, %v1203
    %v1217 = vadd.f32 %v1079, %v1206
    %v1218 = vadd.f32 %v1080, %v1211
    %s1219 = scalar_lea.vmem %s3, 72
    %v1220 = vld [vmem:[%s1219] sm:$0xf]
    %v1221 = vld [vmem:[%s1219 + $0x4] sm:$0xf]
    %v1222 = vld [vmem:[%s1219 + $0x8] sm:$0x1]
    %v1226 = vunpack.c.l.b16 %v1220
    %v1227 = vunpack.c.l.b16 %v1221
    %v1228 = vunpack.c.l.b16 %v1222
    %v1229 = vpack.c.b16 %v1227, %v1226
    %v1230 = vpack.c.b16 %v1228, %v1228
    %1233 = vmatprep.subr.bf16.mxu0 0
    %1234 = vmatpush1.bf16.msra.mxu0 %v397
    %1235 = vmatprep.subr.bf16.mxu0 0
    %1236 = vmatpush1.bf16.msra.mxu0 %v396
    %1237 = vmatprep.subr.bf16.mxu0 0
    %1238 = vmatpush1.bf16.msra.mxu0 %v395
    %1239 = vmatprep.subr.bf16.mxu0 0
    %1240 = vmatpush1.bf16.msra.mxu0 %v394
    %1241 = vmatprep.subr.bf16.mxu0 0
    %1242 = vmatpush1.bf16.msra.mxu0 %v393
    %1243 = vmatprep.subr.bf16.mxu0 0
    %1244 = vmatpush1.bf16.msra.mxu0 %v392
    %1245 = vmatprep.subr.bf16.mxu0 0
    %1246 = vmatpush1.bf16.msra.mxu0 %v391
    %1247 = vmatprep.subr.bf16.mxu0 0
    %1248 = vmatpush1.bf16.msra.mxu0 %v390
    %1249 = vmatprep.subr.bf16.mxu0 0
    %1250 = vmatpush2.bf16.msra.mxu0 0
    %1251 = vmatprep.subr.bf16.mxu0 0
    %1252 = vmatpush2.bf16.msra.mxu0 0
    %1253 = vmatprep.subr.bf16.mxu0 0
    %1254 = vmatpush2.bf16.msra.mxu0 0
    %1255 = vmatprep.subr.bf16.mxu0 0
    %1256 = vmatpush2.bf16.msra.mxu0 0
    %1257 = vmatprep.subr.bf16.mxu0 0
    %1258 = vmatpush2.bf16.msra.mxu0 0
    %1259 = vmatprep.subr.bf16.mxu0 0
    %1260 = vmatpush2.bf16.msra.mxu0 0
    %1261 = vmatprep.subr.bf16.mxu0 0
    %1262 = vmatpush2.bf16.msra.mxu0 0
    %1263 = vmatprep.subr.bf16.mxu0 0
    %1264 = vmatpush2.bf16.msra.mxu0 0
    %1265 = vmatprep.mubr.bf16.mxu0 0
    %1266 = vmatmul.mubr.bf16.gmra.mxu0 %v1229
    %v1267 = vpop.f32.mrf.mxu0
    %v1268 = vadd.f32 0.0, %v1267
    %v1269 = vpop.f32.mrf.mxu0
    %v1270 = vpop.f32.mrf.mxu0
    %v1271 = vadd.f32 0.0, %v1270
    %v1272 = vpop.f32.mrf.mxu0
    %1273 = vmatprep.mubr.bf16.mxu0 0
    %1274 = vmatmul.mubr.bf16.gmra.mxu0 %v1230
    %v1275 = vpop.f32.mrf.mxu0
    %v1276 = vadd.f32 0.0, %v1275
    %v1277 = vpop.f32.mrf.mxu0
    %v1278 = vpop.f32.mrf.mxu0
    %v1279 = vpop.f32.mrf.mxu0
    %1280 = vdwg.mxu0
    %v1281 = vpack.c.bf16 %v1271, %v1268
    %v1282 = vpack.c.bf16 %v1276, %v1276
    %s1283 = scalar_lea.vmem %s4, 96
    %v1284 = vld [vmem:[%s1283] sm:$0xf]
    %v1285 = vld [vmem:[%s1283 + $0x4] sm:$0xf]
    %v1286 = vld [vmem:[%s1283 + $0x8] sm:$0xf]
    %v1287 = vld [vmem:[%s1283 + $0xc] sm:$0xf]
    %v1292 = vunpack.c.l.b16 %v1284
    %v1293 = vunpack.c.l.b16 %v1285
    %v1294 = vunpack.c.l.b16 %v1286
    %v1295 = vunpack.c.l.b16 %v1287
    %v1296 = vpack.c.b16 %v1293, %v1292
    %v1297 = vpack.c.b16 %v1295, %v1294
    %v1301 = vsel %vm546, %v1281, 0
    %v1304 = vsel %vm546, %v1282, 0
    %1306 = vmatprep.subr.bf16.mxu0 0
    %1307 = vmatpush1.bf16.msra.mxu0 0
    %1308 = vmatprep.subr.bf16.mxu0 0
    %1309 = vmatpush1.bf16.msra.mxu0 0
    %1310 = vmatprep.subr.bf16.mxu0 0
    %1311 = vmatpush1.bf16.msra.mxu0 0
    %1312 = vmatprep.subr.bf16.mxu0 0
    %1313 = vmatpush1.bf16.msra.mxu0 0
    %1314 = vmatprep.subr.bf16.mxu0 0
    %1315 = vmatpush1.bf16.msra.mxu0 0
    %1316 = vmatprep.subr.bf16.mxu0 0
    %1317 = vmatpush1.bf16.msra.mxu0 0
    %1318 = vmatprep.subr.bf16.mxu0 0
    %1319 = vmatpush1.bf16.msra.mxu0 %v1297
    %1320 = vmatprep.subr.bf16.mxu0 0
    %1321 = vmatpush1.bf16.msra.mxu0 %v1296
    %1322 = vmatprep.subr.bf16.mxu0 0
    %1323 = vmatpush2.bf16.msra.mxu0 0
    %1324 = vmatprep.subr.bf16.mxu0 0
    %1325 = vmatpush2.bf16.msra.mxu0 0
    %1326 = vmatprep.subr.bf16.mxu0 0
    %1327 = vmatpush2.bf16.msra.mxu0 0
    %1328 = vmatprep.subr.bf16.mxu0 0
    %1329 = vmatpush2.bf16.msra.mxu0 0
    %1330 = vmatprep.subr.bf16.mxu0 0
    %1331 = vmatpush2.bf16.msra.mxu0 0
    %1332 = vmatprep.subr.bf16.mxu0 0
    %1333 = vmatpush2.bf16.msra.mxu0 0
    %1334 = vmatprep.subr.bf16.mxu0 0
    %1335 = vmatpush2.bf16.msra.mxu0 0
    %1336 = vmatprep.subr.bf16.mxu0 0
    %1337 = vmatpush2.bf16.msra.mxu0 0
    %1338 = vmatprep.mubr.bf16.mxu0 0
    %1339 = vmatmul.mubr.bf16.gmra.mxu0 %v1301
    %v1340 = vpop.f32.mrf.mxu0
    %v1341 = vadd.f32 0.0, %v1340
    %v1342 = vpop.f32.mrf.mxu0
    %v1343 = vpop.f32.mrf.mxu0
    %v1344 = vadd.f32 0.0, %v1343
    %v1345 = vpop.f32.mrf.mxu0
    %1346 = vmatprep.mubr.bf16.mxu0 0
    %1347 = vmatmul.mubr.bf16.gmra.mxu0 %v1304
    %v1348 = vpop.f32.mrf.mxu0
    %v1349 = vadd.f32 0.0, %v1348
    %v1350 = vpop.f32.mrf.mxu0
    %v1351 = vpop.f32.mrf.mxu0
    %v1352 = vpop.f32.mrf.mxu0
    %1353 = vdwg.mxu0
    %v1354 = vadd.f32 %v1216, %v1341
    %v1355 = vadd.f32 %v1217, %v1344
    %v1356 = vadd.f32 %v1218, %v1349
    %s1357 = scalar_lea.vmem %s3, 84
    %v1358 = vld [vmem:[%s1357] sm:$0xf]
    %v1359 = vld [vmem:[%s1357 + $0x4] sm:$0xf]
    %v1360 = vld [vmem:[%s1357 + $0x8] sm:$0x1]
    %v1364 = vunpack.c.l.b16 %v1358
    %v1365 = vunpack.c.l.b16 %v1359
    %v1366 = vunpack.c.l.b16 %v1360
    %v1367 = vpack.c.b16 %v1365, %v1364
    %v1368 = vpack.c.b16 %v1366, %v1366
    %1371 = vmatprep.subr.bf16.mxu0 0
    %1372 = vmatpush1.bf16.msra.mxu0 %v397
    %1373 = vmatprep.subr.bf16.mxu0 0
    %1374 = vmatpush1.bf16.msra.mxu0 %v396
    %1375 = vmatprep.subr.bf16.mxu0 0
    %1376 = vmatpush1.bf16.msra.mxu0 %v395
    %1377 = vmatprep.subr.bf16.mxu0 0
    %1378 = vmatpush1.bf16.msra.mxu0 %v394
    %1379 = vmatprep.subr.bf16.mxu0 0
    %1380 = vmatpush1.bf16.msra.mxu0 %v393
    %1381 = vmatprep.subr.bf16.mxu0 0
    %1382 = vmatpush1.bf16.msra.mxu0 %v392
    %1383 = vmatprep.subr.bf16.mxu0 0
    %1384 = vmatpush1.bf16.msra.mxu0 %v391
    %1385 = vmatprep.subr.bf16.mxu0 0
    %1386 = vmatpush1.bf16.msra.mxu0 %v390
    %1387 = vmatprep.subr.bf16.mxu0 0
    %1388 = vmatpush2.bf16.msra.mxu0 0
    %1389 = vmatprep.subr.bf16.mxu0 0
    %1390 = vmatpush2.bf16.msra.mxu0 0
    %1391 = vmatprep.subr.bf16.mxu0 0
    %1392 = vmatpush2.bf16.msra.mxu0 0
    %1393 = vmatprep.subr.bf16.mxu0 0
    %1394 = vmatpush2.bf16.msra.mxu0 0
    %1395 = vmatprep.subr.bf16.mxu0 0
    %1396 = vmatpush2.bf16.msra.mxu0 0
    %1397 = vmatprep.subr.bf16.mxu0 0
    %1398 = vmatpush2.bf16.msra.mxu0 0
    %1399 = vmatprep.subr.bf16.mxu0 0
    %1400 = vmatpush2.bf16.msra.mxu0 0
    %1401 = vmatprep.subr.bf16.mxu0 0
    %1402 = vmatpush2.bf16.msra.mxu0 0
    %1403 = vmatprep.mubr.bf16.mxu0 0
    %1404 = vmatmul.mubr.bf16.gmra.mxu0 %v1367
    %v1405 = vpop.f32.mrf.mxu0
    %v1406 = vadd.f32 0.0, %v1405
    %v1407 = vpop.f32.mrf.mxu0
    %v1408 = vpop.f32.mrf.mxu0
    %v1409 = vadd.f32 0.0, %v1408
    %v1410 = vpop.f32.mrf.mxu0
    %1411 = vmatprep.mubr.bf16.mxu0 0
    %1412 = vmatmul.mubr.bf16.gmra.mxu0 %v1368
    %v1413 = vpop.f32.mrf.mxu0
    %v1414 = vadd.f32 0.0, %v1413
    %v1415 = vpop.f32.mrf.mxu0
    %v1416 = vpop.f32.mrf.mxu0
    %v1417 = vpop.f32.mrf.mxu0
    %1418 = vdwg.mxu0
    %v1419 = vpack.c.bf16 %v1409, %v1406
    %v1420 = vpack.c.bf16 %v1414, %v1414
    %s1421 = scalar_lea.vmem %s4, 112
    %v1422 = vld [vmem:[%s1421] sm:$0xf]
    %v1423 = vld [vmem:[%s1421 + $0x4] sm:$0xf]
    %v1424 = vld [vmem:[%s1421 + $0x8] sm:$0xf]
    %v1425 = vld [vmem:[%s1421 + $0xc] sm:$0xf]
    %v1430 = vunpack.c.l.b16 %v1422
    %v1431 = vunpack.c.l.b16 %v1423
    %v1432 = vunpack.c.l.b16 %v1424
    %v1433 = vunpack.c.l.b16 %v1425
    %v1434 = vpack.c.b16 %v1431, %v1430
    %v1435 = vpack.c.b16 %v1433, %v1432
    %v1439 = vsel %vm546, %v1419, 0
    %v1442 = vsel %vm546, %v1420, 0
    %1444 = vmatprep.subr.bf16.mxu0 0
    %1445 = vmatpush1.bf16.msra.mxu0 0
    %1446 = vmatprep.subr.bf16.mxu0 0
    %1447 = vmatpush1.bf16.msra.mxu0 0
    %1448 = vmatprep.subr.bf16.mxu0 0
    %1449 = vmatpush1.bf16.msra.mxu0 0
    %1450 = vmatprep.subr.bf16.mxu0 0
    %1451 = vmatpush1.bf16.msra.mxu0 0
    %1452 = vmatprep.subr.bf16.mxu0 0
    %1453 = vmatpush1.bf16.msra.mxu0 0
    %1454 = vmatprep.subr.bf16.mxu0 0
    %1455 = vmatpush1.bf16.msra.mxu0 0
    %1456 = vmatprep.subr.bf16.mxu0 0
    %1457 = vmatpush1.bf16.msra.mxu0 %v1435
    %1458 = vmatprep.subr.bf16.mxu0 0
    %1459 = vmatpush1.bf16.msra.mxu0 %v1434
    %1460 = vmatprep.subr.bf16.mxu0 0
    %1461 = vmatpush2.bf16.msra.mxu0 0
    %1462 = vmatprep.subr.bf16.mxu0 0
    %1463 = vmatpush2.bf16.msra.mxu0 0
    %1464 = vmatprep.subr.bf16.mxu0 0
    %1465 = vmatpush2.bf16.msra.mxu0 0
    %1466 = vmatprep.subr.bf16.mxu0 0
    %1467 = vmatpush2.bf16.msra.mxu0 0
    %1468 = vmatprep.subr.bf16.mxu0 0
    %1469 = vmatpush2.bf16.msra.mxu0 0
    %1470 = vmatprep.subr.bf16.mxu0 0
    %1471 = vmatpush2.bf16.msra.mxu0 0
    %1472 = vmatprep.subr.bf16.mxu0 0
    %1473 = vmatpush2.bf16.msra.mxu0 0
    %1474 = vmatprep.subr.bf16.mxu0 0
    %1475 = vmatpush2.bf16.msra.mxu0 0
    %1476 = vmatprep.mubr.bf16.mxu0 0
    %1477 = vmatmul.mubr.bf16.gmra.mxu0 %v1439
    %v1478 = vpop.f32.mrf.mxu0
    %v1479 = vadd.f32 0.0, %v1478
    %v1480 = vpop.f32.mrf.mxu0
    %v1481 = vpop.f32.mrf.mxu0
    %v1482 = vadd.f32 0.0, %v1481
    %v1483 = vpop.f32.mrf.mxu0
    %1484 = vmatprep.mubr.bf16.mxu0 0
    %1485 = vmatmul.mubr.bf16.gmra.mxu0 %v1442
    %v1486 = vpop.f32.mrf.mxu0
    %v1487 = vadd.f32 0.0, %v1486
    %v1488 = vpop.f32.mrf.mxu0
    %v1489 = vpop.f32.mrf.mxu0
    %v1490 = vpop.f32.mrf.mxu0
    %1491 = vdwg.mxu0
    %v1492 = vadd.f32 %v1354, %v1479
    %v1493 = vadd.f32 %v1355, %v1482
    %v1494 = vadd.f32 %v1356, %v1487
    %s1495 = scalar_lea.vmem %s3, 96
    %v1496 = vld [vmem:[%s1495] sm:$0xf]
    %v1497 = vld [vmem:[%s1495 + $0x4] sm:$0xf]
    %v1498 = vld [vmem:[%s1495 + $0x8] sm:$0x1]
    %v1502 = vunpack.c.l.b16 %v1496
    %v1503 = vunpack.c.l.b16 %v1497
    %v1504 = vunpack.c.l.b16 %v1498
    %v1505 = vpack.c.b16 %v1503, %v1502
    %v1506 = vpack.c.b16 %v1504, %v1504
    %1509 = vmatprep.subr.bf16.mxu0 0
    %1510 = vmatpush1.bf16.msra.mxu0 %v397
    %1511 = vmatprep.subr.bf16.mxu0 0
    %1512 = vmatpush1.bf16.msra.mxu0 %v396
    %1513 = vmatprep.subr.bf16.mxu0 0
    %1514 = vmatpush1.bf16.msra.mxu0 %v395
    %1515 = vmatprep.subr.bf16.mxu0 0
    %1516 = vmatpush1.bf16.msra.mxu0 %v394
    %1517 = vmatprep.subr.bf16.mxu0 0
    %1518 = vmatpush1.bf16.msra.mxu0 %v393
    %1519 = vmatprep.subr.bf16.mxu0 0
    %1520 = vmatpush1.bf16.msra.mxu0 %v392
    %1521 = vmatprep.subr.bf16.mxu0 0
    %1522 = vmatpush1.bf16.msra.mxu0 %v391
    %1523 = vmatprep.subr.bf16.mxu0 0
    %1524 = vmatpush1.bf16.msra.mxu0 %v390
    %1525 = vmatprep.subr.bf16.mxu0 0
    %1526 = vmatpush2.bf16.msra.mxu0 0
    %1527 = vmatprep.subr.bf16.mxu0 0
    %1528 = vmatpush2.bf16.msra.mxu0 0
    %1529 = vmatprep.subr.bf16.mxu0 0
    %1530 = vmatpush2.bf16.msra.mxu0 0
    %1531 = vmatprep.subr.bf16.mxu0 0
    %1532 = vmatpush2.bf16.msra.mxu0 0
    %1533 = vmatprep.subr.bf16.mxu0 0
    %1534 = vmatpush2.bf16.msra.mxu0 0
    %1535 = vmatprep.subr.bf16.mxu0 0
    %1536 = vmatpush2.bf16.msra.mxu0 0
    %1537 = vmatprep.subr.bf16.mxu0 0
    %1538 = vmatpush2.bf16.msra.mxu0 0
    %1539 = vmatprep.subr.bf16.mxu0 0
    %1540 = vmatpush2.bf16.msra.mxu0 0
    %1541 = vmatprep.mubr.bf16.mxu0 0
    %1542 = vmatmul.mubr.bf16.gmra.mxu0 %v1505
    %v1543 = vpop.f32.mrf.mxu0
    %v1544 = vadd.f32 0.0, %v1543
    %v1545 = vpop.f32.mrf.mxu0
    %v1546 = vpop.f32.mrf.mxu0
    %v1547 = vadd.f32 0.0, %v1546
    %v1548 = vpop.f32.mrf.mxu0
    %1549 = vmatprep.mubr.bf16.mxu0 0
    %1550 = vmatmul.mubr.bf16.gmra.mxu0 %v1506
    %v1551 = vpop.f32.mrf.mxu0
    %v1552 = vadd.f32 0.0, %v1551
    %v1553 = vpop.f32.mrf.mxu0
    %v1554 = vpop.f32.mrf.mxu0
    %v1555 = vpop.f32.mrf.mxu0
    %1556 = vdwg.mxu0
    %v1557 = vpack.c.bf16 %v1547, %v1544
    %v1558 = vpack.c.bf16 %v1552, %v1552
    %s1559 = scalar_lea.vmem %s4, 128
    %v1560 = vld [vmem:[%s1559] sm:$0xf]
    %v1561 = vld [vmem:[%s1559 + $0x4] sm:$0xf]
    %v1562 = vld [vmem:[%s1559 + $0x8] sm:$0xf]
    %v1563 = vld [vmem:[%s1559 + $0xc] sm:$0xf]
    %v1568 = vunpack.c.l.b16 %v1560
    %v1569 = vunpack.c.l.b16 %v1561
    %v1570 = vunpack.c.l.b16 %v1562
    %v1571 = vunpack.c.l.b16 %v1563
    %v1572 = vpack.c.b16 %v1569, %v1568
    %v1573 = vpack.c.b16 %v1571, %v1570
    %v1577 = vsel %vm546, %v1557, 0
    %v1580 = vsel %vm546, %v1558, 0
    %1582 = vmatprep.subr.bf16.mxu0 0
    %1583 = vmatpush1.bf16.msra.mxu0 0
    %1584 = vmatprep.subr.bf16.mxu0 0
    %1585 = vmatpush1.bf16.msra.mxu0 0
    %1586 = vmatprep.subr.bf16.mxu0 0
    %1587 = vmatpush1.bf16.msra.mxu0 0
    %1588 = vmatprep.subr.bf16.mxu0 0
    %1589 = vmatpush1.bf16.msra.mxu0 0
    %1590 = vmatprep.subr.bf16.mxu0 0
    %1591 = vmatpush1.bf16.msra.mxu0 0
    %1592 = vmatprep.subr.bf16.mxu0 0
    %1593 = vmatpush1.bf16.msra.mxu0 0
    %1594 = vmatprep.subr.bf16.mxu0 0
    %1595 = vmatpush1.bf16.msra.mxu0 %v1573
    %1596 = vmatprep.subr.bf16.mxu0 0
    %1597 = vmatpush1.bf16.msra.mxu0 %v1572
    %1598 = vmatprep.subr.bf16.mxu0 0
    %1599 = vmatpush2.bf16.msra.mxu0 0
    %1600 = vmatprep.subr.bf16.mxu0 0
    %1601 = vmatpush2.bf16.msra.mxu0 0
    %1602 = vmatprep.subr.bf16.mxu0 0
    %1603 = vmatpush2.bf16.msra.mxu0 0
    %1604 = vmatprep.subr.bf16.mxu0 0
    %1605 = vmatpush2.bf16.msra.mxu0 0
    %1606 = vmatprep.subr.bf16.mxu0 0
    %1607 = vmatpush2.bf16.msra.mxu0 0
    %1608 = vmatprep.subr.bf16.mxu0 0
    %1609 = vmatpush2.bf16.msra.mxu0 0
    %1610 = vmatprep.subr.bf16.mxu0 0
    %1611 = vmatpush2.bf16.msra.mxu0 0
    %1612 = vmatprep.subr.bf16.mxu0 0
    %1613 = vmatpush2.bf16.msra.mxu0 0
    %1614 = vmatprep.mubr.bf16.mxu0 0
    %1615 = vmatmul.mubr.bf16.gmra.mxu0 %v1577
    %v1616 = vpop.f32.mrf.mxu0
    %v1617 = vadd.f32 0.0, %v1616
    %v1618 = vpop.f32.mrf.mxu0
    %v1619 = vpop.f32.mrf.mxu0
    %v1620 = vadd.f32 0.0, %v1619
    %v1621 = vpop.f32.mrf.mxu0
    %1622 = vmatprep.mubr.bf16.mxu0 0
    %1623 = vmatmul.mubr.bf16.gmra.mxu0 %v1580
    %v1624 = vpop.f32.mrf.mxu0
    %v1625 = vadd.f32 0.0, %v1624
    %v1626 = vpop.f32.mrf.mxu0
    %v1627 = vpop.f32.mrf.mxu0
    %v1628 = vpop.f32.mrf.mxu0
    %1629 = vdwg.mxu0
    %v1630 = vadd.f32 %v1492, %v1617
    %v1631 = vadd.f32 %v1493, %v1620
    %v1632 = vadd.f32 %v1494, %v1625
    %s1633 = scalar_lea.vmem %s3, 108
    %v1634 = vld [vmem:[%s1633] sm:$0xf]
    %v1635 = vld [vmem:[%s1633 + $0x4] sm:$0xf]
    %v1636 = vld [vmem:[%s1633 + $0x8] sm:$0x1]
    %v1640 = vunpack.c.l.b16 %v1634
    %v1641 = vunpack.c.l.b16 %v1635
    %v1642 = vunpack.c.l.b16 %v1636
    %v1643 = vpack.c.b16 %v1641, %v1640
    %v1644 = vpack.c.b16 %v1642, %v1642
    %1647 = vmatprep.subr.bf16.mxu0 0
    %1648 = vmatpush1.bf16.msra.mxu0 %v397
    %1649 = vmatprep.subr.bf16.mxu0 0
    %1650 = vmatpush1.bf16.msra.mxu0 %v396
    %1651 = vmatprep.subr.bf16.mxu0 0
    %1652 = vmatpush1.bf16.msra.mxu0 %v395
    %1653 = vmatprep.subr.bf16.mxu0 0
    %1654 = vmatpush1.bf16.msra.mxu0 %v394
    %1655 = vmatprep.subr.bf16.mxu0 0
    %1656 = vmatpush1.bf16.msra.mxu0 %v393
    %1657 = vmatprep.subr.bf16.mxu0 0
    %1658 = vmatpush1.bf16.msra.mxu0 %v392
    %1659 = vmatprep.subr.bf16.mxu0 0
    %1660 = vmatpush1.bf16.msra.mxu0 %v391
    %1661 = vmatprep.subr.bf16.mxu0 0
    %1662 = vmatpush1.bf16.msra.mxu0 %v390
    %1663 = vmatprep.subr.bf16.mxu0 0
    %1664 = vmatpush2.bf16.msra.mxu0 0
    %1665 = vmatprep.subr.bf16.mxu0 0
    %1666 = vmatpush2.bf16.msra.mxu0 0
    %1667 = vmatprep.subr.bf16.mxu0 0
    %1668 = vmatpush2.bf16.msra.mxu0 0
    %1669 = vmatprep.subr.bf16.mxu0 0
    %1670 = vmatpush2.bf16.msra.mxu0 0
    %1671 = vmatprep.subr.bf16.mxu0 0
    %1672 = vmatpush2.bf16.msra.mxu0 0
    %1673 = vmatprep.subr.bf16.mxu0 0
    %1674 = vmatpush2.bf16.msra.mxu0 0
    %1675 = vmatprep.subr.bf16.mxu0 0
    %1676 = vmatpush2.bf16.msra.mxu0 0
    %1677 = vmatprep.subr.bf16.mxu0 0
    %1678 = vmatpush2.bf16.msra.mxu0 0
    %1679 = vmatprep.mubr.bf16.mxu0 0
    %1680 = vmatmul.mubr.bf16.gmra.mxu0 %v1643
    %v1681 = vpop.f32.mrf.mxu0
    %v1682 = vadd.f32 0.0, %v1681
    %v1683 = vpop.f32.mrf.mxu0
    %v1684 = vpop.f32.mrf.mxu0
    %v1685 = vadd.f32 0.0, %v1684
    %v1686 = vpop.f32.mrf.mxu0
    %1687 = vmatprep.mubr.bf16.mxu0 0
    %1688 = vmatmul.mubr.bf16.gmra.mxu0 %v1644
    %v1689 = vpop.f32.mrf.mxu0
    %v1690 = vadd.f32 0.0, %v1689
    %v1691 = vpop.f32.mrf.mxu0
    %v1692 = vpop.f32.mrf.mxu0
    %v1693 = vpop.f32.mrf.mxu0
    %1694 = vdwg.mxu0
    %v1695 = vpack.c.bf16 %v1685, %v1682
    %v1696 = vpack.c.bf16 %v1690, %v1690
    %s1697 = scalar_lea.vmem %s4, 144
    %v1698 = vld [vmem:[%s1697] sm:$0xf]
    %v1699 = vld [vmem:[%s1697 + $0x4] sm:$0xf]
    %v1700 = vld [vmem:[%s1697 + $0x8] sm:$0xf]
    %v1701 = vld [vmem:[%s1697 + $0xc] sm:$0xf]
    %v1706 = vunpack.c.l.b16 %v1698
    %v1707 = vunpack.c.l.b16 %v1699
    %v1708 = vunpack.c.l.b16 %v1700
    %v1709 = vunpack.c.l.b16 %v1701
    %v1710 = vpack.c.b16 %v1707, %v1706
    %v1711 = vpack.c.b16 %v1709, %v1708
    %v1715 = vsel %vm546, %v1695, 0
    %v1718 = vsel %vm546, %v1696, 0
    %1720 = vmatprep.subr.bf16.mxu0 0
    %1721 = vmatpush1.bf16.msra.mxu0 0
    %1722 = vmatprep.subr.bf16.mxu0 0
    %1723 = vmatpush1.bf16.msra.mxu0 0
    %1724 = vmatprep.subr.bf16.mxu0 0
    %1725 = vmatpush1.bf16.msra.mxu0 0
    %1726 = vmatprep.subr.bf16.mxu0 0
    %1727 = vmatpush1.bf16.msra.mxu0 0
    %1728 = vmatprep.subr.bf16.mxu0 0
    %1729 = vmatpush1.bf16.msra.mxu0 0
    %1730 = vmatprep.subr.bf16.mxu0 0
    %1731 = vmatpush1.bf16.msra.mxu0 0
    %1732 = vmatprep.subr.bf16.mxu0 0
    %1733 = vmatpush1.bf16.msra.mxu0 %v1711
    %1734 = vmatprep.subr.bf16.mxu0 0
    %1735 = vmatpush1.bf16.msra.mxu0 %v1710
    %1736 = vmatprep.subr.bf16.mxu0 0
    %1737 = vmatpush2.bf16.msra.mxu0 0
    %1738 = vmatprep.subr.bf16.mxu0 0
    %1739 = vmatpush2.bf16.msra.mxu0 0
    %1740 = vmatprep.subr.bf16.mxu0 0
    %1741 = vmatpush2.bf16.msra.mxu0 0
    %1742 = vmatprep.subr.bf16.mxu0 0
    %1743 = vmatpush2.bf16.msra.mxu0 0
    %1744 = vmatprep.subr.bf16.mxu0 0
    %1745 = vmatpush2.bf16.msra.mxu0 0
    %1746 = vmatprep.subr.bf16.mxu0 0
    %1747 = vmatpush2.bf16.msra.mxu0 0
    %1748 = vmatprep.subr.bf16.mxu0 0
    %1749 = vmatpush2.bf16.msra.mxu0 0
    %1750 = vmatprep.subr.bf16.mxu0 0
    %1751 = vmatpush2.bf16.msra.mxu0 0
    %1752 = vmatprep.mubr.bf16.mxu0 0
    %1753 = vmatmul.mubr.bf16.gmra.mxu0 %v1715
    %v1754 = vpop.f32.mrf.mxu0
    %v1755 = vadd.f32 0.0, %v1754
    %v1756 = vpop.f32.mrf.mxu0
    %v1757 = vpop.f32.mrf.mxu0
    %v1758 = vadd.f32 0.0, %v1757
    %v1759 = vpop.f32.mrf.mxu0
    %1760 = vmatprep.mubr.bf16.mxu0 0
    %1761 = vmatmul.mubr.bf16.gmra.mxu0 %v1718
    %v1762 = vpop.f32.mrf.mxu0
    %v1763 = vadd.f32 0.0, %v1762
    %v1764 = vpop.f32.mrf.mxu0
    %v1765 = vpop.f32.mrf.mxu0
    %v1766 = vpop.f32.mrf.mxu0
    %1767 = vdwg.mxu0
    %v1768 = vadd.f32 %v1630, %v1755
    %v1769 = vadd.f32 %v1631, %v1758
    %v1770 = vadd.f32 %v1632, %v1763
    %s1771 = scalar_lea.vmem %s3, 120
    %v1772 = vld [vmem:[%s1771] sm:$0xf]
    %v1773 = vld [vmem:[%s1771 + $0x4] sm:$0xf]
    %v1774 = vld [vmem:[%s1771 + $0x8] sm:$0x1]
    %v1778 = vunpack.c.l.b16 %v1772
    %v1779 = vunpack.c.l.b16 %v1773
    %v1780 = vunpack.c.l.b16 %v1774
    %v1781 = vpack.c.b16 %v1779, %v1778
    %v1782 = vpack.c.b16 %v1780, %v1780
    %1785 = vmatprep.subr.bf16.mxu0 0
    %1786 = vmatpush1.bf16.msra.mxu0 %v397
    %1787 = vmatprep.subr.bf16.mxu0 0
    %1788 = vmatpush1.bf16.msra.mxu0 %v396
    %1789 = vmatprep.subr.bf16.mxu0 0
    %1790 = vmatpush1.bf16.msra.mxu0 %v395
    %1791 = vmatprep.subr.bf16.mxu0 0
    %1792 = vmatpush1.bf16.msra.mxu0 %v394
    %1793 = vmatprep.subr.bf16.mxu0 0
    %1794 = vmatpush1.bf16.msra.mxu0 %v393
    %1795 = vmatprep.subr.bf16.mxu0 0
    %1796 = vmatpush1.bf16.msra.mxu0 %v392
    %1797 = vmatprep.subr.bf16.mxu0 0
    %1798 = vmatpush1.bf16.msra.mxu0 %v391
    %1799 = vmatprep.subr.bf16.mxu0 0
    %1800 = vmatpush1.bf16.msra.mxu0 %v390
    %1801 = vmatprep.subr.bf16.mxu0 0
    %1802 = vmatpush2.bf16.msra.mxu0 0
    %1803 = vmatprep.subr.bf16.mxu0 0
    %1804 = vmatpush2.bf16.msra.mxu0 0
    %1805 = vmatprep.subr.bf16.mxu0 0
    %1806 = vmatpush2.bf16.msra.mxu0 0
    %1807 = vmatprep.subr.bf16.mxu0 0
    %1808 = vmatpush2.bf16.msra.mxu0 0
    %1809 = vmatprep.subr.bf16.mxu0 0
    %1810 = vmatpush2.bf16.msra.mxu0 0
    %1811 = vmatprep.subr.bf16.mxu0 0
    %1812 = vmatpush2.bf16.msra.mxu0 0
    %1813 = vmatprep.subr.bf16.mxu0 0
    %1814 = vmatpush2.bf16.msra.mxu0 0
    %1815 = vmatprep.subr.bf16.mxu0 0
    %1816 = vmatpush2.bf16.msra.mxu0 0
    %1817 = vmatprep.mubr.bf16.mxu0 0
    %1818 = vmatmul.mubr.bf16.gmra.mxu0 %v1781
    %v1819 = vpop.f32.mrf.mxu0
    %v1820 = vadd.f32 0.0, %v1819
    %v1821 = vpop.f32.mrf.mxu0
    %v1822 = vpop.f32.mrf.mxu0
    %v1823 = vadd.f32 0.0, %v1822
    %v1824 = vpop.f32.mrf.mxu0
    %1825 = vmatprep.mubr.bf16.mxu0 0
    %1826 = vmatmul.mubr.bf16.gmra.mxu0 %v1782
    %v1827 = vpop.f32.mrf.mxu0
    %v1828 = vadd.f32 0.0, %v1827
    %v1829 = vpop.f32.mrf.mxu0
    %v1830 = vpop.f32.mrf.mxu0
    %v1831 = vpop.f32.mrf.mxu0
    %1832 = vdwg.mxu0
    %v1833 = vpack.c.bf16 %v1823, %v1820
    %v1834 = vpack.c.bf16 %v1828, %v1828
    %s1835 = scalar_lea.vmem %s4, 160
    %v1836 = vld [vmem:[%s1835] sm:$0xf]
    %v1837 = vld [vmem:[%s1835 + $0x4] sm:$0xf]
    %v1838 = vld [vmem:[%s1835 + $0x8] sm:$0xf]
    %v1839 = vld [vmem:[%s1835 + $0xc] sm:$0xf]
    %v1844 = vunpack.c.l.b16 %v1836
    %v1845 = vunpack.c.l.b16 %v1837
    %v1846 = vunpack.c.l.b16 %v1838
    %v1847 = vunpack.c.l.b16 %v1839
    %v1848 = vpack.c.b16 %v1845, %v1844
    %v1849 = vpack.c.b16 %v1847, %v1846
    %v1853 = vsel %vm546, %v1833, 0
    %v1856 = vsel %vm546, %v1834, 0
    %1858 = vmatprep.subr.bf16.mxu0 0
    %1859 = vmatpush1.bf16.msra.mxu0 0
    %1860 = vmatprep.subr.bf16.mxu0 0
    %1861 = vmatpush1.bf16.msra.mxu0 0
    %1862 = vmatprep.subr.bf16.mxu0 0
    %1863 = vmatpush1.bf16.msra.mxu0 0
    %1864 = vmatprep.subr.bf16.mxu0 0
    %1865 = vmatpush1.bf16.msra.mxu0 0
    %1866 = vmatprep.subr.bf16.mxu0 0
    %1867 = vmatpush1.bf16.msra.mxu0 0
    %1868 = vmatprep.subr.bf16.mxu0 0
    %1869 = vmatpush1.bf16.msra.mxu0 0
    %1870 = vmatprep.subr.bf16.mxu0 0
    %1871 = vmatpush1.bf16.msra.mxu0 %v1849
    %1872 = vmatprep.subr.bf16.mxu0 0
    %1873 = vmatpush1.bf16.msra.mxu0 %v1848
    %1874 = vmatprep.subr.bf16.mxu0 0
    %1875 = vmatpush2.bf16.msra.mxu0 0
    %1876 = vmatprep.subr.bf16.mxu0 0
    %1877 = vmatpush2.bf16.msra.mxu0 0
    %1878 = vmatprep.subr.bf16.mxu0 0
    %1879 = vmatpush2.bf16.msra.mxu0 0
    %1880 = vmatprep.subr.bf16.mxu0 0
    %1881 = vmatpush2.bf16.msra.mxu0 0
    %1882 = vmatprep.subr.bf16.mxu0 0
    %1883 = vmatpush2.bf16.msra.mxu0 0
    %1884 = vmatprep.subr.bf16.mxu0 0
    %1885 = vmatpush2.bf16.msra.mxu0 0
    %1886 = vmatprep.subr.bf16.mxu0 0
    %1887 = vmatpush2.bf16.msra.mxu0 0
    %1888 = vmatprep.subr.bf16.mxu0 0
    %1889 = vmatpush2.bf16.msra.mxu0 0
    %1890 = vmatprep.mubr.bf16.mxu0 0
    %1891 = vmatmul.mubr.bf16.gmra.mxu0 %v1853
    %v1892 = vpop.f32.mrf.mxu0
    %v1893 = vadd.f32 0.0, %v1892
    %v1894 = vpop.f32.mrf.mxu0
    %v1895 = vpop.f32.mrf.mxu0
    %v1896 = vadd.f32 0.0, %v1895
    %v1897 = vpop.f32.mrf.mxu0
    %1898 = vmatprep.mubr.bf16.mxu0 0
    %1899 = vmatmul.mubr.bf16.gmra.mxu0 %v1856
    %v1900 = vpop.f32.mrf.mxu0
    %v1901 = vadd.f32 0.0, %v1900
    %v1902 = vpop.f32.mrf.mxu0
    %v1903 = vpop.f32.mrf.mxu0
    %v1904 = vpop.f32.mrf.mxu0
    %1905 = vdwg.mxu0
    %v1906 = vadd.f32 %v1768, %v1893
    %v1907 = vadd.f32 %v1769, %v1896
    %v1908 = vadd.f32 %v1770, %v1901
    %s1909 = scalar_lea.vmem %s3, 132
    %v1910 = vld [vmem:[%s1909] sm:$0xf]
    %v1911 = vld [vmem:[%s1909 + $0x4] sm:$0xf]
    %v1912 = vld [vmem:[%s1909 + $0x8] sm:$0x1]
    %v1916 = vunpack.c.l.b16 %v1910
    %v1917 = vunpack.c.l.b16 %v1911
    %v1918 = vunpack.c.l.b16 %v1912
    %v1919 = vpack.c.b16 %v1917, %v1916
    %v1920 = vpack.c.b16 %v1918, %v1918
    %1923 = vmatprep.subr.bf16.mxu0 0
    %1924 = vmatpush1.bf16.msra.mxu0 %v397
    %1925 = vmatprep.subr.bf16.mxu0 0
    %1926 = vmatpush1.bf16.msra.mxu0 %v396
    %1927 = vmatprep.subr.bf16.mxu0 0
    %1928 = vmatpush1.bf16.msra.mxu0 %v395
    %1929 = vmatprep.subr.bf16.mxu0 0
    %1930 = vmatpush1.bf16.msra.mxu0 %v394
    %1931 = vmatprep.subr.bf16.mxu0 0
    %1932 = vmatpush1.bf16.msra.mxu0 %v393
    %1933 = vmatprep.subr.bf16.mxu0 0
    %1934 = vmatpush1.bf16.msra.mxu0 %v392
    %1935 = vmatprep.subr.bf16.mxu0 0
    %1936 = vmatpush1.bf16.msra.mxu0 %v391
    %1937 = vmatprep.subr.bf16.mxu0 0
    %1938 = vmatpush1.bf16.msra.mxu0 %v390
    %1939 = vmatprep.subr.bf16.mxu0 0
    %1940 = vmatpush2.bf16.msra.mxu0 0
    %1941 = vmatprep.subr.bf16.mxu0 0
    %1942 = vmatpush2.bf16.msra.mxu0 0
    %1943 = vmatprep.subr.bf16.mxu0 0
    %1944 = vmatpush2.bf16.msra.mxu0 0
    %1945 = vmatprep.subr.bf16.mxu0 0
    %1946 = vmatpush2.bf16.msra.mxu0 0
    %1947 = vmatprep.subr.bf16.mxu0 0
    %1948 = vmatpush2.bf16.msra.mxu0 0
    %1949 = vmatprep.subr.bf16.mxu0 0
    %1950 = vmatpush2.bf16.msra.mxu0 0
    %1951 = vmatprep.subr.bf16.mxu0 0
    %1952 = vmatpush2.bf16.msra.mxu0 0
    %1953 = vmatprep.subr.bf16.mxu0 0
    %1954 = vmatpush2.bf16.msra.mxu0 0
    %1955 = vmatprep.mubr.bf16.mxu0 0
    %1956 = vmatmul.mubr.bf16.gmra.mxu0 %v1919
    %v1957 = vpop.f32.mrf.mxu0
    %v1958 = vadd.f32 0.0, %v1957
    %v1959 = vpop.f32.mrf.mxu0
    %v1960 = vpop.f32.mrf.mxu0
    %v1961 = vadd.f32 0.0, %v1960
    %v1962 = vpop.f32.mrf.mxu0
    %1963 = vmatprep.mubr.bf16.mxu0 0
    %1964 = vmatmul.mubr.bf16.gmra.mxu0 %v1920
    %v1965 = vpop.f32.mrf.mxu0
    %v1966 = vadd.f32 0.0, %v1965
    %v1967 = vpop.f32.mrf.mxu0
    %v1968 = vpop.f32.mrf.mxu0
    %v1969 = vpop.f32.mrf.mxu0
    %1970 = vdwg.mxu0
    %v1971 = vpack.c.bf16 %v1961, %v1958
    %v1972 = vpack.c.bf16 %v1966, %v1966
    %s1973 = scalar_lea.vmem %s4, 176
    %v1974 = vld [vmem:[%s1973] sm:$0xf]
    %v1975 = vld [vmem:[%s1973 + $0x4] sm:$0xf]
    %v1976 = vld [vmem:[%s1973 + $0x8] sm:$0xf]
    %v1977 = vld [vmem:[%s1973 + $0xc] sm:$0xf]
    %v1982 = vunpack.c.l.b16 %v1974
    %v1983 = vunpack.c.l.b16 %v1975
    %v1984 = vunpack.c.l.b16 %v1976
    %v1985 = vunpack.c.l.b16 %v1977
    %v1986 = vpack.c.b16 %v1983, %v1982
    %v1987 = vpack.c.b16 %v1985, %v1984
    %v1991 = vsel %vm546, %v1971, 0
    %v1994 = vsel %vm546, %v1972, 0
    %1996 = vmatprep.subr.bf16.mxu0 0
    %1997 = vmatpush1.bf16.msra.mxu0 0
    %1998 = vmatprep.subr.bf16.mxu0 0
    %1999 = vmatpush1.bf16.msra.mxu0 0
    %2000 = vmatprep.subr.bf16.mxu0 0
    %2001 = vmatpush1.bf16.msra.mxu0 0
    %2002 = vmatprep.subr.bf16.mxu0 0
    %2003 = vmatpush1.bf16.msra.mxu0 0
    %2004 = vmatprep.subr.bf16.mxu0 0
    %2005 = vmatpush1.bf16.msra.mxu0 0
    %2006 = vmatprep.subr.bf16.mxu0 0
    %2007 = vmatpush1.bf16.msra.mxu0 0
    %2008 = vmatprep.subr.bf16.mxu0 0
    %2009 = vmatpush1.bf16.msra.mxu0 %v1987
    %2010 = vmatprep.subr.bf16.mxu0 0
    %2011 = vmatpush1.bf16.msra.mxu0 %v1986
    %2012 = vmatprep.subr.bf16.mxu0 0
    %2013 = vmatpush2.bf16.msra.mxu0 0
    %2014 = vmatprep.subr.bf16.mxu0 0
    %2015 = vmatpush2.bf16.msra.mxu0 0
    %2016 = vmatprep.subr.bf16.mxu0 0
    %2017 = vmatpush2.bf16.msra.mxu0 0
    %2018 = vmatprep.subr.bf16.mxu0 0
    %2019 = vmatpush2.bf16.msra.mxu0 0
    %2020 = vmatprep.subr.bf16.mxu0 0
    %2021 = vmatpush2.bf16.msra.mxu0 0
    %2022 = vmatprep.subr.bf16.mxu0 0
    %2023 = vmatpush2.bf16.msra.mxu0 0
    %2024 = vmatprep.subr.bf16.mxu0 0
    %2025 = vmatpush2.bf16.msra.mxu0 0
    %2026 = vmatprep.subr.bf16.mxu0 0
    %2027 = vmatpush2.bf16.msra.mxu0 0
    %2028 = vmatprep.mubr.bf16.mxu0 0
    %2029 = vmatmul.mubr.bf16.gmra.mxu0 %v1991
    %v2030 = vpop.f32.mrf.mxu0
    %v2031 = vadd.f32 0.0, %v2030
    %v2032 = vpop.f32.mrf.mxu0
    %v2033 = vpop.f32.mrf.mxu0
    %v2034 = vadd.f32 0.0, %v2033
    %v2035 = vpop.f32.mrf.mxu0
    %2036 = vmatprep.mubr.bf16.mxu0 0
    %2037 = vmatmul.mubr.bf16.gmra.mxu0 %v1994
    %v2038 = vpop.f32.mrf.mxu0
    %v2039 = vadd.f32 0.0, %v2038
    %v2040 = vpop.f32.mrf.mxu0
    %v2041 = vpop.f32.mrf.mxu0
    %v2042 = vpop.f32.mrf.mxu0
    %2043 = vdwg.mxu0
    %v2044 = vadd.f32 %v1906, %v2031
    %v2045 = vadd.f32 %v1907, %v2034
    %v2046 = vadd.f32 %v1908, %v2039
    %s2047 = scalar_lea.vmem %s3, 144
    %v2048 = vld [vmem:[%s2047] sm:$0xf]
    %v2049 = vld [vmem:[%s2047 + $0x4] sm:$0xf]
    %v2050 = vld [vmem:[%s2047 + $0x8] sm:$0x1]
    %v2054 = vunpack.c.l.b16 %v2048
    %v2055 = vunpack.c.l.b16 %v2049
    %v2056 = vunpack.c.l.b16 %v2050
    %v2057 = vpack.c.b16 %v2055, %v2054
    %v2058 = vpack.c.b16 %v2056, %v2056
    %2061 = vmatprep.subr.bf16.mxu0 0
    %2062 = vmatpush1.bf16.msra.mxu0 %v397
    %2063 = vmatprep.subr.bf16.mxu0 0
    %2064 = vmatpush1.bf16.msra.mxu0 %v396
    %2065 = vmatprep.subr.bf16.mxu0 0
    %2066 = vmatpush1.bf16.msra.mxu0 %v395
    %2067 = vmatprep.subr.bf16.mxu0 0
    %2068 = vmatpush1.bf16.msra.mxu0 %v394
    %2069 = vmatprep.subr.bf16.mxu0 0
    %2070 = vmatpush1.bf16.msra.mxu0 %v393
    %2071 = vmatprep.subr.bf16.mxu0 0
    %2072 = vmatpush1.bf16.msra.mxu0 %v392
    %2073 = vmatprep.subr.bf16.mxu0 0
    %2074 = vmatpush1.bf16.msra.mxu0 %v391
    %2075 = vmatprep.subr.bf16.mxu0 0
    %2076 = vmatpush1.bf16.msra.mxu0 %v390
    %2077 = vmatprep.subr.bf16.mxu0 0
    %2078 = vmatpush2.bf16.msra.mxu0 0
    %2079 = vmatprep.subr.bf16.mxu0 0
    %2080 = vmatpush2.bf16.msra.mxu0 0
    %2081 = vmatprep.subr.bf16.mxu0 0
    %2082 = vmatpush2.bf16.msra.mxu0 0
    %2083 = vmatprep.subr.bf16.mxu0 0
    %2084 = vmatpush2.bf16.msra.mxu0 0
    %2085 = vmatprep.subr.bf16.mxu0 0
    %2086 = vmatpush2.bf16.msra.mxu0 0
    %2087 = vmatprep.subr.bf16.mxu0 0
    %2088 = vmatpush2.bf16.msra.mxu0 0
    %2089 = vmatprep.subr.bf16.mxu0 0
    %2090 = vmatpush2.bf16.msra.mxu0 0
    %2091 = vmatprep.subr.bf16.mxu0 0
    %2092 = vmatpush2.bf16.msra.mxu0 0
    %2093 = vmatprep.mubr.bf16.mxu0 0
    %2094 = vmatmul.mubr.bf16.gmra.mxu0 %v2057
    %v2095 = vpop.f32.mrf.mxu0
    %v2096 = vadd.f32 0.0, %v2095
    %v2097 = vpop.f32.mrf.mxu0
    %v2098 = vpop.f32.mrf.mxu0
    %v2099 = vadd.f32 0.0, %v2098
    %v2100 = vpop.f32.mrf.mxu0
    %2101 = vmatprep.mubr.bf16.mxu0 0
    %2102 = vmatmul.mubr.bf16.gmra.mxu0 %v2058
    %v2103 = vpop.f32.mrf.mxu0
    %v2104 = vadd.f32 0.0, %v2103
    %v2105 = vpop.f32.mrf.mxu0
    %v2106 = vpop.f32.mrf.mxu0
    %v2107 = vpop.f32.mrf.mxu0
    %2108 = vdwg.mxu0
    %v2109 = vpack.c.bf16 %v2099, %v2096
    %v2110 = vpack.c.bf16 %v2104, %v2104
    %s2111 = scalar_lea.vmem %s4, 192
    %v2112 = vld [vmem:[%s2111] sm:$0xf]
    %v2113 = vld [vmem:[%s2111 + $0x4] sm:$0xf]
    %v2114 = vld [vmem:[%s2111 + $0x8] sm:$0xf]
    %v2115 = vld [vmem:[%s2111 + $0xc] sm:$0xf]
    %v2120 = vunpack.c.l.b16 %v2112
    %v2121 = vunpack.c.l.b16 %v2113
    %v2122 = vunpack.c.l.b16 %v2114
    %v2123 = vunpack.c.l.b16 %v2115
    %v2124 = vpack.c.b16 %v2121, %v2120
    %v2125 = vpack.c.b16 %v2123, %v2122
    %v2129 = vsel %vm546, %v2109, 0
    %v2132 = vsel %vm546, %v2110, 0
    %2134 = vmatprep.subr.bf16.mxu0 0
    %2135 = vmatpush1.bf16.msra.mxu0 0
    %2136 = vmatprep.subr.bf16.mxu0 0
    %2137 = vmatpush1.bf16.msra.mxu0 0
    %2138 = vmatprep.subr.bf16.mxu0 0
    %2139 = vmatpush1.bf16.msra.mxu0 0
    %2140 = vmatprep.subr.bf16.mxu0 0
    %2141 = vmatpush1.bf16.msra.mxu0 0
    %2142 = vmatprep.subr.bf16.mxu0 0
    %2143 = vmatpush1.bf16.msra.mxu0 0
    %2144 = vmatprep.subr.bf16.mxu0 0
    %2145 = vmatpush1.bf16.msra.mxu0 0
    %2146 = vmatprep.subr.bf16.mxu0 0
    %2147 = vmatpush1.bf16.msra.mxu0 %v2125
    %2148 = vmatprep.subr.bf16.mxu0 0
    %2149 = vmatpush1.bf16.msra.mxu0 %v2124
    %2150 = vmatprep.subr.bf16.mxu0 0
    %2151 = vmatpush2.bf16.msra.mxu0 0
    %2152 = vmatprep.subr.bf16.mxu0 0
    %2153 = vmatpush2.bf16.msra.mxu0 0
    %2154 = vmatprep.subr.bf16.mxu0 0
    %2155 = vmatpush2.bf16.msra.mxu0 0
    %2156 = vmatprep.subr.bf16.mxu0 0
    %2157 = vmatpush2.bf16.msra.mxu0 0
    %2158 = vmatprep.subr.bf16.mxu0 0
    %2159 = vmatpush2.bf16.msra.mxu0 0
    %2160 = vmatprep.subr.bf16.mxu0 0
    %2161 = vmatpush2.bf16.msra.mxu0 0
    %2162 = vmatprep.subr.bf16.mxu0 0
    %2163 = vmatpush2.bf16.msra.mxu0 0
    %2164 = vmatprep.subr.bf16.mxu0 0
    %2165 = vmatpush2.bf16.msra.mxu0 0
    %2166 = vmatprep.mubr.bf16.mxu0 0
    %2167 = vmatmul.mubr.bf16.gmra.mxu0 %v2129
    %v2168 = vpop.f32.mrf.mxu0
    %v2169 = vadd.f32 0.0, %v2168
    %v2170 = vpop.f32.mrf.mxu0
    %v2171 = vpop.f32.mrf.mxu0
    %v2172 = vadd.f32 0.0, %v2171
    %v2173 = vpop.f32.mrf.mxu0
    %2174 = vmatprep.mubr.bf16.mxu0 0
    %2175 = vmatmul.mubr.bf16.gmra.mxu0 %v2132
    %v2176 = vpop.f32.mrf.mxu0
    %v2177 = vadd.f32 0.0, %v2176
    %v2178 = vpop.f32.mrf.mxu0
    %v2179 = vpop.f32.mrf.mxu0
    %v2180 = vpop.f32.mrf.mxu0
    %2181 = vdwg.mxu0
    %v2182 = vadd.f32 %v2044, %v2169
    %v2183 = vadd.f32 %v2045, %v2172
    %v2184 = vadd.f32 %v2046, %v2177
    %s2185 = scalar_lea.vmem %s3, 156
    %v2186 = vld [vmem:[%s2185] sm:$0xf]
    %v2187 = vld [vmem:[%s2185 + $0x4] sm:$0xf]
    %v2188 = vld [vmem:[%s2185 + $0x8] sm:$0x1]
    %v2192 = vunpack.c.l.b16 %v2186
    %v2193 = vunpack.c.l.b16 %v2187
    %v2194 = vunpack.c.l.b16 %v2188
    %v2195 = vpack.c.b16 %v2193, %v2192
    %v2196 = vpack.c.b16 %v2194, %v2194
    %2199 = vmatprep.subr.bf16.mxu0 0
    %2200 = vmatpush1.bf16.msra.mxu0 %v397
    %2201 = vmatprep.subr.bf16.mxu0 0
    %2202 = vmatpush1.bf16.msra.mxu0 %v396
    %2203 = vmatprep.subr.bf16.mxu0 0
    %2204 = vmatpush1.bf16.msra.mxu0 %v395
    %2205 = vmatprep.subr.bf16.mxu0 0
    %2206 = vmatpush1.bf16.msra.mxu0 %v394
    %2207 = vmatprep.subr.bf16.mxu0 0
    %2208 = vmatpush1.bf16.msra.mxu0 %v393
    %2209 = vmatprep.subr.bf16.mxu0 0
    %2210 = vmatpush1.bf16.msra.mxu0 %v392
    %2211 = vmatprep.subr.bf16.mxu0 0
    %2212 = vmatpush1.bf16.msra.mxu0 %v391
    %2213 = vmatprep.subr.bf16.mxu0 0
    %2214 = vmatpush1.bf16.msra.mxu0 %v390
    %2215 = vmatprep.subr.bf16.mxu0 0
    %2216 = vmatpush2.bf16.msra.mxu0 0
    %2217 = vmatprep.subr.bf16.mxu0 0
    %2218 = vmatpush2.bf16.msra.mxu0 0
    %2219 = vmatprep.subr.bf16.mxu0 0
    %2220 = vmatpush2.bf16.msra.mxu0 0
    %2221 = vmatprep.subr.bf16.mxu0 0
    %2222 = vmatpush2.bf16.msra.mxu0 0
    %2223 = vmatprep.subr.bf16.mxu0 0
    %2224 = vmatpush2.bf16.msra.mxu0 0
    %2225 = vmatprep.subr.bf16.mxu0 0
    %2226 = vmatpush2.bf16.msra.mxu0 0
    %2227 = vmatprep.subr.bf16.mxu0 0
    %2228 = vmatpush2.bf16.msra.mxu0 0
    %2229 = vmatprep.subr.bf16.mxu0 0
    %2230 = vmatpush2.bf16.msra.mxu0 0
    %2231 = vmatprep.mubr.bf16.mxu0 0
    %2232 = vmatmul.mubr.bf16.gmra.mxu0 %v2195
    %v2233 = vpop.f32.mrf.mxu0
    %v2234 = vadd.f32 0.0, %v2233
    %v2235 = vpop.f32.mrf.mxu0
    %v2236 = vpop.f32.mrf.mxu0
    %v2237 = vadd.f32 0.0, %v2236
    %v2238 = vpop.f32.mrf.mxu0
    %2239 = vmatprep.mubr.bf16.mxu0 0
    %2240 = vmatmul.mubr.bf16.gmra.mxu0 %v2196
    %v2241 = vpop.f32.mrf.mxu0
    %v2242 = vadd.f32 0.0, %v2241
    %v2243 = vpop.f32.mrf.mxu0
    %v2244 = vpop.f32.mrf.mxu0
    %v2245 = vpop.f32.mrf.mxu0
    %2246 = vdwg.mxu0
    %v2247 = vpack.c.bf16 %v2237, %v2234
    %v2248 = vpack.c.bf16 %v2242, %v2242
    %s2249 = scalar_lea.vmem %s4, 208
    %v2250 = vld [vmem:[%s2249] sm:$0xf]
    %v2251 = vld [vmem:[%s2249 + $0x4] sm:$0xf]
    %v2252 = vld [vmem:[%s2249 + $0x8] sm:$0xf]
    %v2253 = vld [vmem:[%s2249 + $0xc] sm:$0xf]
    %v2258 = vunpack.c.l.b16 %v2250
    %v2259 = vunpack.c.l.b16 %v2251
    %v2260 = vunpack.c.l.b16 %v2252
    %v2261 = vunpack.c.l.b16 %v2253
    %v2262 = vpack.c.b16 %v2259, %v2258
    %v2263 = vpack.c.b16 %v2261, %v2260
    %v2267 = vsel %vm546, %v2247, 0
    %v2270 = vsel %vm546, %v2248, 0
    %2272 = vmatprep.subr.bf16.mxu0 0
    %2273 = vmatpush1.bf16.msra.mxu0 0
    %2274 = vmatprep.subr.bf16.mxu0 0
    %2275 = vmatpush1.bf16.msra.mxu0 0
    %2276 = vmatprep.subr.bf16.mxu0 0
    %2277 = vmatpush1.bf16.msra.mxu0 0
    %2278 = vmatprep.subr.bf16.mxu0 0
    %2279 = vmatpush1.bf16.msra.mxu0 0
    %2280 = vmatprep.subr.bf16.mxu0 0
    %2281 = vmatpush1.bf16.msra.mxu0 0
    %2282 = vmatprep.subr.bf16.mxu0 0
    %2283 = vmatpush1.bf16.msra.mxu0 0
    %2284 = vmatprep.subr.bf16.mxu0 0
    %2285 = vmatpush1.bf16.msra.mxu0 %v2263
    %2286 = vmatprep.subr.bf16.mxu0 0
    %2287 = vmatpush1.bf16.msra.mxu0 %v2262
    %2288 = vmatprep.subr.bf16.mxu0 0
    %2289 = vmatpush2.bf16.msra.mxu0 0
    %2290 = vmatprep.subr.bf16.mxu0 0
    %2291 = vmatpush2.bf16.msra.mxu0 0
    %2292 = vmatprep.subr.bf16.mxu0 0
    %2293 = vmatpush2.bf16.msra.mxu0 0
    %2294 = vmatprep.subr.bf16.mxu0 0
    %2295 = vmatpush2.bf16.msra.mxu0 0
    %2296 = vmatprep.subr.bf16.mxu0 0
    %2297 = vmatpush2.bf16.msra.mxu0 0
    %2298 = vmatprep.subr.bf16.mxu0 0
    %2299 = vmatpush2.bf16.msra.mxu0 0
    %2300 = vmatprep.subr.bf16.mxu0 0
    %2301 = vmatpush2.bf16.msra.mxu0 0
    %2302 = vmatprep.subr.bf16.mxu0 0
    %2303 = vmatpush2.bf16.msra.mxu0 0
    %2304 = vmatprep.mubr.bf16.mxu0 0
    %2305 = vmatmul.mubr.bf16.gmra.mxu0 %v2267
    %v2306 = vpop.f32.mrf.mxu0
    %v2307 = vadd.f32 0.0, %v2306
    %v2308 = vpop.f32.mrf.mxu0
    %v2309 = vpop.f32.mrf.mxu0
    %v2310 = vadd.f32 0.0, %v2309
    %v2311 = vpop.f32.mrf.mxu0
    %2312 = vmatprep.mubr.bf16.mxu0 0
    %2313 = vmatmul.mubr.bf16.gmra.mxu0 %v2270
    %v2314 = vpop.f32.mrf.mxu0
    %v2315 = vadd.f32 0.0, %v2314
    %v2316 = vpop.f32.mrf.mxu0
    %v2317 = vpop.f32.mrf.mxu0
    %v2318 = vpop.f32.mrf.mxu0
    %2319 = vdwg.mxu0
    %v2320 = vadd.f32 %v2182, %v2307
    %v2321 = vadd.f32 %v2183, %v2310
    %v2322 = vadd.f32 %v2184, %v2315
    %s2323 = scalar_lea.vmem %s3, 168
    %v2324 = vld [vmem:[%s2323] sm:$0xf]
    %v2325 = vld [vmem:[%s2323 + $0x4] sm:$0xf]
    %v2326 = vld [vmem:[%s2323 + $0x8] sm:$0x1]
    %v2330 = vunpack.c.l.b16 %v2324
    %v2331 = vunpack.c.l.b16 %v2325
    %v2332 = vunpack.c.l.b16 %v2326
    %v2333 = vpack.c.b16 %v2331, %v2330
    %v2334 = vpack.c.b16 %v2332, %v2332
    %2337 = vmatprep.subr.bf16.mxu0 0
    %2338 = vmatpush1.bf16.msra.mxu0 %v397
    %2339 = vmatprep.subr.bf16.mxu0 0
    %2340 = vmatpush1.bf16.msra.mxu0 %v396
    %2341 = vmatprep.subr.bf16.mxu0 0
    %2342 = vmatpush1.bf16.msra.mxu0 %v395
    %2343 = vmatprep.subr.bf16.mxu0 0
    %2344 = vmatpush1.bf16.msra.mxu0 %v394
    %2345 = vmatprep.subr.bf16.mxu0 0
    %2346 = vmatpush1.bf16.msra.mxu0 %v393
    %2347 = vmatprep.subr.bf16.mxu0 0
    %2348 = vmatpush1.bf16.msra.mxu0 %v392
    %2349 = vmatprep.subr.bf16.mxu0 0
    %2350 = vmatpush1.bf16.msra.mxu0 %v391
    %2351 = vmatprep.subr.bf16.mxu0 0
    %2352 = vmatpush1.bf16.msra.mxu0 %v390
    %2353 = vmatprep.subr.bf16.mxu0 0
    %2354 = vmatpush2.bf16.msra.mxu0 0
    %2355 = vmatprep.subr.bf16.mxu0 0
    %2356 = vmatpush2.bf16.msra.mxu0 0
    %2357 = vmatprep.subr.bf16.mxu0 0
    %2358 = vmatpush2.bf16.msra.mxu0 0
    %2359 = vmatprep.subr.bf16.mxu0 0
    %2360 = vmatpush2.bf16.msra.mxu0 0
    %2361 = vmatprep.subr.bf16.mxu0 0
    %2362 = vmatpush2.bf16.msra.mxu0 0
    %2363 = vmatprep.subr.bf16.mxu0 0
    %2364 = vmatpush2.bf16.msra.mxu0 0
    %2365 = vmatprep.subr.bf16.mxu0 0
    %2366 = vmatpush2.bf16.msra.mxu0 0
    %2367 = vmatprep.subr.bf16.mxu0 0
    %2368 = vmatpush2.bf16.msra.mxu0 0
    %2369 = vmatprep.mubr.bf16.mxu0 0
    %2370 = vmatmul.mubr.bf16.gmra.mxu0 %v2333
    %v2371 = vpop.f32.mrf.mxu0
    %v2372 = vadd.f32 0.0, %v2371
    %v2373 = vpop.f32.mrf.mxu0
    %v2374 = vpop.f32.mrf.mxu0
    %v2375 = vadd.f32 0.0, %v2374
    %v2376 = vpop.f32.mrf.mxu0
    %2377 = vmatprep.mubr.bf16.mxu0 0
    %2378 = vmatmul.mubr.bf16.gmra.mxu0 %v2334
    %v2379 = vpop.f32.mrf.mxu0
    %v2380 = vadd.f32 0.0, %v2379
    %v2381 = vpop.f32.mrf.mxu0
    %v2382 = vpop.f32.mrf.mxu0
    %v2383 = vpop.f32.mrf.mxu0
    %2384 = vdwg.mxu0
    %v2385 = vpack.c.bf16 %v2375, %v2372
    %v2386 = vpack.c.bf16 %v2380, %v2380
    %s2387 = scalar_lea.vmem %s4, 224
    %v2388 = vld [vmem:[%s2387] sm:$0xf]
    %v2389 = vld [vmem:[%s2387 + $0x4] sm:$0xf]
    %v2390 = vld [vmem:[%s2387 + $0x8] sm:$0xf]
    %v2391 = vld [vmem:[%s2387 + $0xc] sm:$0xf]
    %v2396 = vunpack.c.l.b16 %v2388
    %v2397 = vunpack.c.l.b16 %v2389
    %v2398 = vunpack.c.l.b16 %v2390
    %v2399 = vunpack.c.l.b16 %v2391
    %v2400 = vpack.c.b16 %v2397, %v2396
    %v2401 = vpack.c.b16 %v2399, %v2398
    %v2405 = vsel %vm546, %v2385, 0
    %v2408 = vsel %vm546, %v2386, 0
    %2410 = vmatprep.subr.bf16.mxu0 0
    %2411 = vmatpush1.bf16.msra.mxu0 0
    %2412 = vmatprep.subr.bf16.mxu0 0
    %2413 = vmatpush1.bf16.msra.mxu0 0
    %2414 = vmatprep.subr.bf16.mxu0 0
    %2415 = vmatpush1.bf16.msra.mxu0 0
    %2416 = vmatprep.subr.bf16.mxu0 0
    %2417 = vmatpush1.bf16.msra.mxu0 0
    %2418 = vmatprep.subr.bf16.mxu0 0
    %2419 = vmatpush1.bf16.msra.mxu0 0
    %2420 = vmatprep.subr.bf16.mxu0 0
    %2421 = vmatpush1.bf16.msra.mxu0 0
    %2422 = vmatprep.subr.bf16.mxu0 0
    %2423 = vmatpush1.bf16.msra.mxu0 %v2401
    %2424 = vmatprep.subr.bf16.mxu0 0
    %2425 = vmatpush1.bf16.msra.mxu0 %v2400
    %2426 = vmatprep.subr.bf16.mxu0 0
    %2427 = vmatpush2.bf16.msra.mxu0 0
    %2428 = vmatprep.subr.bf16.mxu0 0
    %2429 = vmatpush2.bf16.msra.mxu0 0
    %2430 = vmatprep.subr.bf16.mxu0 0
    %2431 = vmatpush2.bf16.msra.mxu0 0
    %2432 = vmatprep.subr.bf16.mxu0 0
    %2433 = vmatpush2.bf16.msra.mxu0 0
    %2434 = vmatprep.subr.bf16.mxu0 0
    %2435 = vmatpush2.bf16.msra.mxu0 0
    %2436 = vmatprep.subr.bf16.mxu0 0
    %2437 = vmatpush2.bf16.msra.mxu0 0
    %2438 = vmatprep.subr.bf16.mxu0 0
    %2439 = vmatpush2.bf16.msra.mxu0 0
    %2440 = vmatprep.subr.bf16.mxu0 0
    %2441 = vmatpush2.bf16.msra.mxu0 0
    %2442 = vmatprep.mubr.bf16.mxu0 0
    %2443 = vmatmul.mubr.bf16.gmra.mxu0 %v2405
    %v2444 = vpop.f32.mrf.mxu0
    %v2445 = vadd.f32 0.0, %v2444
    %v2446 = vpop.f32.mrf.mxu0
    %v2447 = vpop.f32.mrf.mxu0
    %v2448 = vadd.f32 0.0, %v2447
    %v2449 = vpop.f32.mrf.mxu0
    %2450 = vmatprep.mubr.bf16.mxu0 0
    %2451 = vmatmul.mubr.bf16.gmra.mxu0 %v2408
    %v2452 = vpop.f32.mrf.mxu0
    %v2453 = vadd.f32 0.0, %v2452
    %v2454 = vpop.f32.mrf.mxu0
    %v2455 = vpop.f32.mrf.mxu0
    %v2456 = vpop.f32.mrf.mxu0
    %2457 = vdwg.mxu0
    %v2458 = vadd.f32 %v2320, %v2445
    %v2459 = vadd.f32 %v2321, %v2448
    %v2460 = vadd.f32 %v2322, %v2453
    %s2461 = scalar_lea.vmem %s3, 180
    %v2462 = vld [vmem:[%s2461] sm:$0xf]
    %v2463 = vld [vmem:[%s2461 + $0x4] sm:$0xf]
    %v2464 = vld [vmem:[%s2461 + $0x8] sm:$0x1]
    %v2468 = vunpack.c.l.b16 %v2462
    %v2469 = vunpack.c.l.b16 %v2463
    %v2470 = vunpack.c.l.b16 %v2464
    %v2471 = vpack.c.b16 %v2469, %v2468
    %v2472 = vpack.c.b16 %v2470, %v2470
    %2475 = vmatprep.subr.bf16.mxu0 0
    %2476 = vmatpush1.bf16.msra.mxu0 %v397
    %2477 = vmatprep.subr.bf16.mxu0 0
    %2478 = vmatpush1.bf16.msra.mxu0 %v396
    %2479 = vmatprep.subr.bf16.mxu0 0
    %2480 = vmatpush1.bf16.msra.mxu0 %v395
    %2481 = vmatprep.subr.bf16.mxu0 0
    %2482 = vmatpush1.bf16.msra.mxu0 %v394
    %2483 = vmatprep.subr.bf16.mxu0 0
    %2484 = vmatpush1.bf16.msra.mxu0 %v393
    %2485 = vmatprep.subr.bf16.mxu0 0
    %2486 = vmatpush1.bf16.msra.mxu0 %v392
    %2487 = vmatprep.subr.bf16.mxu0 0
    %2488 = vmatpush1.bf16.msra.mxu0 %v391
    %2489 = vmatprep.subr.bf16.mxu0 0
    %2490 = vmatpush1.bf16.msra.mxu0 %v390
    %2491 = vmatprep.subr.bf16.mxu0 0
    %2492 = vmatpush2.bf16.msra.mxu0 0
    %2493 = vmatprep.subr.bf16.mxu0 0
    %2494 = vmatpush2.bf16.msra.mxu0 0
    %2495 = vmatprep.subr.bf16.mxu0 0
    %2496 = vmatpush2.bf16.msra.mxu0 0
    %2497 = vmatprep.subr.bf16.mxu0 0
    %2498 = vmatpush2.bf16.msra.mxu0 0
    %2499 = vmatprep.subr.bf16.mxu0 0
    %2500 = vmatpush2.bf16.msra.mxu0 0
    %2501 = vmatprep.subr.bf16.mxu0 0
    %2502 = vmatpush2.bf16.msra.mxu0 0
    %2503 = vmatprep.subr.bf16.mxu0 0
    %2504 = vmatpush2.bf16.msra.mxu0 0
    %2505 = vmatprep.subr.bf16.mxu0 0
    %2506 = vmatpush2.bf16.msra.mxu0 0
    %2507 = vmatprep.mubr.bf16.mxu0 0
    %2508 = vmatmul.mubr.bf16.gmra.mxu0 %v2471
    %v2509 = vpop.f32.mrf.mxu0
    %v2510 = vadd.f32 0.0, %v2509
    %v2511 = vpop.f32.mrf.mxu0
    %v2512 = vpop.f32.mrf.mxu0
    %v2513 = vadd.f32 0.0, %v2512
    %v2514 = vpop.f32.mrf.mxu0
    %2515 = vmatprep.mubr.bf16.mxu0 0
    %2516 = vmatmul.mubr.bf16.gmra.mxu0 %v2472
    %v2517 = vpop.f32.mrf.mxu0
    %v2518 = vadd.f32 0.0, %v2517
    %v2519 = vpop.f32.mrf.mxu0
    %v2520 = vpop.f32.mrf.mxu0
    %v2521 = vpop.f32.mrf.mxu0
    %2522 = vdwg.mxu0
    %v2523 = vpack.c.bf16 %v2513, %v2510
    %v2524 = vpack.c.bf16 %v2518, %v2518
    %s2525 = scalar_lea.vmem %s4, 240
    %v2526 = vld [vmem:[%s2525] sm:$0xf]
    %v2527 = vld [vmem:[%s2525 + $0x4] sm:$0xf]
    %v2528 = vld [vmem:[%s2525 + $0x8] sm:$0xf]
    %v2529 = vld [vmem:[%s2525 + $0xc] sm:$0xf]
    %v2534 = vunpack.c.l.b16 %v2526
    %v2535 = vunpack.c.l.b16 %v2527
    %v2536 = vunpack.c.l.b16 %v2528
    %v2537 = vunpack.c.l.b16 %v2529
    %v2538 = vpack.c.b16 %v2535, %v2534
    %v2539 = vpack.c.b16 %v2537, %v2536
    %v2543 = vsel %vm546, %v2523, 0
    %v2546 = vsel %vm546, %v2524, 0
    %2548 = vmatprep.subr.bf16.mxu0 0
    %2549 = vmatpush1.bf16.msra.mxu0 0
    %2550 = vmatprep.subr.bf16.mxu0 0
    %2551 = vmatpush1.bf16.msra.mxu0 0
    %2552 = vmatprep.subr.bf16.mxu0 0
    %2553 = vmatpush1.bf16.msra.mxu0 0
    %2554 = vmatprep.subr.bf16.mxu0 0
    %2555 = vmatpush1.bf16.msra.mxu0 0
    %2556 = vmatprep.subr.bf16.mxu0 0
    %2557 = vmatpush1.bf16.msra.mxu0 0
    %2558 = vmatprep.subr.bf16.mxu0 0
    %2559 = vmatpush1.bf16.msra.mxu0 0
    %2560 = vmatprep.subr.bf16.mxu0 0
    %2561 = vmatpush1.bf16.msra.mxu0 %v2539
    %2562 = vmatprep.subr.bf16.mxu0 0
    %2563 = vmatpush1.bf16.msra.mxu0 %v2538
    %2564 = vmatprep.subr.bf16.mxu0 0
    %2565 = vmatpush2.bf16.msra.mxu0 0
    %2566 = vmatprep.subr.bf16.mxu0 0
    %2567 = vmatpush2.bf16.msra.mxu0 0
    %2568 = vmatprep.subr.bf16.mxu0 0
    %2569 = vmatpush2.bf16.msra.mxu0 0
    %2570 = vmatprep.subr.bf16.mxu0 0
    %2571 = vmatpush2.bf16.msra.mxu0 0
    %2572 = vmatprep.subr.bf16.mxu0 0
    %2573 = vmatpush2.bf16.msra.mxu0 0
    %2574 = vmatprep.subr.bf16.mxu0 0
    %2575 = vmatpush2.bf16.msra.mxu0 0
    %2576 = vmatprep.subr.bf16.mxu0 0
    %2577 = vmatpush2.bf16.msra.mxu0 0
    %2578 = vmatprep.subr.bf16.mxu0 0
    %2579 = vmatpush2.bf16.msra.mxu0 0
    %2580 = vmatprep.mubr.bf16.mxu0 0
    %2581 = vmatmul.mubr.bf16.gmra.mxu0 %v2543
    %v2582 = vpop.f32.mrf.mxu0
    %v2583 = vadd.f32 0.0, %v2582
    %v2584 = vpop.f32.mrf.mxu0
    %v2585 = vpop.f32.mrf.mxu0
    %v2586 = vadd.f32 0.0, %v2585
    %v2587 = vpop.f32.mrf.mxu0
    %2588 = vmatprep.mubr.bf16.mxu0 0
    %2589 = vmatmul.mubr.bf16.gmra.mxu0 %v2546
    %v2590 = vpop.f32.mrf.mxu0
    %v2591 = vadd.f32 0.0, %v2590
    %v2592 = vpop.f32.mrf.mxu0
    %v2593 = vpop.f32.mrf.mxu0
    %v2594 = vpop.f32.mrf.mxu0
    %2595 = vdwg.mxu0
    %v2596 = vadd.f32 %v2458, %v2583
    %v2597 = vadd.f32 %v2459, %v2586
    %v2598 = vadd.f32 %v2460, %v2591
    %v2599 = vld [vmem:[%s5] sm:$0x1]
    %v2601 = vlaneseq
    %v2602 = vshrl.u32 %v2601, 7
    %v2603 = vsub.s32 0, %v2602
    %v2604 = vrot.slane %v2599, %v2603
    %v2606 = vadd.f32 %v2596, %v2604
    %v2607 = vadd.f32 %v2597, %v2604
    %v2608 = vadd.f32 %v2598, %v2604
    %v2609 = vmax.f32 %v2606, 0.0
    %v2610 = vmax.f32 %v2607, 0.0
    %v2611 = vmax.f32 %v2608, 0.0
    %v2612 = vpack.c.bf16 %v2610, %v2609
    %v2613 = vpack.c.bf16 %v2611, %v2611
    %v2614 = vld [vmem:[%s6] sm:$0x1]
    %vm2615 = vcmask 146432
    %v2617 = vsel %vm2615, %v2614, 0
    %vm2619 = vcmask 1040384
    %v2621 = vsel %vm2619, %v2613, 0
    %2623 = vmatprep.subr.bf16.mxu0 0
    %2624 = vmatpush1.bf16.msra.mxu0 0
    %2625 = vmatprep.subr.bf16.mxu0 0
    %2626 = vmatpush1.bf16.msra.mxu0 0
    %2627 = vmatprep.subr.bf16.mxu0 0
    %2628 = vmatpush1.bf16.msra.mxu0 0
    %2629 = vmatprep.subr.bf16.mxu0 0
    %2630 = vmatpush1.bf16.msra.mxu0 0
    %2631 = vmatprep.subr.bf16.mxu0 0
    %2632 = vmatpush1.bf16.msra.mxu0 0
    %2633 = vmatprep.subr.bf16.mxu0 0
    %2634 = vmatpush1.bf16.msra.mxu0 0
    %2635 = vmatprep.subr.bf16.mxu0 0
    %2636 = vmatpush1.bf16.msra.mxu0 %v2621
    %2637 = vmatprep.subr.bf16.mxu0 0
    %2638 = vmatpush1.bf16.msra.mxu0 %v2612
    %2639 = vmatprep.subr.bf16.mxu0 0
    %2640 = vmatpush2.bf16.msra.mxu0 0
    %2641 = vmatprep.subr.bf16.mxu0 0
    %2642 = vmatpush2.bf16.msra.mxu0 0
    %2643 = vmatprep.subr.bf16.mxu0 0
    %2644 = vmatpush2.bf16.msra.mxu0 0
    %2645 = vmatprep.subr.bf16.mxu0 0
    %2646 = vmatpush2.bf16.msra.mxu0 0
    %2647 = vmatprep.subr.bf16.mxu0 0
    %2648 = vmatpush2.bf16.msra.mxu0 0
    %2649 = vmatprep.subr.bf16.mxu0 0
    %2650 = vmatpush2.bf16.msra.mxu0 0
    %2651 = vmatprep.subr.bf16.mxu0 0
    %2652 = vmatpush2.bf16.msra.mxu0 0
    %2653 = vmatprep.subr.bf16.mxu0 0
    %2654 = vmatpush2.bf16.msra.mxu0 0
    %2655 = vmatprep.mubr.bf16.mxu0 0
    %2656 = vmatmul.mubr.bf16.gmra.mxu0 %v2617
    %v2657 = vpop.f32.mrf.mxu0
    %v2658 = vadd.f32 0.0, %v2657
    %v2659 = vpop.f32.mrf.mxu0
    %v2660 = vpop.f32.mrf.mxu0
    %v2661 = vpop.f32.mrf.mxu0
    %2662 = vdwg.mxu0
    %v2663 = vpack.c.bf16 %v2658, %v2658
    %v2664 = vld [vmem:[%s7] sm:$0xf]
    %v2665 = vld [vmem:[%s7 + $0x4] sm:$0xf]
    %v2666 = vld [vmem:[%s7 + $0x8] sm:$0xf]
    %v2667 = vld [vmem:[%s7 + $0xc] sm:$0xf]
    %v2668 = vld [vmem:[%s7 + $0x10] sm:$0xf]
    %v2669 = vld [vmem:[%s7 + $0x14] sm:$0xf]
    %v2670 = vld [vmem:[%s7 + $0x18] sm:$0xf]
    %v2671 = vld [vmem:[%s7 + $0x1c] sm:$0xf]
    %s2672 = scalar_lea.vmem %s6, 1
    %v2673 = vld [vmem:[%s2672] sm:$0x1]
    %v2675 = vsel %vm2615, %v2673, 0
    %2677 = vmatprep.subr.bf16.mxu0 0
    %2678 = vmatpush1.bf16.msra.mxu0 0
    %2679 = vmatprep.subr.bf16.mxu0 0
    %2680 = vmatpush1.bf16.msra.mxu0 0
    %2681 = vmatprep.subr.bf16.mxu0 0
    %2682 = vmatpush1.bf16.msra.mxu0 0
    %2683 = vmatprep.subr.bf16.mxu0 0
    %2684 = vmatpush1.bf16.msra.mxu0 0
    %2685 = vmatprep.subr.bf16.mxu0 0
    %2686 = vmatpush1.bf16.msra.mxu0 0
    %2687 = vmatprep.subr.bf16.mxu0 0
    %2688 = vmatpush1.bf16.msra.mxu0 0
    %2689 = vmatprep.subr.bf16.mxu0 0
    %2690 = vmatpush1.bf16.msra.mxu0 %v2621
    %2691 = vmatprep.subr.bf16.mxu0 0
    %2692 = vmatpush1.bf16.msra.mxu0 %v2612
    %2693 = vmatprep.subr.bf16.mxu0 0
    %2694 = vmatpush2.bf16.msra.mxu0 0
    %2695 = vmatprep.subr.bf16.mxu0 0
    %2696 = vmatpush2.bf16.msra.mxu0 0
    %2697 = vmatprep.subr.bf16.mxu0 0
    %2698 = vmatpush2.bf16.msra.mxu0 0
    %2699 = vmatprep.subr.bf16.mxu0 0
    %2700 = vmatpush2.bf16.msra.mxu0 0
    %2701 = vmatprep.subr.bf16.mxu0 0
    %2702 = vmatpush2.bf16.msra.mxu0 0
    %2703 = vmatprep.subr.bf16.mxu0 0
    %2704 = vmatpush2.bf16.msra.mxu0 0
    %2705 = vmatprep.subr.bf16.mxu0 0
    %2706 = vmatpush2.bf16.msra.mxu0 0
    %2707 = vmatprep.subr.bf16.mxu0 0
    %2708 = vmatpush2.bf16.msra.mxu0 0
    %2709 = vmatprep.mubr.bf16.mxu0 0
    %2710 = vmatmul.mubr.bf16.gmra.mxu0 %v2675
    %v2711 = vpop.f32.mrf.mxu0
    %v2712 = vadd.f32 0.0, %v2711
    %v2713 = vpop.f32.mrf.mxu0
    %v2714 = vpop.f32.mrf.mxu0
    %v2715 = vpop.f32.mrf.mxu0
    %2716 = vdwg.mxu0
    %v2717 = vpack.c.bf16 %v2712, %v2712
    %s2718 = scalar_lea.vmem %s7, 32
    %v2719 = vld [vmem:[%s2718] sm:$0xf]
    %v2720 = vld [vmem:[%s2718 + $0x4] sm:$0xf]
    %v2721 = vld [vmem:[%s2718 + $0x8] sm:$0xf]
    %v2722 = vld [vmem:[%s2718 + $0xc] sm:$0xf]
    %v2723 = vld [vmem:[%s2718 + $0x10] sm:$0xf]
    %v2724 = vld [vmem:[%s2718 + $0x14] sm:$0xf]
    %v2725 = vld [vmem:[%s2718 + $0x18] sm:$0xf]
    %v2726 = vld [vmem:[%s2718 + $0x1c] sm:$0xf]
    %v2735 = vunpack.c.l.b16 %v2719
    %v2736 = vunpack.c.l.b16 %v2720
    %v2737 = vunpack.c.l.b16 %v2721
    %v2738 = vunpack.c.l.b16 %v2722
    %v2739 = vunpack.c.l.b16 %v2723
    %v2740 = vunpack.c.l.b16 %v2724
    %v2741 = vunpack.c.l.b16 %v2725
    %v2742 = vunpack.c.l.b16 %v2726
    %v2743 = vpack.c.b16 %v2736, %v2735
    %v2744 = vpack.c.b16 %v2738, %v2737
    %v2745 = vpack.c.b16 %v2740, %v2739
    %v2746 = vpack.c.b16 %v2742, %v2741
    %vm2751 = vcmask 523264
    %v2753 = vsel %vm2751, %v2717, 0
    %2755 = vmatprep.subr.bf16.mxu0 0
    %2756 = vmatpush1.bf16.msra.mxu0 0
    %2757 = vmatprep.subr.bf16.mxu0 0
    %2758 = vmatpush1.bf16.msra.mxu0 0
    %2759 = vmatprep.subr.bf16.mxu0 0
    %2760 = vmatpush1.bf16.msra.mxu0 0
    %2761 = vmatprep.subr.bf16.mxu0 0
    %2762 = vmatpush1.bf16.msra.mxu0 0
    %2763 = vmatprep.subr.bf16.mxu0 0
    %2764 = vmatpush1.bf16.msra.mxu0 %v2746
    %2765 = vmatprep.subr.bf16.mxu0 0
    %2766 = vmatpush1.bf16.msra.mxu0 %v2745
    %2767 = vmatprep.subr.bf16.mxu0 0
    %2768 = vmatpush1.bf16.msra.mxu0 %v2744
    %2769 = vmatprep.subr.bf16.mxu0 0
    %2770 = vmatpush1.bf16.msra.mxu0 %v2743
    %2771 = vmatprep.subr.bf16.mxu0 0
    %2772 = vmatpush2.bf16.msra.mxu0 0
    %2773 = vmatprep.subr.bf16.mxu0 0
    %2774 = vmatpush2.bf16.msra.mxu0 0
    %2775 = vmatprep.subr.bf16.mxu0 0
    %2776 = vmatpush2.bf16.msra.mxu0 0
    %2777 = vmatprep.subr.bf16.mxu0 0
    %2778 = vmatpush2.bf16.msra.mxu0 0
    %2779 = vmatprep.subr.bf16.mxu0 0
    %2780 = vmatpush2.bf16.msra.mxu0 0
    %2781 = vmatprep.subr.bf16.mxu0 0
    %2782 = vmatpush2.bf16.msra.mxu0 0
    %2783 = vmatprep.subr.bf16.mxu0 0
    %2784 = vmatpush2.bf16.msra.mxu0 0
    %2785 = vmatprep.subr.bf16.mxu0 0
    %2786 = vmatpush2.bf16.msra.mxu0 0
    %2787 = vmatprep.mubr.bf16.mxu0 0
    %2788 = vmatmul.mubr.bf16.gmra.mxu0 %v2753
    %v2789 = vpop.f32.mrf.mxu0
    %v2790 = vadd.f32 0.0, %v2789
    %v2791 = vpop.f32.mrf.mxu0
    %v2792 = vpop.f32.mrf.mxu0
    %v2793 = vpop.f32.mrf.mxu0
    %2794 = vdwg.mxu0
    %v2803 = vunpack.c.l.b16 %v2664
    %v2804 = vunpack.c.l.b16 %v2665
    %v2805 = vunpack.c.l.b16 %v2666
    %v2806 = vunpack.c.l.b16 %v2667
    %v2807 = vunpack.c.l.b16 %v2668
    %v2808 = vunpack.c.l.b16 %v2669
    %v2809 = vunpack.c.l.b16 %v2670
    %v2810 = vunpack.c.l.b16 %v2671
    %v2811 = vpack.c.b16 %v2804, %v2803
    %v2812 = vpack.c.b16 %v2806, %v2805
    %v2813 = vpack.c.b16 %v2808, %v2807
    %v2814 = vpack.c.b16 %v2810, %v2809
    %v2820 = vsel %vm2751, %v2663, 0
    %2822 = vmatprep.subr.bf16.mxu0 0
    %2823 = vmatpush1.bf16.msra.mxu0 0
    %2824 = vmatprep.subr.bf16.mxu0 0
    %2825 = vmatpush1.bf16.msra.mxu0 0
    %2826 = vmatprep.subr.bf16.mxu0 0
    %2827 = vmatpush1.bf16.msra.mxu0 0
    %2828 = vmatprep.subr.bf16.mxu0 0
    %2829 = vmatpush1.bf16.msra.mxu0 0
    %2830 = vmatprep.subr.bf16.mxu0 0
    %2831 = vmatpush1.bf16.msra.mxu0 %v2814
    %2832 = vmatprep.subr.bf16.mxu0 0
    %2833 = vmatpush1.bf16.msra.mxu0 %v2813
    %2834 = vmatprep.subr.bf16.mxu0 0
    %2835 = vmatpush1.bf16.msra.mxu0 %v2812
    %2836 = vmatprep.subr.bf16.mxu0 0
    %2837 = vmatpush1.bf16.msra.mxu0 %v2811
    %2838 = vmatprep.subr.bf16.mxu0 0
    %2839 = vmatpush2.bf16.msra.mxu0 0
    %2840 = vmatprep.subr.bf16.mxu0 0
    %2841 = vmatpush2.bf16.msra.mxu0 0
    %2842 = vmatprep.subr.bf16.mxu0 0
    %2843 = vmatpush2.bf16.msra.mxu0 0
    %2844 = vmatprep.subr.bf16.mxu0 0
    %2845 = vmatpush2.bf16.msra.mxu0 0
    %2846 = vmatprep.subr.bf16.mxu0 0
    %2847 = vmatpush2.bf16.msra.mxu0 0
    %2848 = vmatprep.subr.bf16.mxu0 0
    %2849 = vmatpush2.bf16.msra.mxu0 0
    %2850 = vmatprep.subr.bf16.mxu0 0
    %2851 = vmatpush2.bf16.msra.mxu0 0
    %2852 = vmatprep.subr.bf16.mxu0 0
    %2853 = vmatpush2.bf16.msra.mxu0 0
    %2854 = vmatprep.mubr.bf16.mxu0 0
    %2855 = vmatmul.mubr.bf16.gmra.mxu0 %v2820
    %v2856 = vpop.f32.mrf.mxu0
    %v2857 = vadd.f32 %v2790, %v2856
    %v2858 = vpop.f32.mrf.mxu0
    %v2859 = vpop.f32.mrf.mxu0
    %v2860 = vpop.f32.mrf.mxu0
    %2861 = vdwg.mxu0
    %s2862 = scalar_lea.vmem %s6, 2
    %v2863 = vld [vmem:[%s2862] sm:$0x1]
    %v2865 = vsel %vm2615, %v2863, 0
    %2867 = vmatprep.subr.bf16.mxu0 0
    %2868 = vmatpush1.bf16.msra.mxu0 0
    %2869 = vmatprep.subr.bf16.mxu0 0
    %2870 = vmatpush1.bf16.msra.mxu0 0
    %2871 = vmatprep.subr.bf16.mxu0 0
    %2872 = vmatpush1.bf16.msra.mxu0 0
    %2873 = vmatprep.subr.bf16.mxu0 0
    %2874 = vmatpush1.bf16.msra.mxu0 0
    %2875 = vmatprep.subr.bf16.mxu0 0
    %2876 = vmatpush1.bf16.msra.mxu0 0
    %2877 = vmatprep.subr.bf16.mxu0 0
    %2878 = vmatpush1.bf16.msra.mxu0 0
    %2879 = vmatprep.subr.bf16.mxu0 0
    %2880 = vmatpush1.bf16.msra.mxu0 %v2621
    %2881 = vmatprep.subr.bf16.mxu0 0
    %2882 = vmatpush1.bf16.msra.mxu0 %v2612
    %2883 = vmatprep.subr.bf16.mxu0 0
    %2884 = vmatpush2.bf16.msra.mxu0 0
    %2885 = vmatprep.subr.bf16.mxu0 0
    %2886 = vmatpush2.bf16.msra.mxu0 0
    %2887 = vmatprep.subr.bf16.mxu0 0
    %2888 = vmatpush2.bf16.msra.mxu0 0
    %2889 = vmatprep.subr.bf16.mxu0 0
    %2890 = vmatpush2.bf16.msra.mxu0 0
    %2891 = vmatprep.subr.bf16.mxu0 0
    %2892 = vmatpush2.bf16.msra.mxu0 0
    %2893 = vmatprep.subr.bf16.mxu0 0
    %2894 = vmatpush2.bf16.msra.mxu0 0
    %2895 = vmatprep.subr.bf16.mxu0 0
    %2896 = vmatpush2.bf16.msra.mxu0 0
    %2897 = vmatprep.subr.bf16.mxu0 0
    %2898 = vmatpush2.bf16.msra.mxu0 0
    %2899 = vmatprep.mubr.bf16.mxu0 0
    %2900 = vmatmul.mubr.bf16.gmra.mxu0 %v2865
    %v2901 = vpop.f32.mrf.mxu0
    %v2902 = vadd.f32 0.0, %v2901
    %v2903 = vpop.f32.mrf.mxu0
    %v2904 = vpop.f32.mrf.mxu0
    %v2905 = vpop.f32.mrf.mxu0
    %2906 = vdwg.mxu0
    %v2907 = vpack.c.bf16 %v2902, %v2902
    %s2908 = scalar_lea.vmem %s7, 64
    %v2909 = vld [vmem:[%s2908] sm:$0xf]
    %v2910 = vld [vmem:[%s2908 + $0x4] sm:$0xf]
    %v2911 = vld [vmem:[%s2908 + $0x8] sm:$0xf]
    %v2912 = vld [vmem:[%s2908 + $0xc] sm:$0xf]
    %v2913 = vld [vmem:[%s2908 + $0x10] sm:$0xf]
    %v2914 = vld [vmem:[%s2908 + $0x14] sm:$0xf]
    %v2915 = vld [vmem:[%s2908 + $0x18] sm:$0xf]
    %v2916 = vld [vmem:[%s2908 + $0x1c] sm:$0xf]
    %v2925 = vunpack.c.l.b16 %v2909
    %v2926 = vunpack.c.l.b16 %v2910
    %v2927 = vunpack.c.l.b16 %v2911
    %v2928 = vunpack.c.l.b16 %v2912
    %v2929 = vunpack.c.l.b16 %v2913
    %v2930 = vunpack.c.l.b16 %v2914
    %v2931 = vunpack.c.l.b16 %v2915
    %v2932 = vunpack.c.l.b16 %v2916
    %v2933 = vpack.c.b16 %v2926, %v2925
    %v2934 = vpack.c.b16 %v2928, %v2927
    %v2935 = vpack.c.b16 %v2930, %v2929
    %v2936 = vpack.c.b16 %v2932, %v2931
    %v2942 = vsel %vm2751, %v2907, 0
    %2944 = vmatprep.subr.bf16.mxu0 0
    %2945 = vmatpush1.bf16.msra.mxu0 0
    %2946 = vmatprep.subr.bf16.mxu0 0
    %2947 = vmatpush1.bf16.msra.mxu0 0
    %2948 = vmatprep.subr.bf16.mxu0 0
    %2949 = vmatpush1.bf16.msra.mxu0 0
    %2950 = vmatprep.subr.bf16.mxu0 0
    %2951 = vmatpush1.bf16.msra.mxu0 0
    %2952 = vmatprep.subr.bf16.mxu0 0
    %2953 = vmatpush1.bf16.msra.mxu0 %v2936
    %2954 = vmatprep.subr.bf16.mxu0 0
    %2955 = vmatpush1.bf16.msra.mxu0 %v2935
    %2956 = vmatprep.subr.bf16.mxu0 0
    %2957 = vmatpush1.bf16.msra.mxu0 %v2934
    %2958 = vmatprep.subr.bf16.mxu0 0
    %2959 = vmatpush1.bf16.msra.mxu0 %v2933
    %2960 = vmatprep.subr.bf16.mxu0 0
    %2961 = vmatpush2.bf16.msra.mxu0 0
    %2962 = vmatprep.subr.bf16.mxu0 0
    %2963 = vmatpush2.bf16.msra.mxu0 0
    %2964 = vmatprep.subr.bf16.mxu0 0
    %2965 = vmatpush2.bf16.msra.mxu0 0
    %2966 = vmatprep.subr.bf16.mxu0 0
    %2967 = vmatpush2.bf16.msra.mxu0 0
    %2968 = vmatprep.subr.bf16.mxu0 0
    %2969 = vmatpush2.bf16.msra.mxu0 0
    %2970 = vmatprep.subr.bf16.mxu0 0
    %2971 = vmatpush2.bf16.msra.mxu0 0
    %2972 = vmatprep.subr.bf16.mxu0 0
    %2973 = vmatpush2.bf16.msra.mxu0 0
    %2974 = vmatprep.subr.bf16.mxu0 0
    %2975 = vmatpush2.bf16.msra.mxu0 0
    %2976 = vmatprep.mubr.bf16.mxu0 0
    %2977 = vmatmul.mubr.bf16.gmra.mxu0 %v2942
    %v2978 = vpop.f32.mrf.mxu0
    %v2979 = vadd.f32 0.0, %v2978
    %v2980 = vpop.f32.mrf.mxu0
    %v2981 = vpop.f32.mrf.mxu0
    %v2982 = vpop.f32.mrf.mxu0
    %2983 = vdwg.mxu0
    %v2984 = vadd.f32 %v2857, %v2979
    %s2985 = scalar_lea.vmem %s6, 3
    %v2986 = vld [vmem:[%s2985] sm:$0x1]
    %v2988 = vsel %vm2615, %v2986, 0
    %2990 = vmatprep.subr.bf16.mxu0 0
    %2991 = vmatpush1.bf16.msra.mxu0 0
    %2992 = vmatprep.subr.bf16.mxu0 0
    %2993 = vmatpush1.bf16.msra.mxu0 0
    %2994 = vmatprep.subr.bf16.mxu0 0
    %2995 = vmatpush1.bf16.msra.mxu0 0
    %2996 = vmatprep.subr.bf16.mxu0 0
    %2997 = vmatpush1.bf16.msra.mxu0 0
    %2998 = vmatprep.subr.bf16.mxu0 0
    %2999 = vmatpush1.bf16.msra.mxu0 0
    %3000 = vmatprep.subr.bf16.mxu0 0
    %3001 = vmatpush1.bf16.msra.mxu0 0
    %3002 = vmatprep.subr.bf16.mxu0 0
    %3003 = vmatpush1.bf16.msra.mxu0 %v2621
    %3004 = vmatprep.subr.bf16.mxu0 0
    %3005 = vmatpush1.bf16.msra.mxu0 %v2612
    %3006 = vmatprep.subr.bf16.mxu0 0
    %3007 = vmatpush2.bf16.msra.mxu0 0
    %3008 = vmatprep.subr.bf16.mxu0 0
    %3009 = vmatpush2.bf16.msra.mxu0 0
    %3010 = vmatprep.subr.bf16.mxu0 0
    %3011 = vmatpush2.bf16.msra.mxu0 0
    %3012 = vmatprep.subr.bf16.mxu0 0
    %3013 = vmatpush2.bf16.msra.mxu0 0
    %3014 = vmatprep.subr.bf16.mxu0 0
    %3015 = vmatpush2.bf16.msra.mxu0 0
    %3016 = vmatprep.subr.bf16.mxu0 0
    %3017 = vmatpush2.bf16.msra.mxu0 0
    %3018 = vmatprep.subr.bf16.mxu0 0
    %3019 = vmatpush2.bf16.msra.mxu0 0
    %3020 = vmatprep.subr.bf16.mxu0 0
    %3021 = vmatpush2.bf16.msra.mxu0 0
    %3022 = vmatprep.mubr.bf16.mxu0 0
    %3023 = vmatmul.mubr.bf16.gmra.mxu0 %v2988
    %v3024 = vpop.f32.mrf.mxu0
    %v3025 = vadd.f32 0.0, %v3024
    %v3026 = vpop.f32.mrf.mxu0
    %v3027 = vpop.f32.mrf.mxu0
    %v3028 = vpop.f32.mrf.mxu0
    %3029 = vdwg.mxu0
    %v3030 = vpack.c.bf16 %v3025, %v3025
    %s3031 = scalar_lea.vmem %s7, 96
    %v3032 = vld [vmem:[%s3031] sm:$0xf]
    %v3033 = vld [vmem:[%s3031 + $0x4] sm:$0xf]
    %v3034 = vld [vmem:[%s3031 + $0x8] sm:$0xf]
    %v3035 = vld [vmem:[%s3031 + $0xc] sm:$0xf]
    %v3036 = vld [vmem:[%s3031 + $0x10] sm:$0xf]
    %v3037 = vld [vmem:[%s3031 + $0x14] sm:$0xf]
    %v3038 = vld [vmem:[%s3031 + $0x18] sm:$0xf]
    %v3039 = vld [vmem:[%s3031 + $0x1c] sm:$0xf]
    %v3048 = vunpack.c.l.b16 %v3032
    %v3049 = vunpack.c.l.b16 %v3033
    %v3050 = vunpack.c.l.b16 %v3034
    %v3051 = vunpack.c.l.b16 %v3035
    %v3052 = vunpack.c.l.b16 %v3036
    %v3053 = vunpack.c.l.b16 %v3037
    %v3054 = vunpack.c.l.b16 %v3038
    %v3055 = vunpack.c.l.b16 %v3039
    %v3056 = vpack.c.b16 %v3049, %v3048
    %v3057 = vpack.c.b16 %v3051, %v3050
    %v3058 = vpack.c.b16 %v3053, %v3052
    %v3059 = vpack.c.b16 %v3055, %v3054
    %v3065 = vsel %vm2751, %v3030, 0
    %3067 = vmatprep.subr.bf16.mxu0 0
    %3068 = vmatpush1.bf16.msra.mxu0 0
    %3069 = vmatprep.subr.bf16.mxu0 0
    %3070 = vmatpush1.bf16.msra.mxu0 0
    %3071 = vmatprep.subr.bf16.mxu0 0
    %3072 = vmatpush1.bf16.msra.mxu0 0
    %3073 = vmatprep.subr.bf16.mxu0 0
    %3074 = vmatpush1.bf16.msra.mxu0 0
    %3075 = vmatprep.subr.bf16.mxu0 0
    %3076 = vmatpush1.bf16.msra.mxu0 %v3059
    %3077 = vmatprep.subr.bf16.mxu0 0
    %3078 = vmatpush1.bf16.msra.mxu0 %v3058
    %3079 = vmatprep.subr.bf16.mxu0 0
    %3080 = vmatpush1.bf16.msra.mxu0 %v3057
    %3081 = vmatprep.subr.bf16.mxu0 0
    %3082 = vmatpush1.bf16.msra.mxu0 %v3056
    %3083 = vmatprep.subr.bf16.mxu0 0
    %3084 = vmatpush2.bf16.msra.mxu0 0
    %3085 = vmatprep.subr.bf16.mxu0 0
    %3086 = vmatpush2.bf16.msra.mxu0 0
    %3087 = vmatprep.subr.bf16.mxu0 0
    %3088 = vmatpush2.bf16.msra.mxu0 0
    %3089 = vmatprep.subr.bf16.mxu0 0
    %3090 = vmatpush2.bf16.msra.mxu0 0
    %3091 = vmatprep.subr.bf16.mxu0 0
    %3092 = vmatpush2.bf16.msra.mxu0 0
    %3093 = vmatprep.subr.bf16.mxu0 0
    %3094 = vmatpush2.bf16.msra.mxu0 0
    %3095 = vmatprep.subr.bf16.mxu0 0
    %3096 = vmatpush2.bf16.msra.mxu0 0
    %3097 = vmatprep.subr.bf16.mxu0 0
    %3098 = vmatpush2.bf16.msra.mxu0 0
    %3099 = vmatprep.mubr.bf16.mxu0 0
    %3100 = vmatmul.mubr.bf16.gmra.mxu0 %v3065
    %v3101 = vpop.f32.mrf.mxu0
    %v3102 = vadd.f32 0.0, %v3101
    %v3103 = vpop.f32.mrf.mxu0
    %v3104 = vpop.f32.mrf.mxu0
    %v3105 = vpop.f32.mrf.mxu0
    %3106 = vdwg.mxu0
    %v3107 = vadd.f32 %v2984, %v3102
    %s3108 = scalar_lea.vmem %s6, 4
    %v3109 = vld [vmem:[%s3108] sm:$0x1]
    %v3111 = vsel %vm2615, %v3109, 0
    %3113 = vmatprep.subr.bf16.mxu0 0
    %3114 = vmatpush1.bf16.msra.mxu0 0
    %3115 = vmatprep.subr.bf16.mxu0 0
    %3116 = vmatpush1.bf16.msra.mxu0 0
    %3117 = vmatprep.subr.bf16.mxu0 0
    %3118 = vmatpush1.bf16.msra.mxu0 0
    %3119 = vmatprep.subr.bf16.mxu0 0
    %3120 = vmatpush1.bf16.msra.mxu0 0
    %3121 = vmatprep.subr.bf16.mxu0 0
    %3122 = vmatpush1.bf16.msra.mxu0 0
    %3123 = vmatprep.subr.bf16.mxu0 0
    %3124 = vmatpush1.bf16.msra.mxu0 0
    %3125 = vmatprep.subr.bf16.mxu0 0
    %3126 = vmatpush1.bf16.msra.mxu0 %v2621
    %3127 = vmatprep.subr.bf16.mxu0 0
    %3128 = vmatpush1.bf16.msra.mxu0 %v2612
    %3129 = vmatprep.subr.bf16.mxu0 0
    %3130 = vmatpush2.bf16.msra.mxu0 0
    %3131 = vmatprep.subr.bf16.mxu0 0
    %3132 = vmatpush2.bf16.msra.mxu0 0
    %3133 = vmatprep.subr.bf16.mxu0 0
    %3134 = vmatpush2.bf16.msra.mxu0 0
    %3135 = vmatprep.subr.bf16.mxu0 0
    %3136 = vmatpush2.bf16.msra.mxu0 0
    %3137 = vmatprep.subr.bf16.mxu0 0
    %3138 = vmatpush2.bf16.msra.mxu0 0
    %3139 = vmatprep.subr.bf16.mxu0 0
    %3140 = vmatpush2.bf16.msra.mxu0 0
    %3141 = vmatprep.subr.bf16.mxu0 0
    %3142 = vmatpush2.bf16.msra.mxu0 0
    %3143 = vmatprep.subr.bf16.mxu0 0
    %3144 = vmatpush2.bf16.msra.mxu0 0
    %3145 = vmatprep.mubr.bf16.mxu0 0
    %3146 = vmatmul.mubr.bf16.gmra.mxu0 %v3111
    %v3147 = vpop.f32.mrf.mxu0
    %v3148 = vadd.f32 0.0, %v3147
    %v3149 = vpop.f32.mrf.mxu0
    %v3150 = vpop.f32.mrf.mxu0
    %v3151 = vpop.f32.mrf.mxu0
    %3152 = vdwg.mxu0
    %v3153 = vpack.c.bf16 %v3148, %v3148
    %s3154 = scalar_lea.vmem %s7, 128
    %v3155 = vld [vmem:[%s3154] sm:$0xf]
    %v3156 = vld [vmem:[%s3154 + $0x4] sm:$0xf]
    %v3157 = vld [vmem:[%s3154 + $0x8] sm:$0xf]
    %v3158 = vld [vmem:[%s3154 + $0xc] sm:$0xf]
    %v3159 = vld [vmem:[%s3154 + $0x10] sm:$0xf]
    %v3160 = vld [vmem:[%s3154 + $0x14] sm:$0xf]
    %v3161 = vld [vmem:[%s3154 + $0x18] sm:$0xf]
    %v3162 = vld [vmem:[%s3154 + $0x1c] sm:$0xf]
    %v3171 = vunpack.c.l.b16 %v3155
    %v3172 = vunpack.c.l.b16 %v3156
    %v3173 = vunpack.c.l.b16 %v3157
    %v3174 = vunpack.c.l.b16 %v3158
    %v3175 = vunpack.c.l.b16 %v3159
    %v3176 = vunpack.c.l.b16 %v3160
    %v3177 = vunpack.c.l.b16 %v3161
    %v3178 = vunpack.c.l.b16 %v3162
    %v3179 = vpack.c.b16 %v3172, %v3171
    %v3180 = vpack.c.b16 %v3174, %v3173
    %v3181 = vpack.c.b16 %v3176, %v3175
    %v3182 = vpack.c.b16 %v3178, %v3177
    %v3188 = vsel %vm2751, %v3153, 0
    %3190 = vmatprep.subr.bf16.mxu0 0
    %3191 = vmatpush1.bf16.msra.mxu0 0
    %3192 = vmatprep.subr.bf16.mxu0 0
    %3193 = vmatpush1.bf16.msra.mxu0 0
    %3194 = vmatprep.subr.bf16.mxu0 0
    %3195 = vmatpush1.bf16.msra.mxu0 0
    %3196 = vmatprep.subr.bf16.mxu0 0
    %3197 = vmatpush1.bf16.msra.mxu0 0
    %3198 = vmatprep.subr.bf16.mxu0 0
    %3199 = vmatpush1.bf16.msra.mxu0 %v3182
    %3200 = vmatprep.subr.bf16.mxu0 0
    %3201 = vmatpush1.bf16.msra.mxu0 %v3181
    %3202 = vmatprep.subr.bf16.mxu0 0
    %3203 = vmatpush1.bf16.msra.mxu0 %v3180
    %3204 = vmatprep.subr.bf16.mxu0 0
    %3205 = vmatpush1.bf16.msra.mxu0 %v3179
    %3206 = vmatprep.subr.bf16.mxu0 0
    %3207 = vmatpush2.bf16.msra.mxu0 0
    %3208 = vmatprep.subr.bf16.mxu0 0
    %3209 = vmatpush2.bf16.msra.mxu0 0
    %3210 = vmatprep.subr.bf16.mxu0 0
    %3211 = vmatpush2.bf16.msra.mxu0 0
    %3212 = vmatprep.subr.bf16.mxu0 0
    %3213 = vmatpush2.bf16.msra.mxu0 0
    %3214 = vmatprep.subr.bf16.mxu0 0
    %3215 = vmatpush2.bf16.msra.mxu0 0
    %3216 = vmatprep.subr.bf16.mxu0 0
    %3217 = vmatpush2.bf16.msra.mxu0 0
    %3218 = vmatprep.subr.bf16.mxu0 0
    %3219 = vmatpush2.bf16.msra.mxu0 0
    %3220 = vmatprep.subr.bf16.mxu0 0
    %3221 = vmatpush2.bf16.msra.mxu0 0
    %3222 = vmatprep.mubr.bf16.mxu0 0
    %3223 = vmatmul.mubr.bf16.gmra.mxu0 %v3188
    %v3224 = vpop.f32.mrf.mxu0
    %v3225 = vadd.f32 0.0, %v3224
    %v3226 = vpop.f32.mrf.mxu0
    %v3227 = vpop.f32.mrf.mxu0
    %v3228 = vpop.f32.mrf.mxu0
    %3229 = vdwg.mxu0
    %v3230 = vadd.f32 %v3107, %v3225
    %s3231 = scalar_lea.vmem %s6, 5
    %v3232 = vld [vmem:[%s3231] sm:$0x1]
    %v3234 = vsel %vm2615, %v3232, 0
    %3236 = vmatprep.subr.bf16.mxu0 0
    %3237 = vmatpush1.bf16.msra.mxu0 0
    %3238 = vmatprep.subr.bf16.mxu0 0
    %3239 = vmatpush1.bf16.msra.mxu0 0
    %3240 = vmatprep.subr.bf16.mxu0 0
    %3241 = vmatpush1.bf16.msra.mxu0 0
    %3242 = vmatprep.subr.bf16.mxu0 0
    %3243 = vmatpush1.bf16.msra.mxu0 0
    %3244 = vmatprep.subr.bf16.mxu0 0
    %3245 = vmatpush1.bf16.msra.mxu0 0
    %3246 = vmatprep.subr.bf16.mxu0 0
    %3247 = vmatpush1.bf16.msra.mxu0 0
    %3248 = vmatprep.subr.bf16.mxu0 0
    %3249 = vmatpush1.bf16.msra.mxu0 %v2621
    %3250 = vmatprep.subr.bf16.mxu0 0
    %3251 = vmatpush1.bf16.msra.mxu0 %v2612
    %3252 = vmatprep.subr.bf16.mxu0 0
    %3253 = vmatpush2.bf16.msra.mxu0 0
    %3254 = vmatprep.subr.bf16.mxu0 0
    %3255 = vmatpush2.bf16.msra.mxu0 0
    %3256 = vmatprep.subr.bf16.mxu0 0
    %3257 = vmatpush2.bf16.msra.mxu0 0
    %3258 = vmatprep.subr.bf16.mxu0 0
    %3259 = vmatpush2.bf16.msra.mxu0 0
    %3260 = vmatprep.subr.bf16.mxu0 0
    %3261 = vmatpush2.bf16.msra.mxu0 0
    %3262 = vmatprep.subr.bf16.mxu0 0
    %3263 = vmatpush2.bf16.msra.mxu0 0
    %3264 = vmatprep.subr.bf16.mxu0 0
    %3265 = vmatpush2.bf16.msra.mxu0 0
    %3266 = vmatprep.subr.bf16.mxu0 0
    %3267 = vmatpush2.bf16.msra.mxu0 0
    %3268 = vmatprep.mubr.bf16.mxu0 0
    %3269 = vmatmul.mubr.bf16.gmra.mxu0 %v3234
    %v3270 = vpop.f32.mrf.mxu0
    %v3271 = vadd.f32 0.0, %v3270
    %v3272 = vpop.f32.mrf.mxu0
    %v3273 = vpop.f32.mrf.mxu0
    %v3274 = vpop.f32.mrf.mxu0
    %3275 = vdwg.mxu0
    %v3276 = vpack.c.bf16 %v3271, %v3271
    %s3277 = scalar_lea.vmem %s7, 160
    %v3278 = vld [vmem:[%s3277] sm:$0xf]
    %v3279 = vld [vmem:[%s3277 + $0x4] sm:$0xf]
    %v3280 = vld [vmem:[%s3277 + $0x8] sm:$0xf]
    %v3281 = vld [vmem:[%s3277 + $0xc] sm:$0xf]
    %v3282 = vld [vmem:[%s3277 + $0x10] sm:$0xf]
    %v3283 = vld [vmem:[%s3277 + $0x14] sm:$0xf]
    %v3284 = vld [vmem:[%s3277 + $0x18] sm:$0xf]
    %v3285 = vld [vmem:[%s3277 + $0x1c] sm:$0xf]
    %v3294 = vunpack.c.l.b16 %v3278
    %v3295 = vunpack.c.l.b16 %v3279
    %v3296 = vunpack.c.l.b16 %v3280
    %v3297 = vunpack.c.l.b16 %v3281
    %v3298 = vunpack.c.l.b16 %v3282
    %v3299 = vunpack.c.l.b16 %v3283
    %v3300 = vunpack.c.l.b16 %v3284
    %v3301 = vunpack.c.l.b16 %v3285
    %v3302 = vpack.c.b16 %v3295, %v3294
    %v3303 = vpack.c.b16 %v3297, %v3296
    %v3304 = vpack.c.b16 %v3299, %v3298
    %v3305 = vpack.c.b16 %v3301, %v3300
    %v3311 = vsel %vm2751, %v3276, 0
    %3313 = vmatprep.subr.bf16.mxu0 0
    %3314 = vmatpush1.bf16.msra.mxu0 0
    %3315 = vmatprep.subr.bf16.mxu0 0
    %3316 = vmatpush1.bf16.msra.mxu0 0
    %3317 = vmatprep.subr.bf16.mxu0 0
    %3318 = vmatpush1.bf16.msra.mxu0 0
    %3319 = vmatprep.subr.bf16.mxu0 0
    %3320 = vmatpush1.bf16.msra.mxu0 0
    %3321 = vmatprep.subr.bf16.mxu0 0
    %3322 = vmatpush1.bf16.msra.mxu0 %v3305
    %3323 = vmatprep.subr.bf16.mxu0 0
    %3324 = vmatpush1.bf16.msra.mxu0 %v3304
    %3325 = vmatprep.subr.bf16.mxu0 0
    %3326 = vmatpush1.bf16.msra.mxu0 %v3303
    %3327 = vmatprep.subr.bf16.mxu0 0
    %3328 = vmatpush1.bf16.msra.mxu0 %v3302
    %3329 = vmatprep.subr.bf16.mxu0 0
    %3330 = vmatpush2.bf16.msra.mxu0 0
    %3331 = vmatprep.subr.bf16.mxu0 0
    %3332 = vmatpush2.bf16.msra.mxu0 0
    %3333 = vmatprep.subr.bf16.mxu0 0
    %3334 = vmatpush2.bf16.msra.mxu0 0
    %3335 = vmatprep.subr.bf16.mxu0 0
    %3336 = vmatpush2.bf16.msra.mxu0 0
    %3337 = vmatprep.subr.bf16.mxu0 0
    %3338 = vmatpush2.bf16.msra.mxu0 0
    %3339 = vmatprep.subr.bf16.mxu0 0
    %3340 = vmatpush2.bf16.msra.mxu0 0
    %3341 = vmatprep.subr.bf16.mxu0 0
    %3342 = vmatpush2.bf16.msra.mxu0 0
    %3343 = vmatprep.subr.bf16.mxu0 0
    %3344 = vmatpush2.bf16.msra.mxu0 0
    %3345 = vmatprep.mubr.bf16.mxu0 0
    %3346 = vmatmul.mubr.bf16.gmra.mxu0 %v3311
    %v3347 = vpop.f32.mrf.mxu0
    %v3348 = vadd.f32 0.0, %v3347
    %v3349 = vpop.f32.mrf.mxu0
    %v3350 = vpop.f32.mrf.mxu0
    %v3351 = vpop.f32.mrf.mxu0
    %3352 = vdwg.mxu0
    %v3353 = vadd.f32 %v3230, %v3348
    %s3354 = scalar_lea.vmem %s6, 6
    %v3355 = vld [vmem:[%s3354] sm:$0x1]
    %v3357 = vsel %vm2615, %v3355, 0
    %3359 = vmatprep.subr.bf16.mxu0 0
    %3360 = vmatpush1.bf16.msra.mxu0 0
    %3361 = vmatprep.subr.bf16.mxu0 0
    %3362 = vmatpush1.bf16.msra.mxu0 0
    %3363 = vmatprep.subr.bf16.mxu0 0
    %3364 = vmatpush1.bf16.msra.mxu0 0
    %3365 = vmatprep.subr.bf16.mxu0 0
    %3366 = vmatpush1.bf16.msra.mxu0 0
    %3367 = vmatprep.subr.bf16.mxu0 0
    %3368 = vmatpush1.bf16.msra.mxu0 0
    %3369 = vmatprep.subr.bf16.mxu0 0
    %3370 = vmatpush1.bf16.msra.mxu0 0
    %3371 = vmatprep.subr.bf16.mxu0 0
    %3372 = vmatpush1.bf16.msra.mxu0 %v2621
    %3373 = vmatprep.subr.bf16.mxu0 0
    %3374 = vmatpush1.bf16.msra.mxu0 %v2612
    %3375 = vmatprep.subr.bf16.mxu0 0
    %3376 = vmatpush2.bf16.msra.mxu0 0
    %3377 = vmatprep.subr.bf16.mxu0 0
    %3378 = vmatpush2.bf16.msra.mxu0 0
    %3379 = vmatprep.subr.bf16.mxu0 0
    %3380 = vmatpush2.bf16.msra.mxu0 0
    %3381 = vmatprep.subr.bf16.mxu0 0
    %3382 = vmatpush2.bf16.msra.mxu0 0
    %3383 = vmatprep.subr.bf16.mxu0 0
    %3384 = vmatpush2.bf16.msra.mxu0 0
    %3385 = vmatprep.subr.bf16.mxu0 0
    %3386 = vmatpush2.bf16.msra.mxu0 0
    %3387 = vmatprep.subr.bf16.mxu0 0
    %3388 = vmatpush2.bf16.msra.mxu0 0
    %3389 = vmatprep.subr.bf16.mxu0 0
    %3390 = vmatpush2.bf16.msra.mxu0 0
    %3391 = vmatprep.mubr.bf16.mxu0 0
    %3392 = vmatmul.mubr.bf16.gmra.mxu0 %v3357
    %v3393 = vpop.f32.mrf.mxu0
    %v3394 = vadd.f32 0.0, %v3393
    %v3395 = vpop.f32.mrf.mxu0
    %v3396 = vpop.f32.mrf.mxu0
    %v3397 = vpop.f32.mrf.mxu0
    %3398 = vdwg.mxu0
    %v3399 = vpack.c.bf16 %v3394, %v3394
    %s3400 = scalar_lea.vmem %s7, 192
    %v3401 = vld [vmem:[%s3400] sm:$0xf]
    %v3402 = vld [vmem:[%s3400 + $0x4] sm:$0xf]
    %v3403 = vld [vmem:[%s3400 + $0x8] sm:$0xf]
    %v3404 = vld [vmem:[%s3400 + $0xc] sm:$0xf]
    %v3405 = vld [vmem:[%s3400 + $0x10] sm:$0xf]
    %v3406 = vld [vmem:[%s3400 + $0x14] sm:$0xf]
    %v3407 = vld [vmem:[%s3400 + $0x18] sm:$0xf]
    %v3408 = vld [vmem:[%s3400 + $0x1c] sm:$0xf]
    %v3417 = vunpack.c.l.b16 %v3401
    %v3418 = vunpack.c.l.b16 %v3402
    %v3419 = vunpack.c.l.b16 %v3403
    %v3420 = vunpack.c.l.b16 %v3404
    %v3421 = vunpack.c.l.b16 %v3405
    %v3422 = vunpack.c.l.b16 %v3406
    %v3423 = vunpack.c.l.b16 %v3407
    %v3424 = vunpack.c.l.b16 %v3408
    %v3425 = vpack.c.b16 %v3418, %v3417
    %v3426 = vpack.c.b16 %v3420, %v3419
    %v3427 = vpack.c.b16 %v3422, %v3421
    %v3428 = vpack.c.b16 %v3424, %v3423
    %v3434 = vsel %vm2751, %v3399, 0
    %3436 = vmatprep.subr.bf16.mxu0 0
    %3437 = vmatpush1.bf16.msra.mxu0 0
    %3438 = vmatprep.subr.bf16.mxu0 0
    %3439 = vmatpush1.bf16.msra.mxu0 0
    %3440 = vmatprep.subr.bf16.mxu0 0
    %3441 = vmatpush1.bf16.msra.mxu0 0
    %3442 = vmatprep.subr.bf16.mxu0 0
    %3443 = vmatpush1.bf16.msra.mxu0 0
    %3444 = vmatprep.subr.bf16.mxu0 0
    %3445 = vmatpush1.bf16.msra.mxu0 %v3428
    %3446 = vmatprep.subr.bf16.mxu0 0
    %3447 = vmatpush1.bf16.msra.mxu0 %v3427
    %3448 = vmatprep.subr.bf16.mxu0 0
    %3449 = vmatpush1.bf16.msra.mxu0 %v3426
    %3450 = vmatprep.subr.bf16.mxu0 0
    %3451 = vmatpush1.bf16.msra.mxu0 %v3425
    %3452 = vmatprep.subr.bf16.mxu0 0
    %3453 = vmatpush2.bf16.msra.mxu0 0
    %3454 = vmatprep.subr.bf16.mxu0 0
    %3455 = vmatpush2.bf16.msra.mxu0 0
    %3456 = vmatprep.subr.bf16.mxu0 0
    %3457 = vmatpush2.bf16.msra.mxu0 0
    %3458 = vmatprep.subr.bf16.mxu0 0
    %3459 = vmatpush2.bf16.msra.mxu0 0
    %3460 = vmatprep.subr.bf16.mxu0 0
    %3461 = vmatpush2.bf16.msra.mxu0 0
    %3462 = vmatprep.subr.bf16.mxu0 0
    %3463 = vmatpush2.bf16.msra.mxu0 0
    %3464 = vmatprep.subr.bf16.mxu0 0
    %3465 = vmatpush2.bf16.msra.mxu0 0
    %3466 = vmatprep.subr.bf16.mxu0 0
    %3467 = vmatpush2.bf16.msra.mxu0 0
    %3468 = vmatprep.mubr.bf16.mxu0 0
    %3469 = vmatmul.mubr.bf16.gmra.mxu0 %v3434
    %v3470 = vpop.f32.mrf.mxu0
    %v3471 = vadd.f32 0.0, %v3470
    %v3472 = vpop.f32.mrf.mxu0
    %v3473 = vpop.f32.mrf.mxu0
    %v3474 = vpop.f32.mrf.mxu0
    %3475 = vdwg.mxu0
    %v3476 = vadd.f32 %v3353, %v3471
    %s3477 = scalar_lea.vmem %s6, 7
    %v3478 = vld [vmem:[%s3477] sm:$0x1]
    %v3480 = vsel %vm2615, %v3478, 0
    %3482 = vmatprep.subr.bf16.mxu0 0
    %3483 = vmatpush1.bf16.msra.mxu0 0
    %3484 = vmatprep.subr.bf16.mxu0 0
    %3485 = vmatpush1.bf16.msra.mxu0 0
    %3486 = vmatprep.subr.bf16.mxu0 0
    %3487 = vmatpush1.bf16.msra.mxu0 0
    %3488 = vmatprep.subr.bf16.mxu0 0
    %3489 = vmatpush1.bf16.msra.mxu0 0
    %3490 = vmatprep.subr.bf16.mxu0 0
    %3491 = vmatpush1.bf16.msra.mxu0 0
    %3492 = vmatprep.subr.bf16.mxu0 0
    %3493 = vmatpush1.bf16.msra.mxu0 0
    %3494 = vmatprep.subr.bf16.mxu0 0
    %3495 = vmatpush1.bf16.msra.mxu0 %v2621
    %3496 = vmatprep.subr.bf16.mxu0 0
    %3497 = vmatpush1.bf16.msra.mxu0 %v2612
    %3498 = vmatprep.subr.bf16.mxu0 0
    %3499 = vmatpush2.bf16.msra.mxu0 0
    %3500 = vmatprep.subr.bf16.mxu0 0
    %3501 = vmatpush2.bf16.msra.mxu0 0
    %3502 = vmatprep.subr.bf16.mxu0 0
    %3503 = vmatpush2.bf16.msra.mxu0 0
    %3504 = vmatprep.subr.bf16.mxu0 0
    %3505 = vmatpush2.bf16.msra.mxu0 0
    %3506 = vmatprep.subr.bf16.mxu0 0
    %3507 = vmatpush2.bf16.msra.mxu0 0
    %3508 = vmatprep.subr.bf16.mxu0 0
    %3509 = vmatpush2.bf16.msra.mxu0 0
    %3510 = vmatprep.subr.bf16.mxu0 0
    %3511 = vmatpush2.bf16.msra.mxu0 0
    %3512 = vmatprep.subr.bf16.mxu0 0
    %3513 = vmatpush2.bf16.msra.mxu0 0
    %3514 = vmatprep.mubr.bf16.mxu0 0
    %3515 = vmatmul.mubr.bf16.gmra.mxu0 %v3480
    %v3516 = vpop.f32.mrf.mxu0
    %v3517 = vadd.f32 0.0, %v3516
    %v3518 = vpop.f32.mrf.mxu0
    %v3519 = vpop.f32.mrf.mxu0
    %v3520 = vpop.f32.mrf.mxu0
    %3521 = vdwg.mxu0
    %v3522 = vpack.c.bf16 %v3517, %v3517
    %s3523 = scalar_lea.vmem %s7, 224
    %v3524 = vld [vmem:[%s3523] sm:$0xf]
    %v3525 = vld [vmem:[%s3523 + $0x4] sm:$0xf]
    %v3526 = vld [vmem:[%s3523 + $0x8] sm:$0xf]
    %v3527 = vld [vmem:[%s3523 + $0xc] sm:$0xf]
    %v3528 = vld [vmem:[%s3523 + $0x10] sm:$0xf]
    %v3529 = vld [vmem:[%s3523 + $0x14] sm:$0xf]
    %v3530 = vld [vmem:[%s3523 + $0x18] sm:$0xf]
    %v3531 = vld [vmem:[%s3523 + $0x1c] sm:$0xf]
    %v3540 = vunpack.c.l.b16 %v3524
    %v3541 = vunpack.c.l.b16 %v3525
    %v3542 = vunpack.c.l.b16 %v3526
    %v3543 = vunpack.c.l.b16 %v3527
    %v3544 = vunpack.c.l.b16 %v3528
    %v3545 = vunpack.c.l.b16 %v3529
    %v3546 = vunpack.c.l.b16 %v3530
    %v3547 = vunpack.c.l.b16 %v3531
    %v3548 = vpack.c.b16 %v3541, %v3540
    %v3549 = vpack.c.b16 %v3543, %v3542
    %v3550 = vpack.c.b16 %v3545, %v3544
    %v3551 = vpack.c.b16 %v3547, %v3546
    %v3557 = vsel %vm2751, %v3522, 0
    %3559 = vmatprep.subr.bf16.mxu0 0
    %3560 = vmatpush1.bf16.msra.mxu0 0
    %3561 = vmatprep.subr.bf16.mxu0 0
    %3562 = vmatpush1.bf16.msra.mxu0 0
    %3563 = vmatprep.subr.bf16.mxu0 0
    %3564 = vmatpush1.bf16.msra.mxu0 0
    %3565 = vmatprep.subr.bf16.mxu0 0
    %3566 = vmatpush1.bf16.msra.mxu0 0
    %3567 = vmatprep.subr.bf16.mxu0 0
    %3568 = vmatpush1.bf16.msra.mxu0 %v3551
    %3569 = vmatprep.subr.bf16.mxu0 0
    %3570 = vmatpush1.bf16.msra.mxu0 %v3550
    %3571 = vmatprep.subr.bf16.mxu0 0
    %3572 = vmatpush1.bf16.msra.mxu0 %v3549
    %3573 = vmatprep.subr.bf16.mxu0 0
    %3574 = vmatpush1.bf16.msra.mxu0 %v3548
    %3575 = vmatprep.subr.bf16.mxu0 0
    %3576 = vmatpush2.bf16.msra.mxu0 0
    %3577 = vmatprep.subr.bf16.mxu0 0
    %3578 = vmatpush2.bf16.msra.mxu0 0
    %3579 = vmatprep.subr.bf16.mxu0 0
    %3580 = vmatpush2.bf16.msra.mxu0 0
    %3581 = vmatprep.subr.bf16.mxu0 0
    %3582 = vmatpush2.bf16.msra.mxu0 0
    %3583 = vmatprep.subr.bf16.mxu0 0
    %3584 = vmatpush2.bf16.msra.mxu0 0
    %3585 = vmatprep.subr.bf16.mxu0 0
    %3586 = vmatpush2.bf16.msra.mxu0 0
    %3587 = vmatprep.subr.bf16.mxu0 0
    %3588 = vmatpush2.bf16.msra.mxu0 0
    %3589 = vmatprep.subr.bf16.mxu0 0
    %3590 = vmatpush2.bf16.msra.mxu0 0
    %3591 = vmatprep.mubr.bf16.mxu0 0
    %3592 = vmatmul.mubr.bf16.gmra.mxu0 %v3557
    %v3593 = vpop.f32.mrf.mxu0
    %v3594 = vadd.f32 0.0, %v3593
    %v3595 = vpop.f32.mrf.mxu0
    %v3596 = vpop.f32.mrf.mxu0
    %v3597 = vpop.f32.mrf.mxu0
    %3598 = vdwg.mxu0
    %v3599 = vadd.f32 %v3476, %v3594
    %s3600 = scalar_lea.vmem %s6, 8
    %v3601 = vld [vmem:[%s3600] sm:$0x1]
    %v3603 = vsel %vm2615, %v3601, 0
    %3605 = vmatprep.subr.bf16.mxu0 0
    %3606 = vmatpush1.bf16.msra.mxu0 0
    %3607 = vmatprep.subr.bf16.mxu0 0
    %3608 = vmatpush1.bf16.msra.mxu0 0
    %3609 = vmatprep.subr.bf16.mxu0 0
    %3610 = vmatpush1.bf16.msra.mxu0 0
    %3611 = vmatprep.subr.bf16.mxu0 0
    %3612 = vmatpush1.bf16.msra.mxu0 0
    %3613 = vmatprep.subr.bf16.mxu0 0
    %3614 = vmatpush1.bf16.msra.mxu0 0
    %3615 = vmatprep.subr.bf16.mxu0 0
    %3616 = vmatpush1.bf16.msra.mxu0 0
    %3617 = vmatprep.subr.bf16.mxu0 0
    %3618 = vmatpush1.bf16.msra.mxu0 %v2621
    %3619 = vmatprep.subr.bf16.mxu0 0
    %3620 = vmatpush1.bf16.msra.mxu0 %v2612
    %3621 = vmatprep.subr.bf16.mxu0 0
    %3622 = vmatpush2.bf16.msra.mxu0 0
    %3623 = vmatprep.subr.bf16.mxu0 0
    %3624 = vmatpush2.bf16.msra.mxu0 0
    %3625 = vmatprep.subr.bf16.mxu0 0
    %3626 = vmatpush2.bf16.msra.mxu0 0
    %3627 = vmatprep.subr.bf16.mxu0 0
    %3628 = vmatpush2.bf16.msra.mxu0 0
    %3629 = vmatprep.subr.bf16.mxu0 0
    %3630 = vmatpush2.bf16.msra.mxu0 0
    %3631 = vmatprep.subr.bf16.mxu0 0
    %3632 = vmatpush2.bf16.msra.mxu0 0
    %3633 = vmatprep.subr.bf16.mxu0 0
    %3634 = vmatpush2.bf16.msra.mxu0 0
    %3635 = vmatprep.subr.bf16.mxu0 0
    %3636 = vmatpush2.bf16.msra.mxu0 0
    %3637 = vmatprep.mubr.bf16.mxu0 0
    %3638 = vmatmul.mubr.bf16.gmra.mxu0 %v3603
    %v3639 = vpop.f32.mrf.mxu0
    %v3640 = vadd.f32 0.0, %v3639
    %v3641 = vpop.f32.mrf.mxu0
    %v3642 = vpop.f32.mrf.mxu0
    %v3643 = vpop.f32.mrf.mxu0
    %3644 = vdwg.mxu0
    %v3645 = vpack.c.bf16 %v3640, %v3640
    %s3646 = scalar_lea.vmem %s7, 256
    %v3647 = vld [vmem:[%s3646] sm:$0xf]
    %v3648 = vld [vmem:[%s3646 + $0x4] sm:$0xf]
    %v3649 = vld [vmem:[%s3646 + $0x8] sm:$0xf]
    %v3650 = vld [vmem:[%s3646 + $0xc] sm:$0xf]
    %v3651 = vld [vmem:[%s3646 + $0x10] sm:$0xf]
    %v3652 = vld [vmem:[%s3646 + $0x14] sm:$0xf]
    %v3653 = vld [vmem:[%s3646 + $0x18] sm:$0xf]
    %v3654 = vld [vmem:[%s3646 + $0x1c] sm:$0xf]
    %v3663 = vunpack.c.l.b16 %v3647
    %v3664 = vunpack.c.l.b16 %v3648
    %v3665 = vunpack.c.l.b16 %v3649
    %v3666 = vunpack.c.l.b16 %v3650
    %v3667 = vunpack.c.l.b16 %v3651
    %v3668 = vunpack.c.l.b16 %v3652
    %v3669 = vunpack.c.l.b16 %v3653
    %v3670 = vunpack.c.l.b16 %v3654
    %v3671 = vpack.c.b16 %v3664, %v3663
    %v3672 = vpack.c.b16 %v3666, %v3665
    %v3673 = vpack.c.b16 %v3668, %v3667
    %v3674 = vpack.c.b16 %v3670, %v3669
    %v3680 = vsel %vm2751, %v3645, 0
    %3682 = vmatprep.subr.bf16.mxu0 0
    %3683 = vmatpush1.bf16.msra.mxu0 0
    %3684 = vmatprep.subr.bf16.mxu0 0
    %3685 = vmatpush1.bf16.msra.mxu0 0
    %3686 = vmatprep.subr.bf16.mxu0 0
    %3687 = vmatpush1.bf16.msra.mxu0 0
    %3688 = vmatprep.subr.bf16.mxu0 0
    %3689 = vmatpush1.bf16.msra.mxu0 0
    %3690 = vmatprep.subr.bf16.mxu0 0
    %3691 = vmatpush1.bf16.msra.mxu0 %v3674
    %3692 = vmatprep.subr.bf16.mxu0 0
    %3693 = vmatpush1.bf16.msra.mxu0 %v3673
    %3694 = vmatprep.subr.bf16.mxu0 0
    %3695 = vmatpush1.bf16.msra.mxu0 %v3672
    %3696 = vmatprep.subr.bf16.mxu0 0
    %3697 = vmatpush1.bf16.msra.mxu0 %v3671
    %3698 = vmatprep.subr.bf16.mxu0 0
    %3699 = vmatpush2.bf16.msra.mxu0 0
    %3700 = vmatprep.subr.bf16.mxu0 0
    %3701 = vmatpush2.bf16.msra.mxu0 0
    %3702 = vmatprep.subr.bf16.mxu0 0
    %3703 = vmatpush2.bf16.msra.mxu0 0
    %3704 = vmatprep.subr.bf16.mxu0 0
    %3705 = vmatpush2.bf16.msra.mxu0 0
    %3706 = vmatprep.subr.bf16.mxu0 0
    %3707 = vmatpush2.bf16.msra.mxu0 0
    %3708 = vmatprep.subr.bf16.mxu0 0
    %3709 = vmatpush2.bf16.msra.mxu0 0
    %3710 = vmatprep.subr.bf16.mxu0 0
    %3711 = vmatpush2.bf16.msra.mxu0 0
    %3712 = vmatprep.subr.bf16.mxu0 0
    %3713 = vmatpush2.bf16.msra.mxu0 0
    %3714 = vmatprep.mubr.bf16.mxu0 0
    %3715 = vmatmul.mubr.bf16.gmra.mxu0 %v3680
    %v3716 = vpop.f32.mrf.mxu0
    %v3717 = vadd.f32 0.0, %v3716
    %v3718 = vpop.f32.mrf.mxu0
    %v3719 = vpop.f32.mrf.mxu0
    %v3720 = vpop.f32.mrf.mxu0
    %3721 = vdwg.mxu0
    %v3722 = vadd.f32 %v3599, %v3717
    %v3723 = vld [vmem:[%s8] sm:$0x1]
    %v3725 = vlaneseq
    %v3726 = vshrl.u32 %v3725, 7
    %v3727 = vsub.s32 0, %v3726
    %v3728 = vrot.slane %v3723, %v3727
    %v3730 = vadd.f32 %v3722, %v3728
    %v3731 = vmax.f32 %v3730, 0.0
    %v3732 = vpack.c.bf16 %v3731, %v3731
    %v3733 = vld [vmem:[%s9] sm:$0xff]
    %v3734 = vld [vmem:[%s9 + $0x8] sm:$0xff]
    %v3735 = vld [vmem:[%s9 + $0x10] sm:$0xff]
    %v3736 = vld [vmem:[%s9 + $0x18] sm:$0xff]
    %v3737 = vld [vmem:[%s9 + $0x20] sm:$0xff]
    %v3738 = vld [vmem:[%s9 + $0x28] sm:$0xff]
    %v3739 = vld [vmem:[%s9 + $0x30] sm:$0xff]
    %v3740 = vld [vmem:[%s9 + $0x38] sm:$0xff]
    %v3741 = vld [vmem:[%s9 + $0x40] sm:$0xff]
    %v3742 = vld [vmem:[%s9 + $0x48] sm:$0xff]
    %v3743 = vld [vmem:[%s9 + $0x50] sm:$0xff]
    %v3744 = vld [vmem:[%s9 + $0x58] sm:$0xff]
    %v3745 = vld [vmem:[%s9 + $0x60] sm:$0xff]
    %v3746 = vld [vmem:[%s9 + $0x68] sm:$0xff]
    %v3747 = vld [vmem:[%s9 + $0x70] sm:$0xff]
    %v3748 = vld [vmem:[%s9 + $0x78] sm:$0xff]
    %v3749 = vld [vmem:[%s10] sm:$0xf]
    %v3751 = vlaneseq
    %v3752 = vshrl.u32 %v3751, 7
    %v3753 = vsub.s32 0, %v3752
    %v3754 = vrot.slane %v3749, %v3753
    %v3755 = vlaneseq
    %v3756 = vshrl.u32 %v3755, 7
    %v3757 = vsub.s32 1, %v3756
    %v3758 = vrot.slane %v3749, %v3757
    %v3759 = vlaneseq
    %v3760 = vshrl.u32 %v3759, 7
    %v3761 = vsub.s32 2, %v3760
    %v3762 = vrot.slane %v3749, %v3761
    %v3763 = vlaneseq
    %v3764 = vshrl.u32 %v3763, 7
    %v3765 = vsub.s32 3, %v3764
    %v3766 = vrot.slane %v3749, %v3765
    %v3787 = vunpack.c.l.b16 %v3733
    %v3788 = vunpack.c.h.b16 %v3733
    %v3789 = vunpack.c.l.b16 %v3734
    %v3790 = vunpack.c.h.b16 %v3734
    %v3791 = vunpack.c.l.b16 %v3735
    %v3792 = vunpack.c.h.b16 %v3735
    %v3793 = vunpack.c.l.b16 %v3736
    %v3794 = vunpack.c.h.b16 %v3736
    %v3795 = vunpack.c.l.b16 %v3737
    %v3796 = vunpack.c.h.b16 %v3737
    %v3797 = vunpack.c.l.b16 %v3738
    %v3798 = vunpack.c.h.b16 %v3738
    %v3799 = vunpack.c.l.b16 %v3739
    %v3800 = vunpack.c.h.b16 %v3739
    %v3801 = vunpack.c.l.b16 %v3740
    %v3802 = vunpack.c.h.b16 %v3740
    %v3803 = vunpack.c.l.b16 %v3741
    %v3804 = vunpack.c.h.b16 %v3741
    %v3805 = vunpack.c.l.b16 %v3742
    %v3806 = vunpack.c.h.b16 %v3742
    %v3807 = vunpack.c.l.b16 %v3743
    %v3808 = vunpack.c.h.b16 %v3743
    %v3809 = vunpack.c.l.b16 %v3744
    %v3810 = vunpack.c.h.b16 %v3744
    %v3811 = vunpack.c.l.b16 %v3745
    %v3812 = vunpack.c.h.b16 %v3745
    %v3813 = vunpack.c.l.b16 %v3746
    %v3814 = vunpack.c.h.b16 %v3746
    %v3815 = vunpack.c.l.b16 %v3747
    %v3816 = vunpack.c.h.b16 %v3747
    %v3817 = vunpack.c.l.b16 %v3748
    %v3818 = vunpack.c.h.b16 %v3748
    %v3819 = vpack.c.b16 %v3791, %v3787
    %v3820 = vpack.c.b16 %v3792, %v3788
    %v3821 = vpack.c.b16 %v3793, %v3789
    %v3822 = vpack.c.b16 %v3794, %v3790
    %v3823 = vpack.c.b16 %v3799, %v3795
    %v3824 = vpack.c.b16 %v3800, %v3796
    %v3825 = vpack.c.b16 %v3801, %v3797
    %v3826 = vpack.c.b16 %v3802, %v3798
    %v3827 = vpack.c.b16 %v3807, %v3803
    %v3828 = vpack.c.b16 %v3808, %v3804
    %v3829 = vpack.c.b16 %v3809, %v3805
    %v3830 = vpack.c.b16 %v3810, %v3806
    %v3831 = vpack.c.b16 %v3815, %v3811
    %v3832 = vpack.c.b16 %v3816, %v3812
    %v3833 = vpack.c.b16 %v3817, %v3813
    %v3834 = vpack.c.b16 %v3818, %v3814
    %v3852 = vsel %vm2751, %v3732, 0
    %3854 = vmatprep.subr.bf16.mxu0 0
    %3855 = vmatpush1.bf16.msra.mxu0 0
    %3856 = vmatprep.subr.bf16.mxu0 0
    %3857 = vmatpush1.bf16.msra.mxu0 0
    %3858 = vmatprep.subr.bf16.mxu0 0
    %3859 = vmatpush1.bf16.msra.mxu0 0
    %3860 = vmatprep.subr.bf16.mxu0 0
    %3861 = vmatpush1.bf16.msra.mxu0 0
    %3862 = vmatprep.subr.bf16.mxu0 %v3832
    %3863 = vmatpush1.bf16.msra.mxu0 %v3831
    %3864 = vmatprep.subr.bf16.mxu0 %v3828
    %3865 = vmatpush1.bf16.msra.mxu0 %v3827
    %3866 = vmatprep.subr.bf16.mxu0 %v3824
    %3867 = vmatpush1.bf16.msra.mxu0 %v3823
    %3868 = vmatprep.subr.bf16.mxu0 %v3820
    %3869 = vmatpush1.bf16.msra.mxu0 %v3819
    %3870 = vmatprep.subr.bf16.mxu0 0
    %3871 = vmatpush2.bf16.msra.mxu0 0
    %3872 = vmatprep.subr.bf16.mxu0 0
    %3873 = vmatpush2.bf16.msra.mxu0 0
    %3874 = vmatprep.subr.bf16.mxu0 0
    %3875 = vmatpush2.bf16.msra.mxu0 0
    %3876 = vmatprep.subr.bf16.mxu0 0
    %3877 = vmatpush2.bf16.msra.mxu0 0
    %3878 = vmatprep.subr.bf16.mxu0 0
    %3879 = vmatpush2.bf16.msra.mxu0 0
    %3880 = vmatprep.subr.bf16.mxu0 0
    %3881 = vmatpush2.bf16.msra.mxu0 0
    %3882 = vmatprep.subr.bf16.mxu0 0
    %3883 = vmatpush2.bf16.msra.mxu0 0
    %3884 = vmatprep.subr.bf16.mxu0 0
    %3885 = vmatpush2.bf16.msra.mxu0 0
    %3886 = vmatprep.mubr.bf16.mxu0 0
    %3887 = vmatmul.mubr.bf16.gmra.mxu0 %v3852
    %v3888 = vpop.f32.mrf.mxu0
    %v3889 = vadd.f32 %v3754, %v3888
    %v3890 = vpop.f32.mrf.mxu0
    %v3891 = vadd.f32 %v3758, %v3890
    %v3892 = vpop.f32.mrf.mxu0
    %v3893 = vpop.f32.mrf.mxu0
    %3894 = vdwg.mxu0
    %3895 = vmatprep.subr.bf16.mxu0 0
    %3896 = vmatpush1.bf16.msra.mxu0 0
    %3897 = vmatprep.subr.bf16.mxu0 0
    %3898 = vmatpush1.bf16.msra.mxu0 0
    %3899 = vmatprep.subr.bf16.mxu0 0
    %3900 = vmatpush1.bf16.msra.mxu0 0
    %3901 = vmatprep.subr.bf16.mxu0 0
    %3902 = vmatpush1.bf16.msra.mxu0 0
    %3903 = vmatprep.subr.bf16.mxu0 %v3834
    %3904 = vmatpush1.bf16.msra.mxu0 %v3833
    %3905 = vmatprep.subr.bf16.mxu0 %v3830
    %3906 = vmatpush1.bf16.msra.mxu0 %v3829
    %3907 = vmatprep.subr.bf16.mxu0 %v3826
    %3908 = vmatpush1.bf16.msra.mxu0 %v3825
    %3909 = vmatprep.subr.bf16.mxu0 %v3822
    %3910 = vmatpush1.bf16.msra.mxu0 %v3821
    %3911 = vmatprep.subr.bf16.mxu0 0
    %3912 = vmatpush2.bf16.msra.mxu0 0
    %3913 = vmatprep.subr.bf16.mxu0 0
    %3914 = vmatpush2.bf16.msra.mxu0 0
    %3915 = vmatprep.subr.bf16.mxu0 0
    %3916 = vmatpush2.bf16.msra.mxu0 0
    %3917 = vmatprep.subr.bf16.mxu0 0
    %3918 = vmatpush2.bf16.msra.mxu0 0
    %3919 = vmatprep.subr.bf16.mxu0 0
    %3920 = vmatpush2.bf16.msra.mxu0 0
    %3921 = vmatprep.subr.bf16.mxu0 0
    %3922 = vmatpush2.bf16.msra.mxu0 0
    %3923 = vmatprep.subr.bf16.mxu0 0
    %3924 = vmatpush2.bf16.msra.mxu0 0
    %3925 = vmatprep.subr.bf16.mxu0 0
    %3926 = vmatpush2.bf16.msra.mxu0 0
    %3927 = vmatprep.mubr.bf16.mxu0 0
    %3928 = vmatmul.mubr.bf16.gmra.mxu0 %v3852
    %v3929 = vpop.f32.mrf.mxu0
    %v3930 = vadd.f32 %v3762, %v3929
    %v3931 = vpop.f32.mrf.mxu0
    %v3932 = vadd.f32 %v3766, %v3931
    %v3933 = vpop.f32.mrf.mxu0
    %v3934 = vpop.f32.mrf.mxu0
    %3935 = vdwg.mxu0
    %v3936 = vmax.f32 %v3889, 0.0
    %v3937 = vmax.f32 %v3891, 0.0
    %v3938 = vmax.f32 %v3930, 0.0
    %v3939 = vmax.f32 %v3932, 0.0
    %v3940 = vpack.c.bf16 %v3936, %v3936
    %v3941 = vpack.c.bf16 %v3937, %v3937
    %v3942 = vpack.c.bf16 %v3938, %v3938
    %v3943 = vpack.c.bf16 %v3939, %v3939
    %v3944 = vld [vmem:[%s11] sm:$0xf]
    %v3945 = vld [vmem:[%s11 + $0x4] sm:$0xf]
    %v3946 = vld [vmem:[%s11 + $0x8] sm:$0xf]
    %v3947 = vld [vmem:[%s11 + $0xc] sm:$0xf]
    %v3948 = vld [vmem:[%s11 + $0x10] sm:$0xf]
    %v3949 = vld [vmem:[%s11 + $0x14] sm:$0xf]
    %v3950 = vld [vmem:[%s11 + $0x18] sm:$0xf]
    %v3951 = vld [vmem:[%s11 + $0x1c] sm:$0xf]
    %v3952 = vld [vmem:[%s11 + $0x20] sm:$0xf]
    %v3953 = vld [vmem:[%s11 + $0x24] sm:$0xf]
    %v3954 = vld [vmem:[%s11 + $0x28] sm:$0xf]
    %v3955 = vld [vmem:[%s11 + $0x2c] sm:$0xf]
    %v3956 = vld [vmem:[%s11 + $0x30] sm:$0xf]
    %v3957 = vld [vmem:[%s11 + $0x34] sm:$0xf]
    %v3958 = vld [vmem:[%s11 + $0x38] sm:$0xf]
    %v3959 = vld [vmem:[%s11 + $0x3c] sm:$0xf]
    %v3960 = vld [vmem:[%s11 + $0x40] sm:$0xf]
    %v3961 = vld [vmem:[%s11 + $0x44] sm:$0xf]
    %v3962 = vld [vmem:[%s11 + $0x48] sm:$0xf]
    %v3963 = vld [vmem:[%s11 + $0x4c] sm:$0xf]
    %v3964 = vld [vmem:[%s11 + $0x50] sm:$0xf]
    %v3965 = vld [vmem:[%s11 + $0x54] sm:$0xf]
    %v3966 = vld [vmem:[%s11 + $0x58] sm:$0xf]
    %v3967 = vld [vmem:[%s11 + $0x5c] sm:$0xf]
    %v3968 = vld [vmem:[%s11 + $0x60] sm:$0xf]
    %v3969 = vld [vmem:[%s11 + $0x64] sm:$0xf]
    %v3970 = vld [vmem:[%s11 + $0x68] sm:$0xf]
    %v3971 = vld [vmem:[%s11 + $0x6c] sm:$0xf]
    %v3972 = vld [vmem:[%s11 + $0x70] sm:$0xf]
    %v3973 = vld [vmem:[%s11 + $0x74] sm:$0xf]
    %v3974 = vld [vmem:[%s11 + $0x78] sm:$0xf]
    %v3975 = vld [vmem:[%s11 + $0x7c] sm:$0xf]
    %v3976 = vld [vmem:[%s11 + $0x80] sm:$0xf]
    %v3977 = vld [vmem:[%s11 + $0x84] sm:$0xf]
    %v3978 = vld [vmem:[%s11 + $0x88] sm:$0xf]
    %v3979 = vld [vmem:[%s11 + $0x8c] sm:$0xf]
    %v3980 = vld [vmem:[%s11 + $0x90] sm:$0xf]
    %v3981 = vld [vmem:[%s11 + $0x94] sm:$0xf]
    %v3982 = vld [vmem:[%s11 + $0x98] sm:$0xf]
    %v3983 = vld [vmem:[%s11 + $0x9c] sm:$0xf]
    %v3984 = vld [vmem:[%s11 + $0xa0] sm:$0xf]
    %v3985 = vld [vmem:[%s11 + $0xa4] sm:$0xf]
    %v3986 = vld [vmem:[%s11 + $0xa8] sm:$0xf]
    %v3987 = vld [vmem:[%s11 + $0xac] sm:$0xf]
    %v3988 = vld [vmem:[%s11 + $0xb0] sm:$0xf]
    %v3989 = vld [vmem:[%s11 + $0xb4] sm:$0xf]
    %v3990 = vld [vmem:[%s11 + $0xb8] sm:$0xf]
    %v3991 = vld [vmem:[%s11 + $0xbc] sm:$0xf]
    %v3992 = vld [vmem:[%s11 + $0xc0] sm:$0xf]
    %v3993 = vld [vmem:[%s11 + $0xc4] sm:$0xf]
    %v3994 = vld [vmem:[%s11 + $0xc8] sm:$0xf]
    %v3995 = vld [vmem:[%s11 + $0xcc] sm:$0xf]
    %v3996 = vld [vmem:[%s11 + $0xd0] sm:$0xf]
    %v3997 = vld [vmem:[%s11 + $0xd4] sm:$0xf]
    %v3998 = vld [vmem:[%s11 + $0xd8] sm:$0xf]
    %v3999 = vld [vmem:[%s11 + $0xdc] sm:$0xf]
    %v4000 = vld [vmem:[%s11 + $0xe0] sm:$0xf]
    %v4001 = vld [vmem:[%s11 + $0xe4] sm:$0xf]
    %v4002 = vld [vmem:[%s11 + $0xe8] sm:$0xf]
    %v4003 = vld [vmem:[%s11 + $0xec] sm:$0xf]
    %v4004 = vld [vmem:[%s11 + $0xf0] sm:$0xf]
    %v4005 = vld [vmem:[%s11 + $0xf4] sm:$0xf]
    %v4006 = vld [vmem:[%s11 + $0xf8] sm:$0xf]
    %v4007 = vld [vmem:[%s11 + $0xfc] sm:$0xf]
    %v4008 = vld [vmem:[%s12] sm:$0x1]
    %v4010 = vlaneseq
    %v4011 = vshrl.u32 %v4010, 7
    %v4012 = vsub.s32 0, %v4011
    %v4013 = vrot.slane %v4008, %v4012
    %v4079 = vunpack.c.l.b16 %v3944
    %v4080 = vunpack.c.l.b16 %v3945
    %v4081 = vunpack.c.l.b16 %v3946
    %v4082 = vunpack.c.l.b16 %v3947
    %v4083 = vunpack.c.l.b16 %v3948
    %v4084 = vunpack.c.l.b16 %v3949
    %v4085 = vunpack.c.l.b16 %v3950
    %v4086 = vunpack.c.l.b16 %v3951
    %v4087 = vunpack.c.l.b16 %v3952
    %v4088 = vunpack.c.l.b16 %v3953
    %v4089 = vunpack.c.l.b16 %v3954
    %v4090 = vunpack.c.l.b16 %v3955
    %v4091 = vunpack.c.l.b16 %v3956
    %v4092 = vunpack.c.l.b16 %v3957
    %v4093 = vunpack.c.l.b16 %v3958
    %v4094 = vunpack.c.l.b16 %v3959
    %v4095 = vunpack.c.l.b16 %v3960
    %v4096 = vunpack.c.l.b16 %v3961
    %v4097 = vunpack.c.l.b16 %v3962
    %v4098 = vunpack.c.l.b16 %v3963
    %v4099 = vunpack.c.l.b16 %v3964
    %v4100 = vunpack.c.l.b16 %v3965
    %v4101 = vunpack.c.l.b16 %v3966
    %v4102 = vunpack.c.l.b16 %v3967
    %v4103 = vunpack.c.l.b16 %v3968
    %v4104 = vunpack.c.l.b16 %v3969
    %v4105 = vunpack.c.l.b16 %v3970
    %v4106 = vunpack.c.l.b16 %v3971
    %v4107 = vunpack.c.l.b16 %v3972
    %v4108 = vunpack.c.l.b16 %v3973
    %v4109 = vunpack.c.l.b16 %v3974
    %v4110 = vunpack.c.l.b16 %v3975
    %v4111 = vunpack.c.l.b16 %v3976
    %v4112 = vunpack.c.l.b16 %v3977
    %v4113 = vunpack.c.l.b16 %v3978
    %v4114 = vunpack.c.l.b16 %v3979
    %v4115 = vunpack.c.l.b16 %v3980
    %v4116 = vunpack.c.l.b16 %v3981
    %v4117 = vunpack.c.l.b16 %v3982
    %v4118 = vunpack.c.l.b16 %v3983
    %v4119 = vunpack.c.l.b16 %v3984
    %v4120 = vunpack.c.l.b16 %v3985
    %v4121 = vunpack.c.l.b16 %v3986
    %v4122 = vunpack.c.l.b16 %v3987
    %v4123 = vunpack.c.l.b16 %v3988
    %v4124 = vunpack.c.l.b16 %v3989
    %v4125 = vunpack.c.l.b16 %v3990
    %v4126 = vunpack.c.l.b16 %v3991
    %v4127 = vunpack.c.l.b16 %v3992
    %v4128 = vunpack.c.l.b16 %v3993
    %v4129 = vunpack.c.l.b16 %v3994
    %v4130 = vunpack.c.l.b16 %v3995
    %v4131 = vunpack.c.l.b16 %v3996
    %v4132 = vunpack.c.l.b16 %v3997
    %v4133 = vunpack.c.l.b16 %v3998
    %v4134 = vunpack.c.l.b16 %v3999
    %v4135 = vunpack.c.l.b16 %v4000
    %v4136 = vunpack.c.l.b16 %v4001
    %v4137 = vunpack.c.l.b16 %v4002
    %v4138 = vunpack.c.l.b16 %v4003
    %v4139 = vunpack.c.l.b16 %v4004
    %v4140 = vunpack.c.l.b16 %v4005
    %v4141 = vunpack.c.l.b16 %v4006
    %v4142 = vunpack.c.l.b16 %v4007
    %v4143 = vpack.c.b16 %v4080, %v4079
    %v4144 = vpack.c.b16 %v4082, %v4081
    %v4145 = vpack.c.b16 %v4084, %v4083
    %v4146 = vpack.c.b16 %v4086, %v4085
    %v4147 = vpack.c.b16 %v4088, %v4087
    %v4148 = vpack.c.b16 %v4090, %v4089
    %v4149 = vpack.c.b16 %v4092, %v4091
    %v4150 = vpack.c.b16 %v4094, %v4093
    %v4151 = vpack.c.b16 %v4096, %v4095
    %v4152 = vpack.c.b16 %v4098, %v4097
    %v4153 = vpack.c.b16 %v4100, %v4099
    %v4154 = vpack.c.b16 %v4102, %v4101
    %v4155 = vpack.c.b16 %v4104, %v4103
    %v4156 = vpack.c.b16 %v4106, %v4105
    %v4157 = vpack.c.b16 %v4108, %v4107
    %v4158 = vpack.c.b16 %v4110, %v4109
    %v4159 = vpack.c.b16 %v4112, %v4111
    %v4160 = vpack.c.b16 %v4114, %v4113
    %v4161 = vpack.c.b16 %v4116, %v4115
    %v4162 = vpack.c.b16 %v4118, %v4117
    %v4163 = vpack.c.b16 %v4120, %v4119
    %v4164 = vpack.c.b16 %v4122, %v4121
    %v4165 = vpack.c.b16 %v4124, %v4123
    %v4166 = vpack.c.b16 %v4126, %v4125
    %v4167 = vpack.c.b16 %v4128, %v4127
    %v4168 = vpack.c.b16 %v4130, %v4129
    %v4169 = vpack.c.b16 %v4132, %v4131
    %v4170 = vpack.c.b16 %v4134, %v4133
    %v4171 = vpack.c.b16 %v4136, %v4135
    %v4172 = vpack.c.b16 %v4138, %v4137
    %v4173 = vpack.c.b16 %v4140, %v4139
    %v4174 = vpack.c.b16 %v4142, %v4141
    %4207 = vmatprep.subr.bf16.mxu0 0
    %4208 = vmatpush1.bf16.msra.mxu0 %v4150
    %4209 = vmatprep.subr.bf16.mxu0 0
    %4210 = vmatpush1.bf16.msra.mxu0 %v4149
    %4211 = vmatprep.subr.bf16.mxu0 0
    %4212 = vmatpush1.bf16.msra.mxu0 %v4148
    %4213 = vmatprep.subr.bf16.mxu0 0
    %4214 = vmatpush1.bf16.msra.mxu0 %v4147
    %4215 = vmatprep.subr.bf16.mxu0 0
    %4216 = vmatpush1.bf16.msra.mxu0 %v4146
    %4217 = vmatprep.subr.bf16.mxu0 0
    %4218 = vmatpush1.bf16.msra.mxu0 %v4145
    %4219 = vmatprep.subr.bf16.mxu0 0
    %4220 = vmatpush1.bf16.msra.mxu0 %v4144
    %4221 = vmatprep.subr.bf16.mxu0 0
    %4222 = vmatpush1.bf16.msra.mxu0 %v4143
    %4223 = vmatprep.subr.bf16.mxu0 0
    %4224 = vmatpush2.bf16.msra.mxu0 %v4158
    %4225 = vmatprep.subr.bf16.mxu0 0
    %4226 = vmatpush2.bf16.msra.mxu0 %v4157
    %4227 = vmatprep.subr.bf16.mxu0 0
    %4228 = vmatpush2.bf16.msra.mxu0 %v4156
    %4229 = vmatprep.subr.bf16.mxu0 0
    %4230 = vmatpush2.bf16.msra.mxu0 %v4155
    %4231 = vmatprep.subr.bf16.mxu0 0
    %4232 = vmatpush2.bf16.msra.mxu0 %v4154
    %4233 = vmatprep.subr.bf16.mxu0 0
    %4234 = vmatpush2.bf16.msra.mxu0 %v4153
    %4235 = vmatprep.subr.bf16.mxu0 0
    %4236 = vmatpush2.bf16.msra.mxu0 %v4152
    %4237 = vmatprep.subr.bf16.mxu0 0
    %4238 = vmatpush2.bf16.msra.mxu0 %v4151
    %4239 = vmatprep.mubr.bf16.mxu0 %v3941
    %4240 = vmatmul.mubr.bf16.gmra.mxu0 %v3940
    %v4241 = vpop.f32.mrf.mxu0
    %v4242 = vadd.f32 %v4013, %v4241
    %v4243 = vpop.f32.mrf.mxu0
    %v4244 = vpop.f32.mrf.mxu0
    %v4245 = vpop.f32.mrf.mxu0
    %4246 = vdwg.mxu0
    %4247 = vmatprep.subr.bf16.mxu0 0
    %4248 = vmatpush1.bf16.msra.mxu0 %v4166
    %4249 = vmatprep.subr.bf16.mxu0 0
    %4250 = vmatpush1.bf16.msra.mxu0 %v4165
    %4251 = vmatprep.subr.bf16.mxu0 0
    %4252 = vmatpush1.bf16.msra.mxu0 %v4164
    %4253 = vmatprep.subr.bf16.mxu0 0
    %4254 = vmatpush1.bf16.msra.mxu0 %v4163
    %4255 = vmatprep.subr.bf16.mxu0 0
    %4256 = vmatpush1.bf16.msra.mxu0 %v4162
    %4257 = vmatprep.subr.bf16.mxu0 0
    %4258 = vmatpush1.bf16.msra.mxu0 %v4161
    %4259 = vmatprep.subr.bf16.mxu0 0
    %4260 = vmatpush1.bf16.msra.mxu0 %v4160
    %4261 = vmatprep.subr.bf16.mxu0 0
    %4262 = vmatpush1.bf16.msra.mxu0 %v4159
    %4263 = vmatprep.subr.bf16.mxu0 0
    %4264 = vmatpush2.bf16.msra.mxu0 %v4174
    %4265 = vmatprep.subr.bf16.mxu0 0
    %4266 = vmatpush2.bf16.msra.mxu0 %v4173
    %4267 = vmatprep.subr.bf16.mxu0 0
    %4268 = vmatpush2.bf16.msra.mxu0 %v4172
    %4269 = vmatprep.subr.bf16.mxu0 0
    %4270 = vmatpush2.bf16.msra.mxu0 %v4171
    %4271 = vmatprep.subr.bf16.mxu0 0
    %4272 = vmatpush2.bf16.msra.mxu0 %v4170
    %4273 = vmatprep.subr.bf16.mxu0 0
    %4274 = vmatpush2.bf16.msra.mxu0 %v4169
    %4275 = vmatprep.subr.bf16.mxu0 0
    %4276 = vmatpush2.bf16.msra.mxu0 %v4168
    %4277 = vmatprep.subr.bf16.mxu0 0
    %4278 = vmatpush2.bf16.msra.mxu0 %v4167
    %4279 = vmatprep.mubr.bf16.mxu0 %v3943
    %4280 = vmatmul.mubr.bf16.gmra.mxu0 %v3942
    %v4281 = vpop.f32.mrf.mxu0
    %v4282 = vadd.f32 %v4242, %v4281
    %v4283 = vpop.f32.mrf.mxu0
    %v4284 = vpop.f32.mrf.mxu0
    %v4285 = vpop.f32.mrf.mxu0
    %4286 = vdwg.mxu0
    %vm4287 = vcmask 410624
    %v4288 = vsel %vm4287, %v4282, -inf
    %4289 = vmax.xlane.f32.xlu0 %v4288
    %v4290 = vpop.xlane.xlu0 %4289
    %v4291 = vsub.f32 %v4282, %v4290
    %v4292 = vmul.f32 %v4291, 1.442695
    %v4293 = vpow.pop %v4292
    %v4294 = vsel %vm4287, %v4293, 0.0
    %4295 = vadd.xlane.f32.xlu0 %v4294
    %v4296 = vpop.xlane.xlu0 %4295
    %v4297 = vrcp.pop %v4296
    %v4298 = vmul.f32 %v4293, %v4297
    %4299 = vst.msk [vmem:[#allocation2] sm:$0x3] %vm4287, %v4298
    %s4300 = scalar_lea.vmem %s11, 256
    %v4301 = vld [vmem:[%s4300] sm:$0xf]
    %v4302 = vld [vmem:[%s4300 + $0x4] sm:$0xf]
    %v4303 = vld [vmem:[%s4300 + $0x8] sm:$0xf]
    %v4304 = vld [vmem:[%s4300 + $0xc] sm:$0xf]
    %v4305 = vld [vmem:[%s4300 + $0x10] sm:$0xf]
    %v4306 = vld [vmem:[%s4300 + $0x14] sm:$0xf]
    %v4307 = vld [vmem:[%s4300 + $0x18] sm:$0xf]
    %v4308 = vld [vmem:[%s4300 + $0x1c] sm:$0xf]
    %v4309 = vld [vmem:[%s4300 + $0x20] sm:$0xf]
    %v4310 = vld [vmem:[%s4300 + $0x24] sm:$0xf]
    %v4311 = vld [vmem:[%s4300 + $0x28] sm:$0xf]
    %v4312 = vld [vmem:[%s4300 + $0x2c] sm:$0xf]
    %v4313 = vld [vmem:[%s4300 + $0x30] sm:$0xf]
    %v4314 = vld [vmem:[%s4300 + $0x34] sm:$0xf]
    %v4315 = vld [vmem:[%s4300 + $0x38] sm:$0xf]
    %v4316 = vld [vmem:[%s4300 + $0x3c] sm:$0xf]
    %v4317 = vld [vmem:[%s4300 + $0x40] sm:$0xf]
    %v4318 = vld [vmem:[%s4300 + $0x44] sm:$0xf]
    %v4319 = vld [vmem:[%s4300 + $0x48] sm:$0xf]
    %v4320 = vld [vmem:[%s4300 + $0x4c] sm:$0xf]
    %v4321 = vld [vmem:[%s4300 + $0x50] sm:$0xf]
    %v4322 = vld [vmem:[%s4300 + $0x54] sm:$0xf]
    %v4323 = vld [vmem:[%s4300 + $0x58] sm:$0xf]
    %v4324 = vld [vmem:[%s4300 + $0x5c] sm:$0xf]
    %v4325 = vld [vmem:[%s4300 + $0x60] sm:$0xf]
    %v4326 = vld [vmem:[%s4300 + $0x64] sm:$0xf]
    %v4327 = vld [vmem:[%s4300 + $0x68] sm:$0xf]
    %v4328 = vld [vmem:[%s4300 + $0x6c] sm:$0xf]
    %v4329 = vld [vmem:[%s4300 + $0x70] sm:$0xf]
    %v4330 = vld [vmem:[%s4300 + $0x74] sm:$0xf]
    %v4331 = vld [vmem:[%s4300 + $0x78] sm:$0xf]
    %v4332 = vld [vmem:[%s4300 + $0x7c] sm:$0xf]
    %v4333 = vld [vmem:[%s4300 + $0x80] sm:$0xf]
    %v4334 = vld [vmem:[%s4300 + $0x84] sm:$0xf]
    %v4335 = vld [vmem:[%s4300 + $0x88] sm:$0xf]
    %v4336 = vld [vmem:[%s4300 + $0x8c] sm:$0xf]
    %v4337 = vld [vmem:[%s4300 + $0x90] sm:$0xf]
    %v4338 = vld [vmem:[%s4300 + $0x94] sm:$0xf]
    %v4339 = vld [vmem:[%s4300 + $0x98] sm:$0xf]
    %v4340 = vld [vmem:[%s4300 + $0x9c] sm:$0xf]
    %v4341 = vld [vmem:[%s4300 + $0xa0] sm:$0xf]
    %v4342 = vld [vmem:[%s4300 + $0xa4] sm:$0xf]
    %v4343 = vld [vmem:[%s4300 + $0xa8] sm:$0xf]
    %v4344 = vld [vmem:[%s4300 + $0xac] sm:$0xf]
    %v4345 = vld [vmem:[%s4300 + $0xb0] sm:$0xf]
    %v4346 = vld [vmem:[%s4300 + $0xb4] sm:$0xf]
    %v4347 = vld [vmem:[%s4300 + $0xb8] sm:$0xf]
    %v4348 = vld [vmem:[%s4300 + $0xbc] sm:$0xf]
    %v4349 = vld [vmem:[%s4300 + $0xc0] sm:$0xf]
    %v4350 = vld [vmem:[%s4300 + $0xc4] sm:$0xf]
    %v4351 = vld [vmem:[%s4300 + $0xc8] sm:$0xf]
    %v4352 = vld [vmem:[%s4300 + $0xcc] sm:$0xf]
    %v4353 = vld [vmem:[%s4300 + $0xd0] sm:$0xf]
    %v4354 = vld [vmem:[%s4300 + $0xd4] sm:$0xf]
    %v4355 = vld [vmem:[%s4300 + $0xd8] sm:$0xf]
    %v4356 = vld [vmem:[%s4300 + $0xdc] sm:$0xf]
    %v4357 = vld [vmem:[%s4300 + $0xe0] sm:$0xf]
    %v4358 = vld [vmem:[%s4300 + $0xe4] sm:$0xf]
    %v4359 = vld [vmem:[%s4300 + $0xe8] sm:$0xf]
    %v4360 = vld [vmem:[%s4300 + $0xec] sm:$0xf]
    %v4361 = vld [vmem:[%s4300 + $0xf0] sm:$0xf]
    %v4362 = vld [vmem:[%s4300 + $0xf4] sm:$0xf]
    %v4363 = vld [vmem:[%s4300 + $0xf8] sm:$0xf]
    %v4364 = vld [vmem:[%s4300 + $0xfc] sm:$0xf]
    %s4365 = scalar_lea.vmem %s12, 1
    %v4366 = vld [vmem:[%s4365] sm:$0x1]
    %v4368 = vlaneseq
    %v4369 = vshrl.u32 %v4368, 7
    %v4370 = vsub.s32 0, %v4369
    %v4371 = vrot.slane %v4366, %v4370
    %v4437 = vunpack.c.l.b16 %v4301
    %v4438 = vunpack.c.l.b16 %v4302
    %v4439 = vunpack.c.l.b16 %v4303
    %v4440 = vunpack.c.l.b16 %v4304
    %v4441 = vunpack.c.l.b16 %v4305
    %v4442 = vunpack.c.l.b16 %v4306
    %v4443 = vunpack.c.l.b16 %v4307
    %v4444 = vunpack.c.l.b16 %v4308
    %v4445 = vunpack.c.l.b16 %v4309
    %v4446 = vunpack.c.l.b16 %v4310
    %v4447 = vunpack.c.l.b16 %v4311
    %v4448 = vunpack.c.l.b16 %v4312
    %v4449 = vunpack.c.l.b16 %v4313
    %v4450 = vunpack.c.l.b16 %v4314
    %v4451 = vunpack.c.l.b16 %v4315
    %v4452 = vunpack.c.l.b16 %v4316
    %v4453 = vunpack.c.l.b16 %v4317
    %v4454 = vunpack.c.l.b16 %v4318
    %v4455 = vunpack.c.l.b16 %v4319
    %v4456 = vunpack.c.l.b16 %v4320
    %v4457 = vunpack.c.l.b16 %v4321
    %v4458 = vunpack.c.l.b16 %v4322
    %v4459 = vunpack.c.l.b16 %v4323
    %v4460 = vunpack.c.l.b16 %v4324
    %v4461 = vunpack.c.l.b16 %v4325
    %v4462 = vunpack.c.l.b16 %v4326
    %v4463 = vunpack.c.l.b16 %v4327
    %v4464 = vunpack.c.l.b16 %v4328
    %v4465 = vunpack.c.l.b16 %v4329
    %v4466 = vunpack.c.l.b16 %v4330
    %v4467 = vunpack.c.l.b16 %v4331
    %v4468 = vunpack.c.l.b16 %v4332
    %v4469 = vunpack.c.l.b16 %v4333
    %v4470 = vunpack.c.l.b16 %v4334
    %v4471 = vunpack.c.l.b16 %v4335
    %v4472 = vunpack.c.l.b16 %v4336
    %v4473 = vunpack.c.l.b16 %v4337
    %v4474 = vunpack.c.l.b16 %v4338
    %v4475 = vunpack.c.l.b16 %v4339
    %v4476 = vunpack.c.l.b16 %v4340
    %v4477 = vunpack.c.l.b16 %v4341
    %v4478 = vunpack.c.l.b16 %v4342
    %v4479 = vunpack.c.l.b16 %v4343
    %v4480 = vunpack.c.l.b16 %v4344
    %v4481 = vunpack.c.l.b16 %v4345
    %v4482 = vunpack.c.l.b16 %v4346
    %v4483 = vunpack.c.l.b16 %v4347
    %v4484 = vunpack.c.l.b16 %v4348
    %v4485 = vunpack.c.l.b16 %v4349
    %v4486 = vunpack.c.l.b16 %v4350
    %v4487 = vunpack.c.l.b16 %v4351
    %v4488 = vunpack.c.l.b16 %v4352
    %v4489 = vunpack.c.l.b16 %v4353
    %v4490 = vunpack.c.l.b16 %v4354
    %v4491 = vunpack.c.l.b16 %v4355
    %v4492 = vunpack.c.l.b16 %v4356
    %v4493 = vunpack.c.l.b16 %v4357
    %v4494 = vunpack.c.l.b16 %v4358
    %v4495 = vunpack.c.l.b16 %v4359
    %v4496 = vunpack.c.l.b16 %v4360
    %v4497 = vunpack.c.l.b16 %v4361
    %v4498 = vunpack.c.l.b16 %v4362
    %v4499 = vunpack.c.l.b16 %v4363
    %v4500 = vunpack.c.l.b16 %v4364
    %v4501 = vpack.c.b16 %v4438, %v4437
    %v4502 = vpack.c.b16 %v4440, %v4439
    %v4503 = vpack.c.b16 %v4442, %v4441
    %v4504 = vpack.c.b16 %v4444, %v4443
    %v4505 = vpack.c.b16 %v4446, %v4445
    %v4506 = vpack.c.b16 %v4448, %v4447
    %v4507 = vpack.c.b16 %v4450, %v4449
    %v4508 = vpack.c.b16 %v4452, %v4451
    %v4509 = vpack.c.b16 %v4454, %v4453
    %v4510 = vpack.c.b16 %v4456, %v4455
    %v4511 = vpack.c.b16 %v4458, %v4457
    %v4512 = vpack.c.b16 %v4460, %v4459
    %v4513 = vpack.c.b16 %v4462, %v4461
    %v4514 = vpack.c.b16 %v4464, %v4463
    %v4515 = vpack.c.b16 %v4466, %v4465
    %v4516 = vpack.c.b16 %v4468, %v4467
    %v4517 = vpack.c.b16 %v4470, %v4469
    %v4518 = vpack.c.b16 %v4472, %v4471
    %v4519 = vpack.c.b16 %v4474, %v4473
    %v4520 = vpack.c.b16 %v4476, %v4475
    %v4521 = vpack.c.b16 %v4478, %v4477
    %v4522 = vpack.c.b16 %v4480, %v4479
    %v4523 = vpack.c.b16 %v4482, %v4481
    %v4524 = vpack.c.b16 %v4484, %v4483
    %v4525 = vpack.c.b16 %v4486, %v4485
    %v4526 = vpack.c.b16 %v4488, %v4487
    %v4527 = vpack.c.b16 %v4490, %v4489
    %v4528 = vpack.c.b16 %v4492, %v4491
    %v4529 = vpack.c.b16 %v4494, %v4493
    %v4530 = vpack.c.b16 %v4496, %v4495
    %v4531 = vpack.c.b16 %v4498, %v4497
    %v4532 = vpack.c.b16 %v4500, %v4499
    %4565 = vmatprep.subr.bf16.mxu0 0
    %4566 = vmatpush1.bf16.msra.mxu0 %v4508
    %4567 = vmatprep.subr.bf16.mxu0 0
    %4568 = vmatpush1.bf16.msra.mxu0 %v4507
    %4569 = vmatprep.subr.bf16.mxu0 0
    %4570 = vmatpush1.bf16.msra.mxu0 %v4506
    %4571 = vmatprep.subr.bf16.mxu0 0
    %4572 = vmatpush1.bf16.msra.mxu0 %v4505
    %4573 = vmatprep.subr.bf16.mxu0 0
    %4574 = vmatpush1.bf16.msra.mxu0 %v4504
    %4575 = vmatprep.subr.bf16.mxu0 0
    %4576 = vmatpush1.bf16.msra.mxu0 %v4503
    %4577 = vmatprep.subr.bf16.mxu0 0
    %4578 = vmatpush1.bf16.msra.mxu0 %v4502
    %4579 = vmatprep.subr.bf16.mxu0 0
    %4580 = vmatpush1.bf16.msra.mxu0 %v4501
    %4581 = vmatprep.subr.bf16.mxu0 0
    %4582 = vmatpush2.bf16.msra.mxu0 %v4516
    %4583 = vmatprep.subr.bf16.mxu0 0
    %4584 = vmatpush2.bf16.msra.mxu0 %v4515
    %4585 = vmatprep.subr.bf16.mxu0 0
    %4586 = vmatpush2.bf16.msra.mxu0 %v4514
    %4587 = vmatprep.subr.bf16.mxu0 0
    %4588 = vmatpush2.bf16.msra.mxu0 %v4513
    %4589 = vmatprep.subr.bf16.mxu0 0
    %4590 = vmatpush2.bf16.msra.mxu0 %v4512
    %4591 = vmatprep.subr.bf16.mxu0 0
    %4592 = vmatpush2.bf16.msra.mxu0 %v4511
    %4593 = vmatprep.subr.bf16.mxu0 0
    %4594 = vmatpush2.bf16.msra.mxu0 %v4510
    %4595 = vmatprep.subr.bf16.mxu0 0
    %4596 = vmatpush2.bf16.msra.mxu0 %v4509
    %4597 = vmatprep.mubr.bf16.mxu0 %v3941
    %4598 = vmatmul.mubr.bf16.gmra.mxu0 %v3940
    %v4599 = vpop.f32.mrf.mxu0
    %v4600 = vadd.f32 %v4371, %v4599
    %v4601 = vpop.f32.mrf.mxu0
    %v4602 = vpop.f32.mrf.mxu0
    %v4603 = vpop.f32.mrf.mxu0
    %4604 = vdwg.mxu0
    %4605 = vmatprep.subr.bf16.mxu0 0
    %4606 = vmatpush1.bf16.msra.mxu0 %v4524
    %4607 = vmatprep.subr.bf16.mxu0 0
    %4608 = vmatpush1.bf16.msra.mxu0 %v4523
    %4609 = vmatprep.subr.bf16.mxu0 0
    %4610 = vmatpush1.bf16.msra.mxu0 %v4522
    %4611 = vmatprep.subr.bf16.mxu0 0
    %4612 = vmatpush1.bf16.msra.mxu0 %v4521
    %4613 = vmatprep.subr.bf16.mxu0 0
    %4614 = vmatpush1.bf16.msra.mxu0 %v4520
    %4615 = vmatprep.subr.bf16.mxu0 0
    %4616 = vmatpush1.bf16.msra.mxu0 %v4519
    %4617 = vmatprep.subr.bf16.mxu0 0
    %4618 = vmatpush1.bf16.msra.mxu0 %v4518
    %4619 = vmatprep.subr.bf16.mxu0 0
    %4620 = vmatpush1.bf16.msra.mxu0 %v4517
    %4621 = vmatprep.subr.bf16.mxu0 0
    %4622 = vmatpush2.bf16.msra.mxu0 %v4532
    %4623 = vmatprep.subr.bf16.mxu0 0
    %4624 = vmatpush2.bf16.msra.mxu0 %v4531
    %4625 = vmatprep.subr.bf16.mxu0 0
    %4626 = vmatpush2.bf16.msra.mxu0 %v4530
    %4627 = vmatprep.subr.bf16.mxu0 0
    %4628 = vmatpush2.bf16.msra.mxu0 %v4529
    %4629 = vmatprep.subr.bf16.mxu0 0
    %4630 = vmatpush2.bf16.msra.mxu0 %v4528
    %4631 = vmatprep.subr.bf16.mxu0 0
    %4632 = vmatpush2.bf16.msra.mxu0 %v4527
    %4633 = vmatprep.subr.bf16.mxu0 0
    %4634 = vmatpush2.bf16.msra.mxu0 %v4526
    %4635 = vmatprep.subr.bf16.mxu0 0
    %4636 = vmatpush2.bf16.msra.mxu0 %v4525
    %4637 = vmatprep.mubr.bf16.mxu0 %v3943
    %4638 = vmatmul.mubr.bf16.gmra.mxu0 %v3942
    %v4639 = vpop.f32.mrf.mxu0
    %v4640 = vadd.f32 %v4600, %v4639
    %v4641 = vpop.f32.mrf.mxu0
    %v4642 = vpop.f32.mrf.mxu0
    %v4643 = vpop.f32.mrf.mxu0
    %4644 = vdwg.mxu0
    %v4645 = vsel %vm4287, %v4640, -inf
    %4646 = vmax.xlane.f32.xlu0 %v4645
    %v4647 = vpop.xlane.xlu0 %4646
    %v4648 = vsub.f32 %v4640, %v4647
    %v4649 = vmul.f32 %v4648, 1.442695
    %v4650 = vpow.pop %v4649
    %v4651 = vsel %vm4287, %v4650, 0.0
    %4652 = vadd.xlane.f32.xlu0 %v4651
    %v4653 = vpop.xlane.xlu0 %4652
    %v4654 = vrcp.pop %v4653
    %v4655 = vmul.f32 %v4650, %v4654
    %s4656 = scalar_lea.vmem [#allocation2], 2
    %4657 = vst.msk [vmem:[%s4656] sm:$0x3] %vm4287, %v4655
    %s4658 = scalar_lea.vmem %s11, 512
    %v4659 = vld [vmem:[%s4658] sm:$0xf]
    %v4660 = vld [vmem:[%s4658 + $0x4] sm:$0xf]
    %v4661 = vld [vmem:[%s4658 + $0x8] sm:$0xf]
    %v4662 = vld [vmem:[%s4658 + $0xc] sm:$0xf]
    %v4663 = vld [vmem:[%s4658 + $0x10] sm:$0xf]
    %v4664 = vld [vmem:[%s4658 + $0x14] sm:$0xf]
    %v4665 = vld [vmem:[%s4658 + $0x18] sm:$0xf]
    %v4666 = vld [vmem:[%s4658 + $0x1c] sm:$0xf]
    %v4667 = vld [vmem:[%s4658 + $0x20] sm:$0xf]
    %v4668 = vld [vmem:[%s4658 + $0x24] sm:$0xf]
    %v4669 = vld [vmem:[%s4658 + $0x28] sm:$0xf]
    %v4670 = vld [vmem:[%s4658 + $0x2c] sm:$0xf]
    %v4671 = vld [vmem:[%s4658 + $0x30] sm:$0xf]
    %v4672 = vld [vmem:[%s4658 + $0x34] sm:$0xf]
    %v4673 = vld [vmem:[%s4658 + $0x38] sm:$0xf]
    %v4674 = vld [vmem:[%s4658 + $0x3c] sm:$0xf]
    %v4675 = vld [vmem:[%s4658 + $0x40] sm:$0xf]
    %v4676 = vld [vmem:[%s4658 + $0x44] sm:$0xf]
    %v4677 = vld [vmem:[%s4658 + $0x48] sm:$0xf]
    %v4678 = vld [vmem:[%s4658 + $0x4c] sm:$0xf]
    %v4679 = vld [vmem:[%s4658 + $0x50] sm:$0xf]
    %v4680 = vld [vmem:[%s4658 + $0x54] sm:$0xf]
    %v4681 = vld [vmem:[%s4658 + $0x58] sm:$0xf]
    %v4682 = vld [vmem:[%s4658 + $0x5c] sm:$0xf]
    %v4683 = vld [vmem:[%s4658 + $0x60] sm:$0xf]
    %v4684 = vld [vmem:[%s4658 + $0x64] sm:$0xf]
    %v4685 = vld [vmem:[%s4658 + $0x68] sm:$0xf]
    %v4686 = vld [vmem:[%s4658 + $0x6c] sm:$0xf]
    %v4687 = vld [vmem:[%s4658 + $0x70] sm:$0xf]
    %v4688 = vld [vmem:[%s4658 + $0x74] sm:$0xf]
    %v4689 = vld [vmem:[%s4658 + $0x78] sm:$0xf]
    %v4690 = vld [vmem:[%s4658 + $0x7c] sm:$0xf]
    %v4691 = vld [vmem:[%s4658 + $0x80] sm:$0xf]
    %v4692 = vld [vmem:[%s4658 + $0x84] sm:$0xf]
    %v4693 = vld [vmem:[%s4658 + $0x88] sm:$0xf]
    %v4694 = vld [vmem:[%s4658 + $0x8c] sm:$0xf]
    %v4695 = vld [vmem:[%s4658 + $0x90] sm:$0xf]
    %v4696 = vld [vmem:[%s4658 + $0x94] sm:$0xf]
    %v4697 = vld [vmem:[%s4658 + $0x98] sm:$0xf]
    %v4698 = vld [vmem:[%s4658 + $0x9c] sm:$0xf]
    %v4699 = vld [vmem:[%s4658 + $0xa0] sm:$0xf]
    %v4700 = vld [vmem:[%s4658 + $0xa4] sm:$0xf]
    %v4701 = vld [vmem:[%s4658 + $0xa8] sm:$0xf]
    %v4702 = vld [vmem:[%s4658 + $0xac] sm:$0xf]
    %v4703 = vld [vmem:[%s4658 + $0xb0] sm:$0xf]
    %v4704 = vld [vmem:[%s4658 + $0xb4] sm:$0xf]
    %v4705 = vld [vmem:[%s4658 + $0xb8] sm:$0xf]
    %v4706 = vld [vmem:[%s4658 + $0xbc] sm:$0xf]
    %v4707 = vld [vmem:[%s4658 + $0xc0] sm:$0xf]
    %v4708 = vld [vmem:[%s4658 + $0xc4] sm:$0xf]
    %v4709 = vld [vmem:[%s4658 + $0xc8] sm:$0xf]
    %v4710 = vld [vmem:[%s4658 + $0xcc] sm:$0xf]
    %v4711 = vld [vmem:[%s4658 + $0xd0] sm:$0xf]
    %v4712 = vld [vmem:[%s4658 + $0xd4] sm:$0xf]
    %v4713 = vld [vmem:[%s4658 + $0xd8] sm:$0xf]
    %v4714 = vld [vmem:[%s4658 + $0xdc] sm:$0xf]
    %v4715 = vld [vmem:[%s4658 + $0xe0] sm:$0xf]
    %v4716 = vld [vmem:[%s4658 + $0xe4] sm:$0xf]
    %v4717 = vld [vmem:[%s4658 + $0xe8] sm:$0xf]
    %v4718 = vld [vmem:[%s4658 + $0xec] sm:$0xf]
    %v4719 = vld [vmem:[%s4658 + $0xf0] sm:$0xf]
    %v4720 = vld [vmem:[%s4658 + $0xf4] sm:$0xf]
    %v4721 = vld [vmem:[%s4658 + $0xf8] sm:$0xf]
    %v4722 = vld [vmem:[%s4658 + $0xfc] sm:$0xf]
    %s4723 = scalar_lea.vmem %s12, 2
    %v4724 = vld [vmem:[%s4723] sm:$0x1]
    %v4726 = vlaneseq
    %v4727 = vshrl.u32 %v4726, 7
    %v4728 = vsub.s32 0, %v4727
    %v4729 = vrot.slane %v4724, %v4728
    %v4795 = vunpack.c.l.b16 %v4659
    %v4796 = vunpack.c.l.b16 %v4660
    %v4797 = vunpack.c.l.b16 %v4661
    %v4798 = vunpack.c.l.b16 %v4662
    %v4799 = vunpack.c.l.b16 %v4663
    %v4800 = vunpack.c.l.b16 %v4664
    %v4801 = vunpack.c.l.b16 %v4665
    %v4802 = vunpack.c.l.b16 %v4666
    %v4803 = vunpack.c.l.b16 %v4667
    %v4804 = vunpack.c.l.b16 %v4668
    %v4805 = vunpack.c.l.b16 %v4669
    %v4806 = vunpack.c.l.b16 %v4670
    %v4807 = vunpack.c.l.b16 %v4671
    %v4808 = vunpack.c.l.b16 %v4672
    %v4809 = vunpack.c.l.b16 %v4673
    %v4810 = vunpack.c.l.b16 %v4674
    %v4811 = vunpack.c.l.b16 %v4675
    %v4812 = vunpack.c.l.b16 %v4676
    %v4813 = vunpack.c.l.b16 %v4677
    %v4814 = vunpack.c.l.b16 %v4678
    %v4815 = vunpack.c.l.b16 %v4679
    %v4816 = vunpack.c.l.b16 %v4680
    %v4817 = vunpack.c.l.b16 %v4681
    %v4818 = vunpack.c.l.b16 %v4682
    %v4819 = vunpack.c.l.b16 %v4683
    %v4820 = vunpack.c.l.b16 %v4684
    %v4821 = vunpack.c.l.b16 %v4685
    %v4822 = vunpack.c.l.b16 %v4686
    %v4823 = vunpack.c.l.b16 %v4687
    %v4824 = vunpack.c.l.b16 %v4688
    %v4825 = vunpack.c.l.b16 %v4689
    %v4826 = vunpack.c.l.b16 %v4690
    %v4827 = vunpack.c.l.b16 %v4691
    %v4828 = vunpack.c.l.b16 %v4692
    %v4829 = vunpack.c.l.b16 %v4693
    %v4830 = vunpack.c.l.b16 %v4694
    %v4831 = vunpack.c.l.b16 %v4695
    %v4832 = vunpack.c.l.b16 %v4696
    %v4833 = vunpack.c.l.b16 %v4697
    %v4834 = vunpack.c.l.b16 %v4698
    %v4835 = vunpack.c.l.b16 %v4699
    %v4836 = vunpack.c.l.b16 %v4700
    %v4837 = vunpack.c.l.b16 %v4701
    %v4838 = vunpack.c.l.b16 %v4702
    %v4839 = vunpack.c.l.b16 %v4703
    %v4840 = vunpack.c.l.b16 %v4704
    %v4841 = vunpack.c.l.b16 %v4705
    %v4842 = vunpack.c.l.b16 %v4706
    %v4843 = vunpack.c.l.b16 %v4707
    %v4844 = vunpack.c.l.b16 %v4708
    %v4845 = vunpack.c.l.b16 %v4709
    %v4846 = vunpack.c.l.b16 %v4710
    %v4847 = vunpack.c.l.b16 %v4711
    %v4848 = vunpack.c.l.b16 %v4712
    %v4849 = vunpack.c.l.b16 %v4713
    %v4850 = vunpack.c.l.b16 %v4714
    %v4851 = vunpack.c.l.b16 %v4715
    %v4852 = vunpack.c.l.b16 %v4716
    %v4853 = vunpack.c.l.b16 %v4717
    %v4854 = vunpack.c.l.b16 %v4718
    %v4855 = vunpack.c.l.b16 %v4719
    %v4856 = vunpack.c.l.b16 %v4720
    %v4857 = vunpack.c.l.b16 %v4721
    %v4858 = vunpack.c.l.b16 %v4722
    %v4859 = vpack.c.b16 %v4796, %v4795
    %v4860 = vpack.c.b16 %v4798, %v4797
    %v4861 = vpack.c.b16 %v4800, %v4799
    %v4862 = vpack.c.b16 %v4802, %v4801
    %v4863 = vpack.c.b16 %v4804, %v4803
    %v4864 = vpack.c.b16 %v4806, %v4805
    %v4865 = vpack.c.b16 %v4808, %v4807
    %v4866 = vpack.c.b16 %v4810, %v4809
    %v4867 = vpack.c.b16 %v4812, %v4811
    %v4868 = vpack.c.b16 %v4814, %v4813
    %v4869 = vpack.c.b16 %v4816, %v4815
    %v4870 = vpack.c.b16 %v4818, %v4817
    %v4871 = vpack.c.b16 %v4820, %v4819
    %v4872 = vpack.c.b16 %v4822, %v4821
    %v4873 = vpack.c.b16 %v4824, %v4823
    %v4874 = vpack.c.b16 %v4826, %v4825
    %v4875 = vpack.c.b16 %v4828, %v4827
    %v4876 = vpack.c.b16 %v4830, %v4829
    %v4877 = vpack.c.b16 %v4832, %v4831
    %v4878 = vpack.c.b16 %v4834, %v4833
    %v4879 = vpack.c.b16 %v4836, %v4835
    %v4880 = vpack.c.b16 %v4838, %v4837
    %v4881 = vpack.c.b16 %v4840, %v4839
    %v4882 = vpack.c.b16 %v4842, %v4841
    %v4883 = vpack.c.b16 %v4844, %v4843
    %v4884 = vpack.c.b16 %v4846, %v4845
    %v4885 = vpack.c.b16 %v4848, %v4847
    %v4886 = vpack.c.b16 %v4850, %v4849
    %v4887 = vpack.c.b16 %v4852, %v4851
    %v4888 = vpack.c.b16 %v4854, %v4853
    %v4889 = vpack.c.b16 %v4856, %v4855
    %v4890 = vpack.c.b16 %v4858, %v4857
    %4923 = vmatprep.subr.bf16.mxu0 0
    %4924 = vmatpush1.bf16.msra.mxu0 %v4866
    %4925 = vmatprep.subr.bf16.mxu0 0
    %4926 = vmatpush1.bf16.msra.mxu0 %v4865
    %4927 = vmatprep.subr.bf16.mxu0 0
    %4928 = vmatpush1.bf16.msra.mxu0 %v4864
    %4929 = vmatprep.subr.bf16.mxu0 0
    %4930 = vmatpush1.bf16.msra.mxu0 %v4863
    %4931 = vmatprep.subr.bf16.mxu0 0
    %4932 = vmatpush1.bf16.msra.mxu0 %v4862
    %4933 = vmatprep.subr.bf16.mxu0 0
    %4934 = vmatpush1.bf16.msra.mxu0 %v4861
    %4935 = vmatprep.subr.bf16.mxu0 0
    %4936 = vmatpush1.bf16.msra.mxu0 %v4860
    %4937 = vmatprep.subr.bf16.mxu0 0
    %4938 = vmatpush1.bf16.msra.mxu0 %v4859
    %4939 = vmatprep.subr.bf16.mxu0 0
    %4940 = vmatpush2.bf16.msra.mxu0 %v4874
    %4941 = vmatprep.subr.bf16.mxu0 0
    %4942 = vmatpush2.bf16.msra.mxu0 %v4873
    %4943 = vmatprep.subr.bf16.mxu0 0
    %4944 = vmatpush2.bf16.msra.mxu0 %v4872
    %4945 = vmatprep.subr.bf16.mxu0 0
    %4946 = vmatpush2.bf16.msra.mxu0 %v4871
    %4947 = vmatprep.subr.bf16.mxu0 0
    %4948 = vmatpush2.bf16.msra.mxu0 %v4870
    %4949 = vmatprep.subr.bf16.mxu0 0
    %4950 = vmatpush2.bf16.msra.mxu0 %v4869
    %4951 = vmatprep.subr.bf16.mxu0 0
    %4952 = vmatpush2.bf16.msra.mxu0 %v4868
    %4953 = vmatprep.subr.bf16.mxu0 0
    %4954 = vmatpush2.bf16.msra.mxu0 %v4867
    %4955 = vmatprep.mubr.bf16.mxu0 %v3941
    %4956 = vmatmul.mubr.bf16.gmra.mxu0 %v3940
    %v4957 = vpop.f32.mrf.mxu0
    %v4958 = vadd.f32 %v4729, %v4957
    %v4959 = vpop.f32.mrf.mxu0
    %v4960 = vpop.f32.mrf.mxu0
    %v4961 = vpop.f32.mrf.mxu0
    %4962 = vdwg.mxu0
    %4963 = vmatprep.subr.bf16.mxu0 0
    %4964 = vmatpush1.bf16.msra.mxu0 %v4882
    %4965 = vmatprep.subr.bf16.mxu0 0
    %4966 = vmatpush1.bf16.msra.mxu0 %v4881
    %4967 = vmatprep.subr.bf16.mxu0 0
    %4968 = vmatpush1.bf16.msra.mxu0 %v4880
    %4969 = vmatprep.subr.bf16.mxu0 0
    %4970 = vmatpush1.bf16.msra.mxu0 %v4879
    %4971 = vmatprep.subr.bf16.mxu0 0
    %4972 = vmatpush1.bf16.msra.mxu0 %v4878
    %4973 = vmatprep.subr.bf16.mxu0 0
    %4974 = vmatpush1.bf16.msra.mxu0 %v4877
    %4975 = vmatprep.subr.bf16.mxu0 0
    %4976 = vmatpush1.bf16.msra.mxu0 %v4876
    %4977 = vmatprep.subr.bf16.mxu0 0
    %4978 = vmatpush1.bf16.msra.mxu0 %v4875
    %4979 = vmatprep.subr.bf16.mxu0 0
    %4980 = vmatpush2.bf16.msra.mxu0 %v4890
    %4981 = vmatprep.subr.bf16.mxu0 0
    %4982 = vmatpush2.bf16.msra.mxu0 %v4889
    %4983 = vmatprep.subr.bf16.mxu0 0
    %4984 = vmatpush2.bf16.msra.mxu0 %v4888
    %4985 = vmatprep.subr.bf16.mxu0 0
    %4986 = vmatpush2.bf16.msra.mxu0 %v4887
    %4987 = vmatprep.subr.bf16.mxu0 0
    %4988 = vmatpush2.bf16.msra.mxu0 %v4886
    %4989 = vmatprep.subr.bf16.mxu0 0
    %4990 = vmatpush2.bf16.msra.mxu0 %v4885
    %4991 = vmatprep.subr.bf16.mxu0 0
    %4992 = vmatpush2.bf16.msra.mxu0 %v4884
    %4993 = vmatprep.subr.bf16.mxu0 0
    %4994 = vmatpush2.bf16.msra.mxu0 %v4883
    %4995 = vmatprep.mubr.bf16.mxu0 %v3943
    %4996 = vmatmul.mubr.bf16.gmra.mxu0 %v3942
    %v4997 = vpop.f32.mrf.mxu0
    %v4998 = vadd.f32 %v4958, %v4997
    %v4999 = vpop.f32.mrf.mxu0
    %v5000 = vpop.f32.mrf.mxu0
    %v5001 = vpop.f32.mrf.mxu0
    %5002 = vdwg.mxu0
    %v5003 = vsel %vm4287, %v4998, -inf
    %5004 = vmax.xlane.f32.xlu0 %v5003
    %v5005 = vpop.xlane.xlu0 %5004
    %v5006 = vsub.f32 %v4998, %v5005
    %v5007 = vmul.f32 %v5006, 1.442695
    %v5008 = vpow.pop %v5007
    %v5009 = vsel %vm4287, %v5008, 0.0
    %5010 = vadd.xlane.f32.xlu0 %v5009
    %v5011 = vpop.xlane.xlu0 %5010
    %v5012 = vrcp.pop %v5011
    %v5013 = vmul.f32 %v5008, %v5012
    %s5014 = scalar_lea.vmem [#allocation2], 4
    %5015 = vst.msk [vmem:[%s5014] sm:$0x3] %vm4287, %v5013
    %s5016 = scalar_lea.vmem %s11, 768
    %v5017 = vld [vmem:[%s5016] sm:$0xf]
    %v5018 = vld [vmem:[%s5016 + $0x4] sm:$0xf]
    %v5019 = vld [vmem:[%s5016 + $0x8] sm:$0xf]
    %v5020 = vld [vmem:[%s5016 + $0xc] sm:$0xf]
    %v5021 = vld [vmem:[%s5016 + $0x10] sm:$0xf]
    %v5022 = vld [vmem:[%s5016 + $0x14] sm:$0xf]
    %v5023 = vld [vmem:[%s5016 + $0x18] sm:$0xf]
    %v5024 = vld [vmem:[%s5016 + $0x1c] sm:$0xf]
    %v5025 = vld [vmem:[%s5016 + $0x20] sm:$0xf]
    %v5026 = vld [vmem:[%s5016 + $0x24] sm:$0xf]
    %v5027 = vld [vmem:[%s5016 + $0x28] sm:$0xf]
    %v5028 = vld [vmem:[%s5016 + $0x2c] sm:$0xf]
    %v5029 = vld [vmem:[%s5016 + $0x30] sm:$0xf]
    %v5030 = vld [vmem:[%s5016 + $0x34] sm:$0xf]
    %v5031 = vld [vmem:[%s5016 + $0x38] sm:$0xf]
    %v5032 = vld [vmem:[%s5016 + $0x3c] sm:$0xf]
    %v5033 = vld [vmem:[%s5016 + $0x40] sm:$0xf]
    %v5034 = vld [vmem:[%s5016 + $0x44] sm:$0xf]
    %v5035 = vld [vmem:[%s5016 + $0x48] sm:$0xf]
    %v5036 = vld [vmem:[%s5016 + $0x4c] sm:$0xf]
    %v5037 = vld [vmem:[%s5016 + $0x50] sm:$0xf]
    %v5038 = vld [vmem:[%s5016 + $0x54] sm:$0xf]
    %v5039 = vld [vmem:[%s5016 + $0x58] sm:$0xf]
    %v5040 = vld [vmem:[%s5016 + $0x5c] sm:$0xf]
    %v5041 = vld [vmem:[%s5016 + $0x60] sm:$0xf]
    %v5042 = vld [vmem:[%s5016 + $0x64] sm:$0xf]
    %v5043 = vld [vmem:[%s5016 + $0x68] sm:$0xf]
    %v5044 = vld [vmem:[%s5016 + $0x6c] sm:$0xf]
    %v5045 = vld [vmem:[%s5016 + $0x70] sm:$0xf]
    %v5046 = vld [vmem:[%s5016 + $0x74] sm:$0xf]
    %v5047 = vld [vmem:[%s5016 + $0x78] sm:$0xf]
    %v5048 = vld [vmem:[%s5016 + $0x7c] sm:$0xf]
    %v5049 = vld [vmem:[%s5016 + $0x80] sm:$0xf]
    %v5050 = vld [vmem:[%s5016 + $0x84] sm:$0xf]
    %v5051 = vld [vmem:[%s5016 + $0x88] sm:$0xf]
    %v5052 = vld [vmem:[%s5016 + $0x8c] sm:$0xf]
    %v5053 = vld [vmem:[%s5016 + $0x90] sm:$0xf]
    %v5054 = vld [vmem:[%s5016 + $0x94] sm:$0xf]
    %v5055 = vld [vmem:[%s5016 + $0x98] sm:$0xf]
    %v5056 = vld [vmem:[%s5016 + $0x9c] sm:$0xf]
    %v5057 = vld [vmem:[%s5016 + $0xa0] sm:$0xf]
    %v5058 = vld [vmem:[%s5016 + $0xa4] sm:$0xf]
    %v5059 = vld [vmem:[%s5016 + $0xa8] sm:$0xf]
    %v5060 = vld [vmem:[%s5016 + $0xac] sm:$0xf]
    %v5061 = vld [vmem:[%s5016 + $0xb0] sm:$0xf]
    %v5062 = vld [vmem:[%s5016 + $0xb4] sm:$0xf]
    %v5063 = vld [vmem:[%s5016 + $0xb8] sm:$0xf]
    %v5064 = vld [vmem:[%s5016 + $0xbc] sm:$0xf]
    %v5065 = vld [vmem:[%s5016 + $0xc0] sm:$0xf]
    %v5066 = vld [vmem:[%s5016 + $0xc4] sm:$0xf]
    %v5067 = vld [vmem:[%s5016 + $0xc8] sm:$0xf]
    %v5068 = vld [vmem:[%s5016 + $0xcc] sm:$0xf]
    %v5069 = vld [vmem:[%s5016 + $0xd0] sm:$0xf]
    %v5070 = vld [vmem:[%s5016 + $0xd4] sm:$0xf]
    %v5071 = vld [vmem:[%s5016 + $0xd8] sm:$0xf]
    %v5072 = vld [vmem:[%s5016 + $0xdc] sm:$0xf]
    %v5073 = vld [vmem:[%s5016 + $0xe0] sm:$0xf]
    %v5074 = vld [vmem:[%s5016 + $0xe4] sm:$0xf]
    %v5075 = vld [vmem:[%s5016 + $0xe8] sm:$0xf]
    %v5076 = vld [vmem:[%s5016 + $0xec] sm:$0xf]
    %v5077 = vld [vmem:[%s5016 + $0xf0] sm:$0xf]
    %v5078 = vld [vmem:[%s5016 + $0xf4] sm:$0xf]
    %v5079 = vld [vmem:[%s5016 + $0xf8] sm:$0xf]
    %v5080 = vld [vmem:[%s5016 + $0xfc] sm:$0xf]
    %s5081 = scalar_lea.vmem %s12, 3
    %v5082 = vld [vmem:[%s5081] sm:$0x1]
    %v5084 = vlaneseq
    %v5085 = vshrl.u32 %v5084, 7
    %v5086 = vsub.s32 0, %v5085
    %v5087 = vrot.slane %v5082, %v5086
    %v5153 = vunpack.c.l.b16 %v5017
    %v5154 = vunpack.c.l.b16 %v5018
    %v5155 = vunpack.c.l.b16 %v5019
    %v5156 = vunpack.c.l.b16 %v5020
    %v5157 = vunpack.c.l.b16 %v5021
    %v5158 = vunpack.c.l.b16 %v5022
    %v5159 = vunpack.c.l.b16 %v5023
    %v5160 = vunpack.c.l.b16 %v5024
    %v5161 = vunpack.c.l.b16 %v5025
    %v5162 = vunpack.c.l.b16 %v5026
    %v5163 = vunpack.c.l.b16 %v5027
    %v5164 = vunpack.c.l.b16 %v5028
    %v5165 = vunpack.c.l.b16 %v5029
    %v5166 = vunpack.c.l.b16 %v5030
    %v5167 = vunpack.c.l.b16 %v5031
    %v5168 = vunpack.c.l.b16 %v5032
    %v5169 = vunpack.c.l.b16 %v5033
    %v5170 = vunpack.c.l.b16 %v5034
    %v5171 = vunpack.c.l.b16 %v5035
    %v5172 = vunpack.c.l.b16 %v5036
    %v5173 = vunpack.c.l.b16 %v5037
    %v5174 = vunpack.c.l.b16 %v5038
    %v5175 = vunpack.c.l.b16 %v5039
    %v5176 = vunpack.c.l.b16 %v5040
    %v5177 = vunpack.c.l.b16 %v5041
    %v5178 = vunpack.c.l.b16 %v5042
    %v5179 = vunpack.c.l.b16 %v5043
    %v5180 = vunpack.c.l.b16 %v5044
    %v5181 = vunpack.c.l.b16 %v5045
    %v5182 = vunpack.c.l.b16 %v5046
    %v5183 = vunpack.c.l.b16 %v5047
    %v5184 = vunpack.c.l.b16 %v5048
    %v5185 = vunpack.c.l.b16 %v5049
    %v5186 = vunpack.c.l.b16 %v5050
    %v5187 = vunpack.c.l.b16 %v5051
    %v5188 = vunpack.c.l.b16 %v5052
    %v5189 = vunpack.c.l.b16 %v5053
    %v5190 = vunpack.c.l.b16 %v5054
    %v5191 = vunpack.c.l.b16 %v5055
    %v5192 = vunpack.c.l.b16 %v5056
    %v5193 = vunpack.c.l.b16 %v5057
    %v5194 = vunpack.c.l.b16 %v5058
    %v5195 = vunpack.c.l.b16 %v5059
    %v5196 = vunpack.c.l.b16 %v5060
    %v5197 = vunpack.c.l.b16 %v5061
    %v5198 = vunpack.c.l.b16 %v5062
    %v5199 = vunpack.c.l.b16 %v5063
    %v5200 = vunpack.c.l.b16 %v5064
    %v5201 = vunpack.c.l.b16 %v5065
    %v5202 = vunpack.c.l.b16 %v5066
    %v5203 = vunpack.c.l.b16 %v5067
    %v5204 = vunpack.c.l.b16 %v5068
    %v5205 = vunpack.c.l.b16 %v5069
    %v5206 = vunpack.c.l.b16 %v5070
    %v5207 = vunpack.c.l.b16 %v5071
    %v5208 = vunpack.c.l.b16 %v5072
    %v5209 = vunpack.c.l.b16 %v5073
    %v5210 = vunpack.c.l.b16 %v5074
    %v5211 = vunpack.c.l.b16 %v5075
    %v5212 = vunpack.c.l.b16 %v5076
    %v5213 = vunpack.c.l.b16 %v5077
    %v5214 = vunpack.c.l.b16 %v5078
    %v5215 = vunpack.c.l.b16 %v5079
    %v5216 = vunpack.c.l.b16 %v5080
    %v5217 = vpack.c.b16 %v5154, %v5153
    %v5218 = vpack.c.b16 %v5156, %v5155
    %v5219 = vpack.c.b16 %v5158, %v5157
    %v5220 = vpack.c.b16 %v5160, %v5159
    %v5221 = vpack.c.b16 %v5162, %v5161
    %v5222 = vpack.c.b16 %v5164, %v5163
    %v5223 = vpack.c.b16 %v5166, %v5165
    %v5224 = vpack.c.b16 %v5168, %v5167
    %v5225 = vpack.c.b16 %v5170, %v5169
    %v5226 = vpack.c.b16 %v5172, %v5171
    %v5227 = vpack.c.b16 %v5174, %v5173
    %v5228 = vpack.c.b16 %v5176, %v5175
    %v5229 = vpack.c.b16 %v5178, %v5177
    %v5230 = vpack.c.b16 %v5180, %v5179
    %v5231 = vpack.c.b16 %v5182, %v5181
    %v5232 = vpack.c.b16 %v5184, %v5183
    %v5233 = vpack.c.b16 %v5186, %v5185
    %v5234 = vpack.c.b16 %v5188, %v5187
    %v5235 = vpack.c.b16 %v5190, %v5189
    %v5236 = vpack.c.b16 %v5192, %v5191
    %v5237 = vpack.c.b16 %v5194, %v5193
    %v5238 = vpack.c.b16 %v5196, %v5195
    %v5239 = vpack.c.b16 %v5198, %v5197
    %v5240 = vpack.c.b16 %v5200, %v5199
    %v5241 = vpack.c.b16 %v5202, %v5201
    %v5242 = vpack.c.b16 %v5204, %v5203
    %v5243 = vpack.c.b16 %v5206, %v5205
    %v5244 = vpack.c.b16 %v5208, %v5207
    %v5245 = vpack.c.b16 %v5210, %v5209
    %v5246 = vpack.c.b16 %v5212, %v5211
    %v5247 = vpack.c.b16 %v5214, %v5213
    %v5248 = vpack.c.b16 %v5216, %v5215
    %5281 = vmatprep.subr.bf16.mxu0 0
    %5282 = vmatpush1.bf16.msra.mxu0 %v5224
    %5283 = vmatprep.subr.bf16.mxu0 0
    %5284 = vmatpush1.bf16.msra.mxu0 %v5223
    %5285 = vmatprep.subr.bf16.mxu0 0
    %5286 = vmatpush1.bf16.msra.mxu0 %v5222
    %5287 = vmatprep.subr.bf16.mxu0 0
    %5288 = vmatpush1.bf16.msra.mxu0 %v5221
    %5289 = vmatprep.subr.bf16.mxu0 0
    %5290 = vmatpush1.bf16.msra.mxu0 %v5220
    %5291 = vmatprep.subr.bf16.mxu0 0
    %5292 = vmatpush1.bf16.msra.mxu0 %v5219
    %5293 = vmatprep.subr.bf16.mxu0 0
    %5294 = vmatpush1.bf16.msra.mxu0 %v5218
    %5295 = vmatprep.subr.bf16.mxu0 0
    %5296 = vmatpush1.bf16.msra.mxu0 %v5217
    %5297 = vmatprep.subr.bf16.mxu0 0
    %5298 = vmatpush2.bf16.msra.mxu0 %v5232
    %5299 = vmatprep.subr.bf16.mxu0 0
    %5300 = vmatpush2.bf16.msra.mxu0 %v5231
    %5301 = vmatprep.subr.bf16.mxu0 0
    %5302 = vmatpush2.bf16.msra.mxu0 %v5230
    %5303 = vmatprep.subr.bf16.mxu0 0
    %5304 = vmatpush2.bf16.msra.mxu0 %v5229
    %5305 = vmatprep.subr.bf16.mxu0 0
    %5306 = vmatpush2.bf16.msra.mxu0 %v5228
    %5307 = vmatprep.subr.bf16.mxu0 0
    %5308 = vmatpush2.bf16.msra.mxu0 %v5227
    %5309 = vmatprep.subr.bf16.mxu0 0
    %5310 = vmatpush2.bf16.msra.mxu0 %v5226
    %5311 = vmatprep.subr.bf16.mxu0 0
    %5312 = vmatpush2.bf16.msra.mxu0 %v5225
    %5313 = vmatprep.mubr.bf16.mxu0 %v3941
    %5314 = vmatmul.mubr.bf16.gmra.mxu0 %v3940
    %v5315 = vpop.f32.mrf.mxu0
    %v5316 = vadd.f32 %v5087, %v5315
    %v5317 = vpop.f32.mrf.mxu0
    %v5318 = vpop.f32.mrf.mxu0
    %v5319 = vpop.f32.mrf.mxu0
    %5320 = vdwg.mxu0
    %5321 = vmatprep.subr.bf16.mxu0 0
    %5322 = vmatpush1.bf16.msra.mxu0 %v5240
    %5323 = vmatprep.subr.bf16.mxu0 0
    %5324 = vmatpush1.bf16.msra.mxu0 %v5239
    %5325 = vmatprep.subr.bf16.mxu0 0
    %5326 = vmatpush1.bf16.msra.mxu0 %v5238
    %5327 = vmatprep.subr.bf16.mxu0 0
    %5328 = vmatpush1.bf16.msra.mxu0 %v5237
    %5329 = vmatprep.subr.bf16.mxu0 0
    %5330 = vmatpush1.bf16.msra.mxu0 %v5236
    %5331 = vmatprep.subr.bf16.mxu0 0
    %5332 = vmatpush1.bf16.msra.mxu0 %v5235
    %5333 = vmatprep.subr.bf16.mxu0 0
    %5334 = vmatpush1.bf16.msra.mxu0 %v5234
    %5335 = vmatprep.subr.bf16.mxu0 0
    %5336 = vmatpush1.bf16.msra.mxu0 %v5233
    %5337 = vmatprep.subr.bf16.mxu0 0
    %5338 = vmatpush2.bf16.msra.mxu0 %v5248
    %5339 = vmatprep.subr.bf16.mxu0 0
    %5340 = vmatpush2.bf16.msra.mxu0 %v5247
    %5341 = vmatprep.subr.bf16.mxu0 0
    %5342 = vmatpush2.bf16.msra.mxu0 %v5246
    %5343 = vmatprep.subr.bf16.mxu0 0
    %5344 = vmatpush2.bf16.msra.mxu0 %v5245
    %5345 = vmatprep.subr.bf16.mxu0 0
    %5346 = vmatpush2.bf16.msra.mxu0 %v5244
    %5347 = vmatprep.subr.bf16.mxu0 0
    %5348 = vmatpush2.bf16.msra.mxu0 %v5243
    %5349 = vmatprep.subr.bf16.mxu0 0
    %5350 = vmatpush2.bf16.msra.mxu0 %v5242
    %5351 = vmatprep.subr.bf16.mxu0 0
    %5352 = vmatpush2.bf16.msra.mxu0 %v5241
    %5353 = vmatprep.mubr.bf16.mxu0 %v3943
    %5354 = vmatmul.mubr.bf16.gmra.mxu0 %v3942
    %v5355 = vpop.f32.mrf.mxu0
    %v5356 = vadd.f32 %v5316, %v5355
    %v5357 = vpop.f32.mrf.mxu0
    %v5358 = vpop.f32.mrf.mxu0
    %v5359 = vpop.f32.mrf.mxu0
    %5360 = vdwg.mxu0
    %v5361 = vsel %vm4287, %v5356, -inf
    %5362 = vmax.xlane.f32.xlu0 %v5361
    %v5363 = vpop.xlane.xlu0 %5362
    %v5364 = vsub.f32 %v5356, %v5363
    %v5365 = vmul.f32 %v5364, 1.442695
    %v5366 = vpow.pop %v5365
    %v5367 = vsel %vm4287, %v5366, 0.0
    %5368 = vadd.xlane.f32.xlu0 %v5367
    %v5369 = vpop.xlane.xlu0 %5368
    %v5370 = vrcp.pop %v5369
    %v5371 = vmul.f32 %v5366, %v5370
    %s5372 = scalar_lea.vmem [#allocation2], 6
    %5373 = vst.msk [vmem:[%s5372] sm:$0x3] %vm4287, %v5371
    %s5374 = scalar_lea.vmem %s11, 1024
    %v5375 = vld [vmem:[%s5374] sm:$0xf]
    %v5376 = vld [vmem:[%s5374 + $0x4] sm:$0xf]
    %v5377 = vld [vmem:[%s5374 + $0x8] sm:$0xf]
    %v5378 = vld [vmem:[%s5374 + $0xc] sm:$0xf]
    %v5379 = vld [vmem:[%s5374 + $0x10] sm:$0xf]
    %v5380 = vld [vmem:[%s5374 + $0x14] sm:$0xf]
    %v5381 = vld [vmem:[%s5374 + $0x18] sm:$0xf]
    %v5382 = vld [vmem:[%s5374 + $0x1c] sm:$0xf]
    %v5383 = vld [vmem:[%s5374 + $0x20] sm:$0xf]
    %v5384 = vld [vmem:[%s5374 + $0x24] sm:$0xf]
    %v5385 = vld [vmem:[%s5374 + $0x28] sm:$0xf]
    %v5386 = vld [vmem:[%s5374 + $0x2c] sm:$0xf]
    %v5387 = vld [vmem:[%s5374 + $0x30] sm:$0xf]
    %v5388 = vld [vmem:[%s5374 + $0x34] sm:$0xf]
    %v5389 = vld [vmem:[%s5374 + $0x38] sm:$0xf]
    %v5390 = vld [vmem:[%s5374 + $0x3c] sm:$0xf]
    %v5391 = vld [vmem:[%s5374 + $0x40] sm:$0xf]
    %v5392 = vld [vmem:[%s5374 + $0x44] sm:$0xf]
    %v5393 = vld [vmem:[%s5374 + $0x48] sm:$0xf]
    %v5394 = vld [vmem:[%s5374 + $0x4c] sm:$0xf]
    %v5395 = vld [vmem:[%s5374 + $0x50] sm:$0xf]
    %v5396 = vld [vmem:[%s5374 + $0x54] sm:$0xf]
    %v5397 = vld [vmem:[%s5374 + $0x58] sm:$0xf]
    %v5398 = vld [vmem:[%s5374 + $0x5c] sm:$0xf]
    %v5399 = vld [vmem:[%s5374 + $0x60] sm:$0xf]
    %v5400 = vld [vmem:[%s5374 + $0x64] sm:$0xf]
    %v5401 = vld [vmem:[%s5374 + $0x68] sm:$0xf]
    %v5402 = vld [vmem:[%s5374 + $0x6c] sm:$0xf]
    %v5403 = vld [vmem:[%s5374 + $0x70] sm:$0xf]
    %v5404 = vld [vmem:[%s5374 + $0x74] sm:$0xf]
    %v5405 = vld [vmem:[%s5374 + $0x78] sm:$0xf]
    %v5406 = vld [vmem:[%s5374 + $0x7c] sm:$0xf]
    %v5407 = vld [vmem:[%s5374 + $0x80] sm:$0xf]
    %v5408 = vld [vmem:[%s5374 + $0x84] sm:$0xf]
    %v5409 = vld [vmem:[%s5374 + $0x88] sm:$0xf]
    %v5410 = vld [vmem:[%s5374 + $0x8c] sm:$0xf]
    %v5411 = vld [vmem:[%s5374 + $0x90] sm:$0xf]
    %v5412 = vld [vmem:[%s5374 + $0x94] sm:$0xf]
    %v5413 = vld [vmem:[%s5374 + $0x98] sm:$0xf]
    %v5414 = vld [vmem:[%s5374 + $0x9c] sm:$0xf]
    %v5415 = vld [vmem:[%s5374 + $0xa0] sm:$0xf]
    %v5416 = vld [vmem:[%s5374 + $0xa4] sm:$0xf]
    %v5417 = vld [vmem:[%s5374 + $0xa8] sm:$0xf]
    %v5418 = vld [vmem:[%s5374 + $0xac] sm:$0xf]
    %v5419 = vld [vmem:[%s5374 + $0xb0] sm:$0xf]
    %v5420 = vld [vmem:[%s5374 + $0xb4] sm:$0xf]
    %v5421 = vld [vmem:[%s5374 + $0xb8] sm:$0xf]
    %v5422 = vld [vmem:[%s5374 + $0xbc] sm:$0xf]
    %v5423 = vld [vmem:[%s5374 + $0xc0] sm:$0xf]
    %v5424 = vld [vmem:[%s5374 + $0xc4] sm:$0xf]
    %v5425 = vld [vmem:[%s5374 + $0xc8] sm:$0xf]
    %v5426 = vld [vmem:[%s5374 + $0xcc] sm:$0xf]
    %v5427 = vld [vmem:[%s5374 + $0xd0] sm:$0xf]
    %v5428 = vld [vmem:[%s5374 + $0xd4] sm:$0xf]
    %v5429 = vld [vmem:[%s5374 + $0xd8] sm:$0xf]
    %v5430 = vld [vmem:[%s5374 + $0xdc] sm:$0xf]
    %v5431 = vld [vmem:[%s5374 + $0xe0] sm:$0xf]
    %v5432 = vld [vmem:[%s5374 + $0xe4] sm:$0xf]
    %v5433 = vld [vmem:[%s5374 + $0xe8] sm:$0xf]
    %v5434 = vld [vmem:[%s5374 + $0xec] sm:$0xf]
    %v5435 = vld [vmem:[%s5374 + $0xf0] sm:$0xf]
    %v5436 = vld [vmem:[%s5374 + $0xf4] sm:$0xf]
    %v5437 = vld [vmem:[%s5374 + $0xf8] sm:$0xf]
    %v5438 = vld [vmem:[%s5374 + $0xfc] sm:$0xf]
    %s5439 = scalar_lea.vmem %s12, 4
    %v5440 = vld [vmem:[%s5439] sm:$0x1]
    %v5442 = vlaneseq
    %v5443 = vshrl.u32 %v5442, 7
    %v5444 = vsub.s32 0, %v5443
    %v5445 = vrot.slane %v5440, %v5444
    %v5511 = vunpack.c.l.b16 %v5375
    %v5512 = vunpack.c.l.b16 %v5376
    %v5513 = vunpack.c.l.b16 %v5377
    %v5514 = vunpack.c.l.b16 %v5378
    %v5515 = vunpack.c.l.b16 %v5379
    %v5516 = vunpack.c.l.b16 %v5380
    %v5517 = vunpack.c.l.b16 %v5381
    %v5518 = vunpack.c.l.b16 %v5382
    %v5519 = vunpack.c.l.b16 %v5383
    %v5520 = vunpack.c.l.b16 %v5384
    %v5521 = vunpack.c.l.b16 %v5385
    %v5522 = vunpack.c.l.b16 %v5386
    %v5523 = vunpack.c.l.b16 %v5387
    %v5524 = vunpack.c.l.b16 %v5388
    %v5525 = vunpack.c.l.b16 %v5389
    %v5526 = vunpack.c.l.b16 %v5390
    %v5527 = vunpack.c.l.b16 %v5391
    %v5528 = vunpack.c.l.b16 %v5392
    %v5529 = vunpack.c.l.b16 %v5393
    %v5530 = vunpack.c.l.b16 %v5394
    %v5531 = vunpack.c.l.b16 %v5395
    %v5532 = vunpack.c.l.b16 %v5396
    %v5533 = vunpack.c.l.b16 %v5397
    %v5534 = vunpack.c.l.b16 %v5398
    %v5535 = vunpack.c.l.b16 %v5399
    %v5536 = vunpack.c.l.b16 %v5400
    %v5537 = vunpack.c.l.b16 %v5401
    %v5538 = vunpack.c.l.b16 %v5402
    %v5539 = vunpack.c.l.b16 %v5403
    %v5540 = vunpack.c.l.b16 %v5404
    %v5541 = vunpack.c.l.b16 %v5405
    %v5542 = vunpack.c.l.b16 %v5406
    %v5543 = vunpack.c.l.b16 %v5407
    %v5544 = vunpack.c.l.b16 %v5408
    %v5545 = vunpack.c.l.b16 %v5409
    %v5546 = vunpack.c.l.b16 %v5410
    %v5547 = vunpack.c.l.b16 %v5411
    %v5548 = vunpack.c.l.b16 %v5412
    %v5549 = vunpack.c.l.b16 %v5413
    %v5550 = vunpack.c.l.b16 %v5414
    %v5551 = vunpack.c.l.b16 %v5415
    %v5552 = vunpack.c.l.b16 %v5416
    %v5553 = vunpack.c.l.b16 %v5417
    %v5554 = vunpack.c.l.b16 %v5418
    %v5555 = vunpack.c.l.b16 %v5419
    %v5556 = vunpack.c.l.b16 %v5420
    %v5557 = vunpack.c.l.b16 %v5421
    %v5558 = vunpack.c.l.b16 %v5422
    %v5559 = vunpack.c.l.b16 %v5423
    %v5560 = vunpack.c.l.b16 %v5424
    %v5561 = vunpack.c.l.b16 %v5425
    %v5562 = vunpack.c.l.b16 %v5426
    %v5563 = vunpack.c.l.b16 %v5427
    %v5564 = vunpack.c.l.b16 %v5428
    %v5565 = vunpack.c.l.b16 %v5429
    %v5566 = vunpack.c.l.b16 %v5430
    %v5567 = vunpack.c.l.b16 %v5431
    %v5568 = vunpack.c.l.b16 %v5432
    %v5569 = vunpack.c.l.b16 %v5433
    %v5570 = vunpack.c.l.b16 %v5434
    %v5571 = vunpack.c.l.b16 %v5435
    %v5572 = vunpack.c.l.b16 %v5436
    %v5573 = vunpack.c.l.b16 %v5437
    %v5574 = vunpack.c.l.b16 %v5438
    %v5575 = vpack.c.b16 %v5512, %v5511
    %v5576 = vpack.c.b16 %v5514, %v5513
    %v5577 = vpack.c.b16 %v5516, %v5515
    %v5578 = vpack.c.b16 %v5518, %v5517
    %v5579 = vpack.c.b16 %v5520, %v5519
    %v5580 = vpack.c.b16 %v5522, %v5521
    %v5581 = vpack.c.b16 %v5524, %v5523
    %v5582 = vpack.c.b16 %v5526, %v5525
    %v5583 = vpack.c.b16 %v5528, %v5527
    %v5584 = vpack.c.b16 %v5530, %v5529
    %v5585 = vpack.c.b16 %v5532, %v5531
    %v5586 = vpack.c.b16 %v5534, %v5533
    %v5587 = vpack.c.b16 %v5536, %v5535
    %v5588 = vpack.c.b16 %v5538, %v5537
    %v5589 = vpack.c.b16 %v5540, %v5539
    %v5590 = vpack.c.b16 %v5542, %v5541
    %v5591 = vpack.c.b16 %v5544, %v5543
    %v5592 = vpack.c.b16 %v5546, %v5545
    %v5593 = vpack.c.b16 %v5548, %v5547
    %v5594 = vpack.c.b16 %v5550, %v5549
    %v5595 = vpack.c.b16 %v5552, %v5551
    %v5596 = vpack.c.b16 %v5554, %v5553
    %v5597 = vpack.c.b16 %v5556, %v5555
    %v5598 = vpack.c.b16 %v5558, %v5557
    %v5599 = vpack.c.b16 %v5560, %v5559
    %v5600 = vpack.c.b16 %v5562, %v5561
    %v5601 = vpack.c.b16 %v5564, %v5563
    %v5602 = vpack.c.b16 %v5566, %v5565
    %v5603 = vpack.c.b16 %v5568, %v5567
    %v5604 = vpack.c.b16 %v5570, %v5569
    %v5605 = vpack.c.b16 %v5572, %v5571
    %v5606 = vpack.c.b16 %v5574, %v5573
    %5639 = vmatprep.subr.bf16.mxu0 0
    %5640 = vmatpush1.bf16.msra.mxu0 %v5582
    %5641 = vmatprep.subr.bf16.mxu0 0
    %5642 = vmatpush1.bf16.msra.mxu0 %v5581
    %5643 = vmatprep.subr.bf16.mxu0 0
    %5644 = vmatpush1.bf16.msra.mxu0 %v5580
    %5645 = vmatprep.subr.bf16.mxu0 0
    %5646 = vmatpush1.bf16.msra.mxu0 %v5579
    %5647 = vmatprep.subr.bf16.mxu0 0
    %5648 = vmatpush1.bf16.msra.mxu0 %v5578
    %5649 = vmatprep.subr.bf16.mxu0 0
    %5650 = vmatpush1.bf16.msra.mxu0 %v5577
    %5651 = vmatprep.subr.bf16.mxu0 0
    %5652 = vmatpush1.bf16.msra.mxu0 %v5576
    %5653 = vmatprep.subr.bf16.mxu0 0
    %5654 = vmatpush1.bf16.msra.mxu0 %v5575
    %5655 = vmatprep.subr.bf16.mxu0 0
    %5656 = vmatpush2.bf16.msra.mxu0 %v5590
    %5657 = vmatprep.subr.bf16.mxu0 0
    %5658 = vmatpush2.bf16.msra.mxu0 %v5589
    %5659 = vmatprep.subr.bf16.mxu0 0
    %5660 = vmatpush2.bf16.msra.mxu0 %v5588
    %5661 = vmatprep.subr.bf16.mxu0 0
    %5662 = vmatpush2.bf16.msra.mxu0 %v5587
    %5663 = vmatprep.subr.bf16.mxu0 0
    %5664 = vmatpush2.bf16.msra.mxu0 %v5586
    %5665 = vmatprep.subr.bf16.mxu0 0
    %5666 = vmatpush2.bf16.msra.mxu0 %v5585
    %5667 = vmatprep.subr.bf16.mxu0 0
    %5668 = vmatpush2.bf16.msra.mxu0 %v5584
    %5669 = vmatprep.subr.bf16.mxu0 0
    %5670 = vmatpush2.bf16.msra.mxu0 %v5583
    %5671 = vmatprep.mubr.bf16.mxu0 %v3941
    %5672 = vmatmul.mubr.bf16.gmra.mxu0 %v3940
    %v5673 = vpop.f32.mrf.mxu0
    %v5674 = vadd.f32 %v5445, %v5673
    %v5675 = vpop.f32.mrf.mxu0
    %v5676 = vpop.f32.mrf.mxu0
    %v5677 = vpop.f32.mrf.mxu0
    %5678 = vdwg.mxu0
    %5679 = vmatprep.subr.bf16.mxu0 0
    %5680 = vmatpush1.bf16.msra.mxu0 %v5598
    %5681 = vmatprep.subr.bf16.mxu0 0
    %5682 = vmatpush1.bf16.msra.mxu0 %v5597
    %5683 = vmatprep.subr.bf16.mxu0 0
    %5684 = vmatpush1.bf16.msra.mxu0 %v5596
    %5685 = vmatprep.subr.bf16.mxu0 0
    %5686 = vmatpush1.bf16.msra.mxu0 %v5595
    %5687 = vmatprep.subr.bf16.mxu0 0
    %5688 = vmatpush1.bf16.msra.mxu0 %v5594
    %5689 = vmatprep.subr.bf16.mxu0 0
    %5690 = vmatpush1.bf16.msra.mxu0 %v5593
    %5691 = vmatprep.subr.bf16.mxu0 0
    %5692 = vmatpush1.bf16.msra.mxu0 %v5592
    %5693 = vmatprep.subr.bf16.mxu0 0
    %5694 = vmatpush1.bf16.msra.mxu0 %v5591
    %5695 = vmatprep.subr.bf16.mxu0 0
    %5696 = vmatpush2.bf16.msra.mxu0 %v5606
    %5697 = vmatprep.subr.bf16.mxu0 0
    %5698 = vmatpush2.bf16.msra.mxu0 %v5605
    %5699 = vmatprep.subr.bf16.mxu0 0
    %5700 = vmatpush2.bf16.msra.mxu0 %v5604
    %5701 = vmatprep.subr.bf16.mxu0 0
    %5702 = vmatpush2.bf16.msra.mxu0 %v5603
    %5703 = vmatprep.subr.bf16.mxu0 0
    %5704 = vmatpush2.bf16.msra.mxu0 %v5602
    %5705 = vmatprep.subr.bf16.mxu0 0
    %5706 = vmatpush2.bf16.msra.mxu0 %v5601
    %5707 = vmatprep.subr.bf16.mxu0 0
    %5708 = vmatpush2.bf16.msra.mxu0 %v5600
    %5709 = vmatprep.subr.bf16.mxu0 0
    %5710 = vmatpush2.bf16.msra.mxu0 %v5599
    %5711 = vmatprep.mubr.bf16.mxu0 %v3943
    %5712 = vmatmul.mubr.bf16.gmra.mxu0 %v3942
    %v5713 = vpop.f32.mrf.mxu0
    %v5714 = vadd.f32 %v5674, %v5713
    %v5715 = vpop.f32.mrf.mxu0
    %v5716 = vpop.f32.mrf.mxu0
    %v5717 = vpop.f32.mrf.mxu0
    %5718 = vdwg.mxu0
    %v5719 = vsel %vm4287, %v5714, -inf
    %5720 = vmax.xlane.f32.xlu0 %v5719
    %v5721 = vpop.xlane.xlu0 %5720
    %v5722 = vsub.f32 %v5714, %v5721
    %v5723 = vmul.f32 %v5722, 1.442695
    %v5724 = vpow.pop %v5723
    %v5725 = vsel %vm4287, %v5724, 0.0
    %5726 = vadd.xlane.f32.xlu0 %v5725
    %v5727 = vpop.xlane.xlu0 %5726
    %v5728 = vrcp.pop %v5727
    %v5729 = vmul.f32 %v5724, %v5728
    %s5730 = scalar_lea.vmem [#allocation2], 8
    %5731 = vst.msk [vmem:[%s5730] sm:$0x3] %vm4287, %v5729
    %s5732 = scalar_lea.vmem %s11, 1280
    %v5733 = vld [vmem:[%s5732] sm:$0xf]
    %v5734 = vld [vmem:[%s5732 + $0x4] sm:$0xf]
    %v5735 = vld [vmem:[%s5732 + $0x8] sm:$0xf]
    %v5736 = vld [vmem:[%s5732 + $0xc] sm:$0xf]
    %v5737 = vld [vmem:[%s5732 + $0x10] sm:$0xf]
    %v5738 = vld [vmem:[%s5732 + $0x14] sm:$0xf]
    %v5739 = vld [vmem:[%s5732 + $0x18] sm:$0xf]
    %v5740 = vld [vmem:[%s5732 + $0x1c] sm:$0xf]
    %v5741 = vld [vmem:[%s5732 + $0x20] sm:$0xf]
    %v5742 = vld [vmem:[%s5732 + $0x24] sm:$0xf]
    %v5743 = vld [vmem:[%s5732 + $0x28] sm:$0xf]
    %v5744 = vld [vmem:[%s5732 + $0x2c] sm:$0xf]
    %v5745 = vld [vmem:[%s5732 + $0x30] sm:$0xf]
    %v5746 = vld [vmem:[%s5732 + $0x34] sm:$0xf]
    %v5747 = vld [vmem:[%s5732 + $0x38] sm:$0xf]
    %v5748 = vld [vmem:[%s5732 + $0x3c] sm:$0xf]
    %v5749 = vld [vmem:[%s5732 + $0x40] sm:$0xf]
    %v5750 = vld [vmem:[%s5732 + $0x44] sm:$0xf]
    %v5751 = vld [vmem:[%s5732 + $0x48] sm:$0xf]
    %v5752 = vld [vmem:[%s5732 + $0x4c] sm:$0xf]
    %v5753 = vld [vmem:[%s5732 + $0x50] sm:$0xf]
    %v5754 = vld [vmem:[%s5732 + $0x54] sm:$0xf]
    %v5755 = vld [vmem:[%s5732 + $0x58] sm:$0xf]
    %v5756 = vld [vmem:[%s5732 + $0x5c] sm:$0xf]
    %v5757 = vld [vmem:[%s5732 + $0x60] sm:$0xf]
    %v5758 = vld [vmem:[%s5732 + $0x64] sm:$0xf]
    %v5759 = vld [vmem:[%s5732 + $0x68] sm:$0xf]
    %v5760 = vld [vmem:[%s5732 + $0x6c] sm:$0xf]
    %v5761 = vld [vmem:[%s5732 + $0x70] sm:$0xf]
    %v5762 = vld [vmem:[%s5732 + $0x74] sm:$0xf]
    %v5763 = vld [vmem:[%s5732 + $0x78] sm:$0xf]
    %v5764 = vld [vmem:[%s5732 + $0x7c] sm:$0xf]
    %v5765 = vld [vmem:[%s5732 + $0x80] sm:$0xf]
    %v5766 = vld [vmem:[%s5732 + $0x84] sm:$0xf]
    %v5767 = vld [vmem:[%s5732 + $0x88] sm:$0xf]
    %v5768 = vld [vmem:[%s5732 + $0x8c] sm:$0xf]
    %v5769 = vld [vmem:[%s5732 + $0x90] sm:$0xf]
    %v5770 = vld [vmem:[%s5732 + $0x94] sm:$0xf]
    %v5771 = vld [vmem:[%s5732 + $0x98] sm:$0xf]
    %v5772 = vld [vmem:[%s5732 + $0x9c] sm:$0xf]
    %v5773 = vld [vmem:[%s5732 + $0xa0] sm:$0xf]
    %v5774 = vld [vmem:[%s5732 + $0xa4] sm:$0xf]
    %v5775 = vld [vmem:[%s5732 + $0xa8] sm:$0xf]
    %v5776 = vld [vmem:[%s5732 + $0xac] sm:$0xf]
    %v5777 = vld [vmem:[%s5732 + $0xb0] sm:$0xf]
    %v5778 = vld [vmem:[%s5732 + $0xb4] sm:$0xf]
    %v5779 = vld [vmem:[%s5732 + $0xb8] sm:$0xf]
    %v5780 = vld [vmem:[%s5732 + $0xbc] sm:$0xf]
    %v5781 = vld [vmem:[%s5732 + $0xc0] sm:$0xf]
    %v5782 = vld [vmem:[%s5732 + $0xc4] sm:$0xf]
    %v5783 = vld [vmem:[%s5732 + $0xc8] sm:$0xf]
    %v5784 = vld [vmem:[%s5732 + $0xcc] sm:$0xf]
    %v5785 = vld [vmem:[%s5732 + $0xd0] sm:$0xf]
    %v5786 = vld [vmem:[%s5732 + $0xd4] sm:$0xf]
    %v5787 = vld [vmem:[%s5732 + $0xd8] sm:$0xf]
    %v5788 = vld [vmem:[%s5732 + $0xdc] sm:$0xf]
    %v5789 = vld [vmem:[%s5732 + $0xe0] sm:$0xf]
    %v5790 = vld [vmem:[%s5732 + $0xe4] sm:$0xf]
    %v5791 = vld [vmem:[%s5732 + $0xe8] sm:$0xf]
    %v5792 = vld [vmem:[%s5732 + $0xec] sm:$0xf]
    %v5793 = vld [vmem:[%s5732 + $0xf0] sm:$0xf]
    %v5794 = vld [vmem:[%s5732 + $0xf4] sm:$0xf]
    %v5795 = vld [vmem:[%s5732 + $0xf8] sm:$0xf]
    %v5796 = vld [vmem:[%s5732 + $0xfc] sm:$0xf]
    %s5797 = scalar_lea.vmem %s12, 5
    %v5798 = vld [vmem:[%s5797] sm:$0x1]
    %v5800 = vlaneseq
    %v5801 = vshrl.u32 %v5800, 7
    %v5802 = vsub.s32 0, %v5801
    %v5803 = vrot.slane %v5798, %v5802
    %v5869 = vunpack.c.l.b16 %v5733
    %v5870 = vunpack.c.l.b16 %v5734
    %v5871 = vunpack.c.l.b16 %v5735
    %v5872 = vunpack.c.l.b16 %v5736
    %v5873 = vunpack.c.l.b16 %v5737
    %v5874 = vunpack.c.l.b16 %v5738
    %v5875 = vunpack.c.l.b16 %v5739
    %v5876 = vunpack.c.l.b16 %v5740
    %v5877 = vunpack.c.l.b16 %v5741
    %v5878 = vunpack.c.l.b16 %v5742
    %v5879 = vunpack.c.l.b16 %v5743
    %v5880 = vunpack.c.l.b16 %v5744
    %v5881 = vunpack.c.l.b16 %v5745
    %v5882 = vunpack.c.l.b16 %v5746
    %v5883 = vunpack.c.l.b16 %v5747
    %v5884 = vunpack.c.l.b16 %v5748
    %v5885 = vunpack.c.l.b16 %v5749
    %v5886 = vunpack.c.l.b16 %v5750
    %v5887 = vunpack.c.l.b16 %v5751
    %v5888 = vunpack.c.l.b16 %v5752
    %v5889 = vunpack.c.l.b16 %v5753
    %v5890 = vunpack.c.l.b16 %v5754
    %v5891 = vunpack.c.l.b16 %v5755
    %v5892 = vunpack.c.l.b16 %v5756
    %v5893 = vunpack.c.l.b16 %v5757
    %v5894 = vunpack.c.l.b16 %v5758
    %v5895 = vunpack.c.l.b16 %v5759
    %v5896 = vunpack.c.l.b16 %v5760
    %v5897 = vunpack.c.l.b16 %v5761
    %v5898 = vunpack.c.l.b16 %v5762
    %v5899 = vunpack.c.l.b16 %v5763
    %v5900 = vunpack.c.l.b16 %v5764
    %v5901 = vunpack.c.l.b16 %v5765
    %v5902 = vunpack.c.l.b16 %v5766
    %v5903 = vunpack.c.l.b16 %v5767
    %v5904 = vunpack.c.l.b16 %v5768
    %v5905 = vunpack.c.l.b16 %v5769
    %v5906 = vunpack.c.l.b16 %v5770
    %v5907 = vunpack.c.l.b16 %v5771
    %v5908 = vunpack.c.l.b16 %v5772
    %v5909 = vunpack.c.l.b16 %v5773
    %v5910 = vunpack.c.l.b16 %v5774
    %v5911 = vunpack.c.l.b16 %v5775
    %v5912 = vunpack.c.l.b16 %v5776
    %v5913 = vunpack.c.l.b16 %v5777
    %v5914 = vunpack.c.l.b16 %v5778
    %v5915 = vunpack.c.l.b16 %v5779
    %v5916 = vunpack.c.l.b16 %v5780
    %v5917 = vunpack.c.l.b16 %v5781
    %v5918 = vunpack.c.l.b16 %v5782
    %v5919 = vunpack.c.l.b16 %v5783
    %v5920 = vunpack.c.l.b16 %v5784
    %v5921 = vunpack.c.l.b16 %v5785
    %v5922 = vunpack.c.l.b16 %v5786
    %v5923 = vunpack.c.l.b16 %v5787
    %v5924 = vunpack.c.l.b16 %v5788
    %v5925 = vunpack.c.l.b16 %v5789
    %v5926 = vunpack.c.l.b16 %v5790
    %v5927 = vunpack.c.l.b16 %v5791
    %v5928 = vunpack.c.l.b16 %v5792
    %v5929 = vunpack.c.l.b16 %v5793
    %v5930 = vunpack.c.l.b16 %v5794
    %v5931 = vunpack.c.l.b16 %v5795
    %v5932 = vunpack.c.l.b16 %v5796
    %v5933 = vpack.c.b16 %v5870, %v5869
    %v5934 = vpack.c.b16 %v5872, %v5871
    %v5935 = vpack.c.b16 %v5874, %v5873
    %v5936 = vpack.c.b16 %v5876, %v5875
    %v5937 = vpack.c.b16 %v5878, %v5877
    %v5938 = vpack.c.b16 %v5880, %v5879
    %v5939 = vpack.c.b16 %v5882, %v5881
    %v5940 = vpack.c.b16 %v5884, %v5883
    %v5941 = vpack.c.b16 %v5886, %v5885
    %v5942 = vpack.c.b16 %v5888, %v5887
    %v5943 = vpack.c.b16 %v5890, %v5889
    %v5944 = vpack.c.b16 %v5892, %v5891
    %v5945 = vpack.c.b16 %v5894, %v5893
    %v5946 = vpack.c.b16 %v5896, %v5895
    %v5947 = vpack.c.b16 %v5898, %v5897
    %v5948 = vpack.c.b16 %v5900, %v5899
    %v5949 = vpack.c.b16 %v5902, %v5901
    %v5950 = vpack.c.b16 %v5904, %v5903
    %v5951 = vpack.c.b16 %v5906, %v5905
    %v5952 = vpack.c.b16 %v5908, %v5907
    %v5953 = vpack.c.b16 %v5910, %v5909
    %v5954 = vpack.c.b16 %v5912, %v5911
    %v5955 = vpack.c.b16 %v5914, %v5913
    %v5956 = vpack.c.b16 %v5916, %v5915
    %v5957 = vpack.c.b16 %v5918, %v5917
    %v5958 = vpack.c.b16 %v5920, %v5919
    %v5959 = vpack.c.b16 %v5922, %v5921
    %v5960 = vpack.c.b16 %v5924, %v5923
    %v5961 = vpack.c.b16 %v5926, %v5925
    %v5962 = vpack.c.b16 %v5928, %v5927
    %v5963 = vpack.c.b16 %v5930, %v5929
    %v5964 = vpack.c.b16 %v5932, %v5931
    %5997 = vmatprep.subr.bf16.mxu0 0
    %5998 = vmatpush1.bf16.msra.mxu0 %v5940
    %5999 = vmatprep.subr.bf16.mxu0 0
    %6000 = vmatpush1.bf16.msra.mxu0 %v5939
    %6001 = vmatprep.subr.bf16.mxu0 0
    %6002 = vmatpush1.bf16.msra.mxu0 %v5938
    %6003 = vmatprep.subr.bf16.mxu0 0
    %6004 = vmatpush1.bf16.msra.mxu0 %v5937
    %6005 = vmatprep.subr.bf16.mxu0 0
    %6006 = vmatpush1.bf16.msra.mxu0 %v5936
    %6007 = vmatprep.subr.bf16.mxu0 0
    %6008 = vmatpush1.bf16.msra.mxu0 %v5935
    %6009 = vmatprep.subr.bf16.mxu0 0
    %6010 = vmatpush1.bf16.msra.mxu0 %v5934
    %6011 = vmatprep.subr.bf16.mxu0 0
    %6012 = vmatpush1.bf16.msra.mxu0 %v5933
    %6013 = vmatprep.subr.bf16.mxu0 0
    %6014 = vmatpush2.bf16.msra.mxu0 %v5948
    %6015 = vmatprep.subr.bf16.mxu0 0
    %6016 = vmatpush2.bf16.msra.mxu0 %v5947
    %6017 = vmatprep.subr.bf16.mxu0 0
    %6018 = vmatpush2.bf16.msra.mxu0 %v5946
    %6019 = vmatprep.subr.bf16.mxu0 0
    %6020 = vmatpush2.bf16.msra.mxu0 %v5945
    %6021 = vmatprep.subr.bf16.mxu0 0
    %6022 = vmatpush2.bf16.msra.mxu0 %v5944
    %6023 = vmatprep.subr.bf16.mxu0 0
    %6024 = vmatpush2.bf16.msra.mxu0 %v5943
    %6025 = vmatprep.subr.bf16.mxu0 0
    %6026 = vmatpush2.bf16.msra.mxu0 %v5942
    %6027 = vmatprep.subr.bf16.mxu0 0
    %6028 = vmatpush2.bf16.msra.mxu0 %v5941
    %6029 = vmatprep.mubr.bf16.mxu0 %v3941
    %6030 = vmatmul.mubr.bf16.gmra.mxu0 %v3940
    %v6031 = vpop.f32.mrf.mxu0
    %v6032 = vadd.f32 %v5803, %v6031
    %v6033 = vpop.f32.mrf.mxu0
    %v6034 = vpop.f32.mrf.mxu0
    %v6035 = vpop.f32.mrf.mxu0
    %6036 = vdwg.mxu0
    %6037 = vmatprep.subr.bf16.mxu0 0
    %6038 = vmatpush1.bf16.msra.mxu0 %v5956
    %6039 = vmatprep.subr.bf16.mxu0 0
    %6040 = vmatpush1.bf16.msra.mxu0 %v5955
    %6041 = vmatprep.subr.bf16.mxu0 0
    %6042 = vmatpush1.bf16.msra.mxu0 %v5954
    %6043 = vmatprep.subr.bf16.mxu0 0
    %6044 = vmatpush1.bf16.msra.mxu0 %v5953
    %6045 = vmatprep.subr.bf16.mxu0 0
    %6046 = vmatpush1.bf16.msra.mxu0 %v5952
    %6047 = vmatprep.subr.bf16.mxu0 0
    %6048 = vmatpush1.bf16.msra.mxu0 %v5951
    %6049 = vmatprep.subr.bf16.mxu0 0
    %6050 = vmatpush1.bf16.msra.mxu0 %v5950
    %6051 = vmatprep.subr.bf16.mxu0 0
    %6052 = vmatpush1.bf16.msra.mxu0 %v5949
    %6053 = vmatprep.subr.bf16.mxu0 0
    %6054 = vmatpush2.bf16.msra.mxu0 %v5964
    %6055 = vmatprep.subr.bf16.mxu0 0
    %6056 = vmatpush2.bf16.msra.mxu0 %v5963
    %6057 = vmatprep.subr.bf16.mxu0 0
    %6058 = vmatpush2.bf16.msra.mxu0 %v5962
    %6059 = vmatprep.subr.bf16.mxu0 0
    %6060 = vmatpush2.bf16.msra.mxu0 %v5961
    %6061 = vmatprep.subr.bf16.mxu0 0
    %6062 = vmatpush2.bf16.msra.mxu0 %v5960
    %6063 = vmatprep.subr.bf16.mxu0 0
    %6064 = vmatpush2.bf16.msra.mxu0 %v5959
    %6065 = vmatprep.subr.bf16.mxu0 0
    %6066 = vmatpush2.bf16.msra.mxu0 %v5958
    %6067 = vmatprep.subr.bf16.mxu0 0
    %6068 = vmatpush2.bf16.msra.mxu0 %v5957
    %6069 = vmatprep.mubr.bf16.mxu0 %v3943
    %6070 = vmatmul.mubr.bf16.gmra.mxu0 %v3942
    %v6071 = vpop.f32.mrf.mxu0
    %v6072 = vadd.f32 %v6032, %v6071
    %v6073 = vpop.f32.mrf.mxu0
    %v6074 = vpop.f32.mrf.mxu0
    %v6075 = vpop.f32.mrf.mxu0
    %6076 = vdwg.mxu0
    %v6077 = vsel %vm4287, %v6072, -inf
    %6078 = vmax.xlane.f32.xlu0 %v6077
    %v6079 = vpop.xlane.xlu0 %6078
    %v6080 = vsub.f32 %v6072, %v6079
    %v6081 = vmul.f32 %v6080, 1.442695
    %v6082 = vpow.pop %v6081
    %v6083 = vsel %vm4287, %v6082, 0.0
    %6084 = vadd.xlane.f32.xlu0 %v6083
    %v6085 = vpop.xlane.xlu0 %6084
    %v6086 = vrcp.pop %v6085
    %v6087 = vmul.f32 %v6082, %v6086
    %s6088 = scalar_lea.vmem [#allocation2], 10
    %6089 = vst.msk [vmem:[%s6088] sm:$0x3] %vm4287, %v6087
    // Predicated region
    $region54: #{categorical_dqn_forward.1} parent=1 // pred_check
      _
    $region55: #{categorical_dqn_forward.1} parent=1 // pred_check_branch
      %6091 = sbr.rel (0) target = $region57
    $region56: #{categorical_dqn_forward.1} parent=1 // pred_region
      %s6093 = ssub.s32 192, 192
      %6094 = vsyncadd [#allocation3], %s6093
      %s6095 = sshll.u32 [#allocation2], 4
      %s6096 = int_to_ptr.vmem [resolvable:$true] %s6095
      %6101 = dma.vmem_to_hbm [thread:$0]  %s6096, 192, %s13, [#allocation3], 32, 32, 2
    $region57: #{categorical_dqn_forward.1} parent=1 // pred_fallthru
      _
    // Predicated region
    $region58: #{categorical_dqn_forward.1} parent=1 // pred_check
      _
    $region59: #{categorical_dqn_forward.1} parent=1 // pred_check_branch
      %6103 = sbr.rel (0) target = $region61
    $region60: #{categorical_dqn_forward.1} parent=1 // pred_region
      %6104 = dma.done [#allocation3], 192
    $region61: #{categorical_dqn_forward.1} parent=1 // pred_fallthru
      _
    %6105 = vsyncpa [#allocation3], 1

</llo_original>
